<compile_context>
chip_gen: v7x
topology: tpu7x:2x2x1
jax: 0.10.0
libtpu: 0.0.40
codegen_flags: <defaults>
</compile_context>

<pallas_src>
import numpy as np
import jax
import jax.numpy as jnp
from jax.experimental import pallas as pl
from jax.experimental.pallas import tpu as pltpu

DIM = 3               # point dimension
NUM_POINTS = 128      # num_points (== N of the example input)
FEAT = 1024           # width after b3 (maxpool feature size)
_BN_EPS = 1e-5

# (in, out) sizes of the six BasicBlocks: b1, b2, b3, bfc1, bfc2, bfc3
_SIZES = [(DIM, 64), (64, 128), (128, FEAT),
          (FEAT, 512), (512, 256), (256, DIM * DIM)]


# ----------------------------------------------------------------------------
# Block helpers (values in, values out; weights are bf16 refs, biases f32 refs)
# ----------------------------------------------------------------------------
def _block_unfused(h_bf, w1, b1, w2, b2f, wsc):
    """relu( l2(relu(l1(x))) + shortcut(x) ); shortcut bias folded into b2f.

    Used for blocks whose output width is not a multiple of 128 (b1, bfc3),
    where lane-concatenation / slicing would force XLU relayouts."""
    y = jnp.maximum(
        jnp.dot(h_bf, w1[...], preferred_element_type=jnp.float32) + b1[...], 0.0)
    y2 = jnp.dot(y.astype(jnp.bfloat16), w2[...],
                 preferred_element_type=jnp.float32) + b2f[...]
    res = jnp.dot(h_bf, wsc[...], preferred_element_type=jnp.float32)
    return jnp.maximum(y2 + res, 0.0)


def _block_fused(h_bf, w1, b1, w2s, b2s):
    """Same math with the shortcut fused into the SECOND matmul:
       relu( [relu(l1(x)) | x] @ [W2; Wsc] + (b2 + bsc) ).
    The concat boundary (= out width) is a multiple of 128 for b2/b3/bfc1/bfc2,
    so the concat is layout-free."""
    y = jnp.maximum(
        jnp.dot(h_bf, w1[...], preferred_element_type=jnp.float32) + b1[...], 0.0)
    cat = jnp.concatenate([y.astype(jnp.bfloat16), h_bf], axis=-1)
    return jnp.maximum(
        jnp.dot(cat, w2s[...], preferred_element_type=jnp.float32) + b2s[...], 0.0)


# ----------------------------------------------------------------------------
# Kernel 1: b1/b2/b3 (pointwise conv blocks) + MaxPool, per batch tile.
# ----------------------------------------------------------------------------
def _conv_pool_kernel(x_ref,
                      w1a, b1a, w2a, b2a, wsca,     # b1  (3 -> 64,   unfused)
                      w1b, b1b, w2sb, b2sb,         # b2  (64 -> 128, l2-fused)
                      w1c, b1c, w2sc, b2sc,         # b3  (128 -> 1024, l2-fused)
                      g_ref):
    h = x_ref[0].astype(jnp.bfloat16)                       # (bt*N, DIM)
    h = _block_unfused(h, w1a, b1a, w2a, b2a, wsca)         # (bt*N, 64)   f32
    h = _block_fused(h.astype(jnp.bfloat16), w1b, b1b, w2sb, b2sb)   # (bt*N, 128)
    h = _block_fused(h.astype(jnp.bfloat16), w1c, b1c, w2sc, b2sc)   # (bt*N, 1024)

    # MaxPool1d(num_points): bf16 reshape + reduce over the point axis
    # (layout-free: lane dim stays intact, sublane split is a multiple of 8).
    hb = h.astype(jnp.bfloat16)
    bt = hb.shape[0] // NUM_POINTS
    g_ref[0] = jnp.max(hb.reshape(bt, NUM_POINTS, FEAT), axis=1)     # (bt, FEAT)


# ----------------------------------------------------------------------------
# Kernel 2: bfc1/bfc2/bfc3 + identity, once over the whole (padded) batch.
# ----------------------------------------------------------------------------
def _fc_kernel(g_ref,
               w1d, b1d, w2sd, b2sd,                # bfc1 (1024 -> 512, l2-fused)
               w1e, b1e, w2se, b2se,                # bfc2 (512 -> 256,  l2-fused)
               w1f, b1f, w2f, b2f, wscf,            # bfc3 (256 -> 9,    unfused)
               iden_ref, o_ref):
    g = g_ref[...]                                               # (M, 1024) bf16
    h = _block_fused(g, w1d, b1d, w2sd, b2sd)                    # (M, 512)
    h = _block_fused(h.astype(jnp.bfloat16), w1e, b1e, w2se, b2se)  # (M, 256)
    h = _block_unfused(h.astype(jnp.bfloat16), w1f, b1f, w2f, b2f, wscf)  # (M, 9)
    o_ref[...] = h + iden_ref[...]                               # + identity(3x3)


# ----------------------------------------------------------------------------
# Wrapper (glue): layout transpose, batch tiling, BlockSpecs, two pallas_calls.
# ----------------------------------------------------------------------------
def res_stn_forward(x_ncw, conv_params, fc_params, *, b_tile=8):
    # b_tile guidance: 8 on v7x (64 MiB VMEM/TC); 16-32 on v5e/v6e (128 MiB).
    B, C, N = x_ncw.shape
    assert C == DIM and N == NUM_POINTS
    x = jnp.transpose(x_ncw, (0, 2, 1)).astype(jnp.float32)     # (B, N, dim)

    # Shrink the batch tile for small B so the grid has >= 2 steps and both
    # v7x TensorCores get work.
    bt = min(b_tile, max(1, -(-B // 2)))
    b_pad = -(-B // bt) * bt
    n_tiles = b_pad // bt
    if b_pad != B:
        x = jnp.concatenate(
            [x, jnp.zeros((b_pad - B, N, DIM), jnp.float32)], axis=0)
    x_tiles = x.reshape(n_tiles, bt * N, DIM)                   # lane-clean slab

    # ---- kernel 1: conv blocks + maxpool --------------------------------
    conv_specs = [pl.BlockSpec((1, bt * N, DIM), lambda b: (b, 0, 0))]
    for a in conv_params:                                       # all params are 2D
        conv_specs.append(pl.BlockSpec(a.shape, lambda b: (0, 0)))

    pooled = pl.pallas_call(
        _conv_pool_kernel,
        out_shape=jax.ShapeDtypeStruct((n_tiles, bt, FEAT), jnp.bfloat16),
        grid=(n_tiles,),
        in_specs=conv_specs,
        out_specs=pl.BlockSpec((1, bt, FEAT), lambda b: (b, 0, 0)),
        compiler_params=pltpu.CompilerParams(
            dimension_semantics=("parallel",),      # batch tiles are independent
            vmem_limit_bytes=40 * 1024 * 1024,      # fits v7x 64 MiB/TC w/ headroom
        ),
    )(x_tiles, *conv_params)

    g = pooled.reshape(b_pad, FEAT)                             # (b_pad, 1024) bf16

    # ---- kernel 2: fc blocks, one pass at M = b_pad ---------------------
    iden = jnp.eye(DIM, dtype=jnp.float32).reshape(1, DIM * DIM)
    fc_inputs = list(fc_params) + [iden]
    fc_specs = [pl.BlockSpec(g.shape, lambda i: (0, 0))]
    for a in fc_inputs:
        fc_specs.append(pl.BlockSpec(a.shape, lambda i: (0, 0)))

    out = pl.pallas_call(
        _fc_kernel,
        out_shape=jax.ShapeDtypeStruct((b_pad, DIM * DIM), jnp.float32),
        grid=(1,),
        in_specs=fc_specs,
        out_specs=pl.BlockSpec((b_pad, DIM * DIM), lambda i: (0, 0)),
        compiler_params=pltpu.CompilerParams(
            dimension_semantics=("arbitrary",),
            vmem_limit_bytes=40 * 1024 * 1024,
        ),
    )(g, *fc_inputs)

    return out[:B].reshape(B, DIM, DIM)


# ----------------------------------------------------------------------------
# Deterministic parameter construction (PyTorch-default-style uniform init,
# BatchNorm folded in eval mode) + kernel-side packing.
# ----------------------------------------------------------------------------
def _layer(key, fan_in, fan_out):
    kw, kb = jax.random.split(key)
    bound = 1.0 / np.sqrt(fan_in)
    W = jax.random.uniform(kw, (fan_out, fan_in), jnp.float32, -bound, bound)
    b = jax.random.uniform(kb, (fan_out,), jnp.float32, -bound, bound)
    bn_scale = 1.0 / np.sqrt(1.0 + _BN_EPS)          # gamma=1, running_var=1
    W_folded = (W * bn_scale).T                      # (in, out) for x @ W
    b_folded = (b * bn_scale).reshape(1, fan_out)    # beta=0, running_mean=0
    return W_folded, b_folded


def build_params(key):
    """Plain per-block params (f32, BN folded) — used by the JAX reference."""
    keys = jax.random.split(key, len(_SIZES))
    blocks = []
    for k, (ci, co) in zip(keys, _SIZES):
        k1, k2, k3 = jax.random.split(k, 3)
        l1w, l1b = _layer(k1, ci, co)
        l2w, l2b = _layer(k2, co, co)
        scw, scb = _layer(k3, ci, co)                # shortcut (in_size != out_size)
        blocks.append((l1w, l1b, l2w, l2b, scw, scb))
    return blocks


def _pack_unfused(block):
    l1w, l1b, l2w, l2b, scw, scb = block
    return [l1w.astype(jnp.bfloat16), l1b,
            l2w.astype(jnp.bfloat16), (l2b + scb),   # shortcut bias folded into b2
            scw.astype(jnp.bfloat16)]


def _pack_fused(block):
    l1w, l1b, l2w, l2b, scw, scb = block
    w2s = jnp.concatenate([l2w, scw], axis=0).astype(jnp.bfloat16)  # ((out+in), out)
    return [l1w.astype(jnp.bfloat16), l1b, w2s, (l2b + scb)]


def pack_conv_params(blocks):
    """Kernel-1 params: b1 unfused, b2/b3 shortcut fused into the l2 matmul."""
    return _pack_unfused(blocks[0]) + _pack_fused(blocks[1]) + _pack_fused(blocks[2])


def pack_fc_params(blocks):
    """Kernel-2 params: bfc1/bfc2 l2-fused, bfc3 (out=9) unfused."""
    return _pack_fused(blocks[3]) + _pack_fused(blocks[4]) + _pack_unfused(blocks[5])


# ----------------------------------------------------------------------------
# Pure-JAX reference (same bf16-matmul / f32-accumulate regime as the kernels).
# ----------------------------------------------------------------------------
def res_stn_ref(x_ncw, blocks):
    x = jnp.transpose(x_ncw, (0, 2, 1)).astype(jnp.float32)
    B = x.shape[0]
    h = x.reshape(B * NUM_POINTS, DIM)

    def bb(h, p):
        l1w, l1b, l2w, l2b, scw, scb = p
        bf, f32 = jnp.bfloat16, jnp.float32
        y = jnp.dot(h.astype(bf), l1w.astype(bf), preferred_element_type=f32) + l1b
        y = jnp.maximum(y, 0.0)
        y = jnp.dot(y.astype(bf), l2w.astype(bf), preferred_element_type=f32) + l2b
        r = jnp.dot(h.astype(bf), scw.astype(bf), preferred_element_type=f32) + scb
        return jnp.maximum(y + r, 0.0)

    for i in range(3):
        h = bb(h, blocks[i])
    g = jnp.max(h.reshape(B, NUM_POINTS, FEAT), axis=1)     # MaxPool1d(num_points)
    for i in range(3, 6):
        g = bb(g, blocks[i])
    g = g + jnp.eye(DIM, dtype=jnp.float32).reshape(1, DIM * DIM)
    return g.reshape(B, DIM, DIM)


if __name__ == "__main__":
    key = jax.random.PRNGKey(0)
    kx, kp = jax.random.split(key)

    B = 2
    x = jax.random.normal(kx, (B, DIM, NUM_POINTS), dtype=jnp.float32)  # NCW, like PyTorch
    blocks = build_params(kp)
    conv_params = pack_conv_params(blocks)
    fc_params = pack_fc_params(blocks)

    out = res_stn_forward(x, conv_params, fc_params)
    out = jax.block_until_ready(out)

    ref = res_stn_ref(x, blocks)
    assert out.shape == (B, DIM, DIM)
    # bf16-matmul / f32-accumulate in both kernel and reference; the fused
    # [l2|shortcut] accumulation order differs slightly from the reference's
    # two separate dots, covered by the tolerance.
    assert jnp.allclose(out, ref, rtol=1e-2, atol=1e-2), "mismatch vs JAX reference"

    print("KERNEL_OK")
</pallas_src>

<mosaic_0001>
module attributes {stable_mosaic.version = 11 : i64} {
  func.func @_conv_pool_kernel(%arg0: i32, %arg1: memref<1x128x3xf32, #tpu.memory_space<vmem>>, %arg2: memref<3x64xbf16, #tpu.memory_space<vmem>>, %arg3: memref<1x64xf32, #tpu.memory_space<vmem>>, %arg4: memref<64x64xbf16, #tpu.memory_space<vmem>>, %arg5: memref<1x64xf32, #tpu.memory_space<vmem>>, %arg6: memref<3x64xbf16, #tpu.memory_space<vmem>>, %arg7: memref<64x128xbf16, #tpu.memory_space<vmem>>, %arg8: memref<1x128xf32, #tpu.memory_space<vmem>>, %arg9: memref<192x128xbf16, #tpu.memory_space<vmem>>, %arg10: memref<1x128xf32, #tpu.memory_space<vmem>>, %arg11: memref<128x1024xbf16, #tpu.memory_space<vmem>>, %arg12: memref<1x1024xf32, #tpu.memory_space<vmem>>, %arg13: memref<1152x1024xbf16, #tpu.memory_space<vmem>>, %arg14: memref<1x1024xf32, #tpu.memory_space<vmem>>, %arg15: memref<1x1x1024xbf16, #tpu.memory_space<vmem>>) attributes {dimension_semantics = [#tpu.dimension_semantics<parallel>], iteration_bounds = array<i64: 2>, scalar_prefetch = 0 : i64, scratch_operands = 0 : i64, tpu.core_type = #tpu.core_type<tc>, window_params = [{transform_indices = @transform_0, window_bounds = array<i64: 1, 128, 3>}, {pipeline_mode = #tpu.pipeline_mode<synchronous>, transform_indices = @transform_1, window_bounds = array<i64: 3, 64>}, {pipeline_mode = #tpu.pipeline_mode<synchronous>, transform_indices = @transform_2, window_bounds = array<i64: 1, 64>}, {pipeline_mode = #tpu.pipeline_mode<synchronous>, transform_indices = @transform_3, window_bounds = array<i64: 64, 64>}, {pipeline_mode = #tpu.pipeline_mode<synchronous>, transform_indices = @transform_4, window_bounds = array<i64: 1, 64>}, {pipeline_mode = #tpu.pipeline_mode<synchronous>, transform_indices = @transform_5, window_bounds = array<i64: 3, 64>}, {pipeline_mode = #tpu.pipeline_mode<synchronous>, transform_indices = @transform_6, window_bounds = array<i64: 64, 128>}, {pipeline_mode = #tpu.pipeline_mode<synchronous>, transform_indices = @transform_7, window_bounds = array<i64: 1, 128>}, {pipeline_mode = #tpu.pipeline_mode<synchronous>, transform_indices = @transform_8, window_bounds = array<i64: 192, 128>}, {pipeline_mode = #tpu.pipeline_mode<synchronous>, transform_indices = @transform_9, window_bounds = array<i64: 1, 128>}, {pipeline_mode = #tpu.pipeline_mode<synchronous>, transform_indices = @transform_10, window_bounds = array<i64: 128, 1024>}, {pipeline_mode = #tpu.pipeline_mode<synchronous>, transform_indices = @transform_11, window_bounds = array<i64: 1, 1024>}, {pipeline_mode = #tpu.pipeline_mode<synchronous>, transform_indices = @transform_12, window_bounds = array<i64: 1152, 1024>}, {pipeline_mode = #tpu.pipeline_mode<synchronous>, transform_indices = @transform_13, window_bounds = array<i64: 1, 1024>}, {transform_indices = @transform_14, window_bounds = array<i64: 1, 1, 1024>}]} {
    %c0 = arith.constant 0 : index
    %c0_0 = arith.constant 0 : index
    %c0_1 = arith.constant 0 : index
    %0 = vector.load %arg1[%c0, %c0_0, %c0_1] : memref<1x128x3xf32, #tpu.memory_space<vmem>>, vector<1x128x3xf32>
    %1 = vector.shape_cast %0 : vector<1x128x3xf32> to vector<128x3xf32>
    %2 = arith.truncf %1 : vector<128x3xf32> to vector<128x3xbf16>
    %c0_2 = arith.constant 0 : index
    %c0_3 = arith.constant 0 : index
    %3 = vector.load %arg2[%c0_2, %c0_3] : memref<3x64xbf16, #tpu.memory_space<vmem>>, vector<3x64xbf16>
    %cst = arith.constant dense<0.000000e+00> : vector<128x64xf32>
    %4 = tpu.matmul %2, %3, %cst {dimension_numbers = #tpu.dot_dimension_numbers<[1], [0], [0], [1], [0, 0, 1, 1], [], []>} : vector<128x3xbf16>, vector<3x64xbf16>, vector<128x64xf32> -> vector<128x64xf32>
    %c0_4 = arith.constant 0 : index
    %c0_5 = arith.constant 0 : index
    %5 = vector.load %arg3[%c0_4, %c0_5] : memref<1x64xf32, #tpu.memory_space<vmem>>, vector<1x64xf32>
    %6 = vector.broadcast %5 : vector<1x64xf32> to vector<128x64xf32>
    %7 = arith.addf %4, %6 : vector<128x64xf32>
    %cst_6 = arith.constant 0.000000e+00 : f32
    %8 = vector.broadcast %cst_6 : f32 to vector<128x64xf32>
    %9 = arith.maximumf %7, %8 : vector<128x64xf32>
    %10 = arith.truncf %9 : vector<128x64xf32> to vector<128x64xbf16>
    %c0_7 = arith.constant 0 : index
    %c0_8 = arith.constant 0 : index
    %11 = vector.load %arg4[%c0_7, %c0_8] : memref<64x64xbf16, #tpu.memory_space<vmem>>, vector<64x64xbf16>
    %cst_9 = arith.constant dense<0.000000e+00> : vector<128x64xf32>
    %12 = tpu.matmul %10, %11, %cst_9 {dimension_numbers = #tpu.dot_dimension_numbers<[1], [0], [0], [1], [0, 0, 1, 1], [], []>} : vector<128x64xbf16>, vector<64x64xbf16>, vector<128x64xf32> -> vector<128x64xf32>
    %c0_10 = arith.constant 0 : index
    %c0_11 = arith.constant 0 : index
    %13 = vector.load %arg5[%c0_10, %c0_11] : memref<1x64xf32, #tpu.memory_space<vmem>>, vector<1x64xf32>
    %14 = vector.broadcast %13 : vector<1x64xf32> to vector<128x64xf32>
    %15 = arith.addf %12, %14 : vector<128x64xf32>
    %c0_12 = arith.constant 0 : index
    %c0_13 = arith.constant 0 : index
    %16 = vector.load %arg6[%c0_12, %c0_13] : memref<3x64xbf16, #tpu.memory_space<vmem>>, vector<3x64xbf16>
    %cst_14 = arith.constant dense<0.000000e+00> : vector<128x64xf32>
    %17 = tpu.matmul %2, %16, %cst_14 {dimension_numbers = #tpu.dot_dimension_numbers<[1], [0], [0], [1], [0, 0, 1, 1], [], []>} : vector<128x3xbf16>, vector<3x64xbf16>, vector<128x64xf32> -> vector<128x64xf32>
    %18 = arith.addf %15, %17 : vector<128x64xf32>
    %cst_15 = arith.constant 0.000000e+00 : f32
    %19 = vector.broadcast %cst_15 : f32 to vector<128x64xf32>
    %20 = arith.maximumf %18, %19 : vector<128x64xf32>
    %21 = arith.truncf %20 : vector<128x64xf32> to vector<128x64xbf16>
    %c0_16 = arith.constant 0 : index
    %c0_17 = arith.constant 0 : index
    %22 = vector.load %arg7[%c0_16, %c0_17] : memref<64x128xbf16, #tpu.memory_space<vmem>>, vector<64x128xbf16>
    %cst_18 = arith.constant dense<0.000000e+00> : vector<128x128xf32>
    %23 = tpu.matmul %21, %22, %cst_18 {dimension_numbers = #tpu.dot_dimension_numbers<[1], [0], [0], [1], [0, 0, 1, 1], [], []>} : vector<128x64xbf16>, vector<64x128xbf16>, vector<128x128xf32> -> vector<128x128xf32>
    %c0_19 = arith.constant 0 : index
    %c0_20 = arith.constant 0 : index
    %24 = vector.load %arg8[%c0_19, %c0_20] : memref<1x128xf32, #tpu.memory_space<vmem>>, vector<1x128xf32>
    %25 = vector.broadcast %24 : vector<1x128xf32> to vector<128x128xf32>
    %26 = arith.addf %23, %25 : vector<128x128xf32>
    %cst_21 = arith.constant 0.000000e+00 : f32
    %27 = vector.broadcast %cst_21 : f32 to vector<128x128xf32>
    %28 = arith.maximumf %26, %27 : vector<128x128xf32>
    %29 = arith.truncf %28 : vector<128x128xf32> to vector<128x128xbf16>
    %30 = tpu.concatenate %29, %21 in 1 : vector<128x128xbf16>, vector<128x64xbf16> -> vector<128x192xbf16>
    %c0_22 = arith.constant 0 : index
    %c0_23 = arith.constant 0 : index
    %31 = vector.load %arg9[%c0_22, %c0_23] : memref<192x128xbf16, #tpu.memory_space<vmem>>, vector<192x128xbf16>
    %cst_24 = arith.constant dense<0.000000e+00> : vector<128x128xf32>
    %32 = tpu.matmul %30, %31, %cst_24 {dimension_numbers = #tpu.dot_dimension_numbers<[1], [0], [0], [1], [0, 0, 1, 1], [], []>} : vector<128x192xbf16>, vector<192x128xbf16>, vector<128x128xf32> -> vector<128x128xf32>
    %c0_25 = arith.constant 0 : index
    %c0_26 = arith.constant 0 : index
    %33 = vector.load %arg10[%c0_25, %c0_26] : memref<1x128xf32, #tpu.memory_space<vmem>>, vector<1x128xf32>
    %34 = vector.broadcast %33 : vector<1x128xf32> to vector<128x128xf32>
    %35 = arith.addf %32, %34 : vector<128x128xf32>
    %cst_27 = arith.constant 0.000000e+00 : f32
    %36 = vector.broadcast %cst_27 : f32 to vector<128x128xf32>
    %37 = arith.maximumf %35, %36 : vector<128x128xf32>
    %38 = arith.truncf %37 : vector<128x128xf32> to vector<128x128xbf16>
    %c0_28 = arith.constant 0 : index
    %c0_29 = arith.constant 0 : index
    %39 = vector.load %arg11[%c0_28, %c0_29] : memref<128x1024xbf16, #tpu.memory_space<vmem>>, vector<128x1024xbf16>
    %cst_30 = arith.constant dense<0.000000e+00> : vector<128x1024xf32>
    %40 = tpu.matmul %38, %39, %cst_30 {dimension_numbers = #tpu.dot_dimension_numbers<[1], [0], [0], [1], [0, 0, 1, 1], [], []>} : vector<128x128xbf16>, vector<128x1024xbf16>, vector<128x1024xf32> -> vector<128x1024xf32>
    %c0_31 = arith.constant 0 : index
    %c0_32 = arith.constant 0 : index
    %41 = vector.load %arg12[%c0_31, %c0_32] : memref<1x1024xf32, #tpu.memory_space<vmem>>, vector<1x1024xf32>
    %42 = vector.broadcast %41 : vector<1x1024xf32> to vector<128x1024xf32>
    %43 = arith.addf %40, %42 : vector<128x1024xf32>
    %cst_33 = arith.constant 0.000000e+00 : f32
    %44 = vector.broadcast %cst_33 : f32 to vector<128x1024xf32>
    %45 = arith.maximumf %43, %44 : vector<128x1024xf32>
    %46 = arith.truncf %45 : vector<128x1024xf32> to vector<128x1024xbf16>
    %47 = tpu.concatenate %46, %38 in 1 : vector<128x1024xbf16>, vector<128x128xbf16> -> vector<128x1152xbf16>
    %c0_34 = arith.constant 0 : index
    %c0_35 = arith.constant 0 : index
    %48 = vector.load %arg13[%c0_34, %c0_35] : memref<1152x1024xbf16, #tpu.memory_space<vmem>>, vector<1152x1024xbf16>
    %cst_36 = arith.constant dense<0.000000e+00> : vector<128x1024xf32>
    %49 = tpu.matmul %47, %48, %cst_36 {dimension_numbers = #tpu.dot_dimension_numbers<[1], [0], [0], [1], [0, 0, 1, 1], [], []>} : vector<128x1152xbf16>, vector<1152x1024xbf16>, vector<128x1024xf32> -> vector<128x1024xf32>
    %c0_37 = arith.constant 0 : index
    %c0_38 = arith.constant 0 : index
    %50 = vector.load %arg14[%c0_37, %c0_38] : memref<1x1024xf32, #tpu.memory_space<vmem>>, vector<1x1024xf32>
    %51 = vector.broadcast %50 : vector<1x1024xf32> to vector<128x1024xf32>
    %52 = arith.addf %49, %51 : vector<128x1024xf32>
    %cst_39 = arith.constant 0.000000e+00 : f32
    %53 = vector.broadcast %cst_39 : f32 to vector<128x1024xf32>
    %54 = arith.maximumf %52, %53 : vector<128x1024xf32>
    %55 = arith.truncf %54 : vector<128x1024xf32> to vector<128x1024xbf16>
    %56 = vector.shape_cast %55 : vector<128x1024xbf16> to vector<1x128x1024xbf16>
    %cst_40 = arith.constant dense<0xFF80> : vector<1x1024xbf16>
    %57 = vector.multi_reduction <maximumf>, %56, %cst_40 [1] : vector<1x128x1024xbf16> to vector<1x1024xbf16>
    %c0_41 = arith.constant 0 : index
    %c0_42 = arith.constant 0 : index
    %c0_43 = arith.constant 0 : index
    %58 = vector.load %arg15[%c0_41, %c0_42, %c0_43] : memref<1x1x1024xbf16, #tpu.memory_space<vmem>>, vector<1x1x1024xbf16>
    %59 = vector.shape_cast %58 : vector<1x1x1024xbf16> to vector<1x1024xbf16>
    %60 = vector.shape_cast %57 : vector<1x1024xbf16> to vector<1x1x1024xbf16>
    tpu.vector_store %arg15[%c0_41, %c0_42, %c0_43], %60 {strides = array<i32>} : memref<1x1x1024xbf16, #tpu.memory_space<vmem>>, vector<1x1x1024xbf16>,
    return
  }
  func.func @transform_0(%arg0: i32) -> (i32, i32, i32) {
    %c0_i32 = arith.constant 0 : i32
    %c0_i32_0 = arith.constant 0 : i32
    %c0_i32_1 = arith.constant 0 : i32
    return %arg0, %c0_i32, %c0_i32_0 : i32, i32, i32
  }
  func.func @transform_1(%arg0: i32) -> (i32, i32) {
    %c0_i32 = arith.constant 0 : i32
    %c0_i32_0 = arith.constant 0 : i32
    %c0_i32_1 = arith.constant 0 : i32
    return %c0_i32, %c0_i32_0 : i32, i32
  }
  func.func @transform_2(%arg0: i32) -> (i32, i32) {
    %c0_i32 = arith.constant 0 : i32
    %c0_i32_0 = arith.constant 0 : i32
    %c0_i32_1 = arith.constant 0 : i32
    return %c0_i32, %c0_i32_0 : i32, i32
  }
  func.func @transform_3(%arg0: i32) -> (i32, i32) {
    %c0_i32 = arith.constant 0 : i32
    %c0_i32_0 = arith.constant 0 : i32
    %c0_i32_1 = arith.constant 0 : i32
    return %c0_i32, %c0_i32_0 : i32, i32
  }
  func.func @transform_4(%arg0: i32) -> (i32, i32) {
    %c0_i32 = arith.constant 0 : i32
    %c0_i32_0 = arith.constant 0 : i32
    %c0_i32_1 = arith.constant 0 : i32
    return %c0_i32, %c0_i32_0 : i32, i32
  }
  func.func @transform_5(%arg0: i32) -> (i32, i32) {
    %c0_i32 = arith.constant 0 : i32
    %c0_i32_0 = arith.constant 0 : i32
    %c0_i32_1 = arith.constant 0 : i32
    return %c0_i32, %c0_i32_0 : i32, i32
  }
  func.func @transform_6(%arg0: i32) -> (i32, i32) {
    %c0_i32 = arith.constant 0 : i32
    %c0_i32_0 = arith.constant 0 : i32
    %c0_i32_1 = arith.constant 0 : i32
    return %c0_i32, %c0_i32_0 : i32, i32
  }
  func.func @transform_7(%arg0: i32) -> (i32, i32) {
    %c0_i32 = arith.constant 0 : i32
    %c0_i32_0 = arith.constant 0 : i32
    %c0_i32_1 = arith.constant 0 : i32
    return %c0_i32, %c0_i32_0 : i32, i32
  }
  func.func @transform_8(%arg0: i32) -> (i32, i32) {
    %c0_i32 = arith.constant 0 : i32
    %c0_i32_0 = arith.constant 0 : i32
    %c0_i32_1 = arith.constant 0 : i32
    return %c0_i32, %c0_i32_0 : i32, i32
  }
  func.func @transform_9(%arg0: i32) -> (i32, i32) {
    %c0_i32 = arith.constant 0 : i32
    %c0_i32_0 = arith.constant 0 : i32
    %c0_i32_1 = arith.constant 0 : i32
    return %c0_i32, %c0_i32_0 : i32, i32
  }
  func.func @transform_10(%arg0: i32) -> (i32, i32) {
    %c0_i32 = arith.constant 0 : i32
    %c0_i32_0 = arith.constant 0 : i32
    %c0_i32_1 = arith.constant 0 : i32
    return %c0_i32, %c0_i32_0 : i32, i32
  }
  func.func @transform_11(%arg0: i32) -> (i32, i32) {
    %c0_i32 = arith.constant 0 : i32
    %c0_i32_0 = arith.constant 0 : i32
    %c0_i32_1 = arith.constant 0 : i32
    return %c0_i32, %c0_i32_0 : i32, i32
  }
  func.func @transform_12(%arg0: i32) -> (i32, i32) {
    %c0_i32 = arith.constant 0 : i32
    %c0_i32_0 = arith.constant 0 : i32
    %c0_i32_1 = arith.constant 0 : i32
    return %c0_i32, %c0_i32_0 : i32, i32
  }
  func.func @transform_13(%arg0: i32) -> (i32, i32) {
    %c0_i32 = arith.constant 0 : i32
    %c0_i32_0 = arith.constant 0 : i32
    %c0_i32_1 = arith.constant 0 : i32
    return %c0_i32, %c0_i32_0 : i32, i32
  }
  func.func @transform_14(%arg0: i32) -> (i32, i32, i32) {
    %c0_i32 = arith.constant 0 : i32
    %c0_i32_0 = arith.constant 0 : i32
    %c0_i32_1 = arith.constant 0 : i32
    return %arg0, %c0_i32, %c0_i32_0 : i32, i32, i32
  }
}

</mosaic_0001>

<llo_original>
// kernel: tpu_custom_call.1
$region0: #{tpu_custom_call.1}
  #allocation0 [shape = 'u32[]', space=smem, size = 0x4, offset = 0x4, fixed_abs, tag = 'smem constant byte address 0x4 - core index']
  #allocation1 [shape = 'u32[144,128]{1,0:T(1,128)}', space=vmem, size = 0x12000, scoped, tag = 'internal scratch']
  %s0 = inlined_call_operand.vmem [shape: f32[2,128,3], index: 0, kind: input, shape index: {}]
  %s1 = inlined_call_operand.hbm [shape: bf16[3,64], index: 1, kind: input, shape index: {}]
  %s2 = inlined_call_operand.hbm [shape: f32[1,64], index: 2, kind: input, shape index: {}]
  %s3 = inlined_call_operand.hbm [shape: bf16[64,64], index: 3, kind: input, shape index: {}]
  %s4 = inlined_call_operand.hbm [shape: f32[1,64], index: 4, kind: input, shape index: {}]
  %s5 = inlined_call_operand.hbm [shape: bf16[3,64], index: 5, kind: input, shape index: {}]
  %s6 = inlined_call_operand.hbm [shape: bf16[64,128], index: 6, kind: input, shape index: {}]
  %s7 = inlined_call_operand.hbm [shape: f32[1,128], index: 7, kind: input, shape index: {}]
  %s8 = inlined_call_operand.hbm [shape: bf16[192,128], index: 8, kind: input, shape index: {}]
  %s9 = inlined_call_operand.hbm [shape: f32[1,128], index: 9, kind: input, shape index: {}]
  %s10 = inlined_call_operand.hbm [shape: bf16[128,1024], index: 10, kind: input, shape index: {}]
  %s11 = inlined_call_operand.hbm [shape: f32[1,1024], index: 11, kind: input, shape index: {}]
  %s12 = inlined_call_operand.hbm [shape: bf16[1152,1024], index: 12, kind: input, shape index: {}]
  %s13 = inlined_call_operand.hbm [shape: f32[1,1024], index: 13, kind: input, shape index: {}]
  %s14 = inlined_call_operand.vmem [shape: bf16[2,1,1024], index: 14, kind: output, shape index: {}]
  %s15 = sld [smem:[#allocation0]]
  $region141: #{tpu_custom_call.1} parent=0
    _
  %s17 = ssub.s32 1, %s15
  %s18 = scalar_select 0, %s17, %s15
  $region1: #{tpu_custom_call.1} parent=0
    #allocation2 [shape = 'u8[1024]{0}', space=vmem, size = 0x400, scoped, tag = 'input window, operand 1, single buffered']
    #allocation3 [shape = 's32[2]{0}', space=sflag, size = 0x8, scoped, tag = 'scoped memory for tpu_custom_call.1']
    #allocation4 [shape = 'u8[512]{0}', space=vmem, size = 0x400, scoped, tag = 'input window, operand 2, single buffered']
    #allocation5 [shape = 's32[1]{0}', space=sflag, size = 0x4, scoped, tag = 'scoped memory for tpu_custom_call.1']
    #allocation6 [shape = 'u8[16384]{0}', space=vmem, size = 0x4000, scoped, tag = 'input window, operand 3, single buffered']
    #allocation7 [shape = 'u8[512]{0}', space=vmem, size = 0x400, scoped, tag = 'input window, operand 4, single buffered']
    #allocation8 [shape = 's32[1]{0}', space=sflag, size = 0x4, scoped, tag = 'scoped memory for tpu_custom_call.1']
    #allocation9 [shape = 'u8[1024]{0}', space=vmem, size = 0x400, scoped, tag = 'input window, operand 5, single buffered']
    #allocation10 [shape = 'u8[16384]{0}', space=vmem, size = 0x4000, scoped, tag = 'input window, operand 6, single buffered']
    #allocation11 [shape = 's32[1]{0}', space=sflag, size = 0x4, scoped, tag = 'scoped memory for tpu_custom_call.1']
    #allocation12 [shape = 'u8[512]{0}', space=vmem, size = 0x400, scoped, tag = 'input window, operand 7, single buffered']
    #allocation13 [shape = 'u8[49152]{0}', space=vmem, size = 0xc000, scoped, tag = 'input window, operand 8, single buffered']
    #allocation14 [shape = 's32[1]{0}', space=sflag, size = 0x4, scoped, tag = 'scoped memory for tpu_custom_call.1']
    #allocation15 [shape = 'u8[512]{0}', space=vmem, size = 0x400, scoped, tag = 'input window, operand 9, single buffered']
    #allocation16 [shape = 'u8[262144]{0}', space=vmem, size = 0x40000, scoped, tag = 'input window, operand 10, single buffered']
    #allocation17 [shape = 's32[1]{0}', space=sflag, size = 0x4, scoped, tag = 'scoped memory for tpu_custom_call.1']
    #allocation18 [shape = 'u8[4096]{0}', space=vmem, size = 0x1000, scoped, tag = 'input window, operand 11, single buffered']
    #allocation19 [shape = 'u8[2359296]{0}', space=vmem, size = 0x240000, scoped, tag = 'input window, operand 12, single buffered']
    #allocation20 [shape = 's32[1]{0}', space=sflag, size = 0x4, scoped, tag = 'scoped memory for tpu_custom_call.1']
    #allocation21 [shape = 'u8[4096]{0}', space=vmem, size = 0x1000, scoped, tag = 'input window, operand 13, single buffered']
    %19 = vsyncpa [#allocation3], 0
    %20 = vsyncpa [#allocation5], 0
    %21 = vsyncpa [#allocation8], 0
    %22 = vsyncpa [#allocation11], 0
    %23 = vsyncpa [#allocation14], 0
    %24 = vsyncpa [#allocation17], 0
    %25 = vsyncpa [#allocation20], 0
    loop: start=0, step=1, limit=4
    $region2: #{tpu_custom_call.1} parent=1 // loop_pre_header
      _
    $region3: #{tpu_custom_call.1} parent=1 // loop_header
      %s27 = sphi 0, %s31
      %p28 = scmp.ge.s32.totalorder %s27, 4
      %s37 = sphi 0, %s39
      %s40 = sphi 0, %s37
      %s41 = sphi 0, %s40
      %s57 = sphi 0, %s41
      %s61 = sphi 0, %s61
      %s63 = sphi 0, %s61
      %s64 = sphi 0, %s63
      %s78 = sphi 0, %s64
      %s82 = sphi 0, %s82
      %s84 = sphi 0, %s82
      %s85 = sphi 0, %s84
      %s99 = sphi 0, %s85
      %s103 = sphi 0, %s103
      %s105 = sphi 0, %s103
      %s106 = sphi 0, %s105
      %s120 = sphi 0, %s106
      %s124 = sphi 0, %s124
      %s126 = sphi 0, %s124
      %s127 = sphi 0, %s126
      %s141 = sphi 0, %s127
      %s145 = sphi 0, %s145
      %s147 = sphi 0, %s145
      %s148 = sphi 0, %s147
      %s162 = sphi 0, %s148
      %s166 = sphi 0, %s166
      %s168 = sphi 0, %s166
      %s169 = sphi 0, %s168
      %s183 = sphi 0, %s169
      %s187 = sphi 0, %s187
      %s189 = sphi 0, %s187
      %s190 = sphi 0, %s189
      %s204 = sphi 0, %s190
      %s208 = sphi 0, %s208
      %s210 = sphi 0, %s208
      %s211 = sphi 0, %s210
      %s225 = sphi 0, %s211
      %s229 = sphi 0, %s229
      %s231 = sphi 0, %s229
      %s232 = sphi 0, %s231
      %s246 = sphi 0, %s232
      %s250 = sphi 0, %s250
      %s252 = sphi 0, %s250
      %s253 = sphi 0, %s252
      %s267 = sphi 0, %s253
      %s271 = sphi 0, %s271
      %s273 = sphi 0, %s271
      %s274 = sphi 0, %s273
      %s288 = sphi 0, %s274
      %s292 = sphi 0, %s292
      %s294 = sphi 0, %s292
      %s295 = sphi 0, %s294
      %s309 = sphi 0, %s295
      %s313 = sphi 0, %s313
      %s315 = sphi 0, %s313
      %s316 = sphi 0, %s315
      %s330 = sphi 0, %s316
      %s336 = sphi 0, %s338
      %s339 = sphi 0, %s336
      %s340 = sphi 0, %s339
      %s356 = sphi 0, %s340
    $region4: #{tpu_custom_call.1} parent=1 // loop_header_branch
      %30 = sbr.rel (%p28) target = $region8
    $region5: #{tpu_custom_call.1} parent=1 // loop_body
      %s32 = ssub.s32 %s27, 1
      %s33 = ssub.s32 %s27, 2
      %s34 = sadd.s32 %s27, 1
      %s35 = ssub.s32 %s27, %s34
      %p36 = scmp.eq.s32.totalorder %s35, 0
      %s38 = sadd.s32 %s37, 1
      %s39 = scalar_select %p36, %s37, %s38
      %p42 = pneg %p36
      %p43 = scmp.eq.s32.totalorder %s27, 1
      %p44 = por %p42, %p43
      %p45 = scmp.ne.s32.totalorder %s37, %s40
      %p46 = scmp.eq.s32.totalorder %s27, 0
      %p47 = por %p45, %p46
      %p48 = scmp.ne.s32.totalorder %s37, %s40
      %p49 = scmp.eq.s32.totalorder %s32, 1
      %p50 = por %p48, %p49
      %p51 = scmp.ne.s32.totalorder %s40, %s41
      %p52 = scmp.eq.s32.totalorder %s32, 0
      %p53 = por %p51, %p52
      %p54 = scmp.ne.s32.totalorder %s40, %s41
      %p55 = scmp.eq.s32.totalorder %s33, 1
      %p56 = por %p54, %p55
      %p58 = scmp.ne.s32.totalorder %s41, %s57
      %p59 = scmp.eq.s32.totalorder %s33, 0
      %p60 = por %p58, %p59
      %s62 = sadd.s32 %s61, 1
      %p65 = scmp.eq.s32.totalorder %s27, 1
      %p66 = scmp.ne.s32.totalorder %s61, %s63
      %p67 = scmp.eq.s32.totalorder %s27, 0
      %p68 = por %p66, %p67
      %p69 = scmp.ne.s32.totalorder %s61, %s63
      %p70 = scmp.eq.s32.totalorder %s32, 1
      %p71 = por %p69, %p70
      %p72 = scmp.ne.s32.totalorder %s63, %s64
      %p73 = scmp.eq.s32.totalorder %s32, 0
      %p74 = por %p72, %p73
      %p75 = scmp.ne.s32.totalorder %s63, %s64
      %p76 = scmp.eq.s32.totalorder %s33, 1
      %p77 = por %p75, %p76
      %p79 = scmp.ne.s32.totalorder %s64, %s78
      %p80 = scmp.eq.s32.totalorder %s33, 0
      %p81 = por %p79, %p80
      %s83 = sadd.s32 %s82, 1
      %p86 = scmp.eq.s32.totalorder %s27, 1
      %p87 = scmp.ne.s32.totalorder %s82, %s84
      %p88 = scmp.eq.s32.totalorder %s27, 0
      %p89 = por %p87, %p88
      %p90 = scmp.ne.s32.totalorder %s82, %s84
      %p91 = scmp.eq.s32.totalorder %s32, 1
      %p92 = por %p90, %p91
      %p93 = scmp.ne.s32.totalorder %s84, %s85
      %p94 = scmp.eq.s32.totalorder %s32, 0
      %p95 = por %p93, %p94
      %p96 = scmp.ne.s32.totalorder %s84, %s85
      %p97 = scmp.eq.s32.totalorder %s33, 1
      %p98 = por %p96, %p97
      %p100 = scmp.ne.s32.totalorder %s85, %s99
      %p101 = scmp.eq.s32.totalorder %s33, 0
      %p102 = por %p100, %p101
      %s104 = sadd.s32 %s103, 1
      %p107 = scmp.eq.s32.totalorder %s27, 1
      %p108 = scmp.ne.s32.totalorder %s103, %s105
      %p109 = scmp.eq.s32.totalorder %s27, 0
      %p110 = por %p108, %p109
      %p111 = scmp.ne.s32.totalorder %s103, %s105
      %p112 = scmp.eq.s32.totalorder %s32, 1
      %p113 = por %p111, %p112
      %p114 = scmp.ne.s32.totalorder %s105, %s106
      %p115 = scmp.eq.s32.totalorder %s32, 0
      %p116 = por %p114, %p115
      %p117 = scmp.ne.s32.totalorder %s105, %s106
      %p118 = scmp.eq.s32.totalorder %s33, 1
      %p119 = por %p117, %p118
      %p121 = scmp.ne.s32.totalorder %s106, %s120
      %p122 = scmp.eq.s32.totalorder %s33, 0
      %p123 = por %p121, %p122
      %s125 = sadd.s32 %s124, 1
      %p128 = scmp.eq.s32.totalorder %s27, 1
      %p129 = scmp.ne.s32.totalorder %s124, %s126
      %p130 = scmp.eq.s32.totalorder %s27, 0
      %p131 = por %p129, %p130
      %p132 = scmp.ne.s32.totalorder %s124, %s126
      %p133 = scmp.eq.s32.totalorder %s32, 1
      %p134 = por %p132, %p133
      %p135 = scmp.ne.s32.totalorder %s126, %s127
      %p136 = scmp.eq.s32.totalorder %s32, 0
      %p137 = por %p135, %p136
      %p138 = scmp.ne.s32.totalorder %s126, %s127
      %p139 = scmp.eq.s32.totalorder %s33, 1
      %p140 = por %p138, %p139
      %p142 = scmp.ne.s32.totalorder %s127, %s141
      %p143 = scmp.eq.s32.totalorder %s33, 0
      %p144 = por %p142, %p143
      %s146 = sadd.s32 %s145, 1
      %p149 = scmp.eq.s32.totalorder %s27, 1
      %p150 = scmp.ne.s32.totalorder %s145, %s147
      %p151 = scmp.eq.s32.totalorder %s27, 0
      %p152 = por %p150, %p151
      %p153 = scmp.ne.s32.totalorder %s145, %s147
      %p154 = scmp.eq.s32.totalorder %s32, 1
      %p155 = por %p153, %p154
      %p156 = scmp.ne.s32.totalorder %s147, %s148
      %p157 = scmp.eq.s32.totalorder %s32, 0
      %p158 = por %p156, %p157
      %p159 = scmp.ne.s32.totalorder %s147, %s148
      %p160 = scmp.eq.s32.totalorder %s33, 1
      %p161 = por %p159, %p160
      %p163 = scmp.ne.s32.totalorder %s148, %s162
      %p164 = scmp.eq.s32.totalorder %s33, 0
      %p165 = por %p163, %p164
      %s167 = sadd.s32 %s166, 1
      %p170 = scmp.eq.s32.totalorder %s27, 1
      %p171 = scmp.ne.s32.totalorder %s166, %s168
      %p172 = scmp.eq.s32.totalorder %s27, 0
      %p173 = por %p171, %p172
      %p174 = scmp.ne.s32.totalorder %s166, %s168
      %p175 = scmp.eq.s32.totalorder %s32, 1
      %p176 = por %p174, %p175
      %p177 = scmp.ne.s32.totalorder %s168, %s169
      %p178 = scmp.eq.s32.totalorder %s32, 0
      %p179 = por %p177, %p178
      %p180 = scmp.ne.s32.totalorder %s168, %s169
      %p181 = scmp.eq.s32.totalorder %s33, 1
      %p182 = por %p180, %p181
      %p184 = scmp.ne.s32.totalorder %s169, %s183
      %p185 = scmp.eq.s32.totalorder %s33, 0
      %p186 = por %p184, %p185
      %s188 = sadd.s32 %s187, 1
      %p191 = scmp.eq.s32.totalorder %s27, 1
      %p192 = scmp.ne.s32.totalorder %s187, %s189
      %p193 = scmp.eq.s32.totalorder %s27, 0
      %p194 = por %p192, %p193
      %p195 = scmp.ne.s32.totalorder %s187, %s189
      %p196 = scmp.eq.s32.totalorder %s32, 1
      %p197 = por %p195, %p196
      %p198 = scmp.ne.s32.totalorder %s189, %s190
      %p199 = scmp.eq.s32.totalorder %s32, 0
      %p200 = por %p198, %p199
      %p201 = scmp.ne.s32.totalorder %s189, %s190
      %p202 = scmp.eq.s32.totalorder %s33, 1
      %p203 = por %p201, %p202
      %p205 = scmp.ne.s32.totalorder %s190, %s204
      %p206 = scmp.eq.s32.totalorder %s33, 0
      %p207 = por %p205, %p206
      %s209 = sadd.s32 %s208, 1
      %p212 = scmp.eq.s32.totalorder %s27, 1
      %p213 = scmp.ne.s32.totalorder %s208, %s210
      %p214 = scmp.eq.s32.totalorder %s27, 0
      %p215 = por %p213, %p214
      %p216 = scmp.ne.s32.totalorder %s208, %s210
      %p217 = scmp.eq.s32.totalorder %s32, 1
      %p218 = por %p216, %p217
      %p219 = scmp.ne.s32.totalorder %s210, %s211
      %p220 = scmp.eq.s32.totalorder %s32, 0
      %p221 = por %p219, %p220
      %p222 = scmp.ne.s32.totalorder %s210, %s211
      %p223 = scmp.eq.s32.totalorder %s33, 1
      %p224 = por %p222, %p223
      %p226 = scmp.ne.s32.totalorder %s211, %s225
      %p227 = scmp.eq.s32.totalorder %s33, 0
      %p228 = por %p226, %p227
      %s230 = sadd.s32 %s229, 1
      %p233 = scmp.eq.s32.totalorder %s27, 1
      %p234 = scmp.ne.s32.totalorder %s229, %s231
      %p235 = scmp.eq.s32.totalorder %s27, 0
      %p236 = por %p234, %p235
      %p237 = scmp.ne.s32.totalorder %s229, %s231
      %p238 = scmp.eq.s32.totalorder %s32, 1
      %p239 = por %p237, %p238
      %p240 = scmp.ne.s32.totalorder %s231, %s232
      %p241 = scmp.eq.s32.totalorder %s32, 0
      %p242 = por %p240, %p241
      %p243 = scmp.ne.s32.totalorder %s231, %s232
      %p244 = scmp.eq.s32.totalorder %s33, 1
      %p245 = por %p243, %p244
      %p247 = scmp.ne.s32.totalorder %s232, %s246
      %p248 = scmp.eq.s32.totalorder %s33, 0
      %p249 = por %p247, %p248
      %s251 = sadd.s32 %s250, 1
      %p254 = scmp.eq.s32.totalorder %s27, 1
      %p255 = scmp.ne.s32.totalorder %s250, %s252
      %p256 = scmp.eq.s32.totalorder %s27, 0
      %p257 = por %p255, %p256
      %p258 = scmp.ne.s32.totalorder %s250, %s252
      %p259 = scmp.eq.s32.totalorder %s32, 1
      %p260 = por %p258, %p259
      %p261 = scmp.ne.s32.totalorder %s252, %s253
      %p262 = scmp.eq.s32.totalorder %s32, 0
      %p263 = por %p261, %p262
      %p264 = scmp.ne.s32.totalorder %s252, %s253
      %p265 = scmp.eq.s32.totalorder %s33, 1
      %p266 = por %p264, %p265
      %p268 = scmp.ne.s32.totalorder %s253, %s267
      %p269 = scmp.eq.s32.totalorder %s33, 0
      %p270 = por %p268, %p269
      %s272 = sadd.s32 %s271, 1
      %p275 = scmp.eq.s32.totalorder %s27, 1
      %p276 = scmp.ne.s32.totalorder %s271, %s273
      %p277 = scmp.eq.s32.totalorder %s27, 0
      %p278 = por %p276, %p277
      %p279 = scmp.ne.s32.totalorder %s271, %s273
      %p280 = scmp.eq.s32.totalorder %s32, 1
      %p281 = por %p279, %p280
      %p282 = scmp.ne.s32.totalorder %s273, %s274
      %p283 = scmp.eq.s32.totalorder %s32, 0
      %p284 = por %p282, %p283
      %p285 = scmp.ne.s32.totalorder %s273, %s274
      %p286 = scmp.eq.s32.totalorder %s33, 1
      %p287 = por %p285, %p286
      %p289 = scmp.ne.s32.totalorder %s274, %s288
      %p290 = scmp.eq.s32.totalorder %s33, 0
      %p291 = por %p289, %p290
      %s293 = sadd.s32 %s292, 1
      %p296 = scmp.eq.s32.totalorder %s27, 1
      %p297 = scmp.ne.s32.totalorder %s292, %s294
      %p298 = scmp.eq.s32.totalorder %s27, 0
      %p299 = por %p297, %p298
      %p300 = scmp.ne.s32.totalorder %s292, %s294
      %p301 = scmp.eq.s32.totalorder %s32, 1
      %p302 = por %p300, %p301
      %p303 = scmp.ne.s32.totalorder %s294, %s295
      %p304 = scmp.eq.s32.totalorder %s32, 0
      %p305 = por %p303, %p304
      %p306 = scmp.ne.s32.totalorder %s294, %s295
      %p307 = scmp.eq.s32.totalorder %s33, 1
      %p308 = por %p306, %p307
      %p310 = scmp.ne.s32.totalorder %s295, %s309
      %p311 = scmp.eq.s32.totalorder %s33, 0
      %p312 = por %p310, %p311
      %s314 = sadd.s32 %s313, 1
      %p317 = scmp.eq.s32.totalorder %s27, 1
      %p318 = scmp.ne.s32.totalorder %s313, %s315
      %p319 = scmp.eq.s32.totalorder %s27, 0
      %p320 = por %p318, %p319
      %p321 = scmp.ne.s32.totalorder %s313, %s315
      %p322 = scmp.eq.s32.totalorder %s32, 1
      %p323 = por %p321, %p322
      %p324 = scmp.ne.s32.totalorder %s315, %s316
      %p325 = scmp.eq.s32.totalorder %s32, 0
      %p326 = por %p324, %p325
      %p327 = scmp.ne.s32.totalorder %s315, %s316
      %p328 = scmp.eq.s32.totalorder %s33, 1
      %p329 = por %p327, %p328
      %p331 = scmp.ne.s32.totalorder %s316, %s330
      %p332 = scmp.eq.s32.totalorder %s33, 0
      %p333 = por %p331, %p332
      %s334 = ssub.s32 %s27, %s34
      %p335 = scmp.eq.s32.totalorder %s334, 0
      %s337 = sadd.s32 %s336, 1
      %s338 = scalar_select %p335, %s336, %s337
      %p341 = pneg %p335
      %p342 = scmp.eq.s32.totalorder %s27, 1
      %p343 = por %p341, %p342
      %p344 = scmp.ne.s32.totalorder %s336, %s339
      %p345 = scmp.eq.s32.totalorder %s27, 0
      %p346 = por %p344, %p345
      %p347 = scmp.ne.s32.totalorder %s336, %s339
      %p348 = scmp.eq.s32.totalorder %s32, 1
      %p349 = por %p347, %p348
      %p350 = scmp.ne.s32.totalorder %s339, %s340
      %p351 = scmp.eq.s32.totalorder %s32, 0
      %p352 = por %p350, %p351
      %p353 = scmp.ne.s32.totalorder %s339, %s340
      %p354 = scmp.eq.s32.totalorder %s33, 1
      %p355 = por %p353, %p354
      %p357 = scmp.ne.s32.totalorder %s340, %s356
      %p358 = scmp.eq.s32.totalorder %s33, 0
      %p359 = por %p357, %p358
      %p360 = scmp.le.s32.totalorder 1, %s27
      %p361 = scmp.lt.s32.totalorder %s27, 3
      %p362 = pnand %p360, %p361
      %p363 = pneg %p362
      // Predicated region
      $region9: #{tpu_custom_call.1} parent=5 // pred_check
        _
      $region10: #{tpu_custom_call.1} parent=5 // pred_check_branch
        %365 = sbr.rel (%p362) target = $region12
      $region11: #{tpu_custom_call.1} parent=5 // pred_region
        %s366 = ssub.s32 %s27, 1
        // Predicated region
        $region13: #{tpu_custom_call.1} parent=11 // pred_check
          %p367 = pneg %p74
        $region14: #{tpu_custom_call.1} parent=11 // pred_check_branch
          %369 = sbr.rel (%p367) target = $region16
        $region15: #{tpu_custom_call.1} parent=11 // pred_region
          %s371 = ssub.s32 32, 32
          %372 = vsyncadd [#allocation3], %s371
          %s374 = sshll.u32 [#allocation2], 4
          %s375 = int_to_ptr.vmem [resolvable:$true] %s374
          %377 = dma.hbm_to_vmem [thread:$0]  %s1, 32, %s375, [#allocation3]
        $region16: #{tpu_custom_call.1} parent=11 // pred_fallthru
          _
        // Predicated region
        $region17: #{tpu_custom_call.1} parent=11 // pred_check
          %p378 = pneg %p95
        $region18: #{tpu_custom_call.1} parent=11 // pred_check_branch
          %380 = sbr.rel (%p378) target = $region20
        $region19: #{tpu_custom_call.1} parent=11 // pred_region
          %s382 = ssub.s32 16, 16
          %383 = vsyncadd [#allocation5], %s382
          %s385 = sshll.u32 [#allocation4], 4
          %s386 = int_to_ptr.vmem [resolvable:$true] %s385
          %388 = dma.hbm_to_vmem [thread:$0]  %s2, 16, %s386, [#allocation5]
        $region20: #{tpu_custom_call.1} parent=11 // pred_fallthru
          _
        // Predicated region
        $region21: #{tpu_custom_call.1} parent=11 // pred_check
          %p389 = pneg %p116
        $region22: #{tpu_custom_call.1} parent=11 // pred_check_branch
          %391 = sbr.rel (%p389) target = $region24
        $region23: #{tpu_custom_call.1} parent=11 // pred_region
          %s393 = ssub.s32 512, 512
          %394 = vsyncadd [#allocation5], %s393
          %s395 = sshll.u32 [#allocation6], 4
          %s396 = int_to_ptr.vmem [resolvable:$true] %s395
          %401 = dma.hbm_to_vmem [thread:$0]  %s3, 512, %s396, [#allocation5], 64, 64, 4
        $region24: #{tpu_custom_call.1} parent=11 // pred_fallthru
          _
        // Predicated region
        $region25: #{tpu_custom_call.1} parent=11 // pred_check
          %p402 = pneg %p137
        $region26: #{tpu_custom_call.1} parent=11 // pred_check_branch
          %404 = sbr.rel (%p402) target = $region28
        $region27: #{tpu_custom_call.1} parent=11 // pred_region
          %s406 = ssub.s32 16, 16
          %407 = vsyncadd [#allocation8], %s406
          %s409 = sshll.u32 [#allocation7], 4
          %s410 = int_to_ptr.vmem [resolvable:$true] %s409
          %412 = dma.hbm_to_vmem [thread:$0]  %s4, 16, %s410, [#allocation8]
        $region28: #{tpu_custom_call.1} parent=11 // pred_fallthru
          _
        // Predicated region
        $region29: #{tpu_custom_call.1} parent=11 // pred_check
          %p413 = pneg %p158
        $region30: #{tpu_custom_call.1} parent=11 // pred_check_branch
          %415 = sbr.rel (%p413) target = $region32
        $region31: #{tpu_custom_call.1} parent=11 // pred_region
          %s417 = ssub.s32 32, 32
          %418 = vsyncadd [#allocation8], %s417
          %s420 = sshll.u32 [#allocation9], 4
          %s421 = int_to_ptr.vmem [resolvable:$true] %s420
          %423 = dma.hbm_to_vmem [thread:$0]  %s5, 32, %s421, [#allocation8]
        $region32: #{tpu_custom_call.1} parent=11 // pred_fallthru
          _
        // Predicated region
        $region33: #{tpu_custom_call.1} parent=11 // pred_check
          %p424 = pneg %p179
        $region34: #{tpu_custom_call.1} parent=11 // pred_check_branch
          %426 = sbr.rel (%p424) target = $region36
        $region35: #{tpu_custom_call.1} parent=11 // pred_region
          %s428 = ssub.s32 512, 512
          %429 = vsyncadd [#allocation11], %s428
          %s430 = sshll.u32 [#allocation10], 4
          %s431 = int_to_ptr.vmem [resolvable:$true] %s430
          %436 = dma.hbm_to_vmem [thread:$0]  %s6, 512, %s431, [#allocation11], 64, 64, 4
        $region36: #{tpu_custom_call.1} parent=11 // pred_fallthru
          _
        // Predicated region
        $region37: #{tpu_custom_call.1} parent=11 // pred_check
          %p437 = pneg %p200
        $region38: #{tpu_custom_call.1} parent=11 // pred_check_branch
          %439 = sbr.rel (%p437) target = $region40
        $region39: #{tpu_custom_call.1} parent=11 // pred_region
          %s441 = ssub.s32 16, 16
          %442 = vsyncadd [#allocation11], %s441
          %s444 = sshll.u32 [#allocation12], 4
          %s445 = int_to_ptr.vmem [resolvable:$true] %s444
          %447 = dma.hbm_to_vmem [thread:$0]  %s7, 16, %s445, [#allocation11]
        $region40: #{tpu_custom_call.1} parent=11 // pred_fallthru
          _
        // Predicated region
        $region41: #{tpu_custom_call.1} parent=11 // pred_check
          %p448 = pneg %p221
        $region42: #{tpu_custom_call.1} parent=11 // pred_check_branch
          %450 = sbr.rel (%p448) target = $region44
        $region43: #{tpu_custom_call.1} parent=11 // pred_region
          %s452 = ssub.s32 1536, 1536
          %453 = vsyncadd [#allocation14], %s452
          %s454 = sshll.u32 [#allocation13], 4
          %s455 = int_to_ptr.vmem [resolvable:$true] %s454
          %460 = dma.hbm_to_vmem [thread:$0]  %s8, 1536, %s455, [#allocation14], 64, 64, 4
        $region44: #{tpu_custom_call.1} parent=11 // pred_fallthru
          _
        // Predicated region
        $region45: #{tpu_custom_call.1} parent=11 // pred_check
          %p461 = pneg %p242
        $region46: #{tpu_custom_call.1} parent=11 // pred_check_branch
          %463 = sbr.rel (%p461) target = $region48
        $region47: #{tpu_custom_call.1} parent=11 // pred_region
          %s465 = ssub.s32 16, 16
          %466 = vsyncadd [#allocation14], %s465
          %s468 = sshll.u32 [#allocation15], 4
          %s469 = int_to_ptr.vmem [resolvable:$true] %s468
          %471 = dma.hbm_to_vmem [thread:$0]  %s9, 16, %s469, [#allocation14]
        $region48: #{tpu_custom_call.1} parent=11 // pred_fallthru
          _
        // Predicated region
        $region49: #{tpu_custom_call.1} parent=11 // pred_check
          %p472 = pneg %p263
        $region50: #{tpu_custom_call.1} parent=11 // pred_check_branch
          %474 = sbr.rel (%p472) target = $region52
        $region51: #{tpu_custom_call.1} parent=11 // pred_region
          %s476 = ssub.s32 8192, 8192
          %477 = vsyncadd [#allocation17], %s476
          %s478 = sshll.u32 [#allocation16], 4
          %s479 = int_to_ptr.vmem [resolvable:$true] %s478
          %484 = dma.hbm_to_vmem [thread:$0]  %s10, 8192, %s479, [#allocation17], 512, 512, 32
        $region52: #{tpu_custom_call.1} parent=11 // pred_fallthru
          _
        // Predicated region
        $region53: #{tpu_custom_call.1} parent=11 // pred_check
          %p485 = pneg %p284
        $region54: #{tpu_custom_call.1} parent=11 // pred_check_branch
          %487 = sbr.rel (%p485) target = $region56
        $region55: #{tpu_custom_call.1} parent=11 // pred_region
          %s489 = ssub.s32 128, 128
          %490 = vsyncadd [#allocation17], %s489
          %s492 = sshll.u32 [#allocation18], 4
          %s493 = int_to_ptr.vmem [resolvable:$true] %s492
          %495 = dma.hbm_to_vmem [thread:$0]  %s11, 128, %s493, [#allocation17]
        $region56: #{tpu_custom_call.1} parent=11 // pred_fallthru
          _
        // Predicated region
        $region57: #{tpu_custom_call.1} parent=11 // pred_check
          %p496 = pneg %p305
        $region58: #{tpu_custom_call.1} parent=11 // pred_check_branch
          %498 = sbr.rel (%p496) target = $region60
        $region59: #{tpu_custom_call.1} parent=11 // pred_region
          %s500 = ssub.s32 73728, 73728
          %501 = vsyncadd [#allocation20], %s500
          %s502 = sshll.u32 [#allocation19], 4
          %s503 = int_to_ptr.vmem [resolvable:$true] %s502
          %508 = dma.hbm_to_vmem [thread:$0]  %s12, 73728, %s503, [#allocation20], 512, 512, 32
        $region60: #{tpu_custom_call.1} parent=11 // pred_fallthru
          _
        // Predicated region
        $region61: #{tpu_custom_call.1} parent=11 // pred_check
          %p509 = pneg %p326
        $region62: #{tpu_custom_call.1} parent=11 // pred_check_branch
          %511 = sbr.rel (%p509) target = $region64
        $region63: #{tpu_custom_call.1} parent=11 // pred_region
          %s513 = ssub.s32 128, 128
          %514 = vsyncadd [#allocation20], %s513
          %s516 = sshll.u32 [#allocation21], 4
          %s517 = int_to_ptr.vmem [resolvable:$true] %s516
          %519 = dma.hbm_to_vmem [thread:$0]  %s13, 128, %s517, [#allocation20]
        $region64: #{tpu_custom_call.1} parent=11 // pred_fallthru
          _
      $region12: #{tpu_custom_call.1} parent=5 // pred_fallthru
        _
      %p520 = scmp.lt.s32.totalorder %s27, 2
      // Predicated region
      $region65: #{tpu_custom_call.1} parent=5 // pred_check
        %p521 = pneg %p520
      $region66: #{tpu_custom_call.1} parent=5 // pred_check_branch
        %523 = sbr.rel (%p521) target = $region68
      $region67: #{tpu_custom_call.1} parent=5 // pred_region
        // Predicated region
        $region69: #{tpu_custom_call.1} parent=67 // pred_check
          %p524 = pneg %p47
        $region70: #{tpu_custom_call.1} parent=67 // pred_check_branch
          %526 = sbr.rel (%p524) target = $region72
        $region71: #{tpu_custom_call.1} parent=67 // pred_region
          %p527 = scmp.lt.s32.totalorder %s27, 1
          %s528 = scalar_select %p527, %s27, 1
          %s529 = smul.addr %s528, 16
          %s530 = smul.addr %s529, 8
          %s531 = scalar_lea.vmem %s0, %s530
        $region72: #{tpu_custom_call.1} parent=67 // pred_fallthru
          _
      $region68: #{tpu_custom_call.1} parent=5 // pred_fallthru
        _
      %p532 = scmp.le.s32.totalorder 1, %s27
      %p533 = scmp.lt.s32.totalorder %s27, 3
      %p534 = pnand %p532, %p533
      %p535 = pneg %p534
      // Predicated region
      $region73: #{tpu_custom_call.1} parent=5 // pred_check
        _
      $region74: #{tpu_custom_call.1} parent=5 // pred_check_branch
        %537 = sbr.rel (%p534) target = $region76
      $region75: #{tpu_custom_call.1} parent=5 // pred_region
        %s538 = ssub.s32 %s27, 1
        // Predicated region
        $region77: #{tpu_custom_call.1} parent=75 // pred_check
          %p539 = pneg %p74
        $region78: #{tpu_custom_call.1} parent=75 // pred_check_branch
          %541 = sbr.rel (%p539) target = $region80
        $region79: #{tpu_custom_call.1} parent=75 // pred_region
          %542 = dma.done [#allocation3], 32
        $region80: #{tpu_custom_call.1} parent=75 // pred_fallthru
          _
        // Predicated region
        $region81: #{tpu_custom_call.1} parent=75 // pred_check
          %p543 = pneg %p95
        $region82: #{tpu_custom_call.1} parent=75 // pred_check_branch
          %545 = sbr.rel (%p543) target = $region84
        $region83: #{tpu_custom_call.1} parent=75 // pred_region
          %546 = dma.done [#allocation5], 16
        $region84: #{tpu_custom_call.1} parent=75 // pred_fallthru
          _
        // Predicated region
        $region85: #{tpu_custom_call.1} parent=75 // pred_check
          %p547 = pneg %p116
        $region86: #{tpu_custom_call.1} parent=75 // pred_check_branch
          %549 = sbr.rel (%p547) target = $region88
        $region87: #{tpu_custom_call.1} parent=75 // pred_region
          %550 = dma.done [#allocation5], 512
        $region88: #{tpu_custom_call.1} parent=75 // pred_fallthru
          _
        // Predicated region
        $region89: #{tpu_custom_call.1} parent=75 // pred_check
          %p551 = pneg %p137
        $region90: #{tpu_custom_call.1} parent=75 // pred_check_branch
          %553 = sbr.rel (%p551) target = $region92
        $region91: #{tpu_custom_call.1} parent=75 // pred_region
          %554 = dma.done [#allocation8], 16
        $region92: #{tpu_custom_call.1} parent=75 // pred_fallthru
          _
        // Predicated region
        $region93: #{tpu_custom_call.1} parent=75 // pred_check
          %p555 = pneg %p158
        $region94: #{tpu_custom_call.1} parent=75 // pred_check_branch
          %557 = sbr.rel (%p555) target = $region96
        $region95: #{tpu_custom_call.1} parent=75 // pred_region
          %558 = dma.done [#allocation8], 32
        $region96: #{tpu_custom_call.1} parent=75 // pred_fallthru
          _
        // Predicated region
        $region97: #{tpu_custom_call.1} parent=75 // pred_check
          %p559 = pneg %p179
        $region98: #{tpu_custom_call.1} parent=75 // pred_check_branch
          %561 = sbr.rel (%p559) target = $region100
        $region99: #{tpu_custom_call.1} parent=75 // pred_region
          %562 = dma.done [#allocation11], 512
        $region100: #{tpu_custom_call.1} parent=75 // pred_fallthru
          _
        // Predicated region
        $region101: #{tpu_custom_call.1} parent=75 // pred_check
          %p563 = pneg %p200
        $region102: #{tpu_custom_call.1} parent=75 // pred_check_branch
          %565 = sbr.rel (%p563) target = $region104
        $region103: #{tpu_custom_call.1} parent=75 // pred_region
          %566 = dma.done [#allocation11], 16
        $region104: #{tpu_custom_call.1} parent=75 // pred_fallthru
          _
        // Predicated region
        $region105: #{tpu_custom_call.1} parent=75 // pred_check
          %p567 = pneg %p221
        $region106: #{tpu_custom_call.1} parent=75 // pred_check_branch
          %569 = sbr.rel (%p567) target = $region108
        $region107: #{tpu_custom_call.1} parent=75 // pred_region
          %570 = dma.done [#allocation14], 1536
        $region108: #{tpu_custom_call.1} parent=75 // pred_fallthru
          _
        // Predicated region
        $region109: #{tpu_custom_call.1} parent=75 // pred_check
          %p571 = pneg %p242
        $region110: #{tpu_custom_call.1} parent=75 // pred_check_branch
          %573 = sbr.rel (%p571) target = $region112
        $region111: #{tpu_custom_call.1} parent=75 // pred_region
          %574 = dma.done [#allocation14], 16
        $region112: #{tpu_custom_call.1} parent=75 // pred_fallthru
          _
        // Predicated region
        $region113: #{tpu_custom_call.1} parent=75 // pred_check
          %p575 = pneg %p263
        $region114: #{tpu_custom_call.1} parent=75 // pred_check_branch
          %577 = sbr.rel (%p575) target = $region116
        $region115: #{tpu_custom_call.1} parent=75 // pred_region
          %578 = dma.done [#allocation17], 8192
        $region116: #{tpu_custom_call.1} parent=75 // pred_fallthru
          _
        // Predicated region
        $region117: #{tpu_custom_call.1} parent=75 // pred_check
          %p579 = pneg %p284
        $region118: #{tpu_custom_call.1} parent=75 // pred_check_branch
          %581 = sbr.rel (%p579) target = $region120
        $region119: #{tpu_custom_call.1} parent=75 // pred_region
          %582 = dma.done [#allocation17], 128
        $region120: #{tpu_custom_call.1} parent=75 // pred_fallthru
          _
        // Predicated region
        $region121: #{tpu_custom_call.1} parent=75 // pred_check
          %p583 = pneg %p305
        $region122: #{tpu_custom_call.1} parent=75 // pred_check_branch
          %585 = sbr.rel (%p583) target = $region124
        $region123: #{tpu_custom_call.1} parent=75 // pred_region
          %586 = dma.done [#allocation20], 73728
        $region124: #{tpu_custom_call.1} parent=75 // pred_fallthru
          _
        // Predicated region
        $region125: #{tpu_custom_call.1} parent=75 // pred_check
          %p587 = pneg %p326
        $region126: #{tpu_custom_call.1} parent=75 // pred_check_branch
          %589 = sbr.rel (%p587) target = $region128
        $region127: #{tpu_custom_call.1} parent=75 // pred_region
          %590 = dma.done [#allocation20], 128
        $region128: #{tpu_custom_call.1} parent=75 // pred_fallthru
          _
        %p591 = scmp.lt.s32.totalorder %s32, 1
        %s592 = scalar_select %p591, %s32, 1
        %s593 = smul.addr %s592, 16
        %s594 = smul.addr %s593, 8
        %s595 = scalar_lea.vmem %s0, %s594
        %p596 = pneg %p53
        %p597 = pneg %p50
        %p598 = pneg %p74
        %p599 = pneg %p71
        %p600 = pneg %p95
        %p601 = pneg %p92
        %p602 = pneg %p116
        %p603 = pneg %p113
        %p604 = pneg %p137
        %p605 = pneg %p134
        %p606 = pneg %p158
        %p607 = pneg %p155
        %p608 = pneg %p179
        %p609 = pneg %p176
        %p610 = pneg %p200
        %p611 = pneg %p197
        %p612 = pneg %p221
        %p613 = pneg %p218
        %p614 = pneg %p242
        %p615 = pneg %p239
        %p616 = pneg %p263
        %p617 = pneg %p260
        %p618 = pneg %p284
        %p619 = pneg %p281
        %p620 = pneg %p305
        %p621 = pneg %p302
        %p622 = pneg %p326
        %p623 = pneg %p323
        %p624 = pneg %p352
        %p625 = pneg %p349
        %p626 = scmp.lt.s32.totalorder %s32, 1
        %s627 = scalar_select %p626, %s32, 1
        %s628 = smul.addr %s627, 8
        %s629 = scalar_lea.vmem %s14, %s628
        %p630 = scmp.lt.s32.totalorder %s32, 1
        %s631 = scalar_select %p630, %s32, 1
        %s632 = smul.addr %s631, 16
        %s633 = smul.addr %s632, 8
        %s634 = scalar_lea.vmem %s0, %s633
        %p635 = scmp.lt.s32.totalorder %s32, 1
        %s636 = scalar_select %p635, %s32, 1
        %s637 = smul.addr %s636, 8
        %s638 = scalar_lea.vmem %s14, %s637
        %v640 = vld [vmem:[%s634] sm:$0xff]
        %v641 = vld [vmem:[%s634 + $0x8] sm:$0xff]
        %v642 = vld [vmem:[%s634 + $0x10] sm:$0xff]
        %v643 = vld [vmem:[%s634 + $0x18] sm:$0xff]
        %v644 = vld [vmem:[%s634 + $0x20] sm:$0xff]
        %v645 = vld [vmem:[%s634 + $0x28] sm:$0xff]
        %v646 = vld [vmem:[%s634 + $0x30] sm:$0xff]
        %v647 = vld [vmem:[%s634 + $0x38] sm:$0xff]
        %v648 = vld [vmem:[%s634 + $0x40] sm:$0xff]
        %v649 = vld [vmem:[%s634 + $0x48] sm:$0xff]
        %v650 = vld [vmem:[%s634 + $0x50] sm:$0xff]
        %v651 = vld [vmem:[%s634 + $0x58] sm:$0xff]
        %v652 = vld [vmem:[%s634 + $0x60] sm:$0xff]
        %v653 = vld [vmem:[%s634 + $0x68] sm:$0xff]
        %v654 = vld [vmem:[%s634 + $0x70] sm:$0xff]
        %v655 = vld [vmem:[%s634 + $0x78] sm:$0xff]
        %v656 = vpack.c.bf16 %v641, %v640
        %v657 = vpack.c.bf16 %v643, %v642
        %v658 = vpack.c.bf16 %v645, %v644
        %v659 = vpack.c.bf16 %v647, %v646
        %v660 = vpack.c.bf16 %v649, %v648
        %v661 = vpack.c.bf16 %v651, %v650
        %v662 = vpack.c.bf16 %v653, %v652
        %v663 = vpack.c.bf16 %v655, %v654
        %v664 = vld [vmem:[#allocation2] sm:$0x3]
        %v665 = vld [vmem:[#allocation4] sm:$0x1]
        %v667 = vlaneseq
        %v668 = vshrl.u32 %v667, 7
        %v669 = vsub.s32 0, %v668
        %v670 = vrot.slane %v665, %v669
        %vm672 = vcmask 23552
        %v674 = vsel %vm672, %v656, 0
        %v677 = vsel %vm672, %v657, 0
        %v680 = vsel %vm672, %v658, 0
        %v683 = vsel %vm672, %v659, 0
        %v686 = vsel %vm672, %v660, 0
        %v689 = vsel %vm672, %v661, 0
        %v692 = vsel %vm672, %v662, 0
        %v695 = vsel %vm672, %v663, 0
        %vm697 = vcmask 1040384
        %vm698 = vcmask 1041408
        %v699 = vsel %vm697, 4294967295, 65535
        %v700 = vsel %vm698, %v699, 0
        %v702 = vand.u32 %v664, %v700
        %704 = vmatprep.subr.bf16.mxu0 0
        %705 = vmatpush1.bf16.msra.mxu0 %v702
        %706 = vmatprep.subr.bf16.mxu0 0
        %707 = vmatpush1.bf16.msra.mxu0 0
        %708 = vmatprep.subr.bf16.mxu0 0
        %709 = vmatpush1.bf16.msra.mxu0 0
        %710 = vmatprep.subr.bf16.mxu0 0
        %711 = vmatpush1.bf16.msra.mxu0 0
        %712 = vmatprep.subr.bf16.mxu0 0
        %713 = vmatpush1.bf16.msra.mxu0 0
        %714 = vmatprep.subr.bf16.mxu0 0
        %715 = vmatpush1.bf16.msra.mxu0 0
        %716 = vmatprep.subr.bf16.mxu0 0
        %717 = vmatpush1.bf16.msra.mxu0 0
        %718 = vmatprep.subr.bf16.mxu0 0
        %719 = vmatpush1.bf16.msra.mxu0 0
        %720 = vmatprep.subr.bf16.mxu0 0
        %721 = vmatpush1.bf16.msra.mxu0 0
        %722 = vmatprep.subr.bf16.mxu0 0
        %723 = vmatpush1.bf16.msra.mxu0 0
        %724 = vmatprep.subr.bf16.mxu0 0
        %725 = vmatpush1.bf16.msra.mxu0 0
        %726 = vmatprep.subr.bf16.mxu0 0
        %727 = vmatpush1.bf16.msra.mxu0 0
        %728 = vmatprep.subr.bf16.mxu0 0
        %729 = vmatpush1.bf16.msra.mxu0 0
        %730 = vmatprep.subr.bf16.mxu0 0
        %731 = vmatpush1.bf16.msra.mxu0 0
        %732 = vmatprep.subr.bf16.mxu0 0
        %733 = vmatpush1.bf16.msra.mxu0 0
        %734 = vmatprep.subr.bf16.mxu0 0
        %735 = vmatpush1.bf16.msra.mxu0 0
        %736 = vmatprep.mubr.bf16.mxu0 0
        %737 = vmatmul.mubr.bf16.gmra.mrb[0].mxu0 %v674
        %v738 = vpop.f32.mrb[0].mxu0
        %v739 = vadd.f32 %v670, %v738
        %v740 = vpop.f32.mrb[0].mxu0
        %v741 = vpop.f32.mrb[0].mxu0
        %v742 = vadd.f32 %v670, %v741
        %v743 = vpop.f32.mrb[0].mxu0
        %744 = vmatprep.mubr.bf16.mxu0 0
        %745 = vmatmul.mubr.bf16.gmra.mrb[0].mxu0 %v677
        %v746 = vpop.f32.mrb[0].mxu0
        %v747 = vadd.f32 %v670, %v746
        %v748 = vpop.f32.mrb[0].mxu0
        %v749 = vpop.f32.mrb[0].mxu0
        %v750 = vadd.f32 %v670, %v749
        %v751 = vpop.f32.mrb[0].mxu0
        %752 = vmatprep.mubr.bf16.mxu0 0
        %753 = vmatmul.mubr.bf16.gmra.mrb[0].mxu0 %v680
        %v754 = vpop.f32.mrb[0].mxu0
        %v755 = vadd.f32 %v670, %v754
        %v756 = vpop.f32.mrb[0].mxu0
        %v757 = vpop.f32.mrb[0].mxu0
        %v758 = vadd.f32 %v670, %v757
        %v759 = vpop.f32.mrb[0].mxu0
        %760 = vmatprep.mubr.bf16.mxu0 0
        %761 = vmatmul.mubr.bf16.gmra.mrb[0].mxu0 %v683
        %v762 = vpop.f32.mrb[0].mxu0
        %v763 = vadd.f32 %v670, %v762
        %v764 = vpop.f32.mrb[0].mxu0
        %v765 = vpop.f32.mrb[0].mxu0
        %v766 = vadd.f32 %v670, %v765
        %v767 = vpop.f32.mrb[0].mxu0
        %768 = vmatprep.mubr.bf16.mxu0 0
        %769 = vmatmul.mubr.bf16.gmra.mrb[0].mxu0 %v686
        %v770 = vpop.f32.mrb[0].mxu0
        %v771 = vadd.f32 %v670, %v770
        %v772 = vpop.f32.mrb[0].mxu0
        %v773 = vpop.f32.mrb[0].mxu0
        %v774 = vadd.f32 %v670, %v773
        %v775 = vpop.f32.mrb[0].mxu0
        %776 = vmatprep.mubr.bf16.mxu0 0
        %777 = vmatmul.mubr.bf16.gmra.mrb[0].mxu0 %v689
        %v778 = vpop.f32.mrb[0].mxu0
        %v779 = vadd.f32 %v670, %v778
        %v780 = vpop.f32.mrb[0].mxu0
        %v781 = vpop.f32.mrb[0].mxu0
        %v782 = vadd.f32 %v670, %v781
        %v783 = vpop.f32.mrb[0].mxu0
        %784 = vmatprep.mubr.bf16.mxu0 0
        %785 = vmatmul.mubr.bf16.gmra.mrb[0].mxu0 %v692
        %v786 = vpop.f32.mrb[0].mxu0
        %v787 = vadd.f32 %v670, %v786
        %v788 = vpop.f32.mrb[0].mxu0
        %v789 = vpop.f32.mrb[0].mxu0
        %v790 = vadd.f32 %v670, %v789
        %v791 = vpop.f32.mrb[0].mxu0
        %792 = vmatprep.mubr.bf16.mxu0 0
        %793 = vmatmul.mubr.bf16.gmra.mrb[0].mxu0 %v695
        %v794 = vpop.f32.mrb[0].mxu0
        %v795 = vadd.f32 %v670, %v794
        %v796 = vpop.f32.mrb[0].mxu0
        %v797 = vpop.f32.mrb[0].mxu0
        %v798 = vadd.f32 %v670, %v797
        %v799 = vpop.f32.mrb[0].mxu0
        %800 = vdwg.mxu0
        %v801 = vmax.f32 %v739, 0.0
        %v802 = vmax.f32 %v742, 0.0
        %v803 = vmax.f32 %v747, 0.0
        %v804 = vmax.f32 %v750, 0.0
        %v805 = vmax.f32 %v755, 0.0
        %v806 = vmax.f32 %v758, 0.0
        %v807 = vmax.f32 %v763, 0.0
        %v808 = vmax.f32 %v766, 0.0
        %v809 = vmax.f32 %v771, 0.0
        %v810 = vmax.f32 %v774, 0.0
        %v811 = vmax.f32 %v779, 0.0
        %v812 = vmax.f32 %v782, 0.0
        %v813 = vmax.f32 %v787, 0.0
        %v814 = vmax.f32 %v790, 0.0
        %v815 = vmax.f32 %v795, 0.0
        %v816 = vmax.f32 %v798, 0.0
        %v817 = vpack.c.bf16 %v802, %v801
        %v818 = vpack.c.bf16 %v804, %v803
        %v819 = vpack.c.bf16 %v806, %v805
        %v820 = vpack.c.bf16 %v808, %v807
        %v821 = vpack.c.bf16 %v810, %v809
        %v822 = vpack.c.bf16 %v812, %v811
        %v823 = vpack.c.bf16 %v814, %v813
        %v824 = vpack.c.bf16 %v816, %v815
        %v825 = vld [vmem:[#allocation6] sm:$0xf]
        %v826 = vld [vmem:[#allocation6 + $0x4] sm:$0xf]
        %v827 = vld [vmem:[#allocation6 + $0x8] sm:$0xf]
        %v828 = vld [vmem:[#allocation6 + $0xc] sm:$0xf]
        %v829 = vld [vmem:[#allocation6 + $0x10] sm:$0xf]
        %v830 = vld [vmem:[#allocation6 + $0x14] sm:$0xf]
        %v831 = vld [vmem:[#allocation6 + $0x18] sm:$0xf]
        %v832 = vld [vmem:[#allocation6 + $0x1c] sm:$0xf]
        %v833 = vld [vmem:[#allocation7] sm:$0x1]
        %v835 = vlaneseq
        %v836 = vshrl.u32 %v835, 7
        %v837 = vsub.s32 0, %v836
        %v838 = vrot.slane %v833, %v837
        %v848 = vunpack.c.l.b16 %v825
        %v849 = vunpack.c.l.b16 %v826
        %v850 = vunpack.c.l.b16 %v827
        %v851 = vunpack.c.l.b16 %v828
        %v852 = vunpack.c.l.b16 %v829
        %v853 = vunpack.c.l.b16 %v830
        %v854 = vunpack.c.l.b16 %v831
        %v855 = vunpack.c.l.b16 %v832
        %v856 = vpack.c.b16 %v849, %v848
        %v857 = vpack.c.b16 %v851, %v850
        %v858 = vpack.c.b16 %v853, %v852
        %v859 = vpack.c.b16 %v855, %v854
        %vm864 = vcmask 523264
        %v866 = vsel %vm864, %v817, 0
        %v869 = vsel %vm864, %v818, 0
        %v872 = vsel %vm864, %v819, 0
        %v875 = vsel %vm864, %v820, 0
        %v878 = vsel %vm864, %v821, 0
        %v881 = vsel %vm864, %v822, 0
        %v884 = vsel %vm864, %v823, 0
        %v887 = vsel %vm864, %v824, 0
        %889 = vmatprep.subr.bf16.mxu0 0
        %890 = vmatpush1.bf16.msra.mxu0 %v856
        %891 = vmatprep.subr.bf16.mxu0 0
        %892 = vmatpush1.bf16.msra.mxu0 %v857
        %893 = vmatprep.subr.bf16.mxu0 0
        %894 = vmatpush1.bf16.msra.mxu0 %v858
        %895 = vmatprep.subr.bf16.mxu0 0
        %896 = vmatpush1.bf16.msra.mxu0 %v859
        %897 = vmatprep.subr.bf16.mxu0 0
        %898 = vmatpush1.bf16.msra.mxu0 0
        %899 = vmatprep.subr.bf16.mxu0 0
        %900 = vmatpush1.bf16.msra.mxu0 0
        %901 = vmatprep.subr.bf16.mxu0 0
        %902 = vmatpush1.bf16.msra.mxu0 0
        %903 = vmatprep.subr.bf16.mxu0 0
        %904 = vmatpush1.bf16.msra.mxu0 0
        %905 = vmatprep.subr.bf16.mxu0 0
        %906 = vmatpush1.bf16.msra.mxu0 0
        %907 = vmatprep.subr.bf16.mxu0 0
        %908 = vmatpush1.bf16.msra.mxu0 0
        %909 = vmatprep.subr.bf16.mxu0 0
        %910 = vmatpush1.bf16.msra.mxu0 0
        %911 = vmatprep.subr.bf16.mxu0 0
        %912 = vmatpush1.bf16.msra.mxu0 0
        %913 = vmatprep.subr.bf16.mxu0 0
        %914 = vmatpush1.bf16.msra.mxu0 0
        %915 = vmatprep.subr.bf16.mxu0 0
        %916 = vmatpush1.bf16.msra.mxu0 0
        %917 = vmatprep.subr.bf16.mxu0 0
        %918 = vmatpush1.bf16.msra.mxu0 0
        %919 = vmatprep.subr.bf16.mxu0 0
        %920 = vmatpush1.bf16.msra.mxu0 0
        %921 = vmatprep.mubr.bf16.mxu0 0
        %922 = vmatmul.mubr.bf16.gmra.mrb[0].mxu0 %v866
        %v923 = vpop.f32.mrb[0].mxu0
        %v924 = vadd.f32 %v838, %v923
        %v925 = vpop.f32.mrb[0].mxu0
        %v926 = vpop.f32.mrb[0].mxu0
        %v927 = vadd.f32 %v838, %v926
        %v928 = vpop.f32.mrb[0].mxu0
        %929 = vmatprep.mubr.bf16.mxu0 0
        %930 = vmatmul.mubr.bf16.gmra.mrb[0].mxu0 %v869
        %v931 = vpop.f32.mrb[0].mxu0
        %v932 = vadd.f32 %v838, %v931
        %v933 = vpop.f32.mrb[0].mxu0
        %v934 = vpop.f32.mrb[0].mxu0
        %v935 = vadd.f32 %v838, %v934
        %v936 = vpop.f32.mrb[0].mxu0
        %937 = vmatprep.mubr.bf16.mxu0 0
        %938 = vmatmul.mubr.bf16.gmra.mrb[0].mxu0 %v872
        %v939 = vpop.f32.mrb[0].mxu0
        %v940 = vadd.f32 %v838, %v939
        %v941 = vpop.f32.mrb[0].mxu0
        %v942 = vpop.f32.mrb[0].mxu0
        %v943 = vadd.f32 %v838, %v942
        %v944 = vpop.f32.mrb[0].mxu0
        %945 = vmatprep.mubr.bf16.mxu0 0
        %946 = vmatmul.mubr.bf16.gmra.mrb[0].mxu0 %v875
        %v947 = vpop.f32.mrb[0].mxu0
        %v948 = vadd.f32 %v838, %v947
        %v949 = vpop.f32.mrb[0].mxu0
        %v950 = vpop.f32.mrb[0].mxu0
        %v951 = vadd.f32 %v838, %v950
        %v952 = vpop.f32.mrb[0].mxu0
        %953 = vmatprep.mubr.bf16.mxu0 0
        %954 = vmatmul.mubr.bf16.gmra.mrb[0].mxu0 %v878
        %v955 = vpop.f32.mrb[0].mxu0
        %v956 = vadd.f32 %v838, %v955
        %v957 = vpop.f32.mrb[0].mxu0
        %v958 = vpop.f32.mrb[0].mxu0
        %v959 = vadd.f32 %v838, %v958
        %v960 = vpop.f32.mrb[0].mxu0
        %961 = vmatprep.mubr.bf16.mxu0 0
        %962 = vmatmul.mubr.bf16.gmra.mrb[0].mxu0 %v881
        %v963 = vpop.f32.mrb[0].mxu0
        %v964 = vadd.f32 %v838, %v963
        %v965 = vpop.f32.mrb[0].mxu0
        %v966 = vpop.f32.mrb[0].mxu0
        %v967 = vadd.f32 %v838, %v966
        %v968 = vpop.f32.mrb[0].mxu0
        %969 = vmatprep.mubr.bf16.mxu0 0
        %970 = vmatmul.mubr.bf16.gmra.mrb[0].mxu0 %v884
        %v971 = vpop.f32.mrb[0].mxu0
        %v972 = vadd.f32 %v838, %v971
        %v973 = vpop.f32.mrb[0].mxu0
        %v974 = vpop.f32.mrb[0].mxu0
        %v975 = vadd.f32 %v838, %v974
        %v976 = vpop.f32.mrb[0].mxu0
        %977 = vmatprep.mubr.bf16.mxu0 0
        %978 = vmatmul.mubr.bf16.gmra.mrb[0].mxu0 %v887
        %v979 = vpop.f32.mrb[0].mxu0
        %v980 = vadd.f32 %v838, %v979
        %v981 = vpop.f32.mrb[0].mxu0
        %v982 = vpop.f32.mrb[0].mxu0
        %v983 = vadd.f32 %v838, %v982
        %v984 = vpop.f32.mrb[0].mxu0
        %985 = vdwg.mxu0
        %v986 = vld [vmem:[#allocation9] sm:$0x3]
        %v988 = vand.u32 %v986, %v700
        %990 = vmatprep.subr.bf16.mxu0 0
        %991 = vmatpush1.bf16.msra.mxu0 %v988
        %992 = vmatprep.subr.bf16.mxu0 0
        %993 = vmatpush1.bf16.msra.mxu0 0
        %994 = vmatprep.subr.bf16.mxu0 0
        %995 = vmatpush1.bf16.msra.mxu0 0
        %996 = vmatprep.subr.bf16.mxu0 0
        %997 = vmatpush1.bf16.msra.mxu0 0
        %998 = vmatprep.subr.bf16.mxu0 0
        %999 = vmatpush1.bf16.msra.mxu0 0
        %1000 = vmatprep.subr.bf16.mxu0 0
        %1001 = vmatpush1.bf16.msra.mxu0 0
        %1002 = vmatprep.subr.bf16.mxu0 0
        %1003 = vmatpush1.bf16.msra.mxu0 0
        %1004 = vmatprep.subr.bf16.mxu0 0
        %1005 = vmatpush1.bf16.msra.mxu0 0
        %1006 = vmatprep.subr.bf16.mxu0 0
        %1007 = vmatpush1.bf16.msra.mxu0 0
        %1008 = vmatprep.subr.bf16.mxu0 0
        %1009 = vmatpush1.bf16.msra.mxu0 0
        %1010 = vmatprep.subr.bf16.mxu0 0
        %1011 = vmatpush1.bf16.msra.mxu0 0
        %1012 = vmatprep.subr.bf16.mxu0 0
        %1013 = vmatpush1.bf16.msra.mxu0 0
        %1014 = vmatprep.subr.bf16.mxu0 0
        %1015 = vmatpush1.bf16.msra.mxu0 0
        %1016 = vmatprep.subr.bf16.mxu0 0
        %1017 = vmatpush1.bf16.msra.mxu0 0
        %1018 = vmatprep.subr.bf16.mxu0 0
        %1019 = vmatpush1.bf16.msra.mxu0 0
        %1020 = vmatprep.subr.bf16.mxu0 0
        %1021 = vmatpush1.bf16.msra.mxu0 0
        %1022 = vmatprep.mubr.bf16.mxu0 0
        %1023 = vmatmul.mubr.bf16.gmra.mrb[0].mxu0 %v674
        %v1024 = vpop.f32.mrb[0].mxu0
        %v1025 = vadd.f32 0.0, %v1024
        %v1026 = vpop.f32.mrb[0].mxu0
        %v1027 = vpop.f32.mrb[0].mxu0
        %v1028 = vadd.f32 0.0, %v1027
        %v1029 = vpop.f32.mrb[0].mxu0
        %1030 = vmatprep.mubr.bf16.mxu0 0
        %1031 = vmatmul.mubr.bf16.gmra.mrb[0].mxu0 %v677
        %v1032 = vpop.f32.mrb[0].mxu0
        %v1033 = vadd.f32 0.0, %v1032
        %v1034 = vpop.f32.mrb[0].mxu0
        %v1035 = vpop.f32.mrb[0].mxu0
        %v1036 = vadd.f32 0.0, %v1035
        %v1037 = vpop.f32.mrb[0].mxu0
        %1038 = vmatprep.mubr.bf16.mxu0 0
        %1039 = vmatmul.mubr.bf16.gmra.mrb[0].mxu0 %v680
        %v1040 = vpop.f32.mrb[0].mxu0
        %v1041 = vadd.f32 0.0, %v1040
        %v1042 = vpop.f32.mrb[0].mxu0
        %v1043 = vpop.f32.mrb[0].mxu0
        %v1044 = vadd.f32 0.0, %v1043
        %v1045 = vpop.f32.mrb[0].mxu0
        %1046 = vmatprep.mubr.bf16.mxu0 0
        %1047 = vmatmul.mubr.bf16.gmra.mrb[0].mxu0 %v683
        %v1048 = vpop.f32.mrb[0].mxu0
        %v1049 = vadd.f32 0.0, %v1048
        %v1050 = vpop.f32.mrb[0].mxu0
        %v1051 = vpop.f32.mrb[0].mxu0
        %v1052 = vadd.f32 0.0, %v1051
        %v1053 = vpop.f32.mrb[0].mxu0
        %1054 = vmatprep.mubr.bf16.mxu0 0
        %1055 = vmatmul.mubr.bf16.gmra.mrb[0].mxu0 %v686
        %v1056 = vpop.f32.mrb[0].mxu0
        %v1057 = vadd.f32 0.0, %v1056
        %v1058 = vpop.f32.mrb[0].mxu0
        %v1059 = vpop.f32.mrb[0].mxu0
        %v1060 = vadd.f32 0.0, %v1059
        %v1061 = vpop.f32.mrb[0].mxu0
        %1062 = vmatprep.mubr.bf16.mxu0 0
        %1063 = vmatmul.mubr.bf16.gmra.mrb[0].mxu0 %v689
        %v1064 = vpop.f32.mrb[0].mxu0
        %v1065 = vadd.f32 0.0, %v1064
        %v1066 = vpop.f32.mrb[0].mxu0
        %v1067 = vpop.f32.mrb[0].mxu0
        %v1068 = vadd.f32 0.0, %v1067
        %v1069 = vpop.f32.mrb[0].mxu0
        %1070 = vmatprep.mubr.bf16.mxu0 0
        %1071 = vmatmul.mubr.bf16.gmra.mrb[0].mxu0 %v692
        %v1072 = vpop.f32.mrb[0].mxu0
        %v1073 = vadd.f32 0.0, %v1072
        %v1074 = vpop.f32.mrb[0].mxu0
        %v1075 = vpop.f32.mrb[0].mxu0
        %v1076 = vadd.f32 0.0, %v1075
        %v1077 = vpop.f32.mrb[0].mxu0
        %1078 = vmatprep.mubr.bf16.mxu0 0
        %1079 = vmatmul.mubr.bf16.gmra.mrb[0].mxu0 %v695
        %v1080 = vpop.f32.mrb[0].mxu0
        %v1081 = vadd.f32 0.0, %v1080
        %v1082 = vpop.f32.mrb[0].mxu0
        %v1083 = vpop.f32.mrb[0].mxu0
        %v1084 = vadd.f32 0.0, %v1083
        %v1085 = vpop.f32.mrb[0].mxu0
        %1086 = vdwg.mxu0
        %v1087 = vadd.f32 %v924, %v1025
        %v1088 = vadd.f32 %v927, %v1028
        %v1089 = vadd.f32 %v932, %v1033
        %v1090 = vadd.f32 %v935, %v1036
        %v1091 = vadd.f32 %v940, %v1041
        %v1092 = vadd.f32 %v943, %v1044
        %v1093 = vadd.f32 %v948, %v1049
        %v1094 = vadd.f32 %v951, %v1052
        %v1095 = vadd.f32 %v956, %v1057
        %v1096 = vadd.f32 %v959, %v1060
        %v1097 = vadd.f32 %v964, %v1065
        %v1098 = vadd.f32 %v967, %v1068
        %v1099 = vadd.f32 %v972, %v1073
        %v1100 = vadd.f32 %v975, %v1076
        %v1101 = vadd.f32 %v980, %v1081
        %v1102 = vadd.f32 %v983, %v1084
        %v1103 = vmax.f32 %v1087, 0.0
        %v1104 = vmax.f32 %v1088, 0.0
        %v1105 = vmax.f32 %v1089, 0.0
        %v1106 = vmax.f32 %v1090, 0.0
        %v1107 = vmax.f32 %v1091, 0.0
        %v1108 = vmax.f32 %v1092, 0.0
        %v1109 = vmax.f32 %v1093, 0.0
        %v1110 = vmax.f32 %v1094, 0.0
        %v1111 = vmax.f32 %v1095, 0.0
        %v1112 = vmax.f32 %v1096, 0.0
        %v1113 = vmax.f32 %v1097, 0.0
        %v1114 = vmax.f32 %v1098, 0.0
        %v1115 = vmax.f32 %v1099, 0.0
        %v1116 = vmax.f32 %v1100, 0.0
        %v1117 = vmax.f32 %v1101, 0.0
        %v1118 = vmax.f32 %v1102, 0.0
        %v1119 = vpack.c.bf16 %v1104, %v1103
        %v1120 = vpack.c.bf16 %v1106, %v1105
        %v1121 = vpack.c.bf16 %v1108, %v1107
        %v1122 = vpack.c.bf16 %v1110, %v1109
        %v1123 = vpack.c.bf16 %v1112, %v1111
        %v1124 = vpack.c.bf16 %v1114, %v1113
        %v1125 = vpack.c.bf16 %v1116, %v1115
        %v1126 = vpack.c.bf16 %v1118, %v1117
        %v1127 = vld [vmem:[#allocation10] sm:$0xf]
        %v1128 = vld [vmem:[#allocation10 + $0x4] sm:$0xf]
        %v1129 = vld [vmem:[#allocation10 + $0x8] sm:$0xf]
        %v1130 = vld [vmem:[#allocation10 + $0xc] sm:$0xf]
        %v1131 = vld [vmem:[#allocation10 + $0x10] sm:$0xf]
        %v1132 = vld [vmem:[#allocation10 + $0x14] sm:$0xf]
        %v1133 = vld [vmem:[#allocation10 + $0x18] sm:$0xf]
        %v1134 = vld [vmem:[#allocation10 + $0x1c] sm:$0xf]
        %v1135 = vld [vmem:[#allocation12] sm:$0x1]
        %v1137 = vlaneseq
        %v1138 = vshrl.u32 %v1137, 7
        %v1139 = vsub.s32 0, %v1138
        %v1140 = vrot.slane %v1135, %v1139
        %v1150 = vunpack.c.l.b16 %v1127
        %v1151 = vunpack.c.l.b16 %v1128
        %v1152 = vunpack.c.l.b16 %v1129
        %v1153 = vunpack.c.l.b16 %v1130
        %v1154 = vunpack.c.l.b16 %v1131
        %v1155 = vunpack.c.l.b16 %v1132
        %v1156 = vunpack.c.l.b16 %v1133
        %v1157 = vunpack.c.l.b16 %v1134
        %v1158 = vpack.c.b16 %v1151, %v1150
        %v1159 = vpack.c.b16 %v1153, %v1152
        %v1160 = vpack.c.b16 %v1155, %v1154
        %v1161 = vpack.c.b16 %v1157, %v1156
        %v1167 = vsel %vm864, %v1119, 0
        %v1170 = vsel %vm864, %v1120, 0
        %v1173 = vsel %vm864, %v1121, 0
        %v1176 = vsel %vm864, %v1122, 0
        %v1179 = vsel %vm864, %v1123, 0
        %v1182 = vsel %vm864, %v1124, 0
        %v1185 = vsel %vm864, %v1125, 0
        %v1188 = vsel %vm864, %v1126, 0
        %1190 = vmatprep.subr.bf16.mxu0 0
        %1191 = vmatpush1.bf16.msra.mxu0 %v1158
        %1192 = vmatprep.subr.bf16.mxu0 0
        %1193 = vmatpush1.bf16.msra.mxu0 %v1159
        %1194 = vmatprep.subr.bf16.mxu0 0
        %1195 = vmatpush1.bf16.msra.mxu0 %v1160
        %1196 = vmatprep.subr.bf16.mxu0 0
        %1197 = vmatpush1.bf16.msra.mxu0 %v1161
        %1198 = vmatprep.subr.bf16.mxu0 0
        %1199 = vmatpush1.bf16.msra.mxu0 0
        %1200 = vmatprep.subr.bf16.mxu0 0
        %1201 = vmatpush1.bf16.msra.mxu0 0
        %1202 = vmatprep.subr.bf16.mxu0 0
        %1203 = vmatpush1.bf16.msra.mxu0 0
        %1204 = vmatprep.subr.bf16.mxu0 0
        %1205 = vmatpush1.bf16.msra.mxu0 0
        %1206 = vmatprep.subr.bf16.mxu0 0
        %1207 = vmatpush1.bf16.msra.mxu0 0
        %1208 = vmatprep.subr.bf16.mxu0 0
        %1209 = vmatpush1.bf16.msra.mxu0 0
        %1210 = vmatprep.subr.bf16.mxu0 0
        %1211 = vmatpush1.bf16.msra.mxu0 0
        %1212 = vmatprep.subr.bf16.mxu0 0
        %1213 = vmatpush1.bf16.msra.mxu0 0
        %1214 = vmatprep.subr.bf16.mxu0 0
        %1215 = vmatpush1.bf16.msra.mxu0 0
        %1216 = vmatprep.subr.bf16.mxu0 0
        %1217 = vmatpush1.bf16.msra.mxu0 0
        %1218 = vmatprep.subr.bf16.mxu0 0
        %1219 = vmatpush1.bf16.msra.mxu0 0
        %1220 = vmatprep.subr.bf16.mxu0 0
        %1221 = vmatpush1.bf16.msra.mxu0 0
        %1222 = vmatprep.mubr.bf16.mxu0 0
        %1223 = vmatmul.mubr.bf16.gmra.mrb[0].mxu0 %v1167
        %v1224 = vpop.f32.mrb[0].mxu0
        %v1225 = vadd.f32 %v1140, %v1224
        %v1226 = vpop.f32.mrb[0].mxu0
        %v1227 = vpop.f32.mrb[0].mxu0
        %v1228 = vadd.f32 %v1140, %v1227
        %v1229 = vpop.f32.mrb[0].mxu0
        %1230 = vmatprep.mubr.bf16.mxu0 0
        %1231 = vmatmul.mubr.bf16.gmra.mrb[0].mxu0 %v1170
        %v1232 = vpop.f32.mrb[0].mxu0
        %v1233 = vadd.f32 %v1140, %v1232
        %v1234 = vpop.f32.mrb[0].mxu0
        %v1235 = vpop.f32.mrb[0].mxu0
        %v1236 = vadd.f32 %v1140, %v1235
        %v1237 = vpop.f32.mrb[0].mxu0
        %1238 = vmatprep.mubr.bf16.mxu0 0
        %1239 = vmatmul.mubr.bf16.gmra.mrb[0].mxu0 %v1173
        %v1240 = vpop.f32.mrb[0].mxu0
        %v1241 = vadd.f32 %v1140, %v1240
        %v1242 = vpop.f32.mrb[0].mxu0
        %v1243 = vpop.f32.mrb[0].mxu0
        %v1244 = vadd.f32 %v1140, %v1243
        %v1245 = vpop.f32.mrb[0].mxu0
        %1246 = vmatprep.mubr.bf16.mxu0 0
        %1247 = vmatmul.mubr.bf16.gmra.mrb[0].mxu0 %v1176
        %v1248 = vpop.f32.mrb[0].mxu0
        %v1249 = vadd.f32 %v1140, %v1248
        %v1250 = vpop.f32.mrb[0].mxu0
        %v1251 = vpop.f32.mrb[0].mxu0
        %v1252 = vadd.f32 %v1140, %v1251
        %v1253 = vpop.f32.mrb[0].mxu0
        %1254 = vmatprep.mubr.bf16.mxu0 0
        %1255 = vmatmul.mubr.bf16.gmra.mrb[0].mxu0 %v1179
        %v1256 = vpop.f32.mrb[0].mxu0
        %v1257 = vadd.f32 %v1140, %v1256
        %v1258 = vpop.f32.mrb[0].mxu0
        %v1259 = vpop.f32.mrb[0].mxu0
        %v1260 = vadd.f32 %v1140, %v1259
        %v1261 = vpop.f32.mrb[0].mxu0
        %1262 = vmatprep.mubr.bf16.mxu0 0
        %1263 = vmatmul.mubr.bf16.gmra.mrb[0].mxu0 %v1182
        %v1264 = vpop.f32.mrb[0].mxu0
        %v1265 = vadd.f32 %v1140, %v1264
        %v1266 = vpop.f32.mrb[0].mxu0
        %v1267 = vpop.f32.mrb[0].mxu0
        %v1268 = vadd.f32 %v1140, %v1267
        %v1269 = vpop.f32.mrb[0].mxu0
        %1270 = vmatprep.mubr.bf16.mxu0 0
        %1271 = vmatmul.mubr.bf16.gmra.mrb[0].mxu0 %v1185
        %v1272 = vpop.f32.mrb[0].mxu0
        %v1273 = vadd.f32 %v1140, %v1272
        %v1274 = vpop.f32.mrb[0].mxu0
        %v1275 = vpop.f32.mrb[0].mxu0
        %v1276 = vadd.f32 %v1140, %v1275
        %v1277 = vpop.f32.mrb[0].mxu0
        %1278 = vmatprep.mubr.bf16.mxu0 0
        %1279 = vmatmul.mubr.bf16.gmra.mrb[0].mxu0 %v1188
        %v1280 = vpop.f32.mrb[0].mxu0
        %v1281 = vadd.f32 %v1140, %v1280
        %v1282 = vpop.f32.mrb[0].mxu0
        %v1283 = vpop.f32.mrb[0].mxu0
        %v1284 = vadd.f32 %v1140, %v1283
        %v1285 = vpop.f32.mrb[0].mxu0
        %1286 = vdwg.mxu0
        %v1287 = vmax.f32 %v1225, 0.0
        %v1288 = vmax.f32 %v1228, 0.0
        %v1289 = vmax.f32 %v1233, 0.0
        %v1290 = vmax.f32 %v1236, 0.0
        %v1291 = vmax.f32 %v1241, 0.0
        %v1292 = vmax.f32 %v1244, 0.0
        %v1293 = vmax.f32 %v1249, 0.0
        %v1294 = vmax.f32 %v1252, 0.0
        %v1295 = vmax.f32 %v1257, 0.0
        %v1296 = vmax.f32 %v1260, 0.0
        %v1297 = vmax.f32 %v1265, 0.0
        %v1298 = vmax.f32 %v1268, 0.0
        %v1299 = vmax.f32 %v1273, 0.0
        %v1300 = vmax.f32 %v1276, 0.0
        %v1301 = vmax.f32 %v1281, 0.0
        %v1302 = vmax.f32 %v1284, 0.0
        %v1303 = vpack.c.bf16 %v1288, %v1287
        %v1304 = vpack.c.bf16 %v1290, %v1289
        %v1305 = vpack.c.bf16 %v1292, %v1291
        %v1306 = vpack.c.bf16 %v1294, %v1293
        %v1307 = vpack.c.bf16 %v1296, %v1295
        %v1308 = vpack.c.bf16 %v1298, %v1297
        %v1309 = vpack.c.bf16 %v1300, %v1299
        %v1310 = vpack.c.bf16 %v1302, %v1301
        %v1311 = vld [vmem:[#allocation13] sm:$0xf]
        %v1312 = vld [vmem:[#allocation13 + $0x4] sm:$0xf]
        %v1313 = vld [vmem:[#allocation13 + $0x8] sm:$0xf]
        %v1314 = vld [vmem:[#allocation13 + $0xc] sm:$0xf]
        %v1315 = vld [vmem:[#allocation13 + $0x10] sm:$0xf]
        %v1316 = vld [vmem:[#allocation13 + $0x14] sm:$0xf]
        %v1317 = vld [vmem:[#allocation13 + $0x18] sm:$0xf]
        %v1318 = vld [vmem:[#allocation13 + $0x1c] sm:$0xf]
        %v1319 = vld [vmem:[#allocation13 + $0x20] sm:$0xf]
        %v1320 = vld [vmem:[#allocation13 + $0x24] sm:$0xf]
        %v1321 = vld [vmem:[#allocation13 + $0x28] sm:$0xf]
        %v1322 = vld [vmem:[#allocation13 + $0x2c] sm:$0xf]
        %v1323 = vld [vmem:[#allocation13 + $0x30] sm:$0xf]
        %v1324 = vld [vmem:[#allocation13 + $0x34] sm:$0xf]
        %v1325 = vld [vmem:[#allocation13 + $0x38] sm:$0xf]
        %v1326 = vld [vmem:[#allocation13 + $0x3c] sm:$0xf]
        %v1327 = vld [vmem:[#allocation13 + $0x40] sm:$0xf]
        %v1328 = vld [vmem:[#allocation13 + $0x44] sm:$0xf]
        %v1329 = vld [vmem:[#allocation13 + $0x48] sm:$0xf]
        %v1330 = vld [vmem:[#allocation13 + $0x4c] sm:$0xf]
        %v1331 = vld [vmem:[#allocation13 + $0x50] sm:$0xf]
        %v1332 = vld [vmem:[#allocation13 + $0x54] sm:$0xf]
        %v1333 = vld [vmem:[#allocation13 + $0x58] sm:$0xf]
        %v1334 = vld [vmem:[#allocation13 + $0x5c] sm:$0xf]
        %v1335 = vld [vmem:[#allocation15] sm:$0x1]
        %v1337 = vlaneseq
        %v1338 = vshrl.u32 %v1337, 7
        %v1339 = vsub.s32 0, %v1338
        %v1340 = vrot.slane %v1335, %v1339
        %v1366 = vunpack.c.l.b16 %v1311
        %v1367 = vunpack.c.l.b16 %v1312
        %v1368 = vunpack.c.l.b16 %v1313
        %v1369 = vunpack.c.l.b16 %v1314
        %v1370 = vunpack.c.l.b16 %v1315
        %v1371 = vunpack.c.l.b16 %v1316
        %v1372 = vunpack.c.l.b16 %v1317
        %v1373 = vunpack.c.l.b16 %v1318
        %v1374 = vunpack.c.l.b16 %v1319
        %v1375 = vunpack.c.l.b16 %v1320
        %v1376 = vunpack.c.l.b16 %v1321
        %v1377 = vunpack.c.l.b16 %v1322
        %v1378 = vunpack.c.l.b16 %v1323
        %v1379 = vunpack.c.l.b16 %v1324
        %v1380 = vunpack.c.l.b16 %v1325
        %v1381 = vunpack.c.l.b16 %v1326
        %v1382 = vunpack.c.l.b16 %v1327
        %v1383 = vunpack.c.l.b16 %v1328
        %v1384 = vunpack.c.l.b16 %v1329
        %v1385 = vunpack.c.l.b16 %v1330
        %v1386 = vunpack.c.l.b16 %v1331
        %v1387 = vunpack.c.l.b16 %v1332
        %v1388 = vunpack.c.l.b16 %v1333
        %v1389 = vunpack.c.l.b16 %v1334
        %v1390 = vpack.c.b16 %v1367, %v1366
        %v1391 = vpack.c.b16 %v1369, %v1368
        %v1392 = vpack.c.b16 %v1371, %v1370
        %v1393 = vpack.c.b16 %v1373, %v1372
        %v1394 = vpack.c.b16 %v1375, %v1374
        %v1395 = vpack.c.b16 %v1377, %v1376
        %v1396 = vpack.c.b16 %v1379, %v1378
        %v1397 = vpack.c.b16 %v1381, %v1380
        %v1398 = vpack.c.b16 %v1383, %v1382
        %v1399 = vpack.c.b16 %v1385, %v1384
        %v1400 = vpack.c.b16 %v1387, %v1386
        %v1401 = vpack.c.b16 %v1389, %v1388
        %1414 = vmatprep.subr.bf16.mxu0 0
        %1415 = vmatpush1.bf16.msra.mxu0 %v1390
        %1416 = vmatprep.subr.bf16.mxu0 0
        %1417 = vmatpush1.bf16.msra.mxu0 %v1391
        %1418 = vmatprep.subr.bf16.mxu0 0
        %1419 = vmatpush1.bf16.msra.mxu0 %v1392
        %1420 = vmatprep.subr.bf16.mxu0 0
        %1421 = vmatpush1.bf16.msra.mxu0 %v1393
        %1422 = vmatprep.subr.bf16.mxu0 0
        %1423 = vmatpush1.bf16.msra.mxu0 %v1394
        %1424 = vmatprep.subr.bf16.mxu0 0
        %1425 = vmatpush1.bf16.msra.mxu0 %v1395
        %1426 = vmatprep.subr.bf16.mxu0 0
        %1427 = vmatpush1.bf16.msra.mxu0 %v1396
        %1428 = vmatprep.subr.bf16.mxu0 0
        %1429 = vmatpush1.bf16.msra.mxu0 %v1397
        %1430 = vmatprep.subr.bf16.mxu0 0
        %1431 = vmatpush1.bf16.msra.mxu0 %v1398
        %1432 = vmatprep.subr.bf16.mxu0 0
        %1433 = vmatpush1.bf16.msra.mxu0 %v1399
        %1434 = vmatprep.subr.bf16.mxu0 0
        %1435 = vmatpush1.bf16.msra.mxu0 %v1400
        %1436 = vmatprep.subr.bf16.mxu0 0
        %1437 = vmatpush1.bf16.msra.mxu0 %v1401
        %1438 = vmatprep.subr.bf16.mxu0 0
        %1439 = vmatpush1.bf16.msra.mxu0 0
        %1440 = vmatprep.subr.bf16.mxu0 0
        %1441 = vmatpush1.bf16.msra.mxu0 0
        %1442 = vmatprep.subr.bf16.mxu0 0
        %1443 = vmatpush1.bf16.msra.mxu0 0
        %1444 = vmatprep.subr.bf16.mxu0 0
        %1445 = vmatpush1.bf16.msra.mxu0 0
        %1446 = vmatprep.mubr.bf16.mxu0 %v1167
        %1447 = vmatmul.mubr.bf16.gmra.mrb[0].mxu0 %v1303
        %v1448 = vpop.f32.mrb[0].mxu0
        %v1449 = vadd.f32 %v1340, %v1448
        %v1450 = vpop.f32.mrb[0].mxu0
        %v1451 = vpop.f32.mrb[0].mxu0
        %v1452 = vadd.f32 %v1340, %v1451
        %v1453 = vpop.f32.mrb[0].mxu0
        %1454 = vmatprep.mubr.bf16.mxu0 %v1170
        %1455 = vmatmul.mubr.bf16.gmra.mrb[0].mxu0 %v1304
        %v1456 = vpop.f32.mrb[0].mxu0
        %v1457 = vadd.f32 %v1340, %v1456
        %v1458 = vpop.f32.mrb[0].mxu0
        %v1459 = vpop.f32.mrb[0].mxu0
        %v1460 = vadd.f32 %v1340, %v1459
        %v1461 = vpop.f32.mrb[0].mxu0
        %1462 = vmatprep.mubr.bf16.mxu0 %v1173
        %1463 = vmatmul.mubr.bf16.gmra.mrb[0].mxu0 %v1305
        %v1464 = vpop.f32.mrb[0].mxu0
        %v1465 = vadd.f32 %v1340, %v1464
        %v1466 = vpop.f32.mrb[0].mxu0
        %v1467 = vpop.f32.mrb[0].mxu0
        %v1468 = vadd.f32 %v1340, %v1467
        %v1469 = vpop.f32.mrb[0].mxu0
        %1470 = vmatprep.mubr.bf16.mxu0 %v1176
        %1471 = vmatmul.mubr.bf16.gmra.mrb[0].mxu0 %v1306
        %v1472 = vpop.f32.mrb[0].mxu0
        %v1473 = vadd.f32 %v1340, %v1472
        %v1474 = vpop.f32.mrb[0].mxu0
        %v1475 = vpop.f32.mrb[0].mxu0
        %v1476 = vadd.f32 %v1340, %v1475
        %v1477 = vpop.f32.mrb[0].mxu0
        %1478 = vmatprep.mubr.bf16.mxu0 %v1179
        %1479 = vmatmul.mubr.bf16.gmra.mrb[0].mxu0 %v1307
        %v1480 = vpop.f32.mrb[0].mxu0
        %v1481 = vadd.f32 %v1340, %v1480
        %v1482 = vpop.f32.mrb[0].mxu0
        %v1483 = vpop.f32.mrb[0].mxu0
        %v1484 = vadd.f32 %v1340, %v1483
        %v1485 = vpop.f32.mrb[0].mxu0
        %1486 = vmatprep.mubr.bf16.mxu0 %v1182
        %1487 = vmatmul.mubr.bf16.gmra.mrb[0].mxu0 %v1308
        %v1488 = vpop.f32.mrb[0].mxu0
        %v1489 = vadd.f32 %v1340, %v1488
        %v1490 = vpop.f32.mrb[0].mxu0
        %v1491 = vpop.f32.mrb[0].mxu0
        %v1492 = vadd.f32 %v1340, %v1491
        %v1493 = vpop.f32.mrb[0].mxu0
        %1494 = vmatprep.mubr.bf16.mxu0 %v1185
        %1495 = vmatmul.mubr.bf16.gmra.mrb[0].mxu0 %v1309
        %v1496 = vpop.f32.mrb[0].mxu0
        %v1497 = vadd.f32 %v1340, %v1496
        %v1498 = vpop.f32.mrb[0].mxu0
        %v1499 = vpop.f32.mrb[0].mxu0
        %v1500 = vadd.f32 %v1340, %v1499
        %v1501 = vpop.f32.mrb[0].mxu0
        %1502 = vmatprep.mubr.bf16.mxu0 %v1188
        %1503 = vmatmul.mubr.bf16.gmra.mrb[0].mxu0 %v1310
        %v1504 = vpop.f32.mrb[0].mxu0
        %v1505 = vadd.f32 %v1340, %v1504
        %v1506 = vpop.f32.mrb[0].mxu0
        %v1507 = vpop.f32.mrb[0].mxu0
        %v1508 = vadd.f32 %v1340, %v1507
        %v1509 = vpop.f32.mrb[0].mxu0
        %1510 = vdwg.mxu0
        %v1511 = vmax.f32 %v1449, 0.0
        %v1512 = vmax.f32 %v1452, 0.0
        %v1513 = vmax.f32 %v1457, 0.0
        %v1514 = vmax.f32 %v1460, 0.0
        %v1515 = vmax.f32 %v1465, 0.0
        %v1516 = vmax.f32 %v1468, 0.0
        %v1517 = vmax.f32 %v1473, 0.0
        %v1518 = vmax.f32 %v1476, 0.0
        %v1519 = vmax.f32 %v1481, 0.0
        %v1520 = vmax.f32 %v1484, 0.0
        %v1521 = vmax.f32 %v1489, 0.0
        %v1522 = vmax.f32 %v1492, 0.0
        %v1523 = vmax.f32 %v1497, 0.0
        %v1524 = vmax.f32 %v1500, 0.0
        %v1525 = vmax.f32 %v1505, 0.0
        %v1526 = vmax.f32 %v1508, 0.0
        %v1527 = vpack.c.bf16 %v1512, %v1511
        %v1528 = vpack.c.bf16 %v1514, %v1513
        %v1529 = vpack.c.bf16 %v1516, %v1515
        %v1530 = vpack.c.bf16 %v1518, %v1517
        %v1531 = vpack.c.bf16 %v1520, %v1519
        %v1532 = vpack.c.bf16 %v1522, %v1521
        %v1533 = vpack.c.bf16 %v1524, %v1523
        %v1534 = vpack.c.bf16 %v1526, %v1525
        %v1535 = vld [vmem:[#allocation16] sm:$0xff]
        %v1536 = vld [vmem:[#allocation16 + $0x8] sm:$0xff]
        %v1537 = vld [vmem:[#allocation16 + $0x10] sm:$0xff]
        %v1538 = vld [vmem:[#allocation16 + $0x18] sm:$0xff]
        %v1539 = vld [vmem:[#allocation16 + $0x20] sm:$0xff]
        %v1540 = vld [vmem:[#allocation16 + $0x28] sm:$0xff]
        %v1541 = vld [vmem:[#allocation16 + $0x30] sm:$0xff]
        %v1542 = vld [vmem:[#allocation16 + $0x38] sm:$0xff]
        %v1543 = vld [vmem:[#allocation16 + $0x40] sm:$0xff]
        %v1544 = vld [vmem:[#allocation16 + $0x48] sm:$0xff]
        %v1545 = vld [vmem:[#allocation16 + $0x50] sm:$0xff]
        %v1546 = vld [vmem:[#allocation16 + $0x58] sm:$0xff]
        %v1547 = vld [vmem:[#allocation16 + $0x60] sm:$0xff]
        %v1548 = vld [vmem:[#allocation16 + $0x68] sm:$0xff]
        %v1549 = vld [vmem:[#allocation16 + $0x70] sm:$0xff]
        %v1550 = vld [vmem:[#allocation16 + $0x78] sm:$0xff]
        %v1551 = vld [vmem:[#allocation16 + $0x80] sm:$0xff]
        %v1552 = vld [vmem:[#allocation16 + $0x88] sm:$0xff]
        %v1553 = vld [vmem:[#allocation16 + $0x90] sm:$0xff]
        %v1554 = vld [vmem:[#allocation16 + $0x98] sm:$0xff]
        %v1555 = vld [vmem:[#allocation16 + $0xa0] sm:$0xff]
        %v1556 = vld [vmem:[#allocation16 + $0xa8] sm:$0xff]
        %v1557 = vld [vmem:[#allocation16 + $0xb0] sm:$0xff]
        %v1558 = vld [vmem:[#allocation16 + $0xb8] sm:$0xff]
        %v1559 = vld [vmem:[#allocation16 + $0xc0] sm:$0xff]
        %v1560 = vld [vmem:[#allocation16 + $0xc8] sm:$0xff]
        %v1561 = vld [vmem:[#allocation16 + $0xd0] sm:$0xff]
        %v1562 = vld [vmem:[#allocation16 + $0xd8] sm:$0xff]
        %v1563 = vld [vmem:[#allocation16 + $0xe0] sm:$0xff]
        %v1564 = vld [vmem:[#allocation16 + $0xe8] sm:$0xff]
        %v1565 = vld [vmem:[#allocation16 + $0xf0] sm:$0xff]
        %v1566 = vld [vmem:[#allocation16 + $0xf8] sm:$0xff]
        %v1567 = vld [vmem:[#allocation16 + $0x100] sm:$0xff]
        %v1568 = vld [vmem:[#allocation16 + $0x108] sm:$0xff]
        %v1569 = vld [vmem:[#allocation16 + $0x110] sm:$0xff]
        %v1570 = vld [vmem:[#allocation16 + $0x118] sm:$0xff]
        %v1571 = vld [vmem:[#allocation16 + $0x120] sm:$0xff]
        %v1572 = vld [vmem:[#allocation16 + $0x128] sm:$0xff]
        %v1573 = vld [vmem:[#allocation16 + $0x130] sm:$0xff]
        %v1574 = vld [vmem:[#allocation16 + $0x138] sm:$0xff]
        %v1575 = vld [vmem:[#allocation16 + $0x140] sm:$0xff]
        %v1576 = vld [vmem:[#allocation16 + $0x148] sm:$0xff]
        %v1577 = vld [vmem:[#allocation16 + $0x150] sm:$0xff]
        %v1578 = vld [vmem:[#allocation16 + $0x158] sm:$0xff]
        %v1579 = vld [vmem:[#allocation16 + $0x160] sm:$0xff]
        %v1580 = vld [vmem:[#allocation16 + $0x168] sm:$0xff]
        %v1581 = vld [vmem:[#allocation16 + $0x170] sm:$0xff]
        %v1582 = vld [vmem:[#allocation16 + $0x178] sm:$0xff]
        %v1583 = vld [vmem:[#allocation16 + $0x180] sm:$0xff]
        %v1584 = vld [vmem:[#allocation16 + $0x188] sm:$0xff]
        %v1585 = vld [vmem:[#allocation16 + $0x190] sm:$0xff]
        %v1586 = vld [vmem:[#allocation16 + $0x198] sm:$0xff]
        %v1587 = vld [vmem:[#allocation16 + $0x1a0] sm:$0xff]
        %v1588 = vld [vmem:[#allocation16 + $0x1a8] sm:$0xff]
        %v1589 = vld [vmem:[#allocation16 + $0x1b0] sm:$0xff]
        %v1590 = vld [vmem:[#allocation16 + $0x1b8] sm:$0xff]
        %v1591 = vld [vmem:[#allocation16 + $0x1c0] sm:$0xff]
        %v1592 = vld [vmem:[#allocation16 + $0x1c8] sm:$0xff]
        %v1593 = vld [vmem:[#allocation16 + $0x1d0] sm:$0xff]
        %v1594 = vld [vmem:[#allocation16 + $0x1d8] sm:$0xff]
        %v1595 = vld [vmem:[#allocation16 + $0x1e0] sm:$0xff]
        %v1596 = vld [vmem:[#allocation16 + $0x1e8] sm:$0xff]
        %v1597 = vld [vmem:[#allocation16 + $0x1f0] sm:$0xff]
        %v1598 = vld [vmem:[#allocation16 + $0x1f8] sm:$0xff]
        %v1599 = vld [vmem:[#allocation18] sm:$0xff]
        %v1601 = vlaneseq
        %v1602 = vshrl.u32 %v1601, 7
        %v1603 = vsub.s32 0, %v1602
        %v1604 = vrot.slane %v1599, %v1603
        %v1605 = vlaneseq
        %v1606 = vshrl.u32 %v1605, 7
        %v1607 = vsub.s32 1, %v1606
        %v1608 = vrot.slane %v1599, %v1607
        %v1609 = vlaneseq
        %v1610 = vshrl.u32 %v1609, 7
        %v1611 = vsub.s32 2, %v1610
        %v1612 = vrot.slane %v1599, %v1611
        %v1613 = vlaneseq
        %v1614 = vshrl.u32 %v1613, 7
        %v1615 = vsub.s32 3, %v1614
        %v1616 = vrot.slane %v1599, %v1615
        %v1617 = vlaneseq
        %v1618 = vshrl.u32 %v1617, 7
        %v1619 = vsub.s32 4, %v1618
        %v1620 = vrot.slane %v1599, %v1619
        %v1621 = vlaneseq
        %v1622 = vshrl.u32 %v1621, 7
        %v1623 = vsub.s32 5, %v1622
        %v1624 = vrot.slane %v1599, %v1623
        %v1625 = vlaneseq
        %v1626 = vshrl.u32 %v1625, 7
        %v1627 = vsub.s32 6, %v1626
        %v1628 = vrot.slane %v1599, %v1627
        %v1629 = vlaneseq
        %v1630 = vshrl.u32 %v1629, 7
        %v1631 = vsub.s32 7, %v1630
        %v1632 = vrot.slane %v1599, %v1631
        %v1705 = vunpack.c.l.b16 %v1535
        %v1706 = vunpack.c.h.b16 %v1535
        %v1707 = vunpack.c.l.b16 %v1536
        %v1708 = vunpack.c.h.b16 %v1536
        %v1709 = vunpack.c.l.b16 %v1537
        %v1710 = vunpack.c.h.b16 %v1537
        %v1711 = vunpack.c.l.b16 %v1538
        %v1712 = vunpack.c.h.b16 %v1538
        %v1713 = vunpack.c.l.b16 %v1539
        %v1714 = vunpack.c.h.b16 %v1539
        %v1715 = vunpack.c.l.b16 %v1540
        %v1716 = vunpack.c.h.b16 %v1540
        %v1717 = vunpack.c.l.b16 %v1541
        %v1718 = vunpack.c.h.b16 %v1541
        %v1719 = vunpack.c.l.b16 %v1542
        %v1720 = vunpack.c.h.b16 %v1542
        %v1721 = vunpack.c.l.b16 %v1543
        %v1722 = vunpack.c.h.b16 %v1543
        %v1723 = vunpack.c.l.b16 %v1544
        %v1724 = vunpack.c.h.b16 %v1544
        %v1725 = vunpack.c.l.b16 %v1545
        %v1726 = vunpack.c.h.b16 %v1545
        %v1727 = vunpack.c.l.b16 %v1546
        %v1728 = vunpack.c.h.b16 %v1546
        %v1729 = vunpack.c.l.b16 %v1547
        %v1730 = vunpack.c.h.b16 %v1547
        %v1731 = vunpack.c.l.b16 %v1548
        %v1732 = vunpack.c.h.b16 %v1548
        %v1733 = vunpack.c.l.b16 %v1549
        %v1734 = vunpack.c.h.b16 %v1549
        %v1735 = vunpack.c.l.b16 %v1550
        %v1736 = vunpack.c.h.b16 %v1550
        %v1737 = vunpack.c.l.b16 %v1551
        %v1738 = vunpack.c.h.b16 %v1551
        %v1739 = vunpack.c.l.b16 %v1552
        %v1740 = vunpack.c.h.b16 %v1552
        %v1741 = vunpack.c.l.b16 %v1553
        %v1742 = vunpack.c.h.b16 %v1553
        %v1743 = vunpack.c.l.b16 %v1554
        %v1744 = vunpack.c.h.b16 %v1554
        %v1745 = vunpack.c.l.b16 %v1555
        %v1746 = vunpack.c.h.b16 %v1555
        %v1747 = vunpack.c.l.b16 %v1556
        %v1748 = vunpack.c.h.b16 %v1556
        %v1749 = vunpack.c.l.b16 %v1557
        %v1750 = vunpack.c.h.b16 %v1557
        %v1751 = vunpack.c.l.b16 %v1558
        %v1752 = vunpack.c.h.b16 %v1558
        %v1753 = vunpack.c.l.b16 %v1559
        %v1754 = vunpack.c.h.b16 %v1559
        %v1755 = vunpack.c.l.b16 %v1560
        %v1756 = vunpack.c.h.b16 %v1560
        %v1757 = vunpack.c.l.b16 %v1561
        %v1758 = vunpack.c.h.b16 %v1561
        %v1759 = vunpack.c.l.b16 %v1562
        %v1760 = vunpack.c.h.b16 %v1562
        %v1761 = vunpack.c.l.b16 %v1563
        %v1762 = vunpack.c.h.b16 %v1563
        %v1763 = vunpack.c.l.b16 %v1564
        %v1764 = vunpack.c.h.b16 %v1564
        %v1765 = vunpack.c.l.b16 %v1565
        %v1766 = vunpack.c.h.b16 %v1565
        %v1767 = vunpack.c.l.b16 %v1566
        %v1768 = vunpack.c.h.b16 %v1566
        %v1769 = vunpack.c.l.b16 %v1567
        %v1770 = vunpack.c.h.b16 %v1567
        %v1771 = vunpack.c.l.b16 %v1568
        %v1772 = vunpack.c.h.b16 %v1568
        %v1773 = vunpack.c.l.b16 %v1569
        %v1774 = vunpack.c.h.b16 %v1569
        %v1775 = vunpack.c.l.b16 %v1570
        %v1776 = vunpack.c.h.b16 %v1570
        %v1777 = vunpack.c.l.b16 %v1571
        %v1778 = vunpack.c.h.b16 %v1571
        %v1779 = vunpack.c.l.b16 %v1572
        %v1780 = vunpack.c.h.b16 %v1572
        %v1781 = vunpack.c.l.b16 %v1573
        %v1782 = vunpack.c.h.b16 %v1573
        %v1783 = vunpack.c.l.b16 %v1574
        %v1784 = vunpack.c.h.b16 %v1574
        %v1785 = vunpack.c.l.b16 %v1575
        %v1786 = vunpack.c.h.b16 %v1575
        %v1787 = vunpack.c.l.b16 %v1576
        %v1788 = vunpack.c.h.b16 %v1576
        %v1789 = vunpack.c.l.b16 %v1577
        %v1790 = vunpack.c.h.b16 %v1577
        %v1791 = vunpack.c.l.b16 %v1578
        %v1792 = vunpack.c.h.b16 %v1578
        %v1793 = vunpack.c.l.b16 %v1579
        %v1794 = vunpack.c.h.b16 %v1579
        %v1795 = vunpack.c.l.b16 %v1580
        %v1796 = vunpack.c.h.b16 %v1580
        %v1797 = vunpack.c.l.b16 %v1581
        %v1798 = vunpack.c.h.b16 %v1581
        %v1799 = vunpack.c.l.b16 %v1582
        %v1800 = vunpack.c.h.b16 %v1582
        %v1801 = vunpack.c.l.b16 %v1583
        %v1802 = vunpack.c.h.b16 %v1583
        %v1803 = vunpack.c.l.b16 %v1584
        %v1804 = vunpack.c.h.b16 %v1584
        %v1805 = vunpack.c.l.b16 %v1585
        %v1806 = vunpack.c.h.b16 %v1585
        %v1807 = vunpack.c.l.b16 %v1586
        %v1808 = vunpack.c.h.b16 %v1586
        %v1809 = vunpack.c.l.b16 %v1587
        %v1810 = vunpack.c.h.b16 %v1587
        %v1811 = vunpack.c.l.b16 %v1588
        %v1812 = vunpack.c.h.b16 %v1588
        %v1813 = vunpack.c.l.b16 %v1589
        %v1814 = vunpack.c.h.b16 %v1589
        %v1815 = vunpack.c.l.b16 %v1590
        %v1816 = vunpack.c.h.b16 %v1590
        %v1817 = vunpack.c.l.b16 %v1591
        %v1818 = vunpack.c.h.b16 %v1591
        %v1819 = vunpack.c.l.b16 %v1592
        %v1820 = vunpack.c.h.b16 %v1592
        %v1821 = vunpack.c.l.b16 %v1593
        %v1822 = vunpack.c.h.b16 %v1593
        %v1823 = vunpack.c.l.b16 %v1594
        %v1824 = vunpack.c.h.b16 %v1594
        %v1825 = vunpack.c.l.b16 %v1595
        %v1826 = vunpack.c.h.b16 %v1595
        %v1827 = vunpack.c.l.b16 %v1596
        %v1828 = vunpack.c.h.b16 %v1596
        %v1829 = vunpack.c.l.b16 %v1597
        %v1830 = vunpack.c.h.b16 %v1597
        %v1831 = vunpack.c.l.b16 %v1598
        %v1832 = vunpack.c.h.b16 %v1598
        %v1833 = vpack.c.b16 %v1713, %v1705
        %v1834 = vpack.c.b16 %v1714, %v1706
        %v1835 = vpack.c.b16 %v1715, %v1707
        %v1836 = vpack.c.b16 %v1716, %v1708
        %v1837 = vpack.c.b16 %v1717, %v1709
        %v1838 = vpack.c.b16 %v1718, %v1710
        %v1839 = vpack.c.b16 %v1719, %v1711
        %v1840 = vpack.c.b16 %v1720, %v1712
        %v1841 = vpack.c.b16 %v1729, %v1721
        %v1842 = vpack.c.b16 %v1730, %v1722
        %v1843 = vpack.c.b16 %v1731, %v1723
        %v1844 = vpack.c.b16 %v1732, %v1724
        %v1845 = vpack.c.b16 %v1733, %v1725
        %v1846 = vpack.c.b16 %v1734, %v1726
        %v1847 = vpack.c.b16 %v1735, %v1727
        %v1848 = vpack.c.b16 %v1736, %v1728
        %v1849 = vpack.c.b16 %v1745, %v1737
        %v1850 = vpack.c.b16 %v1746, %v1738
        %v1851 = vpack.c.b16 %v1747, %v1739
        %v1852 = vpack.c.b16 %v1748, %v1740
        %v1853 = vpack.c.b16 %v1749, %v1741
        %v1854 = vpack.c.b16 %v1750, %v1742
        %v1855 = vpack.c.b16 %v1751, %v1743
        %v1856 = vpack.c.b16 %v1752, %v1744
        %v1857 = vpack.c.b16 %v1761, %v1753
        %v1858 = vpack.c.b16 %v1762, %v1754
        %v1859 = vpack.c.b16 %v1763, %v1755
        %v1860 = vpack.c.b16 %v1764, %v1756
        %v1861 = vpack.c.b16 %v1765, %v1757
        %v1862 = vpack.c.b16 %v1766, %v1758
        %v1863 = vpack.c.b16 %v1767, %v1759
        %v1864 = vpack.c.b16 %v1768, %v1760
        %v1865 = vpack.c.b16 %v1777, %v1769
        %v1866 = vpack.c.b16 %v1778, %v1770
        %v1867 = vpack.c.b16 %v1779, %v1771
        %v1868 = vpack.c.b16 %v1780, %v1772
        %v1869 = vpack.c.b16 %v1781, %v1773
        %v1870 = vpack.c.b16 %v1782, %v1774
        %v1871 = vpack.c.b16 %v1783, %v1775
        %v1872 = vpack.c.b16 %v1784, %v1776
        %v1873 = vpack.c.b16 %v1793, %v1785
        %v1874 = vpack.c.b16 %v1794, %v1786
        %v1875 = vpack.c.b16 %v1795, %v1787
        %v1876 = vpack.c.b16 %v1796, %v1788
        %v1877 = vpack.c.b16 %v1797, %v1789
        %v1878 = vpack.c.b16 %v1798, %v1790
        %v1879 = vpack.c.b16 %v1799, %v1791
        %v1880 = vpack.c.b16 %v1800, %v1792
        %v1881 = vpack.c.b16 %v1809, %v1801
        %v1882 = vpack.c.b16 %v1810, %v1802
        %v1883 = vpack.c.b16 %v1811, %v1803
        %v1884 = vpack.c.b16 %v1812, %v1804
        %v1885 = vpack.c.b16 %v1813, %v1805
        %v1886 = vpack.c.b16 %v1814, %v1806
        %v1887 = vpack.c.b16 %v1815, %v1807
        %v1888 = vpack.c.b16 %v1816, %v1808
        %v1889 = vpack.c.b16 %v1825, %v1817
        %v1890 = vpack.c.b16 %v1826, %v1818
        %v1891 = vpack.c.b16 %v1827, %v1819
        %v1892 = vpack.c.b16 %v1828, %v1820
        %v1893 = vpack.c.b16 %v1829, %v1821
        %v1894 = vpack.c.b16 %v1830, %v1822
        %v1895 = vpack.c.b16 %v1831, %v1823
        %v1896 = vpack.c.b16 %v1832, %v1824
        %1961 = vmatprep.subr.bf16.mxu0 %v1834
        %1962 = vmatpush1.bf16.msra.mxu0 %v1833
        %1963 = vmatprep.subr.bf16.mxu0 %v1842
        %1964 = vmatpush1.bf16.msra.mxu0 %v1841
        %1965 = vmatprep.subr.bf16.mxu0 %v1850
        %1966 = vmatpush1.bf16.msra.mxu0 %v1849
        %1967 = vmatprep.subr.bf16.mxu0 %v1858
        %1968 = vmatpush1.bf16.msra.mxu0 %v1857
        %1969 = vmatprep.subr.bf16.mxu0 %v1866
        %1970 = vmatpush1.bf16.msra.mxu0 %v1865
        %1971 = vmatprep.subr.bf16.mxu0 %v1874
        %1972 = vmatpush1.bf16.msra.mxu0 %v1873
        %1973 = vmatprep.subr.bf16.mxu0 %v1882
        %1974 = vmatpush1.bf16.msra.mxu0 %v1881
        %1975 = vmatprep.subr.bf16.mxu0 %v1890
        %1976 = vmatpush1.bf16.msra.mxu0 %v1889
        %1977 = vmatprep.subr.bf16.mxu0 0
        %1978 = vmatpush1.bf16.msra.mxu0 0
        %1979 = vmatprep.subr.bf16.mxu0 0
        %1980 = vmatpush1.bf16.msra.mxu0 0
        %1981 = vmatprep.subr.bf16.mxu0 0
        %1982 = vmatpush1.bf16.msra.mxu0 0
        %1983 = vmatprep.subr.bf16.mxu0 0
        %1984 = vmatpush1.bf16.msra.mxu0 0
        %1985 = vmatprep.subr.bf16.mxu0 0
        %1986 = vmatpush1.bf16.msra.mxu0 0
        %1987 = vmatprep.subr.bf16.mxu0 0
        %1988 = vmatpush1.bf16.msra.mxu0 0
        %1989 = vmatprep.subr.bf16.mxu0 0
        %1990 = vmatpush1.bf16.msra.mxu0 0
        %1991 = vmatprep.subr.bf16.mxu0 0
        %1992 = vmatpush1.bf16.msra.mxu0 0
        %1993 = vmatprep.mubr.bf16.mxu0 0
        %1994 = vmatmul.mubr.bf16.gmra.mrb[0].mxu0 %v1527
        %v1995 = vpop.f32.mrb[0].mxu0
        %v1996 = vadd.f32 %v1604, %v1995
        %v1997 = vpop.f32.mrb[0].mxu0
        %v1998 = vadd.f32 %v1608, %v1997
        %v1999 = vpop.f32.mrb[0].mxu0
        %v2000 = vadd.f32 %v1604, %v1999
        %v2001 = vpop.f32.mrb[0].mxu0
        %v2002 = vadd.f32 %v1608, %v2001
        %2003 = vmatprep.mubr.bf16.mxu0 0
        %2004 = vmatmul.mubr.bf16.gmra.mrb[0].mxu0 %v1528
        %v2005 = vpop.f32.mrb[0].mxu0
        %v2006 = vadd.f32 %v1604, %v2005
        %v2007 = vpop.f32.mrb[0].mxu0
        %v2008 = vadd.f32 %v1608, %v2007
        %v2009 = vpop.f32.mrb[0].mxu0
        %v2010 = vadd.f32 %v1604, %v2009
        %v2011 = vpop.f32.mrb[0].mxu0
        %v2012 = vadd.f32 %v1608, %v2011
        %2013 = vmatprep.mubr.bf16.mxu0 0
        %2014 = vmatmul.mubr.bf16.gmra.mrb[0].mxu0 %v1529
        %v2015 = vpop.f32.mrb[0].mxu0
        %v2016 = vadd.f32 %v1604, %v2015
        %v2017 = vpop.f32.mrb[0].mxu0
        %v2018 = vadd.f32 %v1608, %v2017
        %v2019 = vpop.f32.mrb[0].mxu0
        %v2020 = vadd.f32 %v1604, %v2019
        %v2021 = vpop.f32.mrb[0].mxu0
        %v2022 = vadd.f32 %v1608, %v2021
        %2023 = vmatprep.mubr.bf16.mxu0 0
        %2024 = vmatmul.mubr.bf16.gmra.mrb[0].mxu0 %v1530
        %v2025 = vpop.f32.mrb[0].mxu0
        %v2026 = vadd.f32 %v1604, %v2025
        %v2027 = vpop.f32.mrb[0].mxu0
        %v2028 = vadd.f32 %v1608, %v2027
        %v2029 = vpop.f32.mrb[0].mxu0
        %v2030 = vadd.f32 %v1604, %v2029
        %v2031 = vpop.f32.mrb[0].mxu0
        %v2032 = vadd.f32 %v1608, %v2031
        %2033 = vmatprep.mubr.bf16.mxu0 0
        %2034 = vmatmul.mubr.bf16.gmra.mrb[0].mxu0 %v1531
        %v2035 = vpop.f32.mrb[0].mxu0
        %v2036 = vadd.f32 %v1604, %v2035
        %v2037 = vpop.f32.mrb[0].mxu0
        %v2038 = vadd.f32 %v1608, %v2037
        %v2039 = vpop.f32.mrb[0].mxu0
        %v2040 = vadd.f32 %v1604, %v2039
        %v2041 = vpop.f32.mrb[0].mxu0
        %v2042 = vadd.f32 %v1608, %v2041
        %2043 = vmatprep.mubr.bf16.mxu0 0
        %2044 = vmatmul.mubr.bf16.gmra.mrb[0].mxu0 %v1532
        %v2045 = vpop.f32.mrb[0].mxu0
        %v2046 = vadd.f32 %v1604, %v2045
        %v2047 = vpop.f32.mrb[0].mxu0
        %v2048 = vadd.f32 %v1608, %v2047
        %v2049 = vpop.f32.mrb[0].mxu0
        %v2050 = vadd.f32 %v1604, %v2049
        %v2051 = vpop.f32.mrb[0].mxu0
        %v2052 = vadd.f32 %v1608, %v2051
        %2053 = vmatprep.mubr.bf16.mxu0 0
        %2054 = vmatmul.mubr.bf16.gmra.mrb[0].mxu0 %v1533
        %v2055 = vpop.f32.mrb[0].mxu0
        %v2056 = vadd.f32 %v1604, %v2055
        %v2057 = vpop.f32.mrb[0].mxu0
        %v2058 = vadd.f32 %v1608, %v2057
        %v2059 = vpop.f32.mrb[0].mxu0
        %v2060 = vadd.f32 %v1604, %v2059
        %v2061 = vpop.f32.mrb[0].mxu0
        %v2062 = vadd.f32 %v1608, %v2061
        %2063 = vmatprep.mubr.bf16.mxu0 0
        %2064 = vmatmul.mubr.bf16.gmra.mrb[0].mxu0 %v1534
        %v2065 = vpop.f32.mrb[0].mxu0
        %v2066 = vadd.f32 %v1604, %v2065
        %v2067 = vpop.f32.mrb[0].mxu0
        %v2068 = vadd.f32 %v1608, %v2067
        %v2069 = vpop.f32.mrb[0].mxu0
        %v2070 = vadd.f32 %v1604, %v2069
        %v2071 = vpop.f32.mrb[0].mxu0
        %v2072 = vadd.f32 %v1608, %v2071
        %2073 = vdwg.mxu0
        %2074 = vmatprep.subr.bf16.mxu0 %v1836
        %2075 = vmatpush1.bf16.msra.mxu0 %v1835
        %2076 = vmatprep.subr.bf16.mxu0 %v1844
        %2077 = vmatpush1.bf16.msra.mxu0 %v1843
        %2078 = vmatprep.subr.bf16.mxu0 %v1852
        %2079 = vmatpush1.bf16.msra.mxu0 %v1851
        %2080 = vmatprep.subr.bf16.mxu0 %v1860
        %2081 = vmatpush1.bf16.msra.mxu0 %v1859
        %2082 = vmatprep.subr.bf16.mxu0 %v1868
        %2083 = vmatpush1.bf16.msra.mxu0 %v1867
        %2084 = vmatprep.subr.bf16.mxu0 %v1876
        %2085 = vmatpush1.bf16.msra.mxu0 %v1875
        %2086 = vmatprep.subr.bf16.mxu0 %v1884
        %2087 = vmatpush1.bf16.msra.mxu0 %v1883
        %2088 = vmatprep.subr.bf16.mxu0 %v1892
        %2089 = vmatpush1.bf16.msra.mxu0 %v1891
        %2090 = vmatprep.subr.bf16.mxu0 0
        %2091 = vmatpush1.bf16.msra.mxu0 0
        %2092 = vmatprep.subr.bf16.mxu0 0
        %2093 = vmatpush1.bf16.msra.mxu0 0
        %2094 = vmatprep.subr.bf16.mxu0 0
        %2095 = vmatpush1.bf16.msra.mxu0 0
        %2096 = vmatprep.subr.bf16.mxu0 0
        %2097 = vmatpush1.bf16.msra.mxu0 0
        %2098 = vmatprep.subr.bf16.mxu0 0
        %2099 = vmatpush1.bf16.msra.mxu0 0
        %2100 = vmatprep.subr.bf16.mxu0 0
        %2101 = vmatpush1.bf16.msra.mxu0 0
        %2102 = vmatprep.subr.bf16.mxu0 0
        %2103 = vmatpush1.bf16.msra.mxu0 0
        %2104 = vmatprep.subr.bf16.mxu0 0
        %2105 = vmatpush1.bf16.msra.mxu0 0
        %2106 = vmatprep.mubr.bf16.mxu0 0
        %2107 = vmatmul.mubr.bf16.gmra.mrb[0].mxu0 %v1527
        %v2108 = vpop.f32.mrb[0].mxu0
        %v2109 = vadd.f32 %v1612, %v2108
        %v2110 = vpop.f32.mrb[0].mxu0
        %v2111 = vadd.f32 %v1616, %v2110
        %v2112 = vpop.f32.mrb[0].mxu0
        %v2113 = vadd.f32 %v1612, %v2112
        %v2114 = vpop.f32.mrb[0].mxu0
        %v2115 = vadd.f32 %v1616, %v2114
        %2116 = vmatprep.mubr.bf16.mxu0 0
        %2117 = vmatmul.mubr.bf16.gmra.mrb[0].mxu0 %v1528
        %v2118 = vpop.f32.mrb[0].mxu0
        %v2119 = vadd.f32 %v1612, %v2118
        %v2120 = vpop.f32.mrb[0].mxu0
        %v2121 = vadd.f32 %v1616, %v2120
        %v2122 = vpop.f32.mrb[0].mxu0
        %v2123 = vadd.f32 %v1612, %v2122
        %v2124 = vpop.f32.mrb[0].mxu0
        %v2125 = vadd.f32 %v1616, %v2124
        %2126 = vmatprep.mubr.bf16.mxu0 0
        %2127 = vmatmul.mubr.bf16.gmra.mrb[0].mxu0 %v1529
        %v2128 = vpop.f32.mrb[0].mxu0
        %v2129 = vadd.f32 %v1612, %v2128
        %v2130 = vpop.f32.mrb[0].mxu0
        %v2131 = vadd.f32 %v1616, %v2130
        %v2132 = vpop.f32.mrb[0].mxu0
        %v2133 = vadd.f32 %v1612, %v2132
        %v2134 = vpop.f32.mrb[0].mxu0
        %v2135 = vadd.f32 %v1616, %v2134
        %2136 = vmatprep.mubr.bf16.mxu0 0
        %2137 = vmatmul.mubr.bf16.gmra.mrb[0].mxu0 %v1530
        %v2138 = vpop.f32.mrb[0].mxu0
        %v2139 = vadd.f32 %v1612, %v2138
        %v2140 = vpop.f32.mrb[0].mxu0
        %v2141 = vadd.f32 %v1616, %v2140
        %v2142 = vpop.f32.mrb[0].mxu0
        %v2143 = vadd.f32 %v1612, %v2142
        %v2144 = vpop.f32.mrb[0].mxu0
        %v2145 = vadd.f32 %v1616, %v2144
        %2146 = vmatprep.mubr.bf16.mxu0 0
        %2147 = vmatmul.mubr.bf16.gmra.mrb[0].mxu0 %v1531
        %v2148 = vpop.f32.mrb[0].mxu0
        %v2149 = vadd.f32 %v1612, %v2148
        %v2150 = vpop.f32.mrb[0].mxu0
        %v2151 = vadd.f32 %v1616, %v2150
        %v2152 = vpop.f32.mrb[0].mxu0
        %v2153 = vadd.f32 %v1612, %v2152
        %v2154 = vpop.f32.mrb[0].mxu0
        %v2155 = vadd.f32 %v1616, %v2154
        %2156 = vmatprep.mubr.bf16.mxu0 0
        %2157 = vmatmul.mubr.bf16.gmra.mrb[0].mxu0 %v1532
        %v2158 = vpop.f32.mrb[0].mxu0
        %v2159 = vadd.f32 %v1612, %v2158
        %v2160 = vpop.f32.mrb[0].mxu0
        %v2161 = vadd.f32 %v1616, %v2160
        %v2162 = vpop.f32.mrb[0].mxu0
        %v2163 = vadd.f32 %v1612, %v2162
        %v2164 = vpop.f32.mrb[0].mxu0
        %v2165 = vadd.f32 %v1616, %v2164
        %2166 = vmatprep.mubr.bf16.mxu0 0
        %2167 = vmatmul.mubr.bf16.gmra.mrb[0].mxu0 %v1533
        %v2168 = vpop.f32.mrb[0].mxu0
        %v2169 = vadd.f32 %v1612, %v2168
        %v2170 = vpop.f32.mrb[0].mxu0
        %v2171 = vadd.f32 %v1616, %v2170
        %v2172 = vpop.f32.mrb[0].mxu0
        %v2173 = vadd.f32 %v1612, %v2172
        %v2174 = vpop.f32.mrb[0].mxu0
        %v2175 = vadd.f32 %v1616, %v2174
        %2176 = vmatprep.mubr.bf16.mxu0 0
        %2177 = vmatmul.mubr.bf16.gmra.mrb[0].mxu0 %v1534
        %v2178 = vpop.f32.mrb[0].mxu0
        %v2179 = vadd.f32 %v1612, %v2178
        %v2180 = vpop.f32.mrb[0].mxu0
        %v2181 = vadd.f32 %v1616, %v2180
        %v2182 = vpop.f32.mrb[0].mxu0
        %v2183 = vadd.f32 %v1612, %v2182
        %v2184 = vpop.f32.mrb[0].mxu0
        %v2185 = vadd.f32 %v1616, %v2184
        %2186 = vdwg.mxu0
        %2187 = vmatprep.subr.bf16.mxu0 %v1838
        %2188 = vmatpush1.bf16.msra.mxu0 %v1837
        %2189 = vmatprep.subr.bf16.mxu0 %v1846
        %2190 = vmatpush1.bf16.msra.mxu0 %v1845
        %2191 = vmatprep.subr.bf16.mxu0 %v1854
        %2192 = vmatpush1.bf16.msra.mxu0 %v1853
        %2193 = vmatprep.subr.bf16.mxu0 %v1862
        %2194 = vmatpush1.bf16.msra.mxu0 %v1861
        %2195 = vmatprep.subr.bf16.mxu0 %v1870
        %2196 = vmatpush1.bf16.msra.mxu0 %v1869
        %2197 = vmatprep.subr.bf16.mxu0 %v1878
        %2198 = vmatpush1.bf16.msra.mxu0 %v1877
        %2199 = vmatprep.subr.bf16.mxu0 %v1886
        %2200 = vmatpush1.bf16.msra.mxu0 %v1885
        %2201 = vmatprep.subr.bf16.mxu0 %v1894
        %2202 = vmatpush1.bf16.msra.mxu0 %v1893
        %2203 = vmatprep.subr.bf16.mxu0 0
        %2204 = vmatpush1.bf16.msra.mxu0 0
        %2205 = vmatprep.subr.bf16.mxu0 0
        %2206 = vmatpush1.bf16.msra.mxu0 0
        %2207 = vmatprep.subr.bf16.mxu0 0
        %2208 = vmatpush1.bf16.msra.mxu0 0
        %2209 = vmatprep.subr.bf16.mxu0 0
        %2210 = vmatpush1.bf16.msra.mxu0 0
        %2211 = vmatprep.subr.bf16.mxu0 0
        %2212 = vmatpush1.bf16.msra.mxu0 0
        %2213 = vmatprep.subr.bf16.mxu0 0
        %2214 = vmatpush1.bf16.msra.mxu0 0
        %2215 = vmatprep.subr.bf16.mxu0 0
        %2216 = vmatpush1.bf16.msra.mxu0 0
        %2217 = vmatprep.subr.bf16.mxu0 0
        %2218 = vmatpush1.bf16.msra.mxu0 0
        %2219 = vmatprep.mubr.bf16.mxu0 0
        %2220 = vmatmul.mubr.bf16.gmra.mrb[0].mxu0 %v1527
        %v2221 = vpop.f32.mrb[0].mxu0
        %v2222 = vadd.f32 %v1620, %v2221
        %v2223 = vpop.f32.mrb[0].mxu0
        %v2224 = vadd.f32 %v1624, %v2223
        %v2225 = vpop.f32.mrb[0].mxu0
        %v2226 = vadd.f32 %v1620, %v2225
        %v2227 = vpop.f32.mrb[0].mxu0
        %v2228 = vadd.f32 %v1624, %v2227
        %2229 = vmatprep.mubr.bf16.mxu0 0
        %2230 = vmatmul.mubr.bf16.gmra.mrb[0].mxu0 %v1528
        %v2231 = vpop.f32.mrb[0].mxu0
        %v2232 = vadd.f32 %v1620, %v2231
        %v2233 = vpop.f32.mrb[0].mxu0
        %v2234 = vadd.f32 %v1624, %v2233
        %v2235 = vpop.f32.mrb[0].mxu0
        %v2236 = vadd.f32 %v1620, %v2235
        %v2237 = vpop.f32.mrb[0].mxu0
        %v2238 = vadd.f32 %v1624, %v2237
        %2239 = vmatprep.mubr.bf16.mxu0 0
        %2240 = vmatmul.mubr.bf16.gmra.mrb[0].mxu0 %v1529
        %v2241 = vpop.f32.mrb[0].mxu0
        %v2242 = vadd.f32 %v1620, %v2241
        %v2243 = vpop.f32.mrb[0].mxu0
        %v2244 = vadd.f32 %v1624, %v2243
        %v2245 = vpop.f32.mrb[0].mxu0
        %v2246 = vadd.f32 %v1620, %v2245
        %v2247 = vpop.f32.mrb[0].mxu0
        %v2248 = vadd.f32 %v1624, %v2247
        %2249 = vmatprep.mubr.bf16.mxu0 0
        %2250 = vmatmul.mubr.bf16.gmra.mrb[0].mxu0 %v1530
        %v2251 = vpop.f32.mrb[0].mxu0
        %v2252 = vadd.f32 %v1620, %v2251
        %v2253 = vpop.f32.mrb[0].mxu0
        %v2254 = vadd.f32 %v1624, %v2253
        %v2255 = vpop.f32.mrb[0].mxu0
        %v2256 = vadd.f32 %v1620, %v2255
        %v2257 = vpop.f32.mrb[0].mxu0
        %v2258 = vadd.f32 %v1624, %v2257
        %2259 = vmatprep.mubr.bf16.mxu0 0
        %2260 = vmatmul.mubr.bf16.gmra.mrb[0].mxu0 %v1531
        %v2261 = vpop.f32.mrb[0].mxu0
        %v2262 = vadd.f32 %v1620, %v2261
        %v2263 = vpop.f32.mrb[0].mxu0
        %v2264 = vadd.f32 %v1624, %v2263
        %v2265 = vpop.f32.mrb[0].mxu0
        %v2266 = vadd.f32 %v1620, %v2265
        %v2267 = vpop.f32.mrb[0].mxu0
        %v2268 = vadd.f32 %v1624, %v2267
        %2269 = vmatprep.mubr.bf16.mxu0 0
        %2270 = vmatmul.mubr.bf16.gmra.mrb[0].mxu0 %v1532
        %v2271 = vpop.f32.mrb[0].mxu0
        %v2272 = vadd.f32 %v1620, %v2271
        %v2273 = vpop.f32.mrb[0].mxu0
        %v2274 = vadd.f32 %v1624, %v2273
        %v2275 = vpop.f32.mrb[0].mxu0
        %v2276 = vadd.f32 %v1620, %v2275
        %v2277 = vpop.f32.mrb[0].mxu0
        %v2278 = vadd.f32 %v1624, %v2277
        %2279 = vmatprep.mubr.bf16.mxu0 0
        %2280 = vmatmul.mubr.bf16.gmra.mrb[0].mxu0 %v1533
        %v2281 = vpop.f32.mrb[0].mxu0
        %v2282 = vadd.f32 %v1620, %v2281
        %v2283 = vpop.f32.mrb[0].mxu0
        %v2284 = vadd.f32 %v1624, %v2283
        %v2285 = vpop.f32.mrb[0].mxu0
        %v2286 = vadd.f32 %v1620, %v2285
        %v2287 = vpop.f32.mrb[0].mxu0
        %v2288 = vadd.f32 %v1624, %v2287
        %2289 = vmatprep.mubr.bf16.mxu0 0
        %2290 = vmatmul.mubr.bf16.gmra.mrb[0].mxu0 %v1534
        %v2291 = vpop.f32.mrb[0].mxu0
        %v2292 = vadd.f32 %v1620, %v2291
        %v2293 = vpop.f32.mrb[0].mxu0
        %v2294 = vadd.f32 %v1624, %v2293
        %v2295 = vpop.f32.mrb[0].mxu0
        %v2296 = vadd.f32 %v1620, %v2295
        %v2297 = vpop.f32.mrb[0].mxu0
        %v2298 = vadd.f32 %v1624, %v2297
        %2299 = vdwg.mxu0
        %2300 = vmatprep.subr.bf16.mxu0 %v1840
        %2301 = vmatpush1.bf16.msra.mxu0 %v1839
        %2302 = vmatprep.subr.bf16.mxu0 %v1848
        %2303 = vmatpush1.bf16.msra.mxu0 %v1847
        %2304 = vmatprep.subr.bf16.mxu0 %v1856
        %2305 = vmatpush1.bf16.msra.mxu0 %v1855
        %2306 = vmatprep.subr.bf16.mxu0 %v1864
        %2307 = vmatpush1.bf16.msra.mxu0 %v1863
        %2308 = vmatprep.subr.bf16.mxu0 %v1872
        %2309 = vmatpush1.bf16.msra.mxu0 %v1871
        %2310 = vmatprep.subr.bf16.mxu0 %v1880
        %2311 = vmatpush1.bf16.msra.mxu0 %v1879
        %2312 = vmatprep.subr.bf16.mxu0 %v1888
        %2313 = vmatpush1.bf16.msra.mxu0 %v1887
        %2314 = vmatprep.subr.bf16.mxu0 %v1896
        %2315 = vmatpush1.bf16.msra.mxu0 %v1895
        %2316 = vmatprep.subr.bf16.mxu0 0
        %2317 = vmatpush1.bf16.msra.mxu0 0
        %2318 = vmatprep.subr.bf16.mxu0 0
        %2319 = vmatpush1.bf16.msra.mxu0 0
        %2320 = vmatprep.subr.bf16.mxu0 0
        %2321 = vmatpush1.bf16.msra.mxu0 0
        %2322 = vmatprep.subr.bf16.mxu0 0
        %2323 = vmatpush1.bf16.msra.mxu0 0
        %2324 = vmatprep.subr.bf16.mxu0 0
        %2325 = vmatpush1.bf16.msra.mxu0 0
        %2326 = vmatprep.subr.bf16.mxu0 0
        %2327 = vmatpush1.bf16.msra.mxu0 0
        %2328 = vmatprep.subr.bf16.mxu0 0
        %2329 = vmatpush1.bf16.msra.mxu0 0
        %2330 = vmatprep.subr.bf16.mxu0 0
        %2331 = vmatpush1.bf16.msra.mxu0 0
        %2332 = vmatprep.mubr.bf16.mxu0 0
        %2333 = vmatmul.mubr.bf16.gmra.mrb[0].mxu0 %v1527
        %v2334 = vpop.f32.mrb[0].mxu0
        %v2335 = vadd.f32 %v1628, %v2334
        %v2336 = vpop.f32.mrb[0].mxu0
        %v2337 = vadd.f32 %v1632, %v2336
        %v2338 = vpop.f32.mrb[0].mxu0
        %v2339 = vadd.f32 %v1628, %v2338
        %v2340 = vpop.f32.mrb[0].mxu0
        %v2341 = vadd.f32 %v1632, %v2340
        %2342 = vmatprep.mubr.bf16.mxu0 0
        %2343 = vmatmul.mubr.bf16.gmra.mrb[0].mxu0 %v1528
        %v2344 = vpop.f32.mrb[0].mxu0
        %v2345 = vadd.f32 %v1628, %v2344
        %v2346 = vpop.f32.mrb[0].mxu0
        %v2347 = vadd.f32 %v1632, %v2346
        %v2348 = vpop.f32.mrb[0].mxu0
        %v2349 = vadd.f32 %v1628, %v2348
        %v2350 = vpop.f32.mrb[0].mxu0
        %v2351 = vadd.f32 %v1632, %v2350
        %2352 = vmatprep.mubr.bf16.mxu0 0
        %2353 = vmatmul.mubr.bf16.gmra.mrb[0].mxu0 %v1529
        %v2354 = vpop.f32.mrb[0].mxu0
        %v2355 = vadd.f32 %v1628, %v2354
        %v2356 = vpop.f32.mrb[0].mxu0
        %v2357 = vadd.f32 %v1632, %v2356
        %v2358 = vpop.f32.mrb[0].mxu0
        %v2359 = vadd.f32 %v1628, %v2358
        %v2360 = vpop.f32.mrb[0].mxu0
        %v2361 = vadd.f32 %v1632, %v2360
        %2362 = vmatprep.mubr.bf16.mxu0 0
        %2363 = vmatmul.mubr.bf16.gmra.mrb[0].mxu0 %v1530
        %v2364 = vpop.f32.mrb[0].mxu0
        %v2365 = vadd.f32 %v1628, %v2364
        %v2366 = vpop.f32.mrb[0].mxu0
        %v2367 = vadd.f32 %v1632, %v2366
        %v2368 = vpop.f32.mrb[0].mxu0
        %v2369 = vadd.f32 %v1628, %v2368
        %v2370 = vpop.f32.mrb[0].mxu0
        %v2371 = vadd.f32 %v1632, %v2370
        %2372 = vmatprep.mubr.bf16.mxu0 0
        %2373 = vmatmul.mubr.bf16.gmra.mrb[0].mxu0 %v1531
        %v2374 = vpop.f32.mrb[0].mxu0
        %v2375 = vadd.f32 %v1628, %v2374
        %v2376 = vpop.f32.mrb[0].mxu0
        %v2377 = vadd.f32 %v1632, %v2376
        %v2378 = vpop.f32.mrb[0].mxu0
        %v2379 = vadd.f32 %v1628, %v2378
        %v2380 = vpop.f32.mrb[0].mxu0
        %v2381 = vadd.f32 %v1632, %v2380
        %2382 = vmatprep.mubr.bf16.mxu0 0
        %2383 = vmatmul.mubr.bf16.gmra.mrb[0].mxu0 %v1532
        %v2384 = vpop.f32.mrb[0].mxu0
        %v2385 = vadd.f32 %v1628, %v2384
        %v2386 = vpop.f32.mrb[0].mxu0
        %v2387 = vadd.f32 %v1632, %v2386
        %v2388 = vpop.f32.mrb[0].mxu0
        %v2389 = vadd.f32 %v1628, %v2388
        %v2390 = vpop.f32.mrb[0].mxu0
        %v2391 = vadd.f32 %v1632, %v2390
        %2392 = vmatprep.mubr.bf16.mxu0 0
        %2393 = vmatmul.mubr.bf16.gmra.mrb[0].mxu0 %v1533
        %v2394 = vpop.f32.mrb[0].mxu0
        %v2395 = vadd.f32 %v1628, %v2394
        %v2396 = vpop.f32.mrb[0].mxu0
        %v2397 = vadd.f32 %v1632, %v2396
        %v2398 = vpop.f32.mrb[0].mxu0
        %v2399 = vadd.f32 %v1628, %v2398
        %v2400 = vpop.f32.mrb[0].mxu0
        %v2401 = vadd.f32 %v1632, %v2400
        %2402 = vmatprep.mubr.bf16.mxu0 0
        %2403 = vmatmul.mubr.bf16.gmra.mrb[0].mxu0 %v1534
        %v2404 = vpop.f32.mrb[0].mxu0
        %v2405 = vadd.f32 %v1628, %v2404
        %v2406 = vpop.f32.mrb[0].mxu0
        %v2407 = vadd.f32 %v1632, %v2406
        %v2408 = vpop.f32.mrb[0].mxu0
        %v2409 = vadd.f32 %v1628, %v2408
        %v2410 = vpop.f32.mrb[0].mxu0
        %v2411 = vadd.f32 %v1632, %v2410
        %2412 = vdwg.mxu0
        %v2413 = vmax.f32 %v1996, 0.0
        %v2414 = vmax.f32 %v1998, 0.0
        %v2415 = vmax.f32 %v2109, 0.0
        %v2416 = vmax.f32 %v2111, 0.0
        %v2417 = vmax.f32 %v2222, 0.0
        %v2418 = vmax.f32 %v2224, 0.0
        %v2419 = vmax.f32 %v2335, 0.0
        %v2420 = vmax.f32 %v2337, 0.0
        %v2421 = vmax.f32 %v2000, 0.0
        %v2422 = vmax.f32 %v2002, 0.0
        %v2423 = vmax.f32 %v2113, 0.0
        %v2424 = vmax.f32 %v2115, 0.0
        %v2425 = vmax.f32 %v2226, 0.0
        %v2426 = vmax.f32 %v2228, 0.0
        %v2427 = vmax.f32 %v2339, 0.0
        %v2428 = vmax.f32 %v2341, 0.0
        %v2429 = vmax.f32 %v2006, 0.0
        %v2430 = vmax.f32 %v2008, 0.0
        %v2431 = vmax.f32 %v2119, 0.0
        %v2432 = vmax.f32 %v2121, 0.0
        %v2433 = vmax.f32 %v2232, 0.0
        %v2434 = vmax.f32 %v2234, 0.0
        %v2435 = vmax.f32 %v2345, 0.0
        %v2436 = vmax.f32 %v2347, 0.0
        %v2437 = vmax.f32 %v2010, 0.0
        %v2438 = vmax.f32 %v2012, 0.0
        %v2439 = vmax.f32 %v2123, 0.0
        %v2440 = vmax.f32 %v2125, 0.0
        %v2441 = vmax.f32 %v2236, 0.0
        %v2442 = vmax.f32 %v2238, 0.0
        %v2443 = vmax.f32 %v2349, 0.0
        %v2444 = vmax.f32 %v2351, 0.0
        %v2445 = vmax.f32 %v2016, 0.0
        %v2446 = vmax.f32 %v2018, 0.0
        %v2447 = vmax.f32 %v2129, 0.0
        %v2448 = vmax.f32 %v2131, 0.0
        %v2449 = vmax.f32 %v2242, 0.0
        %v2450 = vmax.f32 %v2244, 0.0
        %v2451 = vmax.f32 %v2355, 0.0
        %v2452 = vmax.f32 %v2357, 0.0
        %v2453 = vmax.f32 %v2020, 0.0
        %v2454 = vmax.f32 %v2022, 0.0
        %v2455 = vmax.f32 %v2133, 0.0
        %v2456 = vmax.f32 %v2135, 0.0
        %v2457 = vmax.f32 %v2246, 0.0
        %v2458 = vmax.f32 %v2248, 0.0
        %v2459 = vmax.f32 %v2359, 0.0
        %v2460 = vmax.f32 %v2361, 0.0
        %v2461 = vmax.f32 %v2026, 0.0
        %v2462 = vmax.f32 %v2028, 0.0
        %v2463 = vmax.f32 %v2139, 0.0
        %v2464 = vmax.f32 %v2141, 0.0
        %v2465 = vmax.f32 %v2252, 0.0
        %v2466 = vmax.f32 %v2254, 0.0
        %v2467 = vmax.f32 %v2365, 0.0
        %v2468 = vmax.f32 %v2367, 0.0
        %v2469 = vmax.f32 %v2030, 0.0
        %v2470 = vmax.f32 %v2032, 0.0
        %v2471 = vmax.f32 %v2143, 0.0
        %v2472 = vmax.f32 %v2145, 0.0
        %v2473 = vmax.f32 %v2256, 0.0
        %v2474 = vmax.f32 %v2258, 0.0
        %v2475 = vmax.f32 %v2369, 0.0
        %v2476 = vmax.f32 %v2371, 0.0
        %v2477 = vmax.f32 %v2036, 0.0
        %v2478 = vmax.f32 %v2038, 0.0
        %v2479 = vmax.f32 %v2149, 0.0
        %v2480 = vmax.f32 %v2151, 0.0
        %v2481 = vmax.f32 %v2262, 0.0
        %v2482 = vmax.f32 %v2264, 0.0
        %v2483 = vmax.f32 %v2375, 0.0
        %v2484 = vmax.f32 %v2377, 0.0
        %v2485 = vmax.f32 %v2040, 0.0
        %v2486 = vmax.f32 %v2042, 0.0
        %v2487 = vmax.f32 %v2153, 0.0
        %v2488 = vmax.f32 %v2155, 0.0
        %v2489 = vmax.f32 %v2266, 0.0
        %v2490 = vmax.f32 %v2268, 0.0
        %v2491 = vmax.f32 %v2379, 0.0
        %v2492 = vmax.f32 %v2381, 0.0
        %v2493 = vmax.f32 %v2046, 0.0
        %v2494 = vmax.f32 %v2048, 0.0
        %v2495 = vmax.f32 %v2159, 0.0
        %v2496 = vmax.f32 %v2161, 0.0
        %v2497 = vmax.f32 %v2272, 0.0
        %v2498 = vmax.f32 %v2274, 0.0
        %v2499 = vmax.f32 %v2385, 0.0
        %v2500 = vmax.f32 %v2387, 0.0
        %v2501 = vmax.f32 %v2050, 0.0
        %v2502 = vmax.f32 %v2052, 0.0
        %v2503 = vmax.f32 %v2163, 0.0
        %v2504 = vmax.f32 %v2165, 0.0
        %v2505 = vmax.f32 %v2276, 0.0
        %v2506 = vmax.f32 %v2278, 0.0
        %v2507 = vmax.f32 %v2389, 0.0
        %v2508 = vmax.f32 %v2391, 0.0
        %v2509 = vmax.f32 %v2056, 0.0
        %v2510 = vmax.f32 %v2058, 0.0
        %v2511 = vmax.f32 %v2169, 0.0
        %v2512 = vmax.f32 %v2171, 0.0
        %v2513 = vmax.f32 %v2282, 0.0
        %v2514 = vmax.f32 %v2284, 0.0
        %v2515 = vmax.f32 %v2395, 0.0
        %v2516 = vmax.f32 %v2397, 0.0
        %v2517 = vmax.f32 %v2060, 0.0
        %v2518 = vmax.f32 %v2062, 0.0
        %v2519 = vmax.f32 %v2173, 0.0
        %v2520 = vmax.f32 %v2175, 0.0
        %v2521 = vmax.f32 %v2286, 0.0
        %v2522 = vmax.f32 %v2288, 0.0
        %v2523 = vmax.f32 %v2399, 0.0
        %v2524 = vmax.f32 %v2401, 0.0
        %v2525 = vmax.f32 %v2066, 0.0
        %v2526 = vmax.f32 %v2068, 0.0
        %v2527 = vmax.f32 %v2179, 0.0
        %v2528 = vmax.f32 %v2181, 0.0
        %v2529 = vmax.f32 %v2292, 0.0
        %v2530 = vmax.f32 %v2294, 0.0
        %v2531 = vmax.f32 %v2405, 0.0
        %v2532 = vmax.f32 %v2407, 0.0
        %v2533 = vmax.f32 %v2070, 0.0
        %v2534 = vmax.f32 %v2072, 0.0
        %v2535 = vmax.f32 %v2183, 0.0
        %v2536 = vmax.f32 %v2185, 0.0
        %v2537 = vmax.f32 %v2296, 0.0
        %v2538 = vmax.f32 %v2298, 0.0
        %v2539 = vmax.f32 %v2409, 0.0
        %v2540 = vmax.f32 %v2411, 0.0
        %v2541 = vpack.c.bf16 %v2421, %v2413
        %v2542 = vpack.c.bf16 %v2422, %v2414
        %v2543 = vpack.c.bf16 %v2423, %v2415
        %v2544 = vpack.c.bf16 %v2424, %v2416
        %v2545 = vpack.c.bf16 %v2425, %v2417
        %v2546 = vpack.c.bf16 %v2426, %v2418
        %v2547 = vpack.c.bf16 %v2427, %v2419
        %v2548 = vpack.c.bf16 %v2428, %v2420
        %v2549 = vpack.c.bf16 %v2437, %v2429
        %v2550 = vpack.c.bf16 %v2438, %v2430
        %v2551 = vpack.c.bf16 %v2439, %v2431
        %v2552 = vpack.c.bf16 %v2440, %v2432
        %v2553 = vpack.c.bf16 %v2441, %v2433
        %v2554 = vpack.c.bf16 %v2442, %v2434
        %v2555 = vpack.c.bf16 %v2443, %v2435
        %v2556 = vpack.c.bf16 %v2444, %v2436
        %v2557 = vpack.c.bf16 %v2453, %v2445
        %v2558 = vpack.c.bf16 %v2454, %v2446
        %v2559 = vpack.c.bf16 %v2455, %v2447
        %v2560 = vpack.c.bf16 %v2456, %v2448
        %v2561 = vpack.c.bf16 %v2457, %v2449
        %v2562 = vpack.c.bf16 %v2458, %v2450
        %v2563 = vpack.c.bf16 %v2459, %v2451
        %v2564 = vpack.c.bf16 %v2460, %v2452
        %v2565 = vpack.c.bf16 %v2469, %v2461
        %v2566 = vpack.c.bf16 %v2470, %v2462
        %v2567 = vpack.c.bf16 %v2471, %v2463
        %v2568 = vpack.c.bf16 %v2472, %v2464
        %v2569 = vpack.c.bf16 %v2473, %v2465
        %v2570 = vpack.c.bf16 %v2474, %v2466
        %v2571 = vpack.c.bf16 %v2475, %v2467
        %v2572 = vpack.c.bf16 %v2476, %v2468
        %v2573 = vpack.c.bf16 %v2485, %v2477
        %v2574 = vpack.c.bf16 %v2486, %v2478
        %v2575 = vpack.c.bf16 %v2487, %v2479
        %v2576 = vpack.c.bf16 %v2488, %v2480
        %v2577 = vpack.c.bf16 %v2489, %v2481
        %v2578 = vpack.c.bf16 %v2490, %v2482
        %v2579 = vpack.c.bf16 %v2491, %v2483
        %v2580 = vpack.c.bf16 %v2492, %v2484
        %v2581 = vpack.c.bf16 %v2501, %v2493
        %v2582 = vpack.c.bf16 %v2502, %v2494
        %v2583 = vpack.c.bf16 %v2503, %v2495
        %v2584 = vpack.c.bf16 %v2504, %v2496
        %v2585 = vpack.c.bf16 %v2505, %v2497
        %v2586 = vpack.c.bf16 %v2506, %v2498
        %v2587 = vpack.c.bf16 %v2507, %v2499
        %v2588 = vpack.c.bf16 %v2508, %v2500
        %v2589 = vpack.c.bf16 %v2517, %v2509
        %v2590 = vpack.c.bf16 %v2518, %v2510
        %v2591 = vpack.c.bf16 %v2519, %v2511
        %v2592 = vpack.c.bf16 %v2520, %v2512
        %v2593 = vpack.c.bf16 %v2521, %v2513
        %v2594 = vpack.c.bf16 %v2522, %v2514
        %v2595 = vpack.c.bf16 %v2523, %v2515
        %v2596 = vpack.c.bf16 %v2524, %v2516
        %v2597 = vpack.c.bf16 %v2533, %v2525
        %v2598 = vpack.c.bf16 %v2534, %v2526
        %v2599 = vpack.c.bf16 %v2535, %v2527
        %v2600 = vpack.c.bf16 %v2536, %v2528
        %v2601 = vpack.c.bf16 %v2537, %v2529
        %v2602 = vpack.c.bf16 %v2538, %v2530
        %v2603 = vpack.c.bf16 %v2539, %v2531
        %v2604 = vpack.c.bf16 %v2540, %v2532
        %v2605 = vld [vmem:[#allocation19] sm:$0xff]
        %v2606 = vld [vmem:[#allocation19 + $0x8] sm:$0xff]
        %v2607 = vld [vmem:[#allocation19 + $0x10] sm:$0xff]
        %v2608 = vld [vmem:[#allocation19 + $0x18] sm:$0xff]
        %v2609 = vld [vmem:[#allocation19 + $0x20] sm:$0xff]
        %v2610 = vld [vmem:[#allocation19 + $0x28] sm:$0xff]
        %v2611 = vld [vmem:[#allocation19 + $0x30] sm:$0xff]
        %v2612 = vld [vmem:[#allocation19 + $0x38] sm:$0xff]
        %v2613 = vld [vmem:[#allocation19 + $0x40] sm:$0xff]
        %v2614 = vld [vmem:[#allocation19 + $0x48] sm:$0xff]
        %v2615 = vld [vmem:[#allocation19 + $0x50] sm:$0xff]
        %v2616 = vld [vmem:[#allocation19 + $0x58] sm:$0xff]
        %v2617 = vld [vmem:[#allocation19 + $0x60] sm:$0xff]
        %v2618 = vld [vmem:[#allocation19 + $0x68] sm:$0xff]
        %v2619 = vld [vmem:[#allocation19 + $0x70] sm:$0xff]
        %v2620 = vld [vmem:[#allocation19 + $0x78] sm:$0xff]
        %v2621 = vld [vmem:[#allocation19 + $0x80] sm:$0xff]
        %v2622 = vld [vmem:[#allocation19 + $0x88] sm:$0xff]
        %v2623 = vld [vmem:[#allocation19 + $0x90] sm:$0xff]
        %v2624 = vld [vmem:[#allocation19 + $0x98] sm:$0xff]
        %v2625 = vld [vmem:[#allocation19 + $0xa0] sm:$0xff]
        %v2626 = vld [vmem:[#allocation19 + $0xa8] sm:$0xff]
        %v2627 = vld [vmem:[#allocation19 + $0xb0] sm:$0xff]
        %v2628 = vld [vmem:[#allocation19 + $0xb8] sm:$0xff]
        %v2629 = vld [vmem:[#allocation19 + $0xc0] sm:$0xff]
        %v2630 = vld [vmem:[#allocation19 + $0xc8] sm:$0xff]
        %v2631 = vld [vmem:[#allocation19 + $0xd0] sm:$0xff]
        %v2632 = vld [vmem:[#allocation19 + $0xd8] sm:$0xff]
        %v2633 = vld [vmem:[#allocation19 + $0xe0] sm:$0xff]
        %v2634 = vld [vmem:[#allocation19 + $0xe8] sm:$0xff]
        %v2635 = vld [vmem:[#allocation19 + $0xf0] sm:$0xff]
        %v2636 = vld [vmem:[#allocation19 + $0xf8] sm:$0xff]
        %v2637 = vld [vmem:[#allocation19 + $0x100] sm:$0xff]
        %v2638 = vld [vmem:[#allocation19 + $0x108] sm:$0xff]
        %v2639 = vld [vmem:[#allocation19 + $0x110] sm:$0xff]
        %v2640 = vld [vmem:[#allocation19 + $0x118] sm:$0xff]
        %v2641 = vld [vmem:[#allocation19 + $0x120] sm:$0xff]
        %v2642 = vld [vmem:[#allocation19 + $0x128] sm:$0xff]
        %v2643 = vld [vmem:[#allocation19 + $0x130] sm:$0xff]
        %v2644 = vld [vmem:[#allocation19 + $0x138] sm:$0xff]
        %v2645 = vld [vmem:[#allocation19 + $0x140] sm:$0xff]
        %v2646 = vld [vmem:[#allocation19 + $0x148] sm:$0xff]
        %v2647 = vld [vmem:[#allocation19 + $0x150] sm:$0xff]
        %v2648 = vld [vmem:[#allocation19 + $0x158] sm:$0xff]
        %v2649 = vld [vmem:[#allocation19 + $0x160] sm:$0xff]
        %v2650 = vld [vmem:[#allocation19 + $0x168] sm:$0xff]
        %v2651 = vld [vmem:[#allocation19 + $0x170] sm:$0xff]
        %v2652 = vld [vmem:[#allocation19 + $0x178] sm:$0xff]
        %v2653 = vld [vmem:[#allocation19 + $0x180] sm:$0xff]
        %v2654 = vld [vmem:[#allocation19 + $0x188] sm:$0xff]
        %v2655 = vld [vmem:[#allocation19 + $0x190] sm:$0xff]
        %v2656 = vld [vmem:[#allocation19 + $0x198] sm:$0xff]
        %v2657 = vld [vmem:[#allocation19 + $0x1a0] sm:$0xff]
        %v2658 = vld [vmem:[#allocation19 + $0x1a8] sm:$0xff]
        %v2659 = vld [vmem:[#allocation19 + $0x1b0] sm:$0xff]
        %v2660 = vld [vmem:[#allocation19 + $0x1b8] sm:$0xff]
        %v2661 = vld [vmem:[#allocation19 + $0x1c0] sm:$0xff]
        %v2662 = vld [vmem:[#allocation19 + $0x1c8] sm:$0xff]
        %v2663 = vld [vmem:[#allocation19 + $0x1d0] sm:$0xff]
        %v2664 = vld [vmem:[#allocation19 + $0x1d8] sm:$0xff]
        %v2665 = vld [vmem:[#allocation19 + $0x1e0] sm:$0xff]
        %v2666 = vld [vmem:[#allocation19 + $0x1e8] sm:$0xff]
        %v2667 = vld [vmem:[#allocation19 + $0x1f0] sm:$0xff]
        %v2668 = vld [vmem:[#allocation19 + $0x1f8] sm:$0xff]
        %v2669 = vld [vmem:[#allocation19 + $0x200] sm:$0xff]
        %v2670 = vld [vmem:[#allocation19 + $0x208] sm:$0xff]
        %v2671 = vld [vmem:[#allocation19 + $0x210] sm:$0xff]
        %v2672 = vld [vmem:[#allocation19 + $0x218] sm:$0xff]
        %v2673 = vld [vmem:[#allocation19 + $0x220] sm:$0xff]
        %v2674 = vld [vmem:[#allocation19 + $0x228] sm:$0xff]
        %v2675 = vld [vmem:[#allocation19 + $0x230] sm:$0xff]
        %v2676 = vld [vmem:[#allocation19 + $0x238] sm:$0xff]
        %v2677 = vld [vmem:[#allocation19 + $0x240] sm:$0xff]
        %v2678 = vld [vmem:[#allocation19 + $0x248] sm:$0xff]
        %v2679 = vld [vmem:[#allocation19 + $0x250] sm:$0xff]
        %v2680 = vld [vmem:[#allocation19 + $0x258] sm:$0xff]
        %v2681 = vld [vmem:[#allocation19 + $0x260] sm:$0xff]
        %v2682 = vld [vmem:[#allocation19 + $0x268] sm:$0xff]
        %v2683 = vld [vmem:[#allocation19 + $0x270] sm:$0xff]
        %v2684 = vld [vmem:[#allocation19 + $0x278] sm:$0xff]
        %v2685 = vld [vmem:[#allocation19 + $0x280] sm:$0xff]
        %v2686 = vld [vmem:[#allocation19 + $0x288] sm:$0xff]
        %v2687 = vld [vmem:[#allocation19 + $0x290] sm:$0xff]
        %v2688 = vld [vmem:[#allocation19 + $0x298] sm:$0xff]
        %v2689 = vld [vmem:[#allocation19 + $0x2a0] sm:$0xff]
        %v2690 = vld [vmem:[#allocation19 + $0x2a8] sm:$0xff]
        %v2691 = vld [vmem:[#allocation19 + $0x2b0] sm:$0xff]
        %v2692 = vld [vmem:[#allocation19 + $0x2b8] sm:$0xff]
        %v2693 = vld [vmem:[#allocation19 + $0x2c0] sm:$0xff]
        %v2694 = vld [vmem:[#allocation19 + $0x2c8] sm:$0xff]
        %v2695 = vld [vmem:[#allocation19 + $0x2d0] sm:$0xff]
        %v2696 = vld [vmem:[#allocation19 + $0x2d8] sm:$0xff]
        %v2697 = vld [vmem:[#allocation19 + $0x2e0] sm:$0xff]
        %v2698 = vld [vmem:[#allocation19 + $0x2e8] sm:$0xff]
        %v2699 = vld [vmem:[#allocation19 + $0x2f0] sm:$0xff]
        %v2700 = vld [vmem:[#allocation19 + $0x2f8] sm:$0xff]
        %v2701 = vld [vmem:[#allocation19 + $0x300] sm:$0xff]
        %v2702 = vld [vmem:[#allocation19 + $0x308] sm:$0xff]
        %v2703 = vld [vmem:[#allocation19 + $0x310] sm:$0xff]
        %v2704 = vld [vmem:[#allocation19 + $0x318] sm:$0xff]
        %v2705 = vld [vmem:[#allocation19 + $0x320] sm:$0xff]
        %v2706 = vld [vmem:[#allocation19 + $0x328] sm:$0xff]
        %v2707 = vld [vmem:[#allocation19 + $0x330] sm:$0xff]
        %v2708 = vld [vmem:[#allocation19 + $0x338] sm:$0xff]
        %v2709 = vld [vmem:[#allocation19 + $0x340] sm:$0xff]
        %v2710 = vld [vmem:[#allocation19 + $0x348] sm:$0xff]
        %v2711 = vld [vmem:[#allocation19 + $0x350] sm:$0xff]
        %v2712 = vld [vmem:[#allocation19 + $0x358] sm:$0xff]
        %v2713 = vld [vmem:[#allocation19 + $0x360] sm:$0xff]
        %v2714 = vld [vmem:[#allocation19 + $0x368] sm:$0xff]
        %v2715 = vld [vmem:[#allocation19 + $0x370] sm:$0xff]
        %v2716 = vld [vmem:[#allocation19 + $0x378] sm:$0xff]
        %v2717 = vld [vmem:[#allocation19 + $0x380] sm:$0xff]
        %v2718 = vld [vmem:[#allocation19 + $0x388] sm:$0xff]
        %v2719 = vld [vmem:[#allocation19 + $0x390] sm:$0xff]
        %v2720 = vld [vmem:[#allocation19 + $0x398] sm:$0xff]
        %v2721 = vld [vmem:[#allocation19 + $0x3a0] sm:$0xff]
        %v2722 = vld [vmem:[#allocation19 + $0x3a8] sm:$0xff]
        %v2723 = vld [vmem:[#allocation19 + $0x3b0] sm:$0xff]
        %v2724 = vld [vmem:[#allocation19 + $0x3b8] sm:$0xff]
        %v2725 = vld [vmem:[#allocation19 + $0x3c0] sm:$0xff]
        %v2726 = vld [vmem:[#allocation19 + $0x3c8] sm:$0xff]
        %v2727 = vld [vmem:[#allocation19 + $0x3d0] sm:$0xff]
        %v2728 = vld [vmem:[#allocation19 + $0x3d8] sm:$0xff]
        %v2729 = vld [vmem:[#allocation19 + $0x3e0] sm:$0xff]
        %v2730 = vld [vmem:[#allocation19 + $0x3e8] sm:$0xff]
        %v2731 = vld [vmem:[#allocation19 + $0x3f0] sm:$0xff]
        %v2732 = vld [vmem:[#allocation19 + $0x3f8] sm:$0xff]
        %v2733 = vld [vmem:[#allocation19 + $0x400] sm:$0xff]
        %v2734 = vld [vmem:[#allocation19 + $0x408] sm:$0xff]
        %v2735 = vld [vmem:[#allocation19 + $0x410] sm:$0xff]
        %v2736 = vld [vmem:[#allocation19 + $0x418] sm:$0xff]
        %v2737 = vld [vmem:[#allocation19 + $0x420] sm:$0xff]
        %v2738 = vld [vmem:[#allocation19 + $0x428] sm:$0xff]
        %v2739 = vld [vmem:[#allocation19 + $0x430] sm:$0xff]
        %v2740 = vld [vmem:[#allocation19 + $0x438] sm:$0xff]
        %v2741 = vld [vmem:[#allocation19 + $0x440] sm:$0xff]
        %v2742 = vld [vmem:[#allocation19 + $0x448] sm:$0xff]
        %v2743 = vld [vmem:[#allocation19 + $0x450] sm:$0xff]
        %v2744 = vld [vmem:[#allocation19 + $0x458] sm:$0xff]
        %v2745 = vld [vmem:[#allocation19 + $0x460] sm:$0xff]
        %v2746 = vld [vmem:[#allocation19 + $0x468] sm:$0xff]
        %v2747 = vld [vmem:[#allocation19 + $0x470] sm:$0xff]
        %v2748 = vld [vmem:[#allocation19 + $0x478] sm:$0xff]
        %v2749 = vld [vmem:[#allocation19 + $0x480] sm:$0xff]
        %v2750 = vld [vmem:[#allocation19 + $0x488] sm:$0xff]
        %v2751 = vld [vmem:[#allocation19 + $0x490] sm:$0xff]
        %v2752 = vld [vmem:[#allocation19 + $0x498] sm:$0xff]
        %v2753 = vld [vmem:[#allocation19 + $0x4a0] sm:$0xff]
        %v2754 = vld [vmem:[#allocation19 + $0x4a8] sm:$0xff]
        %v2755 = vld [vmem:[#allocation19 + $0x4b0] sm:$0xff]
        %v2756 = vld [vmem:[#allocation19 + $0x4b8] sm:$0xff]
        %v2757 = vld [vmem:[#allocation19 + $0x4c0] sm:$0xff]
        %v2758 = vld [vmem:[#allocation19 + $0x4c8] sm:$0xff]
        %v2759 = vld [vmem:[#allocation19 + $0x4d0] sm:$0xff]
        %v2760 = vld [vmem:[#allocation19 + $0x4d8] sm:$0xff]
        %v2761 = vld [vmem:[#allocation19 + $0x4e0] sm:$0xff]
        %v2762 = vld [vmem:[#allocation19 + $0x4e8] sm:$0xff]
        %v2763 = vld [vmem:[#allocation19 + $0x4f0] sm:$0xff]
        %v2764 = vld [vmem:[#allocation19 + $0x4f8] sm:$0xff]
        %v2765 = vld [vmem:[#allocation19 + $0x500] sm:$0xff]
        %v2766 = vld [vmem:[#allocation19 + $0x508] sm:$0xff]
        %v2767 = vld [vmem:[#allocation19 + $0x510] sm:$0xff]
        %v2768 = vld [vmem:[#allocation19 + $0x518] sm:$0xff]
        %v2769 = vld [vmem:[#allocation19 + $0x520] sm:$0xff]
        %v2770 = vld [vmem:[#allocation19 + $0x528] sm:$0xff]
        %v2771 = vld [vmem:[#allocation19 + $0x530] sm:$0xff]
        %v2772 = vld [vmem:[#allocation19 + $0x538] sm:$0xff]
        %v2773 = vld [vmem:[#allocation19 + $0x540] sm:$0xff]
        %v2774 = vld [vmem:[#allocation19 + $0x548] sm:$0xff]
        %v2775 = vld [vmem:[#allocation19 + $0x550] sm:$0xff]
        %v2776 = vld [vmem:[#allocation19 + $0x558] sm:$0xff]
        %v2777 = vld [vmem:[#allocation19 + $0x560] sm:$0xff]
        %v2778 = vld [vmem:[#allocation19 + $0x568] sm:$0xff]
        %v2779 = vld [vmem:[#allocation19 + $0x570] sm:$0xff]
        %v2780 = vld [vmem:[#allocation19 + $0x578] sm:$0xff]
        %v2781 = vld [vmem:[#allocation19 + $0x580] sm:$0xff]
        %v2782 = vld [vmem:[#allocation19 + $0x588] sm:$0xff]
        %v2783 = vld [vmem:[#allocation19 + $0x590] sm:$0xff]
        %v2784 = vld [vmem:[#allocation19 + $0x598] sm:$0xff]
        %v2785 = vld [vmem:[#allocation19 + $0x5a0] sm:$0xff]
        %v2786 = vld [vmem:[#allocation19 + $0x5a8] sm:$0xff]
        %v2787 = vld [vmem:[#allocation19 + $0x5b0] sm:$0xff]
        %v2788 = vld [vmem:[#allocation19 + $0x5b8] sm:$0xff]
        %v2789 = vld [vmem:[#allocation19 + $0x5c0] sm:$0xff]
        %v2790 = vld [vmem:[#allocation19 + $0x5c8] sm:$0xff]
        %v2791 = vld [vmem:[#allocation19 + $0x5d0] sm:$0xff]
        %v2792 = vld [vmem:[#allocation19 + $0x5d8] sm:$0xff]
        %v2793 = vld [vmem:[#allocation19 + $0x5e0] sm:$0xff]
        %v2794 = vld [vmem:[#allocation19 + $0x5e8] sm:$0xff]
        %v2795 = vld [vmem:[#allocation19 + $0x5f0] sm:$0xff]
        %v2796 = vld [vmem:[#allocation19 + $0x5f8] sm:$0xff]
        %v2797 = vld [vmem:[#allocation19 + $0x600] sm:$0xff]
        %v2798 = vld [vmem:[#allocation19 + $0x608] sm:$0xff]
        %v2799 = vld [vmem:[#allocation19 + $0x610] sm:$0xff]
        %v2800 = vld [vmem:[#allocation19 + $0x618] sm:$0xff]
        %v2801 = vld [vmem:[#allocation19 + $0x620] sm:$0xff]
        %v2802 = vld [vmem:[#allocation19 + $0x628] sm:$0xff]
        %v2803 = vld [vmem:[#allocation19 + $0x630] sm:$0xff]
        %v2804 = vld [vmem:[#allocation19 + $0x638] sm:$0xff]
        %v2805 = vld [vmem:[#allocation19 + $0x640] sm:$0xff]
        %v2806 = vld [vmem:[#allocation19 + $0x648] sm:$0xff]
        %v2807 = vld [vmem:[#allocation19 + $0x650] sm:$0xff]
        %v2808 = vld [vmem:[#allocation19 + $0x658] sm:$0xff]
        %v2809 = vld [vmem:[#allocation19 + $0x660] sm:$0xff]
        %v2810 = vld [vmem:[#allocation19 + $0x668] sm:$0xff]
        %v2811 = vld [vmem:[#allocation19 + $0x670] sm:$0xff]
        %v2812 = vld [vmem:[#allocation19 + $0x678] sm:$0xff]
        %v2813 = vld [vmem:[#allocation19 + $0x680] sm:$0xff]
        %v2814 = vld [vmem:[#allocation19 + $0x688] sm:$0xff]
        %v2815 = vld [vmem:[#allocation19 + $0x690] sm:$0xff]
        %v2816 = vld [vmem:[#allocation19 + $0x698] sm:$0xff]
        %v2817 = vld [vmem:[#allocation19 + $0x6a0] sm:$0xff]
        %v2818 = vld [vmem:[#allocation19 + $0x6a8] sm:$0xff]
        %v2819 = vld [vmem:[#allocation19 + $0x6b0] sm:$0xff]
        %v2820 = vld [vmem:[#allocation19 + $0x6b8] sm:$0xff]
        %v2821 = vld [vmem:[#allocation19 + $0x6c0] sm:$0xff]
        %v2822 = vld [vmem:[#allocation19 + $0x6c8] sm:$0xff]
        %v2823 = vld [vmem:[#allocation19 + $0x6d0] sm:$0xff]
        %v2824 = vld [vmem:[#allocation19 + $0x6d8] sm:$0xff]
        %v2825 = vld [vmem:[#allocation19 + $0x6e0] sm:$0xff]
        %v2826 = vld [vmem:[#allocation19 + $0x6e8] sm:$0xff]
        %v2827 = vld [vmem:[#allocation19 + $0x6f0] sm:$0xff]
        %v2828 = vld [vmem:[#allocation19 + $0x6f8] sm:$0xff]
        %v2829 = vld [vmem:[#allocation19 + $0x700] sm:$0xff]
        %v2830 = vld [vmem:[#allocation19 + $0x708] sm:$0xff]
        %v2831 = vld [vmem:[#allocation19 + $0x710] sm:$0xff]
        %v2832 = vld [vmem:[#allocation19 + $0x718] sm:$0xff]
        %v2833 = vld [vmem:[#allocation19 + $0x720] sm:$0xff]
        %v2834 = vld [vmem:[#allocation19 + $0x728] sm:$0xff]
        %v2835 = vld [vmem:[#allocation19 + $0x730] sm:$0xff]
        %v2836 = vld [vmem:[#allocation19 + $0x738] sm:$0xff]
        %v2837 = vld [vmem:[#allocation19 + $0x740] sm:$0xff]
        %v2838 = vld [vmem:[#allocation19 + $0x748] sm:$0xff]
        %v2839 = vld [vmem:[#allocation19 + $0x750] sm:$0xff]
        %v2840 = vld [vmem:[#allocation19 + $0x758] sm:$0xff]
        %v2841 = vld [vmem:[#allocation19 + $0x760] sm:$0xff]
        %v2842 = vld [vmem:[#allocation19 + $0x768] sm:$0xff]
        %v2843 = vld [vmem:[#allocation19 + $0x770] sm:$0xff]
        %v2844 = vld [vmem:[#allocation19 + $0x778] sm:$0xff]
        %v2845 = vld [vmem:[#allocation19 + $0x780] sm:$0xff]
        %v2846 = vld [vmem:[#allocation19 + $0x788] sm:$0xff]
        %v2847 = vld [vmem:[#allocation19 + $0x790] sm:$0xff]
        %v2848 = vld [vmem:[#allocation19 + $0x798] sm:$0xff]
        %v2849 = vld [vmem:[#allocation19 + $0x7a0] sm:$0xff]
        %v2850 = vld [vmem:[#allocation19 + $0x7a8] sm:$0xff]
        %v2851 = vld [vmem:[#allocation19 + $0x7b0] sm:$0xff]
        %v2852 = vld [vmem:[#allocation19 + $0x7b8] sm:$0xff]
        %v2853 = vld [vmem:[#allocation19 + $0x7c0] sm:$0xff]
        %v2854 = vld [vmem:[#allocation19 + $0x7c8] sm:$0xff]
        %v2855 = vld [vmem:[#allocation19 + $0x7d0] sm:$0xff]
        %v2856 = vld [vmem:[#allocation19 + $0x7d8] sm:$0xff]
        %v2857 = vld [vmem:[#allocation19 + $0x7e0] sm:$0xff]
        %v2858 = vld [vmem:[#allocation19 + $0x7e8] sm:$0xff]
        %v2859 = vld [vmem:[#allocation19 + $0x7f0] sm:$0xff]
        %v2860 = vld [vmem:[#allocation19 + $0x7f8] sm:$0xff]
        %v2861 = vld [vmem:[#allocation19 + $0x800] sm:$0xff]
        %v2862 = vld [vmem:[#allocation19 + $0x808] sm:$0xff]
        %v2863 = vld [vmem:[#allocation19 + $0x810] sm:$0xff]
        %v2864 = vld [vmem:[#allocation19 + $0x818] sm:$0xff]
        %v2865 = vld [vmem:[#allocation19 + $0x820] sm:$0xff]
        %v2866 = vld [vmem:[#allocation19 + $0x828] sm:$0xff]
        %v2867 = vld [vmem:[#allocation19 + $0x830] sm:$0xff]
        %v2868 = vld [vmem:[#allocation19 + $0x838] sm:$0xff]
        %v2869 = vld [vmem:[#allocation19 + $0x840] sm:$0xff]
        %v2870 = vld [vmem:[#allocation19 + $0x848] sm:$0xff]
        %v2871 = vld [vmem:[#allocation19 + $0x850] sm:$0xff]
        %v2872 = vld [vmem:[#allocation19 + $0x858] sm:$0xff]
        %v2873 = vld [vmem:[#allocation19 + $0x860] sm:$0xff]
        %v2874 = vld [vmem:[#allocation19 + $0x868] sm:$0xff]
        %v2875 = vld [vmem:[#allocation19 + $0x870] sm:$0xff]
        %v2876 = vld [vmem:[#allocation19 + $0x878] sm:$0xff]
        %v2877 = vld [vmem:[#allocation19 + $0x880] sm:$0xff]
        %v2878 = vld [vmem:[#allocation19 + $0x888] sm:$0xff]
        %v2879 = vld [vmem:[#allocation19 + $0x890] sm:$0xff]
        %v2880 = vld [vmem:[#allocation19 + $0x898] sm:$0xff]
        %v2881 = vld [vmem:[#allocation19 + $0x8a0] sm:$0xff]
        %v2882 = vld [vmem:[#allocation19 + $0x8a8] sm:$0xff]
        %v2883 = vld [vmem:[#allocation19 + $0x8b0] sm:$0xff]
        %v2884 = vld [vmem:[#allocation19 + $0x8b8] sm:$0xff]
        %v2885 = vld [vmem:[#allocation19 + $0x8c0] sm:$0xff]
        %v2886 = vld [vmem:[#allocation19 + $0x8c8] sm:$0xff]
        %v2887 = vld [vmem:[#allocation19 + $0x8d0] sm:$0xff]
        %v2888 = vld [vmem:[#allocation19 + $0x8d8] sm:$0xff]
        %v2889 = vld [vmem:[#allocation19 + $0x8e0] sm:$0xff]
        %v2890 = vld [vmem:[#allocation19 + $0x8e8] sm:$0xff]
        %v2891 = vld [vmem:[#allocation19 + $0x8f0] sm:$0xff]
        %v2892 = vld [vmem:[#allocation19 + $0x8f8] sm:$0xff]
        %v2893 = vld [vmem:[#allocation19 + $0x900] sm:$0xff]
        %v2894 = vld [vmem:[#allocation19 + $0x908] sm:$0xff]
        %v2895 = vld [vmem:[#allocation19 + $0x910] sm:$0xff]
        %v2896 = vld [vmem:[#allocation19 + $0x918] sm:$0xff]
        %v2897 = vld [vmem:[#allocation19 + $0x920] sm:$0xff]
        %v2898 = vld [vmem:[#allocation19 + $0x928] sm:$0xff]
        %v2899 = vld [vmem:[#allocation19 + $0x930] sm:$0xff]
        %v2900 = vld [vmem:[#allocation19 + $0x938] sm:$0xff]
        %v2901 = vld [vmem:[#allocation19 + $0x940] sm:$0xff]
        %v2902 = vld [vmem:[#allocation19 + $0x948] sm:$0xff]
        %v2903 = vld [vmem:[#allocation19 + $0x950] sm:$0xff]
        %v2904 = vld [vmem:[#allocation19 + $0x958] sm:$0xff]
        %v2905 = vld [vmem:[#allocation19 + $0x960] sm:$0xff]
        %v2906 = vld [vmem:[#allocation19 + $0x968] sm:$0xff]
        %v2907 = vld [vmem:[#allocation19 + $0x970] sm:$0xff]
        %v2908 = vld [vmem:[#allocation19 + $0x978] sm:$0xff]
        %v2909 = vld [vmem:[#allocation19 + $0x980] sm:$0xff]
        %v2910 = vld [vmem:[#allocation19 + $0x988] sm:$0xff]
        %v2911 = vld [vmem:[#allocation19 + $0x990] sm:$0xff]
        %v2912 = vld [vmem:[#allocation19 + $0x998] sm:$0xff]
        %v2913 = vld [vmem:[#allocation19 + $0x9a0] sm:$0xff]
        %v2914 = vld [vmem:[#allocation19 + $0x9a8] sm:$0xff]
        %v2915 = vld [vmem:[#allocation19 + $0x9b0] sm:$0xff]
        %v2916 = vld [vmem:[#allocation19 + $0x9b8] sm:$0xff]
        %v2917 = vld [vmem:[#allocation19 + $0x9c0] sm:$0xff]
        %v2918 = vld [vmem:[#allocation19 + $0x9c8] sm:$0xff]
        %v2919 = vld [vmem:[#allocation19 + $0x9d0] sm:$0xff]
        %v2920 = vld [vmem:[#allocation19 + $0x9d8] sm:$0xff]
        %v2921 = vld [vmem:[#allocation19 + $0x9e0] sm:$0xff]
        %v2922 = vld [vmem:[#allocation19 + $0x9e8] sm:$0xff]
        %v2923 = vld [vmem:[#allocation19 + $0x9f0] sm:$0xff]
        %v2924 = vld [vmem:[#allocation19 + $0x9f8] sm:$0xff]
        %v2925 = vld [vmem:[#allocation19 + $0xa00] sm:$0xff]
        %v2926 = vld [vmem:[#allocation19 + $0xa08] sm:$0xff]
        %v2927 = vld [vmem:[#allocation19 + $0xa10] sm:$0xff]
        %v2928 = vld [vmem:[#allocation19 + $0xa18] sm:$0xff]
        %v2929 = vld [vmem:[#allocation19 + $0xa20] sm:$0xff]
        %v2930 = vld [vmem:[#allocation19 + $0xa28] sm:$0xff]
        %v2931 = vld [vmem:[#allocation19 + $0xa30] sm:$0xff]
        %v2932 = vld [vmem:[#allocation19 + $0xa38] sm:$0xff]
        %v2933 = vld [vmem:[#allocation19 + $0xa40] sm:$0xff]
        %v2934 = vld [vmem:[#allocation19 + $0xa48] sm:$0xff]
        %v2935 = vld [vmem:[#allocation19 + $0xa50] sm:$0xff]
        %v2936 = vld [vmem:[#allocation19 + $0xa58] sm:$0xff]
        %v2937 = vld [vmem:[#allocation19 + $0xa60] sm:$0xff]
        %v2938 = vld [vmem:[#allocation19 + $0xa68] sm:$0xff]
        %v2939 = vld [vmem:[#allocation19 + $0xa70] sm:$0xff]
        %v2940 = vld [vmem:[#allocation19 + $0xa78] sm:$0xff]
        %v2941 = vld [vmem:[#allocation19 + $0xa80] sm:$0xff]
        %v2942 = vld [vmem:[#allocation19 + $0xa88] sm:$0xff]
        %v2943 = vld [vmem:[#allocation19 + $0xa90] sm:$0xff]
        %v2944 = vld [vmem:[#allocation19 + $0xa98] sm:$0xff]
        %v2945 = vld [vmem:[#allocation19 + $0xaa0] sm:$0xff]
        %v2946 = vld [vmem:[#allocation19 + $0xaa8] sm:$0xff]
        %v2947 = vld [vmem:[#allocation19 + $0xab0] sm:$0xff]
        %v2948 = vld [vmem:[#allocation19 + $0xab8] sm:$0xff]
        %v2949 = vld [vmem:[#allocation19 + $0xac0] sm:$0xff]
        %v2950 = vld [vmem:[#allocation19 + $0xac8] sm:$0xff]
        %v2951 = vld [vmem:[#allocation19 + $0xad0] sm:$0xff]
        %v2952 = vld [vmem:[#allocation19 + $0xad8] sm:$0xff]
        %v2953 = vld [vmem:[#allocation19 + $0xae0] sm:$0xff]
        %v2954 = vld [vmem:[#allocation19 + $0xae8] sm:$0xff]
        %v2955 = vld [vmem:[#allocation19 + $0xaf0] sm:$0xff]
        %v2956 = vld [vmem:[#allocation19 + $0xaf8] sm:$0xff]
        %v2957 = vld [vmem:[#allocation19 + $0xb00] sm:$0xff]
        %v2958 = vld [vmem:[#allocation19 + $0xb08] sm:$0xff]
        %v2959 = vld [vmem:[#allocation19 + $0xb10] sm:$0xff]
        %v2960 = vld [vmem:[#allocation19 + $0xb18] sm:$0xff]
        %v2961 = vld [vmem:[#allocation19 + $0xb20] sm:$0xff]
        %v2962 = vld [vmem:[#allocation19 + $0xb28] sm:$0xff]
        %v2963 = vld [vmem:[#allocation19 + $0xb30] sm:$0xff]
        %v2964 = vld [vmem:[#allocation19 + $0xb38] sm:$0xff]
        %v2965 = vld [vmem:[#allocation19 + $0xb40] sm:$0xff]
        %v2966 = vld [vmem:[#allocation19 + $0xb48] sm:$0xff]
        %v2967 = vld [vmem:[#allocation19 + $0xb50] sm:$0xff]
        %v2968 = vld [vmem:[#allocation19 + $0xb58] sm:$0xff]
        %v2969 = vld [vmem:[#allocation19 + $0xb60] sm:$0xff]
        %v2970 = vld [vmem:[#allocation19 + $0xb68] sm:$0xff]
        %v2971 = vld [vmem:[#allocation19 + $0xb70] sm:$0xff]
        %v2972 = vld [vmem:[#allocation19 + $0xb78] sm:$0xff]
        %v2973 = vld [vmem:[#allocation19 + $0xb80] sm:$0xff]
        %v2974 = vld [vmem:[#allocation19 + $0xb88] sm:$0xff]
        %v2975 = vld [vmem:[#allocation19 + $0xb90] sm:$0xff]
        %v2976 = vld [vmem:[#allocation19 + $0xb98] sm:$0xff]
        %v2977 = vld [vmem:[#allocation19 + $0xba0] sm:$0xff]
        %v2978 = vld [vmem:[#allocation19 + $0xba8] sm:$0xff]
        %v2979 = vld [vmem:[#allocation19 + $0xbb0] sm:$0xff]
        %v2980 = vld [vmem:[#allocation19 + $0xbb8] sm:$0xff]
        %v2981 = vld [vmem:[#allocation19 + $0xbc0] sm:$0xff]
        %v2982 = vld [vmem:[#allocation19 + $0xbc8] sm:$0xff]
        %v2983 = vld [vmem:[#allocation19 + $0xbd0] sm:$0xff]
        %v2984 = vld [vmem:[#allocation19 + $0xbd8] sm:$0xff]
        %v2985 = vld [vmem:[#allocation19 + $0xbe0] sm:$0xff]
        %v2986 = vld [vmem:[#allocation19 + $0xbe8] sm:$0xff]
        %v2987 = vld [vmem:[#allocation19 + $0xbf0] sm:$0xff]
        %v2988 = vld [vmem:[#allocation19 + $0xbf8] sm:$0xff]
        %v2989 = vld [vmem:[#allocation19 + $0xc00] sm:$0xff]
        %v2990 = vld [vmem:[#allocation19 + $0xc08] sm:$0xff]
        %v2991 = vld [vmem:[#allocation19 + $0xc10] sm:$0xff]
        %v2992 = vld [vmem:[#allocation19 + $0xc18] sm:$0xff]
        %v2993 = vld [vmem:[#allocation19 + $0xc20] sm:$0xff]
        %v2994 = vld [vmem:[#allocation19 + $0xc28] sm:$0xff]
        %v2995 = vld [vmem:[#allocation19 + $0xc30] sm:$0xff]
        %v2996 = vld [vmem:[#allocation19 + $0xc38] sm:$0xff]
        %v2997 = vld [vmem:[#allocation19 + $0xc40] sm:$0xff]
        %v2998 = vld [vmem:[#allocation19 + $0xc48] sm:$0xff]
        %v2999 = vld [vmem:[#allocation19 + $0xc50] sm:$0xff]
        %v3000 = vld [vmem:[#allocation19 + $0xc58] sm:$0xff]
        %v3001 = vld [vmem:[#allocation19 + $0xc60] sm:$0xff]
        %v3002 = vld [vmem:[#allocation19 + $0xc68] sm:$0xff]
        %v3003 = vld [vmem:[#allocation19 + $0xc70] sm:$0xff]
        %v3004 = vld [vmem:[#allocation19 + $0xc78] sm:$0xff]
        %v3005 = vld [vmem:[#allocation19 + $0xc80] sm:$0xff]
        %v3006 = vld [vmem:[#allocation19 + $0xc88] sm:$0xff]
        %v3007 = vld [vmem:[#allocation19 + $0xc90] sm:$0xff]
        %v3008 = vld [vmem:[#allocation19 + $0xc98] sm:$0xff]
        %v3009 = vld [vmem:[#allocation19 + $0xca0] sm:$0xff]
        %v3010 = vld [vmem:[#allocation19 + $0xca8] sm:$0xff]
        %v3011 = vld [vmem:[#allocation19 + $0xcb0] sm:$0xff]
        %v3012 = vld [vmem:[#allocation19 + $0xcb8] sm:$0xff]
        %v3013 = vld [vmem:[#allocation19 + $0xcc0] sm:$0xff]
        %v3014 = vld [vmem:[#allocation19 + $0xcc8] sm:$0xff]
        %v3015 = vld [vmem:[#allocation19 + $0xcd0] sm:$0xff]
        %v3016 = vld [vmem:[#allocation19 + $0xcd8] sm:$0xff]
        %v3017 = vld [vmem:[#allocation19 + $0xce0] sm:$0xff]
        %v3018 = vld [vmem:[#allocation19 + $0xce8] sm:$0xff]
        %v3019 = vld [vmem:[#allocation19 + $0xcf0] sm:$0xff]
        %v3020 = vld [vmem:[#allocation19 + $0xcf8] sm:$0xff]
        %v3021 = vld [vmem:[#allocation19 + $0xd00] sm:$0xff]
        %v3022 = vld [vmem:[#allocation19 + $0xd08] sm:$0xff]
        %v3023 = vld [vmem:[#allocation19 + $0xd10] sm:$0xff]
        %v3024 = vld [vmem:[#allocation19 + $0xd18] sm:$0xff]
        %v3025 = vld [vmem:[#allocation19 + $0xd20] sm:$0xff]
        %v3026 = vld [vmem:[#allocation19 + $0xd28] sm:$0xff]
        %v3027 = vld [vmem:[#allocation19 + $0xd30] sm:$0xff]
        %v3028 = vld [vmem:[#allocation19 + $0xd38] sm:$0xff]
        %v3029 = vld [vmem:[#allocation19 + $0xd40] sm:$0xff]
        %v3030 = vld [vmem:[#allocation19 + $0xd48] sm:$0xff]
        %v3031 = vld [vmem:[#allocation19 + $0xd50] sm:$0xff]
        %v3032 = vld [vmem:[#allocation19 + $0xd58] sm:$0xff]
        %v3033 = vld [vmem:[#allocation19 + $0xd60] sm:$0xff]
        %v3034 = vld [vmem:[#allocation19 + $0xd68] sm:$0xff]
        %v3035 = vld [vmem:[#allocation19 + $0xd70] sm:$0xff]
        %v3036 = vld [vmem:[#allocation19 + $0xd78] sm:$0xff]
        %v3037 = vld [vmem:[#allocation19 + $0xd80] sm:$0xff]
        %v3038 = vld [vmem:[#allocation19 + $0xd88] sm:$0xff]
        %v3039 = vld [vmem:[#allocation19 + $0xd90] sm:$0xff]
        %v3040 = vld [vmem:[#allocation19 + $0xd98] sm:$0xff]
        %v3041 = vld [vmem:[#allocation19 + $0xda0] sm:$0xff]
        %v3042 = vld [vmem:[#allocation19 + $0xda8] sm:$0xff]
        %v3043 = vld [vmem:[#allocation19 + $0xdb0] sm:$0xff]
        %v3044 = vld [vmem:[#allocation19 + $0xdb8] sm:$0xff]
        %v3045 = vld [vmem:[#allocation19 + $0xdc0] sm:$0xff]
        %v3046 = vld [vmem:[#allocation19 + $0xdc8] sm:$0xff]
        %v3047 = vld [vmem:[#allocation19 + $0xdd0] sm:$0xff]
        %v3048 = vld [vmem:[#allocation19 + $0xdd8] sm:$0xff]
        %v3049 = vld [vmem:[#allocation19 + $0xde0] sm:$0xff]
        %v3050 = vld [vmem:[#allocation19 + $0xde8] sm:$0xff]
        %v3051 = vld [vmem:[#allocation19 + $0xdf0] sm:$0xff]
        %v3052 = vld [vmem:[#allocation19 + $0xdf8] sm:$0xff]
        %v3053 = vld [vmem:[#allocation19 + $0xe00] sm:$0xff]
        %v3054 = vld [vmem:[#allocation19 + $0xe08] sm:$0xff]
        %v3055 = vld [vmem:[#allocation19 + $0xe10] sm:$0xff]
        %v3056 = vld [vmem:[#allocation19 + $0xe18] sm:$0xff]
        %v3057 = vld [vmem:[#allocation19 + $0xe20] sm:$0xff]
        %v3058 = vld [vmem:[#allocation19 + $0xe28] sm:$0xff]
        %v3059 = vld [vmem:[#allocation19 + $0xe30] sm:$0xff]
        %v3060 = vld [vmem:[#allocation19 + $0xe38] sm:$0xff]
        %v3061 = vld [vmem:[#allocation19 + $0xe40] sm:$0xff]
        %v3062 = vld [vmem:[#allocation19 + $0xe48] sm:$0xff]
        %v3063 = vld [vmem:[#allocation19 + $0xe50] sm:$0xff]
        %v3064 = vld [vmem:[#allocation19 + $0xe58] sm:$0xff]
        %v3065 = vld [vmem:[#allocation19 + $0xe60] sm:$0xff]
        %v3066 = vld [vmem:[#allocation19 + $0xe68] sm:$0xff]
        %v3067 = vld [vmem:[#allocation19 + $0xe70] sm:$0xff]
        %v3068 = vld [vmem:[#allocation19 + $0xe78] sm:$0xff]
        %v3069 = vld [vmem:[#allocation19 + $0xe80] sm:$0xff]
        %v3070 = vld [vmem:[#allocation19 + $0xe88] sm:$0xff]
        %v3071 = vld [vmem:[#allocation19 + $0xe90] sm:$0xff]
        %v3072 = vld [vmem:[#allocation19 + $0xe98] sm:$0xff]
        %v3073 = vld [vmem:[#allocation19 + $0xea0] sm:$0xff]
        %v3074 = vld [vmem:[#allocation19 + $0xea8] sm:$0xff]
        %v3075 = vld [vmem:[#allocation19 + $0xeb0] sm:$0xff]
        %v3076 = vld [vmem:[#allocation19 + $0xeb8] sm:$0xff]
        %v3077 = vld [vmem:[#allocation19 + $0xec0] sm:$0xff]
        %v3078 = vld [vmem:[#allocation19 + $0xec8] sm:$0xff]
        %v3079 = vld [vmem:[#allocation19 + $0xed0] sm:$0xff]
        %v3080 = vld [vmem:[#allocation19 + $0xed8] sm:$0xff]
        %v3081 = vld [vmem:[#allocation19 + $0xee0] sm:$0xff]
        %v3082 = vld [vmem:[#allocation19 + $0xee8] sm:$0xff]
        %v3083 = vld [vmem:[#allocation19 + $0xef0] sm:$0xff]
        %v3084 = vld [vmem:[#allocation19 + $0xef8] sm:$0xff]
        %v3085 = vld [vmem:[#allocation19 + $0xf00] sm:$0xff]
        %v3086 = vld [vmem:[#allocation19 + $0xf08] sm:$0xff]
        %v3087 = vld [vmem:[#allocation19 + $0xf10] sm:$0xff]
        %v3088 = vld [vmem:[#allocation19 + $0xf18] sm:$0xff]
        %v3089 = vld [vmem:[#allocation19 + $0xf20] sm:$0xff]
        %v3090 = vld [vmem:[#allocation19 + $0xf28] sm:$0xff]
        %v3091 = vld [vmem:[#allocation19 + $0xf30] sm:$0xff]
        %v3092 = vld [vmem:[#allocation19 + $0xf38] sm:$0xff]
        %v3093 = vld [vmem:[#allocation19 + $0xf40] sm:$0xff]
        %v3094 = vld [vmem:[#allocation19 + $0xf48] sm:$0xff]
        %v3095 = vld [vmem:[#allocation19 + $0xf50] sm:$0xff]
        %v3096 = vld [vmem:[#allocation19 + $0xf58] sm:$0xff]
        %v3097 = vld [vmem:[#allocation19 + $0xf60] sm:$0xff]
        %v3098 = vld [vmem:[#allocation19 + $0xf68] sm:$0xff]
        %v3099 = vld [vmem:[#allocation19 + $0xf70] sm:$0xff]
        %v3100 = vld [vmem:[#allocation19 + $0xf78] sm:$0xff]
        %v3101 = vld [vmem:[#allocation19 + $0xf80] sm:$0xff]
        %v3102 = vld [vmem:[#allocation19 + $0xf88] sm:$0xff]
        %v3103 = vld [vmem:[#allocation19 + $0xf90] sm:$0xff]
        %v3104 = vld [vmem:[#allocation19 + $0xf98] sm:$0xff]
        %v3105 = vld [vmem:[#allocation19 + $0xfa0] sm:$0xff]
        %v3106 = vld [vmem:[#allocation19 + $0xfa8] sm:$0xff]
        %v3107 = vld [vmem:[#allocation19 + $0xfb0] sm:$0xff]
        %v3108 = vld [vmem:[#allocation19 + $0xfb8] sm:$0xff]
        %v3109 = vld [vmem:[#allocation19 + $0xfc0] sm:$0xff]
        %v3110 = vld [vmem:[#allocation19 + $0xfc8] sm:$0xff]
        %v3111 = vld [vmem:[#allocation19 + $0xfd0] sm:$0xff]
        %v3112 = vld [vmem:[#allocation19 + $0xfd8] sm:$0xff]
        %v3113 = vld [vmem:[#allocation19 + $0xfe0] sm:$0xff]
        %v3114 = vld [vmem:[#allocation19 + $0xfe8] sm:$0xff]
        %v3115 = vld [vmem:[#allocation19 + $0xff0] sm:$0xff]
        %v3116 = vld [vmem:[#allocation19 + $0xff8] sm:$0xff]
        %v3117 = vld [vmem:[#allocation19 + $0x1000] sm:$0xff]
        %v3118 = vld [vmem:[#allocation19 + $0x1008] sm:$0xff]
        %v3119 = vld [vmem:[#allocation19 + $0x1010] sm:$0xff]
        %v3120 = vld [vmem:[#allocation19 + $0x1018] sm:$0xff]
        %v3121 = vld [vmem:[#allocation19 + $0x1020] sm:$0xff]
        %v3122 = vld [vmem:[#allocation19 + $0x1028] sm:$0xff]
        %v3123 = vld [vmem:[#allocation19 + $0x1030] sm:$0xff]
        %v3124 = vld [vmem:[#allocation19 + $0x1038] sm:$0xff]
        %v3125 = vld [vmem:[#allocation19 + $0x1040] sm:$0xff]
        %v3126 = vld [vmem:[#allocation19 + $0x1048] sm:$0xff]
        %v3127 = vld [vmem:[#allocation19 + $0x1050] sm:$0xff]
        %v3128 = vld [vmem:[#allocation19 + $0x1058] sm:$0xff]
        %v3129 = vld [vmem:[#allocation19 + $0x1060] sm:$0xff]
        %v3130 = vld [vmem:[#allocation19 + $0x1068] sm:$0xff]
        %v3131 = vld [vmem:[#allocation19 + $0x1070] sm:$0xff]
        %v3132 = vld [vmem:[#allocation19 + $0x1078] sm:$0xff]
        %v3133 = vld [vmem:[#allocation19 + $0x1080] sm:$0xff]
        %v3134 = vld [vmem:[#allocation19 + $0x1088] sm:$0xff]
        %v3135 = vld [vmem:[#allocation19 + $0x1090] sm:$0xff]
        %v3136 = vld [vmem:[#allocation19 + $0x1098] sm:$0xff]
        %v3137 = vld [vmem:[#allocation19 + $0x10a0] sm:$0xff]
        %v3138 = vld [vmem:[#allocation19 + $0x10a8] sm:$0xff]
        %v3139 = vld [vmem:[#allocation19 + $0x10b0] sm:$0xff]
        %v3140 = vld [vmem:[#allocation19 + $0x10b8] sm:$0xff]
        %v3141 = vld [vmem:[#allocation19 + $0x10c0] sm:$0xff]
        %v3142 = vld [vmem:[#allocation19 + $0x10c8] sm:$0xff]
        %v3143 = vld [vmem:[#allocation19 + $0x10d0] sm:$0xff]
        %v3144 = vld [vmem:[#allocation19 + $0x10d8] sm:$0xff]
        %v3145 = vld [vmem:[#allocation19 + $0x10e0] sm:$0xff]
        %v3146 = vld [vmem:[#allocation19 + $0x10e8] sm:$0xff]
        %v3147 = vld [vmem:[#allocation19 + $0x10f0] sm:$0xff]
        %v3148 = vld [vmem:[#allocation19 + $0x10f8] sm:$0xff]
        %v3149 = vld [vmem:[#allocation19 + $0x1100] sm:$0xff]
        %v3150 = vld [vmem:[#allocation19 + $0x1108] sm:$0xff]
        %v3151 = vld [vmem:[#allocation19 + $0x1110] sm:$0xff]
        %v3152 = vld [vmem:[#allocation19 + $0x1118] sm:$0xff]
        %v3153 = vld [vmem:[#allocation19 + $0x1120] sm:$0xff]
        %v3154 = vld [vmem:[#allocation19 + $0x1128] sm:$0xff]
        %v3155 = vld [vmem:[#allocation19 + $0x1130] sm:$0xff]
        %v3156 = vld [vmem:[#allocation19 + $0x1138] sm:$0xff]
        %v3157 = vld [vmem:[#allocation19 + $0x1140] sm:$0xff]
        %v3158 = vld [vmem:[#allocation19 + $0x1148] sm:$0xff]
        %v3159 = vld [vmem:[#allocation19 + $0x1150] sm:$0xff]
        %v3160 = vld [vmem:[#allocation19 + $0x1158] sm:$0xff]
        %v3161 = vld [vmem:[#allocation19 + $0x1160] sm:$0xff]
        %v3162 = vld [vmem:[#allocation19 + $0x1168] sm:$0xff]
        %v3163 = vld [vmem:[#allocation19 + $0x1170] sm:$0xff]
        %v3164 = vld [vmem:[#allocation19 + $0x1178] sm:$0xff]
        %v3165 = vld [vmem:[#allocation19 + $0x1180] sm:$0xff]
        %v3166 = vld [vmem:[#allocation19 + $0x1188] sm:$0xff]
        %v3167 = vld [vmem:[#allocation19 + $0x1190] sm:$0xff]
        %v3168 = vld [vmem:[#allocation19 + $0x1198] sm:$0xff]
        %v3169 = vld [vmem:[#allocation19 + $0x11a0] sm:$0xff]
        %v3170 = vld [vmem:[#allocation19 + $0x11a8] sm:$0xff]
        %v3171 = vld [vmem:[#allocation19 + $0x11b0] sm:$0xff]
        %v3172 = vld [vmem:[#allocation19 + $0x11b8] sm:$0xff]
        %v3173 = vld [vmem:[#allocation19 + $0x11c0] sm:$0xff]
        %v3174 = vld [vmem:[#allocation19 + $0x11c8] sm:$0xff]
        %v3175 = vld [vmem:[#allocation19 + $0x11d0] sm:$0xff]
        %v3176 = vld [vmem:[#allocation19 + $0x11d8] sm:$0xff]
        %v3177 = vld [vmem:[#allocation19 + $0x11e0] sm:$0xff]
        %v3178 = vld [vmem:[#allocation19 + $0x11e8] sm:$0xff]
        %v3179 = vld [vmem:[#allocation19 + $0x11f0] sm:$0xff]
        %v3180 = vld [vmem:[#allocation19 + $0x11f8] sm:$0xff]
        %v3181 = vld [vmem:[#allocation21] sm:$0xff]
        %v3183 = vlaneseq
        %v3184 = vshrl.u32 %v3183, 7
        %v3185 = vsub.s32 0, %v3184
        %v3186 = vrot.slane %v3181, %v3185
        %v3187 = vlaneseq
        %v3188 = vshrl.u32 %v3187, 7
        %v3189 = vsub.s32 1, %v3188
        %v3190 = vrot.slane %v3181, %v3189
        %v3191 = vlaneseq
        %v3192 = vshrl.u32 %v3191, 7
        %v3193 = vsub.s32 2, %v3192
        %v3194 = vrot.slane %v3181, %v3193
        %v3195 = vlaneseq
        %v3196 = vshrl.u32 %v3195, 7
        %v3197 = vsub.s32 3, %v3196
        %v3198 = vrot.slane %v3181, %v3197
        %v3199 = vlaneseq
        %v3200 = vshrl.u32 %v3199, 7
        %v3201 = vsub.s32 4, %v3200
        %v3202 = vrot.slane %v3181, %v3201
        %v3203 = vlaneseq
        %v3204 = vshrl.u32 %v3203, 7
        %v3205 = vsub.s32 5, %v3204
        %v3206 = vrot.slane %v3181, %v3205
        %v3207 = vlaneseq
        %v3208 = vshrl.u32 %v3207, 7
        %v3209 = vsub.s32 6, %v3208
        %v3210 = vrot.slane %v3181, %v3209
        %v3211 = vlaneseq
        %v3212 = vshrl.u32 %v3211, 7
        %v3213 = vsub.s32 7, %v3212
        %v3214 = vrot.slane %v3181, %v3213
        %v3799 = vunpack.c.l.b16 %v2605
        %v3800 = vunpack.c.h.b16 %v2605
        %v3801 = vunpack.c.l.b16 %v2606
        %v3802 = vunpack.c.h.b16 %v2606
        %v3803 = vunpack.c.l.b16 %v2607
        %v3804 = vunpack.c.h.b16 %v2607
        %v3805 = vunpack.c.l.b16 %v2608
        %v3806 = vunpack.c.h.b16 %v2608
        %v3807 = vunpack.c.l.b16 %v2609
        %v3808 = vunpack.c.h.b16 %v2609
        %v3809 = vunpack.c.l.b16 %v2610
        %v3810 = vunpack.c.h.b16 %v2610
        %v3811 = vunpack.c.l.b16 %v2611
        %v3812 = vunpack.c.h.b16 %v2611
        %v3813 = vunpack.c.l.b16 %v2612
        %v3814 = vunpack.c.h.b16 %v2612
        %v3815 = vunpack.c.l.b16 %v2613
        %v3816 = vunpack.c.h.b16 %v2613
        %v3817 = vunpack.c.l.b16 %v2614
        %v3818 = vunpack.c.h.b16 %v2614
        %v3819 = vunpack.c.l.b16 %v2615
        %v3820 = vunpack.c.h.b16 %v2615
        %v3821 = vunpack.c.l.b16 %v2616
        %v3822 = vunpack.c.h.b16 %v2616
        %v3823 = vunpack.c.l.b16 %v2617
        %v3824 = vunpack.c.h.b16 %v2617
        %v3825 = vunpack.c.l.b16 %v2618
        %v3826 = vunpack.c.h.b16 %v2618
        %v3827 = vunpack.c.l.b16 %v2619
        %v3828 = vunpack.c.h.b16 %v2619
        %v3829 = vunpack.c.l.b16 %v2620
        %v3830 = vunpack.c.h.b16 %v2620
        %v3831 = vunpack.c.l.b16 %v2621
        %v3832 = vunpack.c.h.b16 %v2621
        %v3833 = vunpack.c.l.b16 %v2622
        %v3834 = vunpack.c.h.b16 %v2622
        %v3835 = vunpack.c.l.b16 %v2623
        %v3836 = vunpack.c.h.b16 %v2623
        %v3837 = vunpack.c.l.b16 %v2624
        %v3838 = vunpack.c.h.b16 %v2624
        %v3839 = vunpack.c.l.b16 %v2625
        %v3840 = vunpack.c.h.b16 %v2625
        %v3841 = vunpack.c.l.b16 %v2626
        %v3842 = vunpack.c.h.b16 %v2626
        %v3843 = vunpack.c.l.b16 %v2627
        %v3844 = vunpack.c.h.b16 %v2627
        %v3845 = vunpack.c.l.b16 %v2628
        %v3846 = vunpack.c.h.b16 %v2628
        %v3847 = vunpack.c.l.b16 %v2629
        %v3848 = vunpack.c.h.b16 %v2629
        %v3849 = vunpack.c.l.b16 %v2630
        %v3850 = vunpack.c.h.b16 %v2630
        %v3851 = vunpack.c.l.b16 %v2631
        %v3852 = vunpack.c.h.b16 %v2631
        %v3853 = vunpack.c.l.b16 %v2632
        %v3854 = vunpack.c.h.b16 %v2632
        %v3855 = vunpack.c.l.b16 %v2633
        %v3856 = vunpack.c.h.b16 %v2633
        %v3857 = vunpack.c.l.b16 %v2634
        %v3858 = vunpack.c.h.b16 %v2634
        %v3859 = vunpack.c.l.b16 %v2635
        %v3860 = vunpack.c.h.b16 %v2635
        %v3861 = vunpack.c.l.b16 %v2636
        %v3862 = vunpack.c.h.b16 %v2636
        %v3863 = vunpack.c.l.b16 %v2637
        %v3864 = vunpack.c.h.b16 %v2637
        %v3865 = vunpack.c.l.b16 %v2638
        %v3866 = vunpack.c.h.b16 %v2638
        %v3867 = vunpack.c.l.b16 %v2639
        %v3868 = vunpack.c.h.b16 %v2639
        %v3869 = vunpack.c.l.b16 %v2640
        %v3870 = vunpack.c.h.b16 %v2640
        %v3871 = vunpack.c.l.b16 %v2641
        %v3872 = vunpack.c.h.b16 %v2641
        %v3873 = vunpack.c.l.b16 %v2642
        %v3874 = vunpack.c.h.b16 %v2642
        %v3875 = vunpack.c.l.b16 %v2643
        %v3876 = vunpack.c.h.b16 %v2643
        %v3877 = vunpack.c.l.b16 %v2644
        %v3878 = vunpack.c.h.b16 %v2644
        %v3879 = vunpack.c.l.b16 %v2645
        %v3880 = vunpack.c.h.b16 %v2645
        %v3881 = vunpack.c.l.b16 %v2646
        %v3882 = vunpack.c.h.b16 %v2646
        %v3883 = vunpack.c.l.b16 %v2647
        %v3884 = vunpack.c.h.b16 %v2647
        %v3885 = vunpack.c.l.b16 %v2648
        %v3886 = vunpack.c.h.b16 %v2648
        %v3887 = vunpack.c.l.b16 %v2649
        %v3888 = vunpack.c.h.b16 %v2649
        %v3889 = vunpack.c.l.b16 %v2650
        %v3890 = vunpack.c.h.b16 %v2650
        %v3891 = vunpack.c.l.b16 %v2651
        %v3892 = vunpack.c.h.b16 %v2651
        %v3893 = vunpack.c.l.b16 %v2652
        %v3894 = vunpack.c.h.b16 %v2652
        %v3895 = vunpack.c.l.b16 %v2653
        %v3896 = vunpack.c.h.b16 %v2653
        %v3897 = vunpack.c.l.b16 %v2654
        %v3898 = vunpack.c.h.b16 %v2654
        %v3899 = vunpack.c.l.b16 %v2655
        %v3900 = vunpack.c.h.b16 %v2655
        %v3901 = vunpack.c.l.b16 %v2656
        %v3902 = vunpack.c.h.b16 %v2656
        %v3903 = vunpack.c.l.b16 %v2657
        %v3904 = vunpack.c.h.b16 %v2657
        %v3905 = vunpack.c.l.b16 %v2658
        %v3906 = vunpack.c.h.b16 %v2658
        %v3907 = vunpack.c.l.b16 %v2659
        %v3908 = vunpack.c.h.b16 %v2659
        %v3909 = vunpack.c.l.b16 %v2660
        %v3910 = vunpack.c.h.b16 %v2660
        %v3911 = vunpack.c.l.b16 %v2661
        %v3912 = vunpack.c.h.b16 %v2661
        %v3913 = vunpack.c.l.b16 %v2662
        %v3914 = vunpack.c.h.b16 %v2662
        %v3915 = vunpack.c.l.b16 %v2663
        %v3916 = vunpack.c.h.b16 %v2663
        %v3917 = vunpack.c.l.b16 %v2664
        %v3918 = vunpack.c.h.b16 %v2664
        %v3919 = vunpack.c.l.b16 %v2665
        %v3920 = vunpack.c.h.b16 %v2665
        %v3921 = vunpack.c.l.b16 %v2666
        %v3922 = vunpack.c.h.b16 %v2666
        %v3923 = vunpack.c.l.b16 %v2667
        %v3924 = vunpack.c.h.b16 %v2667
        %v3925 = vunpack.c.l.b16 %v2668
        %v3926 = vunpack.c.h.b16 %v2668
        %v3927 = vunpack.c.l.b16 %v2669
        %v3928 = vunpack.c.h.b16 %v2669
        %v3929 = vunpack.c.l.b16 %v2670
        %v3930 = vunpack.c.h.b16 %v2670
        %v3931 = vunpack.c.l.b16 %v2671
        %v3932 = vunpack.c.h.b16 %v2671
        %v3933 = vunpack.c.l.b16 %v2672
        %v3934 = vunpack.c.h.b16 %v2672
        %v3935 = vunpack.c.l.b16 %v2673
        %v3936 = vunpack.c.h.b16 %v2673
        %v3937 = vunpack.c.l.b16 %v2674
        %v3938 = vunpack.c.h.b16 %v2674
        %v3939 = vunpack.c.l.b16 %v2675
        %v3940 = vunpack.c.h.b16 %v2675
        %v3941 = vunpack.c.l.b16 %v2676
        %v3942 = vunpack.c.h.b16 %v2676
        %v3943 = vunpack.c.l.b16 %v2677
        %v3944 = vunpack.c.h.b16 %v2677
        %v3945 = vunpack.c.l.b16 %v2678
        %v3946 = vunpack.c.h.b16 %v2678
        %v3947 = vunpack.c.l.b16 %v2679
        %v3948 = vunpack.c.h.b16 %v2679
        %v3949 = vunpack.c.l.b16 %v2680
        %v3950 = vunpack.c.h.b16 %v2680
        %v3951 = vunpack.c.l.b16 %v2681
        %v3952 = vunpack.c.h.b16 %v2681
        %v3953 = vunpack.c.l.b16 %v2682
        %v3954 = vunpack.c.h.b16 %v2682
        %v3955 = vunpack.c.l.b16 %v2683
        %v3956 = vunpack.c.h.b16 %v2683
        %v3957 = vunpack.c.l.b16 %v2684
        %v3958 = vunpack.c.h.b16 %v2684
        %v3959 = vunpack.c.l.b16 %v2685
        %v3960 = vunpack.c.h.b16 %v2685
        %v3961 = vunpack.c.l.b16 %v2686
        %v3962 = vunpack.c.h.b16 %v2686
        %v3963 = vunpack.c.l.b16 %v2687
        %v3964 = vunpack.c.h.b16 %v2687
        %v3965 = vunpack.c.l.b16 %v2688
        %v3966 = vunpack.c.h.b16 %v2688
        %v3967 = vunpack.c.l.b16 %v2689
        %v3968 = vunpack.c.h.b16 %v2689
        %v3969 = vunpack.c.l.b16 %v2690
        %v3970 = vunpack.c.h.b16 %v2690
        %v3971 = vunpack.c.l.b16 %v2691
        %v3972 = vunpack.c.h.b16 %v2691
        %v3973 = vunpack.c.l.b16 %v2692
        %v3974 = vunpack.c.h.b16 %v2692
        %v3975 = vunpack.c.l.b16 %v2693
        %v3976 = vunpack.c.h.b16 %v2693
        %v3977 = vunpack.c.l.b16 %v2694
        %v3978 = vunpack.c.h.b16 %v2694
        %v3979 = vunpack.c.l.b16 %v2695
        %v3980 = vunpack.c.h.b16 %v2695
        %v3981 = vunpack.c.l.b16 %v2696
        %v3982 = vunpack.c.h.b16 %v2696
        %v3983 = vunpack.c.l.b16 %v2697
        %v3984 = vunpack.c.h.b16 %v2697
        %v3985 = vunpack.c.l.b16 %v2698
        %v3986 = vunpack.c.h.b16 %v2698
        %v3987 = vunpack.c.l.b16 %v2699
        %v3988 = vunpack.c.h.b16 %v2699
        %v3989 = vunpack.c.l.b16 %v2700
        %v3990 = vunpack.c.h.b16 %v2700
        %v3991 = vunpack.c.l.b16 %v2701
        %v3992 = vunpack.c.h.b16 %v2701
        %v3993 = vunpack.c.l.b16 %v2702
        %v3994 = vunpack.c.h.b16 %v2702
        %v3995 = vunpack.c.l.b16 %v2703
        %v3996 = vunpack.c.h.b16 %v2703
        %v3997 = vunpack.c.l.b16 %v2704
        %v3998 = vunpack.c.h.b16 %v2704
        %v3999 = vunpack.c.l.b16 %v2705
        %v4000 = vunpack.c.h.b16 %v2705
        %v4001 = vunpack.c.l.b16 %v2706
        %v4002 = vunpack.c.h.b16 %v2706
        %v4003 = vunpack.c.l.b16 %v2707
        %v4004 = vunpack.c.h.b16 %v2707
        %v4005 = vunpack.c.l.b16 %v2708
        %v4006 = vunpack.c.h.b16 %v2708
        %v4007 = vunpack.c.l.b16 %v2709
        %v4008 = vunpack.c.h.b16 %v2709
        %v4009 = vunpack.c.l.b16 %v2710
        %v4010 = vunpack.c.h.b16 %v2710
        %v4011 = vunpack.c.l.b16 %v2711
        %v4012 = vunpack.c.h.b16 %v2711
        %v4013 = vunpack.c.l.b16 %v2712
        %v4014 = vunpack.c.h.b16 %v2712
        %v4015 = vunpack.c.l.b16 %v2713
        %v4016 = vunpack.c.h.b16 %v2713
        %v4017 = vunpack.c.l.b16 %v2714
        %v4018 = vunpack.c.h.b16 %v2714
        %v4019 = vunpack.c.l.b16 %v2715
        %v4020 = vunpack.c.h.b16 %v2715
        %v4021 = vunpack.c.l.b16 %v2716
        %v4022 = vunpack.c.h.b16 %v2716
        %v4023 = vunpack.c.l.b16 %v2717
        %v4024 = vunpack.c.h.b16 %v2717
        %v4025 = vunpack.c.l.b16 %v2718
        %v4026 = vunpack.c.h.b16 %v2718
        %v4027 = vunpack.c.l.b16 %v2719
        %v4028 = vunpack.c.h.b16 %v2719
        %v4029 = vunpack.c.l.b16 %v2720
        %v4030 = vunpack.c.h.b16 %v2720
        %v4031 = vunpack.c.l.b16 %v2721
        %v4032 = vunpack.c.h.b16 %v2721
        %v4033 = vunpack.c.l.b16 %v2722
        %v4034 = vunpack.c.h.b16 %v2722
        %v4035 = vunpack.c.l.b16 %v2723
        %v4036 = vunpack.c.h.b16 %v2723
        %v4037 = vunpack.c.l.b16 %v2724
        %v4038 = vunpack.c.h.b16 %v2724
        %v4039 = vunpack.c.l.b16 %v2725
        %v4040 = vunpack.c.h.b16 %v2725
        %v4041 = vunpack.c.l.b16 %v2726
        %v4042 = vunpack.c.h.b16 %v2726
        %v4043 = vunpack.c.l.b16 %v2727
        %v4044 = vunpack.c.h.b16 %v2727
        %v4045 = vunpack.c.l.b16 %v2728
        %v4046 = vunpack.c.h.b16 %v2728
        %v4047 = vunpack.c.l.b16 %v2729
        %v4048 = vunpack.c.h.b16 %v2729
        %v4049 = vunpack.c.l.b16 %v2730
        %v4050 = vunpack.c.h.b16 %v2730
        %v4051 = vunpack.c.l.b16 %v2731
        %v4052 = vunpack.c.h.b16 %v2731
        %v4053 = vunpack.c.l.b16 %v2732
        %v4054 = vunpack.c.h.b16 %v2732
        %v4055 = vunpack.c.l.b16 %v2733
        %v4056 = vunpack.c.h.b16 %v2733
        %v4057 = vunpack.c.l.b16 %v2734
        %v4058 = vunpack.c.h.b16 %v2734
        %v4059 = vunpack.c.l.b16 %v2735
        %v4060 = vunpack.c.h.b16 %v2735
        %v4061 = vunpack.c.l.b16 %v2736
        %v4062 = vunpack.c.h.b16 %v2736
        %v4063 = vunpack.c.l.b16 %v2737
        %v4064 = vunpack.c.h.b16 %v2737
        %v4065 = vunpack.c.l.b16 %v2738
        %v4066 = vunpack.c.h.b16 %v2738
        %v4067 = vunpack.c.l.b16 %v2739
        %v4068 = vunpack.c.h.b16 %v2739
        %v4069 = vunpack.c.l.b16 %v2740
        %v4070 = vunpack.c.h.b16 %v2740
        %v4071 = vunpack.c.l.b16 %v2741
        %v4072 = vunpack.c.h.b16 %v2741
        %v4073 = vunpack.c.l.b16 %v2742
        %v4074 = vunpack.c.h.b16 %v2742
        %v4075 = vunpack.c.l.b16 %v2743
        %v4076 = vunpack.c.h.b16 %v2743
        %v4077 = vunpack.c.l.b16 %v2744
        %v4078 = vunpack.c.h.b16 %v2744
        %v4079 = vunpack.c.l.b16 %v2745
        %v4080 = vunpack.c.h.b16 %v2745
        %v4081 = vunpack.c.l.b16 %v2746
        %v4082 = vunpack.c.h.b16 %v2746
        %v4083 = vunpack.c.l.b16 %v2747
        %v4084 = vunpack.c.h.b16 %v2747
        %v4085 = vunpack.c.l.b16 %v2748
        %v4086 = vunpack.c.h.b16 %v2748
        %v4087 = vunpack.c.l.b16 %v2749
        %v4088 = vunpack.c.h.b16 %v2749
        %v4089 = vunpack.c.l.b16 %v2750
        %v4090 = vunpack.c.h.b16 %v2750
        %v4091 = vunpack.c.l.b16 %v2751
        %v4092 = vunpack.c.h.b16 %v2751
        %v4093 = vunpack.c.l.b16 %v2752
        %v4094 = vunpack.c.h.b16 %v2752
        %v4095 = vunpack.c.l.b16 %v2753
        %v4096 = vunpack.c.h.b16 %v2753
        %v4097 = vunpack.c.l.b16 %v2754
        %v4098 = vunpack.c.h.b16 %v2754
        %v4099 = vunpack.c.l.b16 %v2755
        %v4100 = vunpack.c.h.b16 %v2755
        %v4101 = vunpack.c.l.b16 %v2756
        %v4102 = vunpack.c.h.b16 %v2756
        %v4103 = vunpack.c.l.b16 %v2757
        %v4104 = vunpack.c.h.b16 %v2757
        %v4105 = vunpack.c.l.b16 %v2758
        %v4106 = vunpack.c.h.b16 %v2758
        %v4107 = vunpack.c.l.b16 %v2759
        %v4108 = vunpack.c.h.b16 %v2759
        %v4109 = vunpack.c.l.b16 %v2760
        %v4110 = vunpack.c.h.b16 %v2760
        %v4111 = vunpack.c.l.b16 %v2761
        %v4112 = vunpack.c.h.b16 %v2761
        %v4113 = vunpack.c.l.b16 %v2762
        %v4114 = vunpack.c.h.b16 %v2762
        %v4115 = vunpack.c.l.b16 %v2763
        %v4116 = vunpack.c.h.b16 %v2763
        %v4117 = vunpack.c.l.b16 %v2764
        %v4118 = vunpack.c.h.b16 %v2764
        %v4119 = vunpack.c.l.b16 %v2765
        %v4120 = vunpack.c.h.b16 %v2765
        %v4121 = vunpack.c.l.b16 %v2766
        %v4122 = vunpack.c.h.b16 %v2766
        %v4123 = vunpack.c.l.b16 %v2767
        %v4124 = vunpack.c.h.b16 %v2767
        %v4125 = vunpack.c.l.b16 %v2768
        %v4126 = vunpack.c.h.b16 %v2768
        %v4127 = vunpack.c.l.b16 %v2769
        %v4128 = vunpack.c.h.b16 %v2769
        %v4129 = vunpack.c.l.b16 %v2770
        %v4130 = vunpack.c.h.b16 %v2770
        %v4131 = vunpack.c.l.b16 %v2771
        %v4132 = vunpack.c.h.b16 %v2771
        %v4133 = vunpack.c.l.b16 %v2772
        %v4134 = vunpack.c.h.b16 %v2772
        %v4135 = vunpack.c.l.b16 %v2773
        %v4136 = vunpack.c.h.b16 %v2773
        %v4137 = vunpack.c.l.b16 %v2774
        %v4138 = vunpack.c.h.b16 %v2774
        %v4139 = vunpack.c.l.b16 %v2775
        %v4140 = vunpack.c.h.b16 %v2775
        %v4141 = vunpack.c.l.b16 %v2776
        %v4142 = vunpack.c.h.b16 %v2776
        %v4143 = vunpack.c.l.b16 %v2777
        %v4144 = vunpack.c.h.b16 %v2777
        %v4145 = vunpack.c.l.b16 %v2778
        %v4146 = vunpack.c.h.b16 %v2778
        %v4147 = vunpack.c.l.b16 %v2779
        %v4148 = vunpack.c.h.b16 %v2779
        %v4149 = vunpack.c.l.b16 %v2780
        %v4150 = vunpack.c.h.b16 %v2780
        %v4151 = vunpack.c.l.b16 %v2781
        %v4152 = vunpack.c.h.b16 %v2781
        %v4153 = vunpack.c.l.b16 %v2782
        %v4154 = vunpack.c.h.b16 %v2782
        %v4155 = vunpack.c.l.b16 %v2783
        %v4156 = vunpack.c.h.b16 %v2783
        %v4157 = vunpack.c.l.b16 %v2784
        %v4158 = vunpack.c.h.b16 %v2784
        %v4159 = vunpack.c.l.b16 %v2785
        %v4160 = vunpack.c.h.b16 %v2785
        %v4161 = vunpack.c.l.b16 %v2786
        %v4162 = vunpack.c.h.b16 %v2786
        %v4163 = vunpack.c.l.b16 %v2787
        %v4164 = vunpack.c.h.b16 %v2787
        %v4165 = vunpack.c.l.b16 %v2788
        %v4166 = vunpack.c.h.b16 %v2788
        %v4167 = vunpack.c.l.b16 %v2789
        %v4168 = vunpack.c.h.b16 %v2789
        %v4169 = vunpack.c.l.b16 %v2790
        %v4170 = vunpack.c.h.b16 %v2790
        %v4171 = vunpack.c.l.b16 %v2791
        %v4172 = vunpack.c.h.b16 %v2791
        %v4173 = vunpack.c.l.b16 %v2792
        %v4174 = vunpack.c.h.b16 %v2792
        %v4175 = vunpack.c.l.b16 %v2793
        %v4176 = vunpack.c.h.b16 %v2793
        %v4177 = vunpack.c.l.b16 %v2794
        %v4178 = vunpack.c.h.b16 %v2794
        %v4179 = vunpack.c.l.b16 %v2795
        %v4180 = vunpack.c.h.b16 %v2795
        %v4181 = vunpack.c.l.b16 %v2796
        %v4182 = vunpack.c.h.b16 %v2796
        %v4183 = vunpack.c.l.b16 %v2797
        %v4184 = vunpack.c.h.b16 %v2797
        %v4185 = vunpack.c.l.b16 %v2798
        %v4186 = vunpack.c.h.b16 %v2798
        %v4187 = vunpack.c.l.b16 %v2799
        %v4188 = vunpack.c.h.b16 %v2799
        %v4189 = vunpack.c.l.b16 %v2800
        %v4190 = vunpack.c.h.b16 %v2800
        %v4191 = vunpack.c.l.b16 %v2801
        %v4192 = vunpack.c.h.b16 %v2801
        %v4193 = vunpack.c.l.b16 %v2802
        %v4194 = vunpack.c.h.b16 %v2802
        %v4195 = vunpack.c.l.b16 %v2803
        %v4196 = vunpack.c.h.b16 %v2803
        %v4197 = vunpack.c.l.b16 %v2804
        %v4198 = vunpack.c.h.b16 %v2804
        %v4199 = vunpack.c.l.b16 %v2805
        %v4200 = vunpack.c.h.b16 %v2805
        %v4201 = vunpack.c.l.b16 %v2806
        %v4202 = vunpack.c.h.b16 %v2806
        %v4203 = vunpack.c.l.b16 %v2807
        %v4204 = vunpack.c.h.b16 %v2807
        %v4205 = vunpack.c.l.b16 %v2808
        %v4206 = vunpack.c.h.b16 %v2808
        %v4207 = vunpack.c.l.b16 %v2809
        %v4208 = vunpack.c.h.b16 %v2809
        %v4209 = vunpack.c.l.b16 %v2810
        %v4210 = vunpack.c.h.b16 %v2810
        %v4211 = vunpack.c.l.b16 %v2811
        %v4212 = vunpack.c.h.b16 %v2811
        %v4213 = vunpack.c.l.b16 %v2812
        %v4214 = vunpack.c.h.b16 %v2812
        %v4215 = vunpack.c.l.b16 %v2813
        %v4216 = vunpack.c.h.b16 %v2813
        %v4217 = vunpack.c.l.b16 %v2814
        %v4218 = vunpack.c.h.b16 %v2814
        %v4219 = vunpack.c.l.b16 %v2815
        %v4220 = vunpack.c.h.b16 %v2815
        %v4221 = vunpack.c.l.b16 %v2816
        %v4222 = vunpack.c.h.b16 %v2816
        %v4223 = vunpack.c.l.b16 %v2817
        %v4224 = vunpack.c.h.b16 %v2817
        %v4225 = vunpack.c.l.b16 %v2818
        %v4226 = vunpack.c.h.b16 %v2818
        %v4227 = vunpack.c.l.b16 %v2819
        %v4228 = vunpack.c.h.b16 %v2819
        %v4229 = vunpack.c.l.b16 %v2820
        %v4230 = vunpack.c.h.b16 %v2820
        %v4231 = vunpack.c.l.b16 %v2821
        %v4232 = vunpack.c.h.b16 %v2821
        %v4233 = vunpack.c.l.b16 %v2822
        %v4234 = vunpack.c.h.b16 %v2822
        %v4235 = vunpack.c.l.b16 %v2823
        %v4236 = vunpack.c.h.b16 %v2823
        %v4237 = vunpack.c.l.b16 %v2824
        %v4238 = vunpack.c.h.b16 %v2824
        %v4239 = vunpack.c.l.b16 %v2825
        %v4240 = vunpack.c.h.b16 %v2825
        %v4241 = vunpack.c.l.b16 %v2826
        %v4242 = vunpack.c.h.b16 %v2826
        %v4243 = vunpack.c.l.b16 %v2827
        %v4244 = vunpack.c.h.b16 %v2827
        %v4245 = vunpack.c.l.b16 %v2828
        %v4246 = vunpack.c.h.b16 %v2828
        %v4247 = vunpack.c.l.b16 %v2829
        %v4248 = vunpack.c.h.b16 %v2829
        %v4249 = vunpack.c.l.b16 %v2830
        %v4250 = vunpack.c.h.b16 %v2830
        %v4251 = vunpack.c.l.b16 %v2831
        %v4252 = vunpack.c.h.b16 %v2831
        %v4253 = vunpack.c.l.b16 %v2832
        %v4254 = vunpack.c.h.b16 %v2832
        %v4255 = vunpack.c.l.b16 %v2833
        %v4256 = vunpack.c.h.b16 %v2833
        %v4257 = vunpack.c.l.b16 %v2834
        %v4258 = vunpack.c.h.b16 %v2834
        %v4259 = vunpack.c.l.b16 %v2835
        %v4260 = vunpack.c.h.b16 %v2835
        %v4261 = vunpack.c.l.b16 %v2836
        %v4262 = vunpack.c.h.b16 %v2836
        %v4263 = vunpack.c.l.b16 %v2837
        %v4264 = vunpack.c.h.b16 %v2837
        %v4265 = vunpack.c.l.b16 %v2838
        %v4266 = vunpack.c.h.b16 %v2838
        %v4267 = vunpack.c.l.b16 %v2839
        %v4268 = vunpack.c.h.b16 %v2839
        %v4269 = vunpack.c.l.b16 %v2840
        %v4270 = vunpack.c.h.b16 %v2840
        %v4271 = vunpack.c.l.b16 %v2841
        %v4272 = vunpack.c.h.b16 %v2841
        %v4273 = vunpack.c.l.b16 %v2842
        %v4274 = vunpack.c.h.b16 %v2842
        %v4275 = vunpack.c.l.b16 %v2843
        %v4276 = vunpack.c.h.b16 %v2843
        %v4277 = vunpack.c.l.b16 %v2844
        %v4278 = vunpack.c.h.b16 %v2844
        %v4279 = vunpack.c.l.b16 %v2845
        %v4280 = vunpack.c.h.b16 %v2845
        %v4281 = vunpack.c.l.b16 %v2846
        %v4282 = vunpack.c.h.b16 %v2846
        %v4283 = vunpack.c.l.b16 %v2847
        %v4284 = vunpack.c.h.b16 %v2847
        %v4285 = vunpack.c.l.b16 %v2848
        %v4286 = vunpack.c.h.b16 %v2848
        %v4287 = vunpack.c.l.b16 %v2849
        %v4288 = vunpack.c.h.b16 %v2849
        %v4289 = vunpack.c.l.b16 %v2850
        %v4290 = vunpack.c.h.b16 %v2850
        %v4291 = vunpack.c.l.b16 %v2851
        %v4292 = vunpack.c.h.b16 %v2851
        %v4293 = vunpack.c.l.b16 %v2852
        %v4294 = vunpack.c.h.b16 %v2852
        %v4295 = vunpack.c.l.b16 %v2853
        %v4296 = vunpack.c.h.b16 %v2853
        %v4297 = vunpack.c.l.b16 %v2854
        %v4298 = vunpack.c.h.b16 %v2854
        %v4299 = vunpack.c.l.b16 %v2855
        %v4300 = vunpack.c.h.b16 %v2855
        %v4301 = vunpack.c.l.b16 %v2856
        %v4302 = vunpack.c.h.b16 %v2856
        %v4303 = vunpack.c.l.b16 %v2857
        %v4304 = vunpack.c.h.b16 %v2857
        %v4305 = vunpack.c.l.b16 %v2858
        %v4306 = vunpack.c.h.b16 %v2858
        %v4307 = vunpack.c.l.b16 %v2859
        %v4308 = vunpack.c.h.b16 %v2859
        %v4309 = vunpack.c.l.b16 %v2860
        %v4310 = vunpack.c.h.b16 %v2860
        %v4311 = vunpack.c.l.b16 %v2861
        %v4312 = vunpack.c.h.b16 %v2861
        %v4313 = vunpack.c.l.b16 %v2862
        %v4314 = vunpack.c.h.b16 %v2862
        %v4315 = vunpack.c.l.b16 %v2863
        %v4316 = vunpack.c.h.b16 %v2863
        %v4317 = vunpack.c.l.b16 %v2864
        %v4318 = vunpack.c.h.b16 %v2864
        %v4319 = vunpack.c.l.b16 %v2865
        %v4320 = vunpack.c.h.b16 %v2865
        %v4321 = vunpack.c.l.b16 %v2866
        %v4322 = vunpack.c.h.b16 %v2866
        %v4323 = vunpack.c.l.b16 %v2867
        %v4324 = vunpack.c.h.b16 %v2867
        %v4325 = vunpack.c.l.b16 %v2868
        %v4326 = vunpack.c.h.b16 %v2868
        %v4327 = vunpack.c.l.b16 %v2869
        %v4328 = vunpack.c.h.b16 %v2869
        %v4329 = vunpack.c.l.b16 %v2870
        %v4330 = vunpack.c.h.b16 %v2870
        %v4331 = vunpack.c.l.b16 %v2871
        %v4332 = vunpack.c.h.b16 %v2871
        %v4333 = vunpack.c.l.b16 %v2872
        %v4334 = vunpack.c.h.b16 %v2872
        %v4335 = vunpack.c.l.b16 %v2873
        %v4336 = vunpack.c.h.b16 %v2873
        %v4337 = vunpack.c.l.b16 %v2874
        %v4338 = vunpack.c.h.b16 %v2874
        %v4339 = vunpack.c.l.b16 %v2875
        %v4340 = vunpack.c.h.b16 %v2875
        %v4341 = vunpack.c.l.b16 %v2876
        %v4342 = vunpack.c.h.b16 %v2876
        %v4343 = vunpack.c.l.b16 %v2877
        %v4344 = vunpack.c.h.b16 %v2877
        %v4345 = vunpack.c.l.b16 %v2878
        %v4346 = vunpack.c.h.b16 %v2878
        %v4347 = vunpack.c.l.b16 %v2879
        %v4348 = vunpack.c.h.b16 %v2879
        %v4349 = vunpack.c.l.b16 %v2880
        %v4350 = vunpack.c.h.b16 %v2880
        %v4351 = vunpack.c.l.b16 %v2881
        %v4352 = vunpack.c.h.b16 %v2881
        %v4353 = vunpack.c.l.b16 %v2882
        %v4354 = vunpack.c.h.b16 %v2882
        %v4355 = vunpack.c.l.b16 %v2883
        %v4356 = vunpack.c.h.b16 %v2883
        %v4357 = vunpack.c.l.b16 %v2884
        %v4358 = vunpack.c.h.b16 %v2884
        %v4359 = vunpack.c.l.b16 %v2885
        %v4360 = vunpack.c.h.b16 %v2885
        %v4361 = vunpack.c.l.b16 %v2886
        %v4362 = vunpack.c.h.b16 %v2886
        %v4363 = vunpack.c.l.b16 %v2887
        %v4364 = vunpack.c.h.b16 %v2887
        %v4365 = vunpack.c.l.b16 %v2888
        %v4366 = vunpack.c.h.b16 %v2888
        %v4367 = vunpack.c.l.b16 %v2889
        %v4368 = vunpack.c.h.b16 %v2889
        %v4369 = vunpack.c.l.b16 %v2890
        %v4370 = vunpack.c.h.b16 %v2890
        %v4371 = vunpack.c.l.b16 %v2891
        %v4372 = vunpack.c.h.b16 %v2891
        %v4373 = vunpack.c.l.b16 %v2892
        %v4374 = vunpack.c.h.b16 %v2892
        %v4375 = vunpack.c.l.b16 %v2893
        %v4376 = vunpack.c.h.b16 %v2893
        %v4377 = vunpack.c.l.b16 %v2894
        %v4378 = vunpack.c.h.b16 %v2894
        %v4379 = vunpack.c.l.b16 %v2895
        %v4380 = vunpack.c.h.b16 %v2895
        %v4381 = vunpack.c.l.b16 %v2896
        %v4382 = vunpack.c.h.b16 %v2896
        %v4383 = vunpack.c.l.b16 %v2897
        %v4384 = vunpack.c.h.b16 %v2897
        %v4385 = vunpack.c.l.b16 %v2898
        %v4386 = vunpack.c.h.b16 %v2898
        %v4387 = vunpack.c.l.b16 %v2899
        %v4388 = vunpack.c.h.b16 %v2899
        %v4389 = vunpack.c.l.b16 %v2900
        %v4390 = vunpack.c.h.b16 %v2900
        %v4391 = vunpack.c.l.b16 %v2901
        %v4392 = vunpack.c.h.b16 %v2901
        %v4393 = vunpack.c.l.b16 %v2902
        %v4394 = vunpack.c.h.b16 %v2902
        %v4395 = vunpack.c.l.b16 %v2903
        %v4396 = vunpack.c.h.b16 %v2903
        %v4397 = vunpack.c.l.b16 %v2904
        %v4398 = vunpack.c.h.b16 %v2904
        %v4399 = vunpack.c.l.b16 %v2905
        %v4400 = vunpack.c.h.b16 %v2905
        %v4401 = vunpack.c.l.b16 %v2906
        %v4402 = vunpack.c.h.b16 %v2906
        %v4403 = vunpack.c.l.b16 %v2907
        %v4404 = vunpack.c.h.b16 %v2907
        %v4405 = vunpack.c.l.b16 %v2908
        %v4406 = vunpack.c.h.b16 %v2908
        %v4407 = vunpack.c.l.b16 %v2909
        %v4408 = vunpack.c.h.b16 %v2909
        %v4409 = vunpack.c.l.b16 %v2910
        %v4410 = vunpack.c.h.b16 %v2910
        %v4411 = vunpack.c.l.b16 %v2911
        %v4412 = vunpack.c.h.b16 %v2911
        %v4413 = vunpack.c.l.b16 %v2912
        %v4414 = vunpack.c.h.b16 %v2912
        %v4415 = vunpack.c.l.b16 %v2913
        %v4416 = vunpack.c.h.b16 %v2913
        %v4417 = vunpack.c.l.b16 %v2914
        %v4418 = vunpack.c.h.b16 %v2914
        %v4419 = vunpack.c.l.b16 %v2915
        %v4420 = vunpack.c.h.b16 %v2915
        %v4421 = vunpack.c.l.b16 %v2916
        %v4422 = vunpack.c.h.b16 %v2916
        %v4423 = vunpack.c.l.b16 %v2917
        %v4424 = vunpack.c.h.b16 %v2917
        %v4425 = vunpack.c.l.b16 %v2918
        %v4426 = vunpack.c.h.b16 %v2918
        %v4427 = vunpack.c.l.b16 %v2919
        %v4428 = vunpack.c.h.b16 %v2919
        %v4429 = vunpack.c.l.b16 %v2920
        %v4430 = vunpack.c.h.b16 %v2920
        %v4431 = vunpack.c.l.b16 %v2921
        %v4432 = vunpack.c.h.b16 %v2921
        %v4433 = vunpack.c.l.b16 %v2922
        %v4434 = vunpack.c.h.b16 %v2922
        %v4435 = vunpack.c.l.b16 %v2923
        %v4436 = vunpack.c.h.b16 %v2923
        %v4437 = vunpack.c.l.b16 %v2924
        %v4438 = vunpack.c.h.b16 %v2924
        %v4439 = vunpack.c.l.b16 %v2925
        %v4440 = vunpack.c.h.b16 %v2925
        %v4441 = vunpack.c.l.b16 %v2926
        %v4442 = vunpack.c.h.b16 %v2926
        %v4443 = vunpack.c.l.b16 %v2927
        %v4444 = vunpack.c.h.b16 %v2927
        %v4445 = vunpack.c.l.b16 %v2928
        %v4446 = vunpack.c.h.b16 %v2928
        %v4447 = vunpack.c.l.b16 %v2929
        %v4448 = vunpack.c.h.b16 %v2929
        %v4449 = vunpack.c.l.b16 %v2930
        %v4450 = vunpack.c.h.b16 %v2930
        %v4451 = vunpack.c.l.b16 %v2931
        %v4452 = vunpack.c.h.b16 %v2931
        %v4453 = vunpack.c.l.b16 %v2932
        %v4454 = vunpack.c.h.b16 %v2932
        %v4455 = vunpack.c.l.b16 %v2933
        %v4456 = vunpack.c.h.b16 %v2933
        %v4457 = vunpack.c.l.b16 %v2934
        %v4458 = vunpack.c.h.b16 %v2934
        %v4459 = vunpack.c.l.b16 %v2935
        %v4460 = vunpack.c.h.b16 %v2935
        %v4461 = vunpack.c.l.b16 %v2936
        %v4462 = vunpack.c.h.b16 %v2936
        %v4463 = vunpack.c.l.b16 %v2937
        %v4464 = vunpack.c.h.b16 %v2937
        %v4465 = vunpack.c.l.b16 %v2938
        %v4466 = vunpack.c.h.b16 %v2938
        %v4467 = vunpack.c.l.b16 %v2939
        %v4468 = vunpack.c.h.b16 %v2939
        %v4469 = vunpack.c.l.b16 %v2940
        %v4470 = vunpack.c.h.b16 %v2940
        %v4471 = vunpack.c.l.b16 %v2941
        %v4472 = vunpack.c.h.b16 %v2941
        %v4473 = vunpack.c.l.b16 %v2942
        %v4474 = vunpack.c.h.b16 %v2942
        %v4475 = vunpack.c.l.b16 %v2943
        %v4476 = vunpack.c.h.b16 %v2943
        %v4477 = vunpack.c.l.b16 %v2944
        %v4478 = vunpack.c.h.b16 %v2944
        %v4479 = vunpack.c.l.b16 %v2945
        %v4480 = vunpack.c.h.b16 %v2945
        %v4481 = vunpack.c.l.b16 %v2946
        %v4482 = vunpack.c.h.b16 %v2946
        %v4483 = vunpack.c.l.b16 %v2947
        %v4484 = vunpack.c.h.b16 %v2947
        %v4485 = vunpack.c.l.b16 %v2948
        %v4486 = vunpack.c.h.b16 %v2948
        %v4487 = vunpack.c.l.b16 %v2949
        %v4488 = vunpack.c.h.b16 %v2949
        %v4489 = vunpack.c.l.b16 %v2950
        %v4490 = vunpack.c.h.b16 %v2950
        %v4491 = vunpack.c.l.b16 %v2951
        %v4492 = vunpack.c.h.b16 %v2951
        %v4493 = vunpack.c.l.b16 %v2952
        %v4494 = vunpack.c.h.b16 %v2952
        %v4495 = vunpack.c.l.b16 %v2953
        %v4496 = vunpack.c.h.b16 %v2953
        %v4497 = vunpack.c.l.b16 %v2954
        %v4498 = vunpack.c.h.b16 %v2954
        %v4499 = vunpack.c.l.b16 %v2955
        %v4500 = vunpack.c.h.b16 %v2955
        %v4501 = vunpack.c.l.b16 %v2956
        %v4502 = vunpack.c.h.b16 %v2956
        %v4503 = vunpack.c.l.b16 %v2957
        %v4504 = vunpack.c.h.b16 %v2957
        %v4505 = vunpack.c.l.b16 %v2958
        %v4506 = vunpack.c.h.b16 %v2958
        %v4507 = vunpack.c.l.b16 %v2959
        %v4508 = vunpack.c.h.b16 %v2959
        %v4509 = vunpack.c.l.b16 %v2960
        %v4510 = vunpack.c.h.b16 %v2960
        %v4511 = vunpack.c.l.b16 %v2961
        %v4512 = vunpack.c.h.b16 %v2961
        %v4513 = vunpack.c.l.b16 %v2962
        %v4514 = vunpack.c.h.b16 %v2962
        %v4515 = vunpack.c.l.b16 %v2963
        %v4516 = vunpack.c.h.b16 %v2963
        %v4517 = vunpack.c.l.b16 %v2964
        %v4518 = vunpack.c.h.b16 %v2964
        %v4519 = vunpack.c.l.b16 %v2965
        %v4520 = vunpack.c.h.b16 %v2965
        %v4521 = vunpack.c.l.b16 %v2966
        %v4522 = vunpack.c.h.b16 %v2966
        %v4523 = vunpack.c.l.b16 %v2967
        %v4524 = vunpack.c.h.b16 %v2967
        %v4525 = vunpack.c.l.b16 %v2968
        %v4526 = vunpack.c.h.b16 %v2968
        %v4527 = vunpack.c.l.b16 %v2969
        %v4528 = vunpack.c.h.b16 %v2969
        %v4529 = vunpack.c.l.b16 %v2970
        %v4530 = vunpack.c.h.b16 %v2970
        %v4531 = vunpack.c.l.b16 %v2971
        %v4532 = vunpack.c.h.b16 %v2971
        %v4533 = vunpack.c.l.b16 %v2972
        %v4534 = vunpack.c.h.b16 %v2972
        %v4535 = vunpack.c.l.b16 %v2973
        %v4536 = vunpack.c.h.b16 %v2973
        %v4537 = vunpack.c.l.b16 %v2974
        %v4538 = vunpack.c.h.b16 %v2974
        %v4539 = vunpack.c.l.b16 %v2975
        %v4540 = vunpack.c.h.b16 %v2975
        %v4541 = vunpack.c.l.b16 %v2976
        %v4542 = vunpack.c.h.b16 %v2976
        %v4543 = vunpack.c.l.b16 %v2977
        %v4544 = vunpack.c.h.b16 %v2977
        %v4545 = vunpack.c.l.b16 %v2978
        %v4546 = vunpack.c.h.b16 %v2978
        %v4547 = vunpack.c.l.b16 %v2979
        %v4548 = vunpack.c.h.b16 %v2979
        %v4549 = vunpack.c.l.b16 %v2980
        %v4550 = vunpack.c.h.b16 %v2980
        %v4551 = vunpack.c.l.b16 %v2981
        %v4552 = vunpack.c.h.b16 %v2981
        %v4553 = vunpack.c.l.b16 %v2982
        %v4554 = vunpack.c.h.b16 %v2982
        %v4555 = vunpack.c.l.b16 %v2983
        %v4556 = vunpack.c.h.b16 %v2983
        %v4557 = vunpack.c.l.b16 %v2984
        %v4558 = vunpack.c.h.b16 %v2984
        %v4559 = vunpack.c.l.b16 %v2985
        %v4560 = vunpack.c.h.b16 %v2985
        %v4561 = vunpack.c.l.b16 %v2986
        %v4562 = vunpack.c.h.b16 %v2986
        %v4563 = vunpack.c.l.b16 %v2987
        %v4564 = vunpack.c.h.b16 %v2987
        %v4565 = vunpack.c.l.b16 %v2988
        %v4566 = vunpack.c.h.b16 %v2988
        %v4567 = vunpack.c.l.b16 %v2989
        %v4568 = vunpack.c.h.b16 %v2989
        %v4569 = vunpack.c.l.b16 %v2990
        %v4570 = vunpack.c.h.b16 %v2990
        %v4571 = vunpack.c.l.b16 %v2991
        %v4572 = vunpack.c.h.b16 %v2991
        %v4573 = vunpack.c.l.b16 %v2992
        %v4574 = vunpack.c.h.b16 %v2992
        %v4575 = vunpack.c.l.b16 %v2993
        %v4576 = vunpack.c.h.b16 %v2993
        %v4577 = vunpack.c.l.b16 %v2994
        %v4578 = vunpack.c.h.b16 %v2994
        %v4579 = vunpack.c.l.b16 %v2995
        %v4580 = vunpack.c.h.b16 %v2995
        %v4581 = vunpack.c.l.b16 %v2996
        %v4582 = vunpack.c.h.b16 %v2996
        %v4583 = vunpack.c.l.b16 %v2997
        %v4584 = vunpack.c.h.b16 %v2997
        %v4585 = vunpack.c.l.b16 %v2998
        %v4586 = vunpack.c.h.b16 %v2998
        %v4587 = vunpack.c.l.b16 %v2999
        %v4588 = vunpack.c.h.b16 %v2999
        %v4589 = vunpack.c.l.b16 %v3000
        %v4590 = vunpack.c.h.b16 %v3000
        %v4591 = vunpack.c.l.b16 %v3001
        %v4592 = vunpack.c.h.b16 %v3001
        %v4593 = vunpack.c.l.b16 %v3002
        %v4594 = vunpack.c.h.b16 %v3002
        %v4595 = vunpack.c.l.b16 %v3003
        %v4596 = vunpack.c.h.b16 %v3003
        %v4597 = vunpack.c.l.b16 %v3004
        %v4598 = vunpack.c.h.b16 %v3004
        %v4599 = vunpack.c.l.b16 %v3005
        %v4600 = vunpack.c.h.b16 %v3005
        %v4601 = vunpack.c.l.b16 %v3006
        %v4602 = vunpack.c.h.b16 %v3006
        %v4603 = vunpack.c.l.b16 %v3007
        %v4604 = vunpack.c.h.b16 %v3007
        %v4605 = vunpack.c.l.b16 %v3008
        %v4606 = vunpack.c.h.b16 %v3008
        %v4607 = vunpack.c.l.b16 %v3009
        %v4608 = vunpack.c.h.b16 %v3009
        %v4609 = vunpack.c.l.b16 %v3010
        %v4610 = vunpack.c.h.b16 %v3010
        %v4611 = vunpack.c.l.b16 %v3011
        %v4612 = vunpack.c.h.b16 %v3011
        %v4613 = vunpack.c.l.b16 %v3012
        %v4614 = vunpack.c.h.b16 %v3012
        %v4615 = vunpack.c.l.b16 %v3013
        %v4616 = vunpack.c.h.b16 %v3013
        %v4617 = vunpack.c.l.b16 %v3014
        %v4618 = vunpack.c.h.b16 %v3014
        %v4619 = vunpack.c.l.b16 %v3015
        %v4620 = vunpack.c.h.b16 %v3015
        %v4621 = vunpack.c.l.b16 %v3016
        %v4622 = vunpack.c.h.b16 %v3016
        %v4623 = vunpack.c.l.b16 %v3017
        %v4624 = vunpack.c.h.b16 %v3017
        %v4625 = vunpack.c.l.b16 %v3018
        %v4626 = vunpack.c.h.b16 %v3018
        %v4627 = vunpack.c.l.b16 %v3019
        %v4628 = vunpack.c.h.b16 %v3019
        %v4629 = vunpack.c.l.b16 %v3020
        %v4630 = vunpack.c.h.b16 %v3020
        %v4631 = vunpack.c.l.b16 %v3021
        %v4632 = vunpack.c.h.b16 %v3021
        %v4633 = vunpack.c.l.b16 %v3022
        %v4634 = vunpack.c.h.b16 %v3022
        %v4635 = vunpack.c.l.b16 %v3023
        %v4636 = vunpack.c.h.b16 %v3023
        %v4637 = vunpack.c.l.b16 %v3024
        %v4638 = vunpack.c.h.b16 %v3024
        %v4639 = vunpack.c.l.b16 %v3025
        %v4640 = vunpack.c.h.b16 %v3025
        %v4641 = vunpack.c.l.b16 %v3026
        %v4642 = vunpack.c.h.b16 %v3026
        %v4643 = vunpack.c.l.b16 %v3027
        %v4644 = vunpack.c.h.b16 %v3027
        %v4645 = vunpack.c.l.b16 %v3028
        %v4646 = vunpack.c.h.b16 %v3028
        %v4647 = vunpack.c.l.b16 %v3029
        %v4648 = vunpack.c.h.b16 %v3029
        %v4649 = vunpack.c.l.b16 %v3030
        %v4650 = vunpack.c.h.b16 %v3030
        %v4651 = vunpack.c.l.b16 %v3031
        %v4652 = vunpack.c.h.b16 %v3031
        %v4653 = vunpack.c.l.b16 %v3032
        %v4654 = vunpack.c.h.b16 %v3032
        %v4655 = vunpack.c.l.b16 %v3033
        %v4656 = vunpack.c.h.b16 %v3033
        %v4657 = vunpack.c.l.b16 %v3034
        %v4658 = vunpack.c.h.b16 %v3034
        %v4659 = vunpack.c.l.b16 %v3035
        %v4660 = vunpack.c.h.b16 %v3035
        %v4661 = vunpack.c.l.b16 %v3036
        %v4662 = vunpack.c.h.b16 %v3036
        %v4663 = vunpack.c.l.b16 %v3037
        %v4664 = vunpack.c.h.b16 %v3037
        %v4665 = vunpack.c.l.b16 %v3038
        %v4666 = vunpack.c.h.b16 %v3038
        %v4667 = vunpack.c.l.b16 %v3039
        %v4668 = vunpack.c.h.b16 %v3039
        %v4669 = vunpack.c.l.b16 %v3040
        %v4670 = vunpack.c.h.b16 %v3040
        %v4671 = vunpack.c.l.b16 %v3041
        %v4672 = vunpack.c.h.b16 %v3041
        %v4673 = vunpack.c.l.b16 %v3042
        %v4674 = vunpack.c.h.b16 %v3042
        %v4675 = vunpack.c.l.b16 %v3043
        %v4676 = vunpack.c.h.b16 %v3043
        %v4677 = vunpack.c.l.b16 %v3044
        %v4678 = vunpack.c.h.b16 %v3044
        %v4679 = vunpack.c.l.b16 %v3045
        %v4680 = vunpack.c.h.b16 %v3045
        %v4681 = vunpack.c.l.b16 %v3046
        %v4682 = vunpack.c.h.b16 %v3046
        %v4683 = vunpack.c.l.b16 %v3047
        %v4684 = vunpack.c.h.b16 %v3047
        %v4685 = vunpack.c.l.b16 %v3048
        %v4686 = vunpack.c.h.b16 %v3048
        %v4687 = vunpack.c.l.b16 %v3049
        %v4688 = vunpack.c.h.b16 %v3049
        %v4689 = vunpack.c.l.b16 %v3050
        %v4690 = vunpack.c.h.b16 %v3050
        %v4691 = vunpack.c.l.b16 %v3051
        %v4692 = vunpack.c.h.b16 %v3051
        %v4693 = vunpack.c.l.b16 %v3052
        %v4694 = vunpack.c.h.b16 %v3052
        %v4695 = vunpack.c.l.b16 %v3053
        %v4696 = vunpack.c.h.b16 %v3053
        %v4697 = vunpack.c.l.b16 %v3054
        %v4698 = vunpack.c.h.b16 %v3054
        %v4699 = vunpack.c.l.b16 %v3055
        %v4700 = vunpack.c.h.b16 %v3055
        %v4701 = vunpack.c.l.b16 %v3056
        %v4702 = vunpack.c.h.b16 %v3056
        %v4703 = vunpack.c.l.b16 %v3057
        %v4704 = vunpack.c.h.b16 %v3057
        %v4705 = vunpack.c.l.b16 %v3058
        %v4706 = vunpack.c.h.b16 %v3058
        %v4707 = vunpack.c.l.b16 %v3059
        %v4708 = vunpack.c.h.b16 %v3059
        %v4709 = vunpack.c.l.b16 %v3060
        %v4710 = vunpack.c.h.b16 %v3060
        %v4711 = vunpack.c.l.b16 %v3061
        %v4712 = vunpack.c.h.b16 %v3061
        %v4713 = vunpack.c.l.b16 %v3062
        %v4714 = vunpack.c.h.b16 %v3062
        %v4715 = vunpack.c.l.b16 %v3063
        %v4716 = vunpack.c.h.b16 %v3063
        %v4717 = vunpack.c.l.b16 %v3064
        %v4718 = vunpack.c.h.b16 %v3064
        %v4719 = vunpack.c.l.b16 %v3065
        %v4720 = vunpack.c.h.b16 %v3065
        %v4721 = vunpack.c.l.b16 %v3066
        %v4722 = vunpack.c.h.b16 %v3066
        %v4723 = vunpack.c.l.b16 %v3067
        %v4724 = vunpack.c.h.b16 %v3067
        %v4725 = vunpack.c.l.b16 %v3068
        %v4726 = vunpack.c.h.b16 %v3068
        %v4727 = vunpack.c.l.b16 %v3069
        %v4728 = vunpack.c.h.b16 %v3069
        %v4729 = vunpack.c.l.b16 %v3070
        %v4730 = vunpack.c.h.b16 %v3070
        %v4731 = vunpack.c.l.b16 %v3071
        %v4732 = vunpack.c.h.b16 %v3071
        %v4733 = vunpack.c.l.b16 %v3072
        %v4734 = vunpack.c.h.b16 %v3072
        %v4735 = vunpack.c.l.b16 %v3073
        %v4736 = vunpack.c.h.b16 %v3073
        %v4737 = vunpack.c.l.b16 %v3074
        %v4738 = vunpack.c.h.b16 %v3074
        %v4739 = vunpack.c.l.b16 %v3075
        %v4740 = vunpack.c.h.b16 %v3075
        %v4741 = vunpack.c.l.b16 %v3076
        %v4742 = vunpack.c.h.b16 %v3076
        %v4743 = vunpack.c.l.b16 %v3077
        %v4744 = vunpack.c.h.b16 %v3077
        %v4745 = vunpack.c.l.b16 %v3078
        %v4746 = vunpack.c.h.b16 %v3078
        %v4747 = vunpack.c.l.b16 %v3079
        %v4748 = vunpack.c.h.b16 %v3079
        %v4749 = vunpack.c.l.b16 %v3080
        %v4750 = vunpack.c.h.b16 %v3080
        %v4751 = vunpack.c.l.b16 %v3081
        %v4752 = vunpack.c.h.b16 %v3081
        %v4753 = vunpack.c.l.b16 %v3082
        %v4754 = vunpack.c.h.b16 %v3082
        %v4755 = vunpack.c.l.b16 %v3083
        %v4756 = vunpack.c.h.b16 %v3083
        %v4757 = vunpack.c.l.b16 %v3084
        %v4758 = vunpack.c.h.b16 %v3084
        %v4759 = vunpack.c.l.b16 %v3085
        %v4760 = vunpack.c.h.b16 %v3085
        %v4761 = vunpack.c.l.b16 %v3086
        %v4762 = vunpack.c.h.b16 %v3086
        %v4763 = vunpack.c.l.b16 %v3087
        %v4764 = vunpack.c.h.b16 %v3087
        %v4765 = vunpack.c.l.b16 %v3088
        %v4766 = vunpack.c.h.b16 %v3088
        %v4767 = vunpack.c.l.b16 %v3089
        %v4768 = vunpack.c.h.b16 %v3089
        %v4769 = vunpack.c.l.b16 %v3090
        %v4770 = vunpack.c.h.b16 %v3090
        %v4771 = vunpack.c.l.b16 %v3091
        %v4772 = vunpack.c.h.b16 %v3091
        %v4773 = vunpack.c.l.b16 %v3092
        %v4774 = vunpack.c.h.b16 %v3092
        %v4775 = vunpack.c.l.b16 %v3093
        %v4776 = vunpack.c.h.b16 %v3093
        %v4777 = vunpack.c.l.b16 %v3094
        %v4778 = vunpack.c.h.b16 %v3094
        %v4779 = vunpack.c.l.b16 %v3095
        %v4780 = vunpack.c.h.b16 %v3095
        %v4781 = vunpack.c.l.b16 %v3096
        %v4782 = vunpack.c.h.b16 %v3096
        %v4783 = vunpack.c.l.b16 %v3097
        %v4784 = vunpack.c.h.b16 %v3097
        %v4785 = vunpack.c.l.b16 %v3098
        %v4786 = vunpack.c.h.b16 %v3098
        %v4787 = vunpack.c.l.b16 %v3099
        %v4788 = vunpack.c.h.b16 %v3099
        %v4789 = vunpack.c.l.b16 %v3100
        %v4790 = vunpack.c.h.b16 %v3100
        %v4791 = vunpack.c.l.b16 %v3101
        %v4792 = vunpack.c.h.b16 %v3101
        %v4793 = vunpack.c.l.b16 %v3102
        %v4794 = vunpack.c.h.b16 %v3102
        %v4795 = vunpack.c.l.b16 %v3103
        %v4796 = vunpack.c.h.b16 %v3103
        %v4797 = vunpack.c.l.b16 %v3104
        %v4798 = vunpack.c.h.b16 %v3104
        %v4799 = vunpack.c.l.b16 %v3105
        %v4800 = vunpack.c.h.b16 %v3105
        %v4801 = vunpack.c.l.b16 %v3106
        %v4802 = vunpack.c.h.b16 %v3106
        %v4803 = vunpack.c.l.b16 %v3107
        %v4804 = vunpack.c.h.b16 %v3107
        %v4805 = vunpack.c.l.b16 %v3108
        %v4806 = vunpack.c.h.b16 %v3108
        %v4807 = vunpack.c.l.b16 %v3109
        %v4808 = vunpack.c.h.b16 %v3109
        %v4809 = vunpack.c.l.b16 %v3110
        %v4810 = vunpack.c.h.b16 %v3110
        %v4811 = vunpack.c.l.b16 %v3111
        %v4812 = vunpack.c.h.b16 %v3111
        %v4813 = vunpack.c.l.b16 %v3112
        %v4814 = vunpack.c.h.b16 %v3112
        %v4815 = vunpack.c.l.b16 %v3113
        %v4816 = vunpack.c.h.b16 %v3113
        %v4817 = vunpack.c.l.b16 %v3114
        %v4818 = vunpack.c.h.b16 %v3114
        %v4819 = vunpack.c.l.b16 %v3115
        %v4820 = vunpack.c.h.b16 %v3115
        %v4821 = vunpack.c.l.b16 %v3116
        %v4822 = vunpack.c.h.b16 %v3116
        %v4823 = vunpack.c.l.b16 %v3117
        %v4824 = vunpack.c.h.b16 %v3117
        %v4825 = vunpack.c.l.b16 %v3118
        %v4826 = vunpack.c.h.b16 %v3118
        %v4827 = vunpack.c.l.b16 %v3119
        %v4828 = vunpack.c.h.b16 %v3119
        %v4829 = vunpack.c.l.b16 %v3120
        %v4830 = vunpack.c.h.b16 %v3120
        %v4831 = vunpack.c.l.b16 %v3121
        %v4832 = vunpack.c.h.b16 %v3121
        %v4833 = vunpack.c.l.b16 %v3122
        %v4834 = vunpack.c.h.b16 %v3122
        %v4835 = vunpack.c.l.b16 %v3123
        %v4836 = vunpack.c.h.b16 %v3123
        %v4837 = vunpack.c.l.b16 %v3124
        %v4838 = vunpack.c.h.b16 %v3124
        %v4839 = vunpack.c.l.b16 %v3125
        %v4840 = vunpack.c.h.b16 %v3125
        %v4841 = vunpack.c.l.b16 %v3126
        %v4842 = vunpack.c.h.b16 %v3126
        %v4843 = vunpack.c.l.b16 %v3127
        %v4844 = vunpack.c.h.b16 %v3127
        %v4845 = vunpack.c.l.b16 %v3128
        %v4846 = vunpack.c.h.b16 %v3128
        %v4847 = vunpack.c.l.b16 %v3129
        %v4848 = vunpack.c.h.b16 %v3129
        %v4849 = vunpack.c.l.b16 %v3130
        %v4850 = vunpack.c.h.b16 %v3130
        %v4851 = vunpack.c.l.b16 %v3131
        %v4852 = vunpack.c.h.b16 %v3131
        %v4853 = vunpack.c.l.b16 %v3132
        %v4854 = vunpack.c.h.b16 %v3132
        %v4855 = vunpack.c.l.b16 %v3133
        %v4856 = vunpack.c.h.b16 %v3133
        %v4857 = vunpack.c.l.b16 %v3134
        %v4858 = vunpack.c.h.b16 %v3134
        %v4859 = vunpack.c.l.b16 %v3135
        %v4860 = vunpack.c.h.b16 %v3135
        %v4861 = vunpack.c.l.b16 %v3136
        %v4862 = vunpack.c.h.b16 %v3136
        %v4863 = vunpack.c.l.b16 %v3137
        %v4864 = vunpack.c.h.b16 %v3137
        %v4865 = vunpack.c.l.b16 %v3138
        %v4866 = vunpack.c.h.b16 %v3138
        %v4867 = vunpack.c.l.b16 %v3139
        %v4868 = vunpack.c.h.b16 %v3139
        %v4869 = vunpack.c.l.b16 %v3140
        %v4870 = vunpack.c.h.b16 %v3140
        %v4871 = vunpack.c.l.b16 %v3141
        %v4872 = vunpack.c.h.b16 %v3141
        %v4873 = vunpack.c.l.b16 %v3142
        %v4874 = vunpack.c.h.b16 %v3142
        %v4875 = vunpack.c.l.b16 %v3143
        %v4876 = vunpack.c.h.b16 %v3143
        %v4877 = vunpack.c.l.b16 %v3144
        %v4878 = vunpack.c.h.b16 %v3144
        %v4879 = vunpack.c.l.b16 %v3145
        %v4880 = vunpack.c.h.b16 %v3145
        %v4881 = vunpack.c.l.b16 %v3146
        %v4882 = vunpack.c.h.b16 %v3146
        %v4883 = vunpack.c.l.b16 %v3147
        %v4884 = vunpack.c.h.b16 %v3147
        %v4885 = vunpack.c.l.b16 %v3148
        %v4886 = vunpack.c.h.b16 %v3148
        %v4887 = vunpack.c.l.b16 %v3149
        %v4888 = vunpack.c.h.b16 %v3149
        %v4889 = vunpack.c.l.b16 %v3150
        %v4890 = vunpack.c.h.b16 %v3150
        %v4891 = vunpack.c.l.b16 %v3151
        %v4892 = vunpack.c.h.b16 %v3151
        %v4893 = vunpack.c.l.b16 %v3152
        %v4894 = vunpack.c.h.b16 %v3152
        %v4895 = vunpack.c.l.b16 %v3153
        %v4896 = vunpack.c.h.b16 %v3153
        %v4897 = vunpack.c.l.b16 %v3154
        %v4898 = vunpack.c.h.b16 %v3154
        %v4899 = vunpack.c.l.b16 %v3155
        %v4900 = vunpack.c.h.b16 %v3155
        %v4901 = vunpack.c.l.b16 %v3156
        %v4902 = vunpack.c.h.b16 %v3156
        %v4903 = vunpack.c.l.b16 %v3157
        %v4904 = vunpack.c.h.b16 %v3157
        %v4905 = vunpack.c.l.b16 %v3158
        %v4906 = vunpack.c.h.b16 %v3158
        %v4907 = vunpack.c.l.b16 %v3159
        %v4908 = vunpack.c.h.b16 %v3159
        %v4909 = vunpack.c.l.b16 %v3160
        %v4910 = vunpack.c.h.b16 %v3160
        %v4911 = vunpack.c.l.b16 %v3161
        %v4912 = vunpack.c.h.b16 %v3161
        %v4913 = vunpack.c.l.b16 %v3162
        %v4914 = vunpack.c.h.b16 %v3162
        %v4915 = vunpack.c.l.b16 %v3163
        %v4916 = vunpack.c.h.b16 %v3163
        %v4917 = vunpack.c.l.b16 %v3164
        %v4918 = vunpack.c.h.b16 %v3164
        %v4919 = vunpack.c.l.b16 %v3165
        %v4920 = vunpack.c.h.b16 %v3165
        %v4921 = vunpack.c.l.b16 %v3166
        %v4922 = vunpack.c.h.b16 %v3166
        %v4923 = vunpack.c.l.b16 %v3167
        %v4924 = vunpack.c.h.b16 %v3167
        %v4925 = vunpack.c.l.b16 %v3168
        %v4926 = vunpack.c.h.b16 %v3168
        %v4927 = vunpack.c.l.b16 %v3169
        %v4928 = vunpack.c.h.b16 %v3169
        %v4929 = vunpack.c.l.b16 %v3170
        %v4930 = vunpack.c.h.b16 %v3170
        %v4931 = vunpack.c.l.b16 %v3171
        %v4932 = vunpack.c.h.b16 %v3171
        %v4933 = vunpack.c.l.b16 %v3172
        %v4934 = vunpack.c.h.b16 %v3172
        %v4935 = vunpack.c.l.b16 %v3173
        %v4936 = vunpack.c.h.b16 %v3173
        %v4937 = vunpack.c.l.b16 %v3174
        %v4938 = vunpack.c.h.b16 %v3174
        %v4939 = vunpack.c.l.b16 %v3175
        %v4940 = vunpack.c.h.b16 %v3175
        %v4941 = vunpack.c.l.b16 %v3176
        %v4942 = vunpack.c.h.b16 %v3176
        %v4943 = vunpack.c.l.b16 %v3177
        %v4944 = vunpack.c.h.b16 %v3177
        %v4945 = vunpack.c.l.b16 %v3178
        %v4946 = vunpack.c.h.b16 %v3178
        %v4947 = vunpack.c.l.b16 %v3179
        %v4948 = vunpack.c.h.b16 %v3179
        %v4949 = vunpack.c.l.b16 %v3180
        %v4950 = vunpack.c.h.b16 %v3180
        %v4951 = vpack.c.b16 %v3807, %v3799
        %v4952 = vpack.c.b16 %v3808, %v3800
        %v4953 = vpack.c.b16 %v3809, %v3801
        %v4954 = vpack.c.b16 %v3810, %v3802
        %v4955 = vpack.c.b16 %v3811, %v3803
        %v4956 = vpack.c.b16 %v3812, %v3804
        %v4957 = vpack.c.b16 %v3813, %v3805
        %v4958 = vpack.c.b16 %v3814, %v3806
        %v4959 = vpack.c.b16 %v3823, %v3815
        %v4960 = vpack.c.b16 %v3824, %v3816
        %v4961 = vpack.c.b16 %v3825, %v3817
        %v4962 = vpack.c.b16 %v3826, %v3818
        %v4963 = vpack.c.b16 %v3827, %v3819
        %v4964 = vpack.c.b16 %v3828, %v3820
        %v4965 = vpack.c.b16 %v3829, %v3821
        %v4966 = vpack.c.b16 %v3830, %v3822
        %v4967 = vpack.c.b16 %v3839, %v3831
        %v4968 = vpack.c.b16 %v3840, %v3832
        %v4969 = vpack.c.b16 %v3841, %v3833
        %v4970 = vpack.c.b16 %v3842, %v3834
        %v4971 = vpack.c.b16 %v3843, %v3835
        %v4972 = vpack.c.b16 %v3844, %v3836
        %v4973 = vpack.c.b16 %v3845, %v3837
        %v4974 = vpack.c.b16 %v3846, %v3838
        %v4975 = vpack.c.b16 %v3855, %v3847
        %v4976 = vpack.c.b16 %v3856, %v3848
        %v4977 = vpack.c.b16 %v3857, %v3849
        %v4978 = vpack.c.b16 %v3858, %v3850
        %v4979 = vpack.c.b16 %v3859, %v3851
        %v4980 = vpack.c.b16 %v3860, %v3852
        %v4981 = vpack.c.b16 %v3861, %v3853
        %v4982 = vpack.c.b16 %v3862, %v3854
        %v4983 = vpack.c.b16 %v3871, %v3863
        %v4984 = vpack.c.b16 %v3872, %v3864
        %v4985 = vpack.c.b16 %v3873, %v3865
        %v4986 = vpack.c.b16 %v3874, %v3866
        %v4987 = vpack.c.b16 %v3875, %v3867
        %v4988 = vpack.c.b16 %v3876, %v3868
        %v4989 = vpack.c.b16 %v3877, %v3869
        %v4990 = vpack.c.b16 %v3878, %v3870
        %v4991 = vpack.c.b16 %v3887, %v3879
        %v4992 = vpack.c.b16 %v3888, %v3880
        %v4993 = vpack.c.b16 %v3889, %v3881
        %v4994 = vpack.c.b16 %v3890, %v3882
        %v4995 = vpack.c.b16 %v3891, %v3883
        %v4996 = vpack.c.b16 %v3892, %v3884
        %v4997 = vpack.c.b16 %v3893, %v3885
        %v4998 = vpack.c.b16 %v3894, %v3886
        %v4999 = vpack.c.b16 %v3903, %v3895
        %v5000 = vpack.c.b16 %v3904, %v3896
        %v5001 = vpack.c.b16 %v3905, %v3897
        %v5002 = vpack.c.b16 %v3906, %v3898
        %v5003 = vpack.c.b16 %v3907, %v3899
        %v5004 = vpack.c.b16 %v3908, %v3900
        %v5005 = vpack.c.b16 %v3909, %v3901
        %v5006 = vpack.c.b16 %v3910, %v3902
        %v5007 = vpack.c.b16 %v3919, %v3911
        %v5008 = vpack.c.b16 %v3920, %v3912
        %v5009 = vpack.c.b16 %v3921, %v3913
        %v5010 = vpack.c.b16 %v3922, %v3914
        %v5011 = vpack.c.b16 %v3923, %v3915
        %v5012 = vpack.c.b16 %v3924, %v3916
        %v5013 = vpack.c.b16 %v3925, %v3917
        %v5014 = vpack.c.b16 %v3926, %v3918
        %v5015 = vpack.c.b16 %v3935, %v3927
        %v5016 = vpack.c.b16 %v3936, %v3928
        %v5017 = vpack.c.b16 %v3937, %v3929
        %v5018 = vpack.c.b16 %v3938, %v3930
        %v5019 = vpack.c.b16 %v3939, %v3931
        %v5020 = vpack.c.b16 %v3940, %v3932
        %v5021 = vpack.c.b16 %v3941, %v3933
        %v5022 = vpack.c.b16 %v3942, %v3934
        %v5023 = vpack.c.b16 %v3951, %v3943
        %v5024 = vpack.c.b16 %v3952, %v3944
        %v5025 = vpack.c.b16 %v3953, %v3945
        %v5026 = vpack.c.b16 %v3954, %v3946
        %v5027 = vpack.c.b16 %v3955, %v3947
        %v5028 = vpack.c.b16 %v3956, %v3948
        %v5029 = vpack.c.b16 %v3957, %v3949
        %v5030 = vpack.c.b16 %v3958, %v3950
        %v5031 = vpack.c.b16 %v3967, %v3959
        %v5032 = vpack.c.b16 %v3968, %v3960
        %v5033 = vpack.c.b16 %v3969, %v3961
        %v5034 = vpack.c.b16 %v3970, %v3962
        %v5035 = vpack.c.b16 %v3971, %v3963
        %v5036 = vpack.c.b16 %v3972, %v3964
        %v5037 = vpack.c.b16 %v3973, %v3965
        %v5038 = vpack.c.b16 %v3974, %v3966
        %v5039 = vpack.c.b16 %v3983, %v3975
        %v5040 = vpack.c.b16 %v3984, %v3976
        %v5041 = vpack.c.b16 %v3985, %v3977
        %v5042 = vpack.c.b16 %v3986, %v3978
        %v5043 = vpack.c.b16 %v3987, %v3979
        %v5044 = vpack.c.b16 %v3988, %v3980
        %v5045 = vpack.c.b16 %v3989, %v3981
        %v5046 = vpack.c.b16 %v3990, %v3982
        %v5047 = vpack.c.b16 %v3999, %v3991
        %v5048 = vpack.c.b16 %v4000, %v3992
        %v5049 = vpack.c.b16 %v4001, %v3993
        %v5050 = vpack.c.b16 %v4002, %v3994
        %v5051 = vpack.c.b16 %v4003, %v3995
        %v5052 = vpack.c.b16 %v4004, %v3996
        %v5053 = vpack.c.b16 %v4005, %v3997
        %v5054 = vpack.c.b16 %v4006, %v3998
        %v5055 = vpack.c.b16 %v4015, %v4007
        %v5056 = vpack.c.b16 %v4016, %v4008
        %v5057 = vpack.c.b16 %v4017, %v4009
        %v5058 = vpack.c.b16 %v4018, %v4010
        %v5059 = vpack.c.b16 %v4019, %v4011
        %v5060 = vpack.c.b16 %v4020, %v4012
        %v5061 = vpack.c.b16 %v4021, %v4013
        %v5062 = vpack.c.b16 %v4022, %v4014
        %v5063 = vpack.c.b16 %v4031, %v4023
        %v5064 = vpack.c.b16 %v4032, %v4024
        %v5065 = vpack.c.b16 %v4033, %v4025
        %v5066 = vpack.c.b16 %v4034, %v4026
        %v5067 = vpack.c.b16 %v4035, %v4027
        %v5068 = vpack.c.b16 %v4036, %v4028
        %v5069 = vpack.c.b16 %v4037, %v4029
        %v5070 = vpack.c.b16 %v4038, %v4030
        %v5071 = vpack.c.b16 %v4047, %v4039
        %v5072 = vpack.c.b16 %v4048, %v4040
        %v5073 = vpack.c.b16 %v4049, %v4041
        %v5074 = vpack.c.b16 %v4050, %v4042
        %v5075 = vpack.c.b16 %v4051, %v4043
        %v5076 = vpack.c.b16 %v4052, %v4044
        %v5077 = vpack.c.b16 %v4053, %v4045
        %v5078 = vpack.c.b16 %v4054, %v4046
        %v5079 = vpack.c.b16 %v4063, %v4055
        %v5080 = vpack.c.b16 %v4064, %v4056
        %v5081 = vpack.c.b16 %v4065, %v4057
        %v5082 = vpack.c.b16 %v4066, %v4058
        %v5083 = vpack.c.b16 %v4067, %v4059
        %v5084 = vpack.c.b16 %v4068, %v4060
        %v5085 = vpack.c.b16 %v4069, %v4061
        %v5086 = vpack.c.b16 %v4070, %v4062
        %v5087 = vpack.c.b16 %v4079, %v4071
        %v5088 = vpack.c.b16 %v4080, %v4072
        %v5089 = vpack.c.b16 %v4081, %v4073
        %v5090 = vpack.c.b16 %v4082, %v4074
        %v5091 = vpack.c.b16 %v4083, %v4075
        %v5092 = vpack.c.b16 %v4084, %v4076
        %v5093 = vpack.c.b16 %v4085, %v4077
        %v5094 = vpack.c.b16 %v4086, %v4078
        %v5095 = vpack.c.b16 %v4095, %v4087
        %v5096 = vpack.c.b16 %v4096, %v4088
        %v5097 = vpack.c.b16 %v4097, %v4089
        %v5098 = vpack.c.b16 %v4098, %v4090
        %v5099 = vpack.c.b16 %v4099, %v4091
        %v5100 = vpack.c.b16 %v4100, %v4092
        %v5101 = vpack.c.b16 %v4101, %v4093
        %v5102 = vpack.c.b16 %v4102, %v4094
        %v5103 = vpack.c.b16 %v4111, %v4103
        %v5104 = vpack.c.b16 %v4112, %v4104
        %v5105 = vpack.c.b16 %v4113, %v4105
        %v5106 = vpack.c.b16 %v4114, %v4106
        %v5107 = vpack.c.b16 %v4115, %v4107
        %v5108 = vpack.c.b16 %v4116, %v4108
        %v5109 = vpack.c.b16 %v4117, %v4109
        %v5110 = vpack.c.b16 %v4118, %v4110
        %v5111 = vpack.c.b16 %v4127, %v4119
        %v5112 = vpack.c.b16 %v4128, %v4120
        %v5113 = vpack.c.b16 %v4129, %v4121
        %v5114 = vpack.c.b16 %v4130, %v4122
        %v5115 = vpack.c.b16 %v4131, %v4123
        %v5116 = vpack.c.b16 %v4132, %v4124
        %v5117 = vpack.c.b16 %v4133, %v4125
        %v5118 = vpack.c.b16 %v4134, %v4126
        %v5119 = vpack.c.b16 %v4143, %v4135
        %v5120 = vpack.c.b16 %v4144, %v4136
        %v5121 = vpack.c.b16 %v4145, %v4137
        %v5122 = vpack.c.b16 %v4146, %v4138
        %v5123 = vpack.c.b16 %v4147, %v4139
        %v5124 = vpack.c.b16 %v4148, %v4140
        %v5125 = vpack.c.b16 %v4149, %v4141
        %v5126 = vpack.c.b16 %v4150, %v4142
        %v5127 = vpack.c.b16 %v4159, %v4151
        %v5128 = vpack.c.b16 %v4160, %v4152
        %v5129 = vpack.c.b16 %v4161, %v4153
        %v5130 = vpack.c.b16 %v4162, %v4154
        %v5131 = vpack.c.b16 %v4163, %v4155
        %v5132 = vpack.c.b16 %v4164, %v4156
        %v5133 = vpack.c.b16 %v4165, %v4157
        %v5134 = vpack.c.b16 %v4166, %v4158
        %v5135 = vpack.c.b16 %v4175, %v4167
        %v5136 = vpack.c.b16 %v4176, %v4168
        %v5137 = vpack.c.b16 %v4177, %v4169
        %v5138 = vpack.c.b16 %v4178, %v4170
        %v5139 = vpack.c.b16 %v4179, %v4171
        %v5140 = vpack.c.b16 %v4180, %v4172
        %v5141 = vpack.c.b16 %v4181, %v4173
        %v5142 = vpack.c.b16 %v4182, %v4174
        %v5143 = vpack.c.b16 %v4191, %v4183
        %v5144 = vpack.c.b16 %v4192, %v4184
        %v5145 = vpack.c.b16 %v4193, %v4185
        %v5146 = vpack.c.b16 %v4194, %v4186
        %v5147 = vpack.c.b16 %v4195, %v4187
        %v5148 = vpack.c.b16 %v4196, %v4188
        %v5149 = vpack.c.b16 %v4197, %v4189
        %v5150 = vpack.c.b16 %v4198, %v4190
        %v5151 = vpack.c.b16 %v4207, %v4199
        %v5152 = vpack.c.b16 %v4208, %v4200
        %v5153 = vpack.c.b16 %v4209, %v4201
        %v5154 = vpack.c.b16 %v4210, %v4202
        %v5155 = vpack.c.b16 %v4211, %v4203
        %v5156 = vpack.c.b16 %v4212, %v4204
        %v5157 = vpack.c.b16 %v4213, %v4205
        %v5158 = vpack.c.b16 %v4214, %v4206
        %v5159 = vpack.c.b16 %v4223, %v4215
        %v5160 = vpack.c.b16 %v4224, %v4216
        %v5161 = vpack.c.b16 %v4225, %v4217
        %v5162 = vpack.c.b16 %v4226, %v4218
        %v5163 = vpack.c.b16 %v4227, %v4219
        %v5164 = vpack.c.b16 %v4228, %v4220
        %v5165 = vpack.c.b16 %v4229, %v4221
        %v5166 = vpack.c.b16 %v4230, %v4222
        %v5167 = vpack.c.b16 %v4239, %v4231
        %v5168 = vpack.c.b16 %v4240, %v4232
        %v5169 = vpack.c.b16 %v4241, %v4233
        %v5170 = vpack.c.b16 %v4242, %v4234
        %v5171 = vpack.c.b16 %v4243, %v4235
        %v5172 = vpack.c.b16 %v4244, %v4236
        %v5173 = vpack.c.b16 %v4245, %v4237
        %v5174 = vpack.c.b16 %v4246, %v4238
        %v5175 = vpack.c.b16 %v4255, %v4247
        %v5176 = vpack.c.b16 %v4256, %v4248
        %v5177 = vpack.c.b16 %v4257, %v4249
        %v5178 = vpack.c.b16 %v4258, %v4250
        %v5179 = vpack.c.b16 %v4259, %v4251
        %v5180 = vpack.c.b16 %v4260, %v4252
        %v5181 = vpack.c.b16 %v4261, %v4253
        %v5182 = vpack.c.b16 %v4262, %v4254
        %v5183 = vpack.c.b16 %v4271, %v4263
        %v5184 = vpack.c.b16 %v4272, %v4264
        %v5185 = vpack.c.b16 %v4273, %v4265
        %v5186 = vpack.c.b16 %v4274, %v4266
        %v5187 = vpack.c.b16 %v4275, %v4267
        %v5188 = vpack.c.b16 %v4276, %v4268
        %v5189 = vpack.c.b16 %v4277, %v4269
        %v5190 = vpack.c.b16 %v4278, %v4270
        %v5191 = vpack.c.b16 %v4287, %v4279
        %v5192 = vpack.c.b16 %v4288, %v4280
        %v5193 = vpack.c.b16 %v4289, %v4281
        %v5194 = vpack.c.b16 %v4290, %v4282
        %v5195 = vpack.c.b16 %v4291, %v4283
        %v5196 = vpack.c.b16 %v4292, %v4284
        %v5197 = vpack.c.b16 %v4293, %v4285
        %v5198 = vpack.c.b16 %v4294, %v4286
        %v5199 = vpack.c.b16 %v4303, %v4295
        %v5200 = vpack.c.b16 %v4304, %v4296
        %v5201 = vpack.c.b16 %v4305, %v4297
        %v5202 = vpack.c.b16 %v4306, %v4298
        %v5203 = vpack.c.b16 %v4307, %v4299
        %v5204 = vpack.c.b16 %v4308, %v4300
        %v5205 = vpack.c.b16 %v4309, %v4301
        %v5206 = vpack.c.b16 %v4310, %v4302
        %v5207 = vpack.c.b16 %v4319, %v4311
        %v5208 = vpack.c.b16 %v4320, %v4312
        %v5209 = vpack.c.b16 %v4321, %v4313
        %v5210 = vpack.c.b16 %v4322, %v4314
        %v5211 = vpack.c.b16 %v4323, %v4315
        %v5212 = vpack.c.b16 %v4324, %v4316
        %v5213 = vpack.c.b16 %v4325, %v4317
        %v5214 = vpack.c.b16 %v4326, %v4318
        %v5215 = vpack.c.b16 %v4335, %v4327
        %v5216 = vpack.c.b16 %v4336, %v4328
        %v5217 = vpack.c.b16 %v4337, %v4329
        %v5218 = vpack.c.b16 %v4338, %v4330
        %v5219 = vpack.c.b16 %v4339, %v4331
        %v5220 = vpack.c.b16 %v4340, %v4332
        %v5221 = vpack.c.b16 %v4341, %v4333
        %v5222 = vpack.c.b16 %v4342, %v4334
        %v5223 = vpack.c.b16 %v4351, %v4343
        %v5224 = vpack.c.b16 %v4352, %v4344
        %v5225 = vpack.c.b16 %v4353, %v4345
        %v5226 = vpack.c.b16 %v4354, %v4346
        %v5227 = vpack.c.b16 %v4355, %v4347
        %v5228 = vpack.c.b16 %v4356, %v4348
        %v5229 = vpack.c.b16 %v4357, %v4349
        %v5230 = vpack.c.b16 %v4358, %v4350
        %v5231 = vpack.c.b16 %v4367, %v4359
        %v5232 = vpack.c.b16 %v4368, %v4360
        %v5233 = vpack.c.b16 %v4369, %v4361
        %v5234 = vpack.c.b16 %v4370, %v4362
        %v5235 = vpack.c.b16 %v4371, %v4363
        %v5236 = vpack.c.b16 %v4372, %v4364
        %v5237 = vpack.c.b16 %v4373, %v4365
        %v5238 = vpack.c.b16 %v4374, %v4366
        %v5239 = vpack.c.b16 %v4383, %v4375
        %v5240 = vpack.c.b16 %v4384, %v4376
        %v5241 = vpack.c.b16 %v4385, %v4377
        %v5242 = vpack.c.b16 %v4386, %v4378
        %v5243 = vpack.c.b16 %v4387, %v4379
        %v5244 = vpack.c.b16 %v4388, %v4380
        %v5245 = vpack.c.b16 %v4389, %v4381
        %v5246 = vpack.c.b16 %v4390, %v4382
        %v5247 = vpack.c.b16 %v4399, %v4391
        %v5248 = vpack.c.b16 %v4400, %v4392
        %v5249 = vpack.c.b16 %v4401, %v4393
        %v5250 = vpack.c.b16 %v4402, %v4394
        %v5251 = vpack.c.b16 %v4403, %v4395
        %v5252 = vpack.c.b16 %v4404, %v4396
        %v5253 = vpack.c.b16 %v4405, %v4397
        %v5254 = vpack.c.b16 %v4406, %v4398
        %v5255 = vpack.c.b16 %v4415, %v4407
        %v5256 = vpack.c.b16 %v4416, %v4408
        %v5257 = vpack.c.b16 %v4417, %v4409
        %v5258 = vpack.c.b16 %v4418, %v4410
        %v5259 = vpack.c.b16 %v4419, %v4411
        %v5260 = vpack.c.b16 %v4420, %v4412
        %v5261 = vpack.c.b16 %v4421, %v4413
        %v5262 = vpack.c.b16 %v4422, %v4414
        %v5263 = vpack.c.b16 %v4431, %v4423
        %v5264 = vpack.c.b16 %v4432, %v4424
        %v5265 = vpack.c.b16 %v4433, %v4425
        %v5266 = vpack.c.b16 %v4434, %v4426
        %v5267 = vpack.c.b16 %v4435, %v4427
        %v5268 = vpack.c.b16 %v4436, %v4428
        %v5269 = vpack.c.b16 %v4437, %v4429
        %v5270 = vpack.c.b16 %v4438, %v4430
        %v5271 = vpack.c.b16 %v4447, %v4439
        %v5272 = vpack.c.b16 %v4448, %v4440
        %v5273 = vpack.c.b16 %v4449, %v4441
        %v5274 = vpack.c.b16 %v4450, %v4442
        %v5275 = vpack.c.b16 %v4451, %v4443
        %v5276 = vpack.c.b16 %v4452, %v4444
        %v5277 = vpack.c.b16 %v4453, %v4445
        %v5278 = vpack.c.b16 %v4454, %v4446
        %v5279 = vpack.c.b16 %v4463, %v4455
        %v5280 = vpack.c.b16 %v4464, %v4456
        %v5281 = vpack.c.b16 %v4465, %v4457
        %v5282 = vpack.c.b16 %v4466, %v4458
        %v5283 = vpack.c.b16 %v4467, %v4459
        %v5284 = vpack.c.b16 %v4468, %v4460
        %v5285 = vpack.c.b16 %v4469, %v4461
        %v5286 = vpack.c.b16 %v4470, %v4462
        %v5287 = vpack.c.b16 %v4479, %v4471
        %v5288 = vpack.c.b16 %v4480, %v4472
        %v5289 = vpack.c.b16 %v4481, %v4473
        %v5290 = vpack.c.b16 %v4482, %v4474
        %v5291 = vpack.c.b16 %v4483, %v4475
        %v5292 = vpack.c.b16 %v4484, %v4476
        %v5293 = vpack.c.b16 %v4485, %v4477
        %v5294 = vpack.c.b16 %v4486, %v4478
        %v5295 = vpack.c.b16 %v4495, %v4487
        %v5296 = vpack.c.b16 %v4496, %v4488
        %v5297 = vpack.c.b16 %v4497, %v4489
        %v5298 = vpack.c.b16 %v4498, %v4490
        %v5299 = vpack.c.b16 %v4499, %v4491
        %v5300 = vpack.c.b16 %v4500, %v4492
        %v5301 = vpack.c.b16 %v4501, %v4493
        %v5302 = vpack.c.b16 %v4502, %v4494
        %v5303 = vpack.c.b16 %v4511, %v4503
        %v5304 = vpack.c.b16 %v4512, %v4504
        %v5305 = vpack.c.b16 %v4513, %v4505
        %v5306 = vpack.c.b16 %v4514, %v4506
        %v5307 = vpack.c.b16 %v4515, %v4507
        %v5308 = vpack.c.b16 %v4516, %v4508
        %v5309 = vpack.c.b16 %v4517, %v4509
        %v5310 = vpack.c.b16 %v4518, %v4510
        %v5311 = vpack.c.b16 %v4527, %v4519
        %v5312 = vpack.c.b16 %v4528, %v4520
        %v5313 = vpack.c.b16 %v4529, %v4521
        %v5314 = vpack.c.b16 %v4530, %v4522
        %v5315 = vpack.c.b16 %v4531, %v4523
        %v5316 = vpack.c.b16 %v4532, %v4524
        %v5317 = vpack.c.b16 %v4533, %v4525
        %v5318 = vpack.c.b16 %v4534, %v4526
        %v5319 = vpack.c.b16 %v4543, %v4535
        %v5320 = vpack.c.b16 %v4544, %v4536
        %v5321 = vpack.c.b16 %v4545, %v4537
        %v5322 = vpack.c.b16 %v4546, %v4538
        %v5323 = vpack.c.b16 %v4547, %v4539
        %v5324 = vpack.c.b16 %v4548, %v4540
        %v5325 = vpack.c.b16 %v4549, %v4541
        %v5326 = vpack.c.b16 %v4550, %v4542
        %v5327 = vpack.c.b16 %v4559, %v4551
        %v5328 = vpack.c.b16 %v4560, %v4552
        %v5329 = vpack.c.b16 %v4561, %v4553
        %v5330 = vpack.c.b16 %v4562, %v4554
        %v5331 = vpack.c.b16 %v4563, %v4555
        %v5332 = vpack.c.b16 %v4564, %v4556
        %v5333 = vpack.c.b16 %v4565, %v4557
        %v5334 = vpack.c.b16 %v4566, %v4558
        %v5335 = vpack.c.b16 %v4575, %v4567
        %v5336 = vpack.c.b16 %v4576, %v4568
        %v5337 = vpack.c.b16 %v4577, %v4569
        %v5338 = vpack.c.b16 %v4578, %v4570
        %v5339 = vpack.c.b16 %v4579, %v4571
        %v5340 = vpack.c.b16 %v4580, %v4572
        %v5341 = vpack.c.b16 %v4581, %v4573
        %v5342 = vpack.c.b16 %v4582, %v4574
        %v5343 = vpack.c.b16 %v4591, %v4583
        %v5344 = vpack.c.b16 %v4592, %v4584
        %v5345 = vpack.c.b16 %v4593, %v4585
        %v5346 = vpack.c.b16 %v4594, %v4586
        %v5347 = vpack.c.b16 %v4595, %v4587
        %v5348 = vpack.c.b16 %v4596, %v4588
        %v5349 = vpack.c.b16 %v4597, %v4589
        %v5350 = vpack.c.b16 %v4598, %v4590
        %v5351 = vpack.c.b16 %v4607, %v4599
        %v5352 = vpack.c.b16 %v4608, %v4600
        %v5353 = vpack.c.b16 %v4609, %v4601
        %v5354 = vpack.c.b16 %v4610, %v4602
        %v5355 = vpack.c.b16 %v4611, %v4603
        %v5356 = vpack.c.b16 %v4612, %v4604
        %v5357 = vpack.c.b16 %v4613, %v4605
        %v5358 = vpack.c.b16 %v4614, %v4606
        %v5359 = vpack.c.b16 %v4623, %v4615
        %v5360 = vpack.c.b16 %v4624, %v4616
        %v5361 = vpack.c.b16 %v4625, %v4617
        %v5362 = vpack.c.b16 %v4626, %v4618
        %v5363 = vpack.c.b16 %v4627, %v4619
        %v5364 = vpack.c.b16 %v4628, %v4620
        %v5365 = vpack.c.b16 %v4629, %v4621
        %v5366 = vpack.c.b16 %v4630, %v4622
        %v5367 = vpack.c.b16 %v4639, %v4631
        %v5368 = vpack.c.b16 %v4640, %v4632
        %v5369 = vpack.c.b16 %v4641, %v4633
        %v5370 = vpack.c.b16 %v4642, %v4634
        %v5371 = vpack.c.b16 %v4643, %v4635
        %v5372 = vpack.c.b16 %v4644, %v4636
        %v5373 = vpack.c.b16 %v4645, %v4637
        %v5374 = vpack.c.b16 %v4646, %v4638
        %v5375 = vpack.c.b16 %v4655, %v4647
        %v5376 = vpack.c.b16 %v4656, %v4648
        %v5377 = vpack.c.b16 %v4657, %v4649
        %v5378 = vpack.c.b16 %v4658, %v4650
        %v5379 = vpack.c.b16 %v4659, %v4651
        %v5380 = vpack.c.b16 %v4660, %v4652
        %v5381 = vpack.c.b16 %v4661, %v4653
        %v5382 = vpack.c.b16 %v4662, %v4654
        %v5383 = vpack.c.b16 %v4671, %v4663
        %v5384 = vpack.c.b16 %v4672, %v4664
        %v5385 = vpack.c.b16 %v4673, %v4665
        %v5386 = vpack.c.b16 %v4674, %v4666
        %v5387 = vpack.c.b16 %v4675, %v4667
        %v5388 = vpack.c.b16 %v4676, %v4668
        %v5389 = vpack.c.b16 %v4677, %v4669
        %v5390 = vpack.c.b16 %v4678, %v4670
        %v5391 = vpack.c.b16 %v4687, %v4679
        %v5392 = vpack.c.b16 %v4688, %v4680
        %v5393 = vpack.c.b16 %v4689, %v4681
        %v5394 = vpack.c.b16 %v4690, %v4682
        %v5395 = vpack.c.b16 %v4691, %v4683
        %v5396 = vpack.c.b16 %v4692, %v4684
        %v5397 = vpack.c.b16 %v4693, %v4685
        %v5398 = vpack.c.b16 %v4694, %v4686
        %v5399 = vpack.c.b16 %v4703, %v4695
        %v5400 = vpack.c.b16 %v4704, %v4696
        %v5401 = vpack.c.b16 %v4705, %v4697
        %v5402 = vpack.c.b16 %v4706, %v4698
        %v5403 = vpack.c.b16 %v4707, %v4699
        %v5404 = vpack.c.b16 %v4708, %v4700
        %v5405 = vpack.c.b16 %v4709, %v4701
        %v5406 = vpack.c.b16 %v4710, %v4702
        %v5407 = vpack.c.b16 %v4719, %v4711
        %v5408 = vpack.c.b16 %v4720, %v4712
        %v5409 = vpack.c.b16 %v4721, %v4713
        %v5410 = vpack.c.b16 %v4722, %v4714
        %v5411 = vpack.c.b16 %v4723, %v4715
        %v5412 = vpack.c.b16 %v4724, %v4716
        %v5413 = vpack.c.b16 %v4725, %v4717
        %v5414 = vpack.c.b16 %v4726, %v4718
        %v5415 = vpack.c.b16 %v4735, %v4727
        %v5416 = vpack.c.b16 %v4736, %v4728
        %v5417 = vpack.c.b16 %v4737, %v4729
        %v5418 = vpack.c.b16 %v4738, %v4730
        %v5419 = vpack.c.b16 %v4739, %v4731
        %v5420 = vpack.c.b16 %v4740, %v4732
        %v5421 = vpack.c.b16 %v4741, %v4733
        %v5422 = vpack.c.b16 %v4742, %v4734
        %v5423 = vpack.c.b16 %v4751, %v4743
        %v5424 = vpack.c.b16 %v4752, %v4744
        %v5425 = vpack.c.b16 %v4753, %v4745
        %v5426 = vpack.c.b16 %v4754, %v4746
        %v5427 = vpack.c.b16 %v4755, %v4747
        %v5428 = vpack.c.b16 %v4756, %v4748
        %v5429 = vpack.c.b16 %v4757, %v4749
        %v5430 = vpack.c.b16 %v4758, %v4750
        %v5431 = vpack.c.b16 %v4767, %v4759
        %v5432 = vpack.c.b16 %v4768, %v4760
        %v5433 = vpack.c.b16 %v4769, %v4761
        %v5434 = vpack.c.b16 %v4770, %v4762
        %v5435 = vpack.c.b16 %v4771, %v4763
        %v5436 = vpack.c.b16 %v4772, %v4764
        %v5437 = vpack.c.b16 %v4773, %v4765
        %v5438 = vpack.c.b16 %v4774, %v4766
        %v5439 = vpack.c.b16 %v4783, %v4775
        %v5440 = vpack.c.b16 %v4784, %v4776
        %v5441 = vpack.c.b16 %v4785, %v4777
        %v5442 = vpack.c.b16 %v4786, %v4778
        %v5443 = vpack.c.b16 %v4787, %v4779
        %v5444 = vpack.c.b16 %v4788, %v4780
        %v5445 = vpack.c.b16 %v4789, %v4781
        %v5446 = vpack.c.b16 %v4790, %v4782
        %v5447 = vpack.c.b16 %v4799, %v4791
        %v5448 = vpack.c.b16 %v4800, %v4792
        %v5449 = vpack.c.b16 %v4801, %v4793
        %v5450 = vpack.c.b16 %v4802, %v4794
        %v5451 = vpack.c.b16 %v4803, %v4795
        %v5452 = vpack.c.b16 %v4804, %v4796
        %v5453 = vpack.c.b16 %v4805, %v4797
        %v5454 = vpack.c.b16 %v4806, %v4798
        %v5455 = vpack.c.b16 %v4815, %v4807
        %v5456 = vpack.c.b16 %v4816, %v4808
        %v5457 = vpack.c.b16 %v4817, %v4809
        %v5458 = vpack.c.b16 %v4818, %v4810
        %v5459 = vpack.c.b16 %v4819, %v4811
        %v5460 = vpack.c.b16 %v4820, %v4812
        %v5461 = vpack.c.b16 %v4821, %v4813
        %v5462 = vpack.c.b16 %v4822, %v4814
        %v5463 = vpack.c.b16 %v4831, %v4823
        %v5464 = vpack.c.b16 %v4832, %v4824
        %v5465 = vpack.c.b16 %v4833, %v4825
        %v5466 = vpack.c.b16 %v4834, %v4826
        %v5467 = vpack.c.b16 %v4835, %v4827
        %v5468 = vpack.c.b16 %v4836, %v4828
        %v5469 = vpack.c.b16 %v4837, %v4829
        %v5470 = vpack.c.b16 %v4838, %v4830
        %v5471 = vpack.c.b16 %v4847, %v4839
        %v5472 = vpack.c.b16 %v4848, %v4840
        %v5473 = vpack.c.b16 %v4849, %v4841
        %v5474 = vpack.c.b16 %v4850, %v4842
        %v5475 = vpack.c.b16 %v4851, %v4843
        %v5476 = vpack.c.b16 %v4852, %v4844
        %v5477 = vpack.c.b16 %v4853, %v4845
        %v5478 = vpack.c.b16 %v4854, %v4846
        %v5479 = vpack.c.b16 %v4863, %v4855
        %v5480 = vpack.c.b16 %v4864, %v4856
        %v5481 = vpack.c.b16 %v4865, %v4857
        %v5482 = vpack.c.b16 %v4866, %v4858
        %v5483 = vpack.c.b16 %v4867, %v4859
        %v5484 = vpack.c.b16 %v4868, %v4860
        %v5485 = vpack.c.b16 %v4869, %v4861
        %v5486 = vpack.c.b16 %v4870, %v4862
        %v5487 = vpack.c.b16 %v4879, %v4871
        %v5488 = vpack.c.b16 %v4880, %v4872
        %v5489 = vpack.c.b16 %v4881, %v4873
        %v5490 = vpack.c.b16 %v4882, %v4874
        %v5491 = vpack.c.b16 %v4883, %v4875
        %v5492 = vpack.c.b16 %v4884, %v4876
        %v5493 = vpack.c.b16 %v4885, %v4877
        %v5494 = vpack.c.b16 %v4886, %v4878
        %v5495 = vpack.c.b16 %v4895, %v4887
        %v5496 = vpack.c.b16 %v4896, %v4888
        %v5497 = vpack.c.b16 %v4897, %v4889
        %v5498 = vpack.c.b16 %v4898, %v4890
        %v5499 = vpack.c.b16 %v4899, %v4891
        %v5500 = vpack.c.b16 %v4900, %v4892
        %v5501 = vpack.c.b16 %v4901, %v4893
        %v5502 = vpack.c.b16 %v4902, %v4894
        %v5503 = vpack.c.b16 %v4911, %v4903
        %v5504 = vpack.c.b16 %v4912, %v4904
        %v5505 = vpack.c.b16 %v4913, %v4905
        %v5506 = vpack.c.b16 %v4914, %v4906
        %v5507 = vpack.c.b16 %v4915, %v4907
        %v5508 = vpack.c.b16 %v4916, %v4908
        %v5509 = vpack.c.b16 %v4917, %v4909
        %v5510 = vpack.c.b16 %v4918, %v4910
        %v5511 = vpack.c.b16 %v4927, %v4919
        %v5512 = vpack.c.b16 %v4928, %v4920
        %v5513 = vpack.c.b16 %v4929, %v4921
        %v5514 = vpack.c.b16 %v4930, %v4922
        %v5515 = vpack.c.b16 %v4931, %v4923
        %v5516 = vpack.c.b16 %v4932, %v4924
        %v5517 = vpack.c.b16 %v4933, %v4925
        %v5518 = vpack.c.b16 %v4934, %v4926
        %v5519 = vpack.c.b16 %v4943, %v4935
        %v5520 = vpack.c.b16 %v4944, %v4936
        %v5521 = vpack.c.b16 %v4945, %v4937
        %v5522 = vpack.c.b16 %v4946, %v4938
        %v5523 = vpack.c.b16 %v4947, %v4939
        %v5524 = vpack.c.b16 %v4948, %v4940
        %v5525 = vpack.c.b16 %v4949, %v4941
        %v5526 = vpack.c.b16 %v4950, %v4942
        %6103 = vmatprep.subr.bf16.mxu0 %v4952
        %6104 = vmatpush1.bf16.msra.mxu0 %v4951
        %6105 = vmatprep.subr.bf16.mxu0 %v4960
        %6106 = vmatpush1.bf16.msra.mxu0 %v4959
        %6107 = vmatprep.subr.bf16.mxu0 %v4968
        %6108 = vmatpush1.bf16.msra.mxu0 %v4967
        %6109 = vmatprep.subr.bf16.mxu0 %v4976
        %6110 = vmatpush1.bf16.msra.mxu0 %v4975
        %6111 = vmatprep.subr.bf16.mxu0 %v4984
        %6112 = vmatpush1.bf16.msra.mxu0 %v4983
        %6113 = vmatprep.subr.bf16.mxu0 %v4992
        %6114 = vmatpush1.bf16.msra.mxu0 %v4991
        %6115 = vmatprep.subr.bf16.mxu0 %v5000
        %6116 = vmatpush1.bf16.msra.mxu0 %v4999
        %6117 = vmatprep.subr.bf16.mxu0 %v5008
        %6118 = vmatpush1.bf16.msra.mxu0 %v5007
        %6119 = vmatprep.subr.bf16.mxu0 %v5016
        %6120 = vmatpush1.bf16.msra.mxu0 %v5015
        %6121 = vmatprep.subr.bf16.mxu0 %v5024
        %6122 = vmatpush1.bf16.msra.mxu0 %v5023
        %6123 = vmatprep.subr.bf16.mxu0 %v5032
        %6124 = vmatpush1.bf16.msra.mxu0 %v5031
        %6125 = vmatprep.subr.bf16.mxu0 %v5040
        %6126 = vmatpush1.bf16.msra.mxu0 %v5039
        %6127 = vmatprep.subr.bf16.mxu0 %v5048
        %6128 = vmatpush1.bf16.msra.mxu0 %v5047
        %6129 = vmatprep.subr.bf16.mxu0 %v5056
        %6130 = vmatpush1.bf16.msra.mxu0 %v5055
        %6131 = vmatprep.subr.bf16.mxu0 %v5064
        %6132 = vmatpush1.bf16.msra.mxu0 %v5063
        %6133 = vmatprep.subr.bf16.mxu0 %v5072
        %6134 = vmatpush1.bf16.msra.mxu0 %v5071
        %6135 = vmatprep.mubr.bf16.mxu0 %v2542
        %6136 = vmatmul.mubr.bf16.gmra.mrb[0].mxu0 %v2541
        %v6137 = vpop.f32.mrb[0].mxu0
        %v6138 = vadd.f32 %v3186, %v6137
        %v6139 = vpop.f32.mrb[0].mxu0
        %v6140 = vadd.f32 %v3190, %v6139
        %v6141 = vpop.f32.mrb[0].mxu0
        %v6142 = vadd.f32 %v3186, %v6141
        %v6143 = vpop.f32.mrb[0].mxu0
        %v6144 = vadd.f32 %v3190, %v6143
        %6145 = vmatprep.mubr.bf16.mxu0 %v2550
        %6146 = vmatmul.mubr.bf16.gmra.mrb[0].mxu0 %v2549
        %v6147 = vpop.f32.mrb[0].mxu0
        %v6148 = vadd.f32 %v3186, %v6147
        %v6149 = vpop.f32.mrb[0].mxu0
        %v6150 = vadd.f32 %v3190, %v6149
        %v6151 = vpop.f32.mrb[0].mxu0
        %v6152 = vadd.f32 %v3186, %v6151
        %v6153 = vpop.f32.mrb[0].mxu0
        %v6154 = vadd.f32 %v3190, %v6153
        %6155 = vmatprep.mubr.bf16.mxu0 %v2558
        %6156 = vmatmul.mubr.bf16.gmra.mrb[0].mxu0 %v2557
        %v6157 = vpop.f32.mrb[0].mxu0
        %v6158 = vadd.f32 %v3186, %v6157
        %v6159 = vpop.f32.mrb[0].mxu0
        %v6160 = vadd.f32 %v3190, %v6159
        %v6161 = vpop.f32.mrb[0].mxu0
        %v6162 = vadd.f32 %v3186, %v6161
        %v6163 = vpop.f32.mrb[0].mxu0
        %v6164 = vadd.f32 %v3190, %v6163
        %6165 = vmatprep.mubr.bf16.mxu0 %v2566
        %6166 = vmatmul.mubr.bf16.gmra.mrb[0].mxu0 %v2565
        %v6167 = vpop.f32.mrb[0].mxu0
        %v6168 = vadd.f32 %v3186, %v6167
        %v6169 = vpop.f32.mrb[0].mxu0
        %v6170 = vadd.f32 %v3190, %v6169
        %v6171 = vpop.f32.mrb[0].mxu0
        %v6172 = vadd.f32 %v3186, %v6171
        %v6173 = vpop.f32.mrb[0].mxu0
        %v6174 = vadd.f32 %v3190, %v6173
        %6175 = vmatprep.mubr.bf16.mxu0 %v2574
        %6176 = vmatmul.mubr.bf16.gmra.mrb[0].mxu0 %v2573
        %v6177 = vpop.f32.mrb[0].mxu0
        %v6178 = vadd.f32 %v3186, %v6177
        %v6179 = vpop.f32.mrb[0].mxu0
        %v6180 = vadd.f32 %v3190, %v6179
        %v6181 = vpop.f32.mrb[0].mxu0
        %v6182 = vadd.f32 %v3186, %v6181
        %v6183 = vpop.f32.mrb[0].mxu0
        %v6184 = vadd.f32 %v3190, %v6183
        %6185 = vmatprep.mubr.bf16.mxu0 %v2582
        %6186 = vmatmul.mubr.bf16.gmra.mrb[0].mxu0 %v2581
        %v6187 = vpop.f32.mrb[0].mxu0
        %v6188 = vadd.f32 %v3186, %v6187
        %v6189 = vpop.f32.mrb[0].mxu0
        %v6190 = vadd.f32 %v3190, %v6189
        %v6191 = vpop.f32.mrb[0].mxu0
        %v6192 = vadd.f32 %v3186, %v6191
        %v6193 = vpop.f32.mrb[0].mxu0
        %v6194 = vadd.f32 %v3190, %v6193
        %6195 = vmatprep.mubr.bf16.mxu0 %v2590
        %6196 = vmatmul.mubr.bf16.gmra.mrb[0].mxu0 %v2589
        %v6197 = vpop.f32.mrb[0].mxu0
        %v6198 = vadd.f32 %v3186, %v6197
        %v6199 = vpop.f32.mrb[0].mxu0
        %v6200 = vadd.f32 %v3190, %v6199
        %v6201 = vpop.f32.mrb[0].mxu0
        %v6202 = vadd.f32 %v3186, %v6201
        %v6203 = vpop.f32.mrb[0].mxu0
        %v6204 = vadd.f32 %v3190, %v6203
        %6205 = vmatprep.mubr.bf16.mxu0 %v2598
        %6206 = vmatmul.mubr.bf16.gmra.mrb[0].mxu0 %v2597
        %v6207 = vpop.f32.mrb[0].mxu0
        %v6208 = vadd.f32 %v3186, %v6207
        %v6209 = vpop.f32.mrb[0].mxu0
        %v6210 = vadd.f32 %v3190, %v6209
        %v6211 = vpop.f32.mrb[0].mxu0
        %v6212 = vadd.f32 %v3186, %v6211
        %v6213 = vpop.f32.mrb[0].mxu0
        %v6214 = vadd.f32 %v3190, %v6213
        %6215 = vdwg.mxu0
        %6216 = vmatprep.subr.bf16.mxu0 %v5080
        %6217 = vmatpush1.bf16.msra.mxu0 %v5079
        %6218 = vmatprep.subr.bf16.mxu0 %v5088
        %6219 = vmatpush1.bf16.msra.mxu0 %v5087
        %6220 = vmatprep.subr.bf16.mxu0 %v5096
        %6221 = vmatpush1.bf16.msra.mxu0 %v5095
        %6222 = vmatprep.subr.bf16.mxu0 %v5104
        %6223 = vmatpush1.bf16.msra.mxu0 %v5103
        %6224 = vmatprep.subr.bf16.mxu0 %v5112
        %6225 = vmatpush1.bf16.msra.mxu0 %v5111
        %6226 = vmatprep.subr.bf16.mxu0 %v5120
        %6227 = vmatpush1.bf16.msra.mxu0 %v5119
        %6228 = vmatprep.subr.bf16.mxu0 %v5128
        %6229 = vmatpush1.bf16.msra.mxu0 %v5127
        %6230 = vmatprep.subr.bf16.mxu0 %v5136
        %6231 = vmatpush1.bf16.msra.mxu0 %v5135
        %6232 = vmatprep.subr.bf16.mxu0 %v5144
        %6233 = vmatpush1.bf16.msra.mxu0 %v5143
        %6234 = vmatprep.subr.bf16.mxu0 %v5152
        %6235 = vmatpush1.bf16.msra.mxu0 %v5151
        %6236 = vmatprep.subr.bf16.mxu0 %v5160
        %6237 = vmatpush1.bf16.msra.mxu0 %v5159
        %6238 = vmatprep.subr.bf16.mxu0 %v5168
        %6239 = vmatpush1.bf16.msra.mxu0 %v5167
        %6240 = vmatprep.subr.bf16.mxu0 %v5176
        %6241 = vmatpush1.bf16.msra.mxu0 %v5175
        %6242 = vmatprep.subr.bf16.mxu0 %v5184
        %6243 = vmatpush1.bf16.msra.mxu0 %v5183
        %6244 = vmatprep.subr.bf16.mxu0 %v5192
        %6245 = vmatpush1.bf16.msra.mxu0 %v5191
        %6246 = vmatprep.subr.bf16.mxu0 %v5200
        %6247 = vmatpush1.bf16.msra.mxu0 %v5199
        %6248 = vmatprep.mubr.bf16.mxu0 %v2544
        %6249 = vmatmul.mubr.bf16.gmra.mrb[0].mxu0 %v2543
        %v6250 = vpop.f32.mrb[0].mxu0
        %v6251 = vadd.f32 %v6138, %v6250
        %v6252 = vpop.f32.mrb[0].mxu0
        %v6253 = vadd.f32 %v6140, %v6252
        %v6254 = vpop.f32.mrb[0].mxu0
        %v6255 = vadd.f32 %v6142, %v6254
        %v6256 = vpop.f32.mrb[0].mxu0
        %v6257 = vadd.f32 %v6144, %v6256
        %6258 = vmatprep.mubr.bf16.mxu0 %v2552
        %6259 = vmatmul.mubr.bf16.gmra.mrb[0].mxu0 %v2551
        %v6260 = vpop.f32.mrb[0].mxu0
        %v6261 = vadd.f32 %v6148, %v6260
        %v6262 = vpop.f32.mrb[0].mxu0
        %v6263 = vadd.f32 %v6150, %v6262
        %v6264 = vpop.f32.mrb[0].mxu0
        %v6265 = vadd.f32 %v6152, %v6264
        %v6266 = vpop.f32.mrb[0].mxu0
        %v6267 = vadd.f32 %v6154, %v6266
        %6268 = vmatprep.mubr.bf16.mxu0 %v2560
        %6269 = vmatmul.mubr.bf16.gmra.mrb[0].mxu0 %v2559
        %v6270 = vpop.f32.mrb[0].mxu0
        %v6271 = vadd.f32 %v6158, %v6270
        %v6272 = vpop.f32.mrb[0].mxu0
        %v6273 = vadd.f32 %v6160, %v6272
        %v6274 = vpop.f32.mrb[0].mxu0
        %v6275 = vadd.f32 %v6162, %v6274
        %v6276 = vpop.f32.mrb[0].mxu0
        %v6277 = vadd.f32 %v6164, %v6276
        %6278 = vmatprep.mubr.bf16.mxu0 %v2568
        %6279 = vmatmul.mubr.bf16.gmra.mrb[0].mxu0 %v2567
        %v6280 = vpop.f32.mrb[0].mxu0
        %v6281 = vadd.f32 %v6168, %v6280
        %v6282 = vpop.f32.mrb[0].mxu0
        %v6283 = vadd.f32 %v6170, %v6282
        %v6284 = vpop.f32.mrb[0].mxu0
        %v6285 = vadd.f32 %v6172, %v6284
        %v6286 = vpop.f32.mrb[0].mxu0
        %v6287 = vadd.f32 %v6174, %v6286
        %6288 = vmatprep.mubr.bf16.mxu0 %v2576
        %6289 = vmatmul.mubr.bf16.gmra.mrb[0].mxu0 %v2575
        %v6290 = vpop.f32.mrb[0].mxu0
        %v6291 = vadd.f32 %v6178, %v6290
        %v6292 = vpop.f32.mrb[0].mxu0
        %v6293 = vadd.f32 %v6180, %v6292
        %v6294 = vpop.f32.mrb[0].mxu0
        %v6295 = vadd.f32 %v6182, %v6294
        %v6296 = vpop.f32.mrb[0].mxu0
        %v6297 = vadd.f32 %v6184, %v6296
        %6298 = vmatprep.mubr.bf16.mxu0 %v2584
        %6299 = vmatmul.mubr.bf16.gmra.mrb[0].mxu0 %v2583
        %v6300 = vpop.f32.mrb[0].mxu0
        %v6301 = vadd.f32 %v6188, %v6300
        %v6302 = vpop.f32.mrb[0].mxu0
        %v6303 = vadd.f32 %v6190, %v6302
        %v6304 = vpop.f32.mrb[0].mxu0
        %v6305 = vadd.f32 %v6192, %v6304
        %v6306 = vpop.f32.mrb[0].mxu0
        %v6307 = vadd.f32 %v6194, %v6306
        %6308 = vmatprep.mubr.bf16.mxu0 %v2592
        %6309 = vmatmul.mubr.bf16.gmra.mrb[0].mxu0 %v2591
        %v6310 = vpop.f32.mrb[0].mxu0
        %v6311 = vadd.f32 %v6198, %v6310
        %v6312 = vpop.f32.mrb[0].mxu0
        %v6313 = vadd.f32 %v6200, %v6312
        %v6314 = vpop.f32.mrb[0].mxu0
        %v6315 = vadd.f32 %v6202, %v6314
        %v6316 = vpop.f32.mrb[0].mxu0
        %v6317 = vadd.f32 %v6204, %v6316
        %6318 = vmatprep.mubr.bf16.mxu0 %v2600
        %6319 = vmatmul.mubr.bf16.gmra.mrb[0].mxu0 %v2599
        %v6320 = vpop.f32.mrb[0].mxu0
        %v6321 = vadd.f32 %v6208, %v6320
        %v6322 = vpop.f32.mrb[0].mxu0
        %v6323 = vadd.f32 %v6210, %v6322
        %v6324 = vpop.f32.mrb[0].mxu0
        %v6325 = vadd.f32 %v6212, %v6324
        %v6326 = vpop.f32.mrb[0].mxu0
        %v6327 = vadd.f32 %v6214, %v6326
        %6328 = vdwg.mxu0
        %6329 = vmatprep.subr.bf16.mxu0 %v5208
        %6330 = vmatpush1.bf16.msra.mxu0 %v5207
        %6331 = vmatprep.subr.bf16.mxu0 %v5216
        %6332 = vmatpush1.bf16.msra.mxu0 %v5215
        %6333 = vmatprep.subr.bf16.mxu0 %v5224
        %6334 = vmatpush1.bf16.msra.mxu0 %v5223
        %6335 = vmatprep.subr.bf16.mxu0 %v5232
        %6336 = vmatpush1.bf16.msra.mxu0 %v5231
        %6337 = vmatprep.subr.bf16.mxu0 %v5240
        %6338 = vmatpush1.bf16.msra.mxu0 %v5239
        %6339 = vmatprep.subr.bf16.mxu0 %v5248
        %6340 = vmatpush1.bf16.msra.mxu0 %v5247
        %6341 = vmatprep.subr.bf16.mxu0 %v5256
        %6342 = vmatpush1.bf16.msra.mxu0 %v5255
        %6343 = vmatprep.subr.bf16.mxu0 %v5264
        %6344 = vmatpush1.bf16.msra.mxu0 %v5263
        %6345 = vmatprep.subr.bf16.mxu0 %v5272
        %6346 = vmatpush1.bf16.msra.mxu0 %v5271
        %6347 = vmatprep.subr.bf16.mxu0 %v5280
        %6348 = vmatpush1.bf16.msra.mxu0 %v5279
        %6349 = vmatprep.subr.bf16.mxu0 %v5288
        %6350 = vmatpush1.bf16.msra.mxu0 %v5287
        %6351 = vmatprep.subr.bf16.mxu0 %v5296
        %6352 = vmatpush1.bf16.msra.mxu0 %v5295
        %6353 = vmatprep.subr.bf16.mxu0 %v5304
        %6354 = vmatpush1.bf16.msra.mxu0 %v5303
        %6355 = vmatprep.subr.bf16.mxu0 %v5312
        %6356 = vmatpush1.bf16.msra.mxu0 %v5311
        %6357 = vmatprep.subr.bf16.mxu0 %v5320
        %6358 = vmatpush1.bf16.msra.mxu0 %v5319
        %6359 = vmatprep.subr.bf16.mxu0 %v5328
        %6360 = vmatpush1.bf16.msra.mxu0 %v5327
        %6361 = vmatprep.mubr.bf16.mxu0 %v2546
        %6362 = vmatmul.mubr.bf16.gmra.mrb[0].mxu0 %v2545
        %v6363 = vpop.f32.mrb[0].mxu0
        %v6364 = vadd.f32 %v6251, %v6363
        %v6365 = vpop.f32.mrb[0].mxu0
        %v6366 = vadd.f32 %v6253, %v6365
        %v6367 = vpop.f32.mrb[0].mxu0
        %v6368 = vadd.f32 %v6255, %v6367
        %v6369 = vpop.f32.mrb[0].mxu0
        %v6370 = vadd.f32 %v6257, %v6369
        %6371 = vmatprep.mubr.bf16.mxu0 %v2554
        %6372 = vmatmul.mubr.bf16.gmra.mrb[0].mxu0 %v2553
        %v6373 = vpop.f32.mrb[0].mxu0
        %v6374 = vadd.f32 %v6261, %v6373
        %v6375 = vpop.f32.mrb[0].mxu0
        %v6376 = vadd.f32 %v6263, %v6375
        %v6377 = vpop.f32.mrb[0].mxu0
        %v6378 = vadd.f32 %v6265, %v6377
        %v6379 = vpop.f32.mrb[0].mxu0
        %v6380 = vadd.f32 %v6267, %v6379
        %6381 = vmatprep.mubr.bf16.mxu0 %v2562
        %6382 = vmatmul.mubr.bf16.gmra.mrb[0].mxu0 %v2561
        %v6383 = vpop.f32.mrb[0].mxu0
        %v6384 = vadd.f32 %v6271, %v6383
        %v6385 = vpop.f32.mrb[0].mxu0
        %v6386 = vadd.f32 %v6273, %v6385
        %v6387 = vpop.f32.mrb[0].mxu0
        %v6388 = vadd.f32 %v6275, %v6387
        %v6389 = vpop.f32.mrb[0].mxu0
        %v6390 = vadd.f32 %v6277, %v6389
        %6391 = vmatprep.mubr.bf16.mxu0 %v2570
        %6392 = vmatmul.mubr.bf16.gmra.mrb[0].mxu0 %v2569
        %v6393 = vpop.f32.mrb[0].mxu0
        %v6394 = vadd.f32 %v6281, %v6393
        %v6395 = vpop.f32.mrb[0].mxu0
        %v6396 = vadd.f32 %v6283, %v6395
        %v6397 = vpop.f32.mrb[0].mxu0
        %v6398 = vadd.f32 %v6285, %v6397
        %v6399 = vpop.f32.mrb[0].mxu0
        %v6400 = vadd.f32 %v6287, %v6399
        %6401 = vmatprep.mubr.bf16.mxu0 %v2578
        %6402 = vmatmul.mubr.bf16.gmra.mrb[0].mxu0 %v2577
        %v6403 = vpop.f32.mrb[0].mxu0
        %v6404 = vadd.f32 %v6291, %v6403
        %v6405 = vpop.f32.mrb[0].mxu0
        %v6406 = vadd.f32 %v6293, %v6405
        %v6407 = vpop.f32.mrb[0].mxu0
        %v6408 = vadd.f32 %v6295, %v6407
        %v6409 = vpop.f32.mrb[0].mxu0
        %v6410 = vadd.f32 %v6297, %v6409
        %6411 = vmatprep.mubr.bf16.mxu0 %v2586
        %6412 = vmatmul.mubr.bf16.gmra.mrb[0].mxu0 %v2585
        %v6413 = vpop.f32.mrb[0].mxu0
        %v6414 = vadd.f32 %v6301, %v6413
        %v6415 = vpop.f32.mrb[0].mxu0
        %v6416 = vadd.f32 %v6303, %v6415
        %v6417 = vpop.f32.mrb[0].mxu0
        %v6418 = vadd.f32 %v6305, %v6417
        %v6419 = vpop.f32.mrb[0].mxu0
        %v6420 = vadd.f32 %v6307, %v6419
        %6421 = vmatprep.mubr.bf16.mxu0 %v2594
        %6422 = vmatmul.mubr.bf16.gmra.mrb[0].mxu0 %v2593
        %v6423 = vpop.f32.mrb[0].mxu0
        %v6424 = vadd.f32 %v6311, %v6423
        %v6425 = vpop.f32.mrb[0].mxu0
        %v6426 = vadd.f32 %v6313, %v6425
        %v6427 = vpop.f32.mrb[0].mxu0
        %v6428 = vadd.f32 %v6315, %v6427
        %v6429 = vpop.f32.mrb[0].mxu0
        %v6430 = vadd.f32 %v6317, %v6429
        %6431 = vmatprep.mubr.bf16.mxu0 %v2602
        %6432 = vmatmul.mubr.bf16.gmra.mrb[0].mxu0 %v2601
        %v6433 = vpop.f32.mrb[0].mxu0
        %v6434 = vadd.f32 %v6321, %v6433
        %v6435 = vpop.f32.mrb[0].mxu0
        %v6436 = vadd.f32 %v6323, %v6435
        %v6437 = vpop.f32.mrb[0].mxu0
        %v6438 = vadd.f32 %v6325, %v6437
        %v6439 = vpop.f32.mrb[0].mxu0
        %v6440 = vadd.f32 %v6327, %v6439
        %6441 = vdwg.mxu0
        %6442 = vmatprep.subr.bf16.mxu0 %v5336
        %6443 = vmatpush1.bf16.msra.mxu0 %v5335
        %6444 = vmatprep.subr.bf16.mxu0 %v5344
        %6445 = vmatpush1.bf16.msra.mxu0 %v5343
        %6446 = vmatprep.subr.bf16.mxu0 %v5352
        %6447 = vmatpush1.bf16.msra.mxu0 %v5351
        %6448 = vmatprep.subr.bf16.mxu0 %v5360
        %6449 = vmatpush1.bf16.msra.mxu0 %v5359
        %6450 = vmatprep.subr.bf16.mxu0 %v5368
        %6451 = vmatpush1.bf16.msra.mxu0 %v5367
        %6452 = vmatprep.subr.bf16.mxu0 %v5376
        %6453 = vmatpush1.bf16.msra.mxu0 %v5375
        %6454 = vmatprep.subr.bf16.mxu0 %v5384
        %6455 = vmatpush1.bf16.msra.mxu0 %v5383
        %6456 = vmatprep.subr.bf16.mxu0 %v5392
        %6457 = vmatpush1.bf16.msra.mxu0 %v5391
        %6458 = vmatprep.subr.bf16.mxu0 %v5400
        %6459 = vmatpush1.bf16.msra.mxu0 %v5399
        %6460 = vmatprep.subr.bf16.mxu0 %v5408
        %6461 = vmatpush1.bf16.msra.mxu0 %v5407
        %6462 = vmatprep.subr.bf16.mxu0 %v5416
        %6463 = vmatpush1.bf16.msra.mxu0 %v5415
        %6464 = vmatprep.subr.bf16.mxu0 %v5424
        %6465 = vmatpush1.bf16.msra.mxu0 %v5423
        %6466 = vmatprep.subr.bf16.mxu0 %v5432
        %6467 = vmatpush1.bf16.msra.mxu0 %v5431
        %6468 = vmatprep.subr.bf16.mxu0 %v5440
        %6469 = vmatpush1.bf16.msra.mxu0 %v5439
        %6470 = vmatprep.subr.bf16.mxu0 %v5448
        %6471 = vmatpush1.bf16.msra.mxu0 %v5447
        %6472 = vmatprep.subr.bf16.mxu0 %v5456
        %6473 = vmatpush1.bf16.msra.mxu0 %v5455
        %6474 = vmatprep.mubr.bf16.mxu0 %v2548
        %6475 = vmatmul.mubr.bf16.gmra.mrb[0].mxu0 %v2547
        %v6476 = vpop.f32.mrb[0].mxu0
        %v6477 = vadd.f32 %v6364, %v6476
        %v6478 = vpop.f32.mrb[0].mxu0
        %v6479 = vadd.f32 %v6366, %v6478
        %v6480 = vpop.f32.mrb[0].mxu0
        %v6481 = vadd.f32 %v6368, %v6480
        %v6482 = vpop.f32.mrb[0].mxu0
        %v6483 = vadd.f32 %v6370, %v6482
        %6484 = vmatprep.mubr.bf16.mxu0 %v2556
        %6485 = vmatmul.mubr.bf16.gmra.mrb[0].mxu0 %v2555
        %v6486 = vpop.f32.mrb[0].mxu0
        %v6487 = vadd.f32 %v6374, %v6486
        %v6488 = vpop.f32.mrb[0].mxu0
        %v6489 = vadd.f32 %v6376, %v6488
        %v6490 = vpop.f32.mrb[0].mxu0
        %v6491 = vadd.f32 %v6378, %v6490
        %v6492 = vpop.f32.mrb[0].mxu0
        %v6493 = vadd.f32 %v6380, %v6492
        %6494 = vmatprep.mubr.bf16.mxu0 %v2564
        %6495 = vmatmul.mubr.bf16.gmra.mrb[0].mxu0 %v2563
        %v6496 = vpop.f32.mrb[0].mxu0
        %v6497 = vadd.f32 %v6384, %v6496
        %v6498 = vpop.f32.mrb[0].mxu0
        %v6499 = vadd.f32 %v6386, %v6498
        %v6500 = vpop.f32.mrb[0].mxu0
        %v6501 = vadd.f32 %v6388, %v6500
        %v6502 = vpop.f32.mrb[0].mxu0
        %v6503 = vadd.f32 %v6390, %v6502
        %6504 = vmatprep.mubr.bf16.mxu0 %v2572
        %6505 = vmatmul.mubr.bf16.gmra.mrb[0].mxu0 %v2571
        %v6506 = vpop.f32.mrb[0].mxu0
        %v6507 = vadd.f32 %v6394, %v6506
        %v6508 = vpop.f32.mrb[0].mxu0
        %v6509 = vadd.f32 %v6396, %v6508
        %v6510 = vpop.f32.mrb[0].mxu0
        %v6511 = vadd.f32 %v6398, %v6510
        %v6512 = vpop.f32.mrb[0].mxu0
        %v6513 = vadd.f32 %v6400, %v6512
        %6514 = vmatprep.mubr.bf16.mxu0 %v2580
        %6515 = vmatmul.mubr.bf16.gmra.mrb[0].mxu0 %v2579
        %v6516 = vpop.f32.mrb[0].mxu0
        %v6517 = vadd.f32 %v6404, %v6516
        %v6518 = vpop.f32.mrb[0].mxu0
        %v6519 = vadd.f32 %v6406, %v6518
        %v6520 = vpop.f32.mrb[0].mxu0
        %v6521 = vadd.f32 %v6408, %v6520
        %v6522 = vpop.f32.mrb[0].mxu0
        %v6523 = vadd.f32 %v6410, %v6522
        %6524 = vmatprep.mubr.bf16.mxu0 %v2588
        %6525 = vmatmul.mubr.bf16.gmra.mrb[0].mxu0 %v2587
        %v6526 = vpop.f32.mrb[0].mxu0
        %v6527 = vadd.f32 %v6414, %v6526
        %v6528 = vpop.f32.mrb[0].mxu0
        %v6529 = vadd.f32 %v6416, %v6528
        %v6530 = vpop.f32.mrb[0].mxu0
        %v6531 = vadd.f32 %v6418, %v6530
        %v6532 = vpop.f32.mrb[0].mxu0
        %v6533 = vadd.f32 %v6420, %v6532
        %6534 = vmatprep.mubr.bf16.mxu0 %v2596
        %6535 = vmatmul.mubr.bf16.gmra.mrb[0].mxu0 %v2595
        %v6536 = vpop.f32.mrb[0].mxu0
        %v6537 = vadd.f32 %v6424, %v6536
        %v6538 = vpop.f32.mrb[0].mxu0
        %v6539 = vadd.f32 %v6426, %v6538
        %v6540 = vpop.f32.mrb[0].mxu0
        %v6541 = vadd.f32 %v6428, %v6540
        %v6542 = vpop.f32.mrb[0].mxu0
        %v6543 = vadd.f32 %v6430, %v6542
        %6544 = vmatprep.mubr.bf16.mxu0 %v2604
        %6545 = vmatmul.mubr.bf16.gmra.mrb[0].mxu0 %v2603
        %v6546 = vpop.f32.mrb[0].mxu0
        %v6547 = vadd.f32 %v6434, %v6546
        %v6548 = vpop.f32.mrb[0].mxu0
        %v6549 = vadd.f32 %v6436, %v6548
        %v6550 = vpop.f32.mrb[0].mxu0
        %v6551 = vadd.f32 %v6438, %v6550
        %v6552 = vpop.f32.mrb[0].mxu0
        %v6553 = vadd.f32 %v6440, %v6552
        %6554 = vdwg.mxu0
        %6555 = vmatprep.subr.bf16.mxu0 %v5464
        %6556 = vmatpush1.bf16.msra.mxu0 %v5463
        %6557 = vmatprep.subr.bf16.mxu0 %v5472
        %6558 = vmatpush1.bf16.msra.mxu0 %v5471
        %6559 = vmatprep.subr.bf16.mxu0 %v5480
        %6560 = vmatpush1.bf16.msra.mxu0 %v5479
        %6561 = vmatprep.subr.bf16.mxu0 %v5488
        %6562 = vmatpush1.bf16.msra.mxu0 %v5487
        %6563 = vmatprep.subr.bf16.mxu0 %v5496
        %6564 = vmatpush1.bf16.msra.mxu0 %v5495
        %6565 = vmatprep.subr.bf16.mxu0 %v5504
        %6566 = vmatpush1.bf16.msra.mxu0 %v5503
        %6567 = vmatprep.subr.bf16.mxu0 %v5512
        %6568 = vmatpush1.bf16.msra.mxu0 %v5511
        %6569 = vmatprep.subr.bf16.mxu0 %v5520
        %6570 = vmatpush1.bf16.msra.mxu0 %v5519
        %6571 = vmatprep.subr.bf16.mxu0 0
        %6572 = vmatpush1.bf16.msra.mxu0 0
        %6573 = vmatprep.subr.bf16.mxu0 0
        %6574 = vmatpush1.bf16.msra.mxu0 0
        %6575 = vmatprep.subr.bf16.mxu0 0
        %6576 = vmatpush1.bf16.msra.mxu0 0
        %6577 = vmatprep.subr.bf16.mxu0 0
        %6578 = vmatpush1.bf16.msra.mxu0 0
        %6579 = vmatprep.subr.bf16.mxu0 0
        %6580 = vmatpush1.bf16.msra.mxu0 0
        %6581 = vmatprep.subr.bf16.mxu0 0
        %6582 = vmatpush1.bf16.msra.mxu0 0
        %6583 = vmatprep.subr.bf16.mxu0 0
        %6584 = vmatpush1.bf16.msra.mxu0 0
        %6585 = vmatprep.subr.bf16.mxu0 0
        %6586 = vmatpush1.bf16.msra.mxu0 0
        %6587 = vmatprep.mubr.bf16.mxu0 0
        %6588 = vmatmul.mubr.bf16.gmra.mrb[0].mxu0 %v1527
        %v6589 = vpop.f32.mrb[0].mxu0
        %v6590 = vadd.f32 %v6477, %v6589
        %v6591 = vpop.f32.mrb[0].mxu0
        %v6592 = vadd.f32 %v6479, %v6591
        %v6593 = vpop.f32.mrb[0].mxu0
        %v6594 = vadd.f32 %v6481, %v6593
        %v6595 = vpop.f32.mrb[0].mxu0
        %v6596 = vadd.f32 %v6483, %v6595
        %6597 = vmatprep.mubr.bf16.mxu0 0
        %6598 = vmatmul.mubr.bf16.gmra.mrb[0].mxu0 %v1528
        %v6599 = vpop.f32.mrb[0].mxu0
        %v6600 = vadd.f32 %v6487, %v6599
        %v6601 = vpop.f32.mrb[0].mxu0
        %v6602 = vadd.f32 %v6489, %v6601
        %v6603 = vpop.f32.mrb[0].mxu0
        %v6604 = vadd.f32 %v6491, %v6603
        %v6605 = vpop.f32.mrb[0].mxu0
        %v6606 = vadd.f32 %v6493, %v6605
        %6607 = vmatprep.mubr.bf16.mxu0 0
        %6608 = vmatmul.mubr.bf16.gmra.mrb[0].mxu0 %v1529
        %v6609 = vpop.f32.mrb[0].mxu0
        %v6610 = vadd.f32 %v6497, %v6609
        %v6611 = vpop.f32.mrb[0].mxu0
        %v6612 = vadd.f32 %v6499, %v6611
        %v6613 = vpop.f32.mrb[0].mxu0
        %v6614 = vadd.f32 %v6501, %v6613
        %v6615 = vpop.f32.mrb[0].mxu0
        %v6616 = vadd.f32 %v6503, %v6615
        %6617 = vmatprep.mubr.bf16.mxu0 0
        %6618 = vmatmul.mubr.bf16.gmra.mrb[0].mxu0 %v1530
        %v6619 = vpop.f32.mrb[0].mxu0
        %v6620 = vadd.f32 %v6507, %v6619
        %v6621 = vpop.f32.mrb[0].mxu0
        %v6622 = vadd.f32 %v6509, %v6621
        %v6623 = vpop.f32.mrb[0].mxu0
        %v6624 = vadd.f32 %v6511, %v6623
        %v6625 = vpop.f32.mrb[0].mxu0
        %v6626 = vadd.f32 %v6513, %v6625
        %6627 = vmatprep.mubr.bf16.mxu0 0
        %6628 = vmatmul.mubr.bf16.gmra.mrb[0].mxu0 %v1531
        %v6629 = vpop.f32.mrb[0].mxu0
        %v6630 = vadd.f32 %v6517, %v6629
        %v6631 = vpop.f32.mrb[0].mxu0
        %v6632 = vadd.f32 %v6519, %v6631
        %v6633 = vpop.f32.mrb[0].mxu0
        %v6634 = vadd.f32 %v6521, %v6633
        %v6635 = vpop.f32.mrb[0].mxu0
        %v6636 = vadd.f32 %v6523, %v6635
        %6637 = vmatprep.mubr.bf16.mxu0 0
        %6638 = vmatmul.mubr.bf16.gmra.mrb[0].mxu0 %v1532
        %v6639 = vpop.f32.mrb[0].mxu0
        %v6640 = vadd.f32 %v6527, %v6639
        %v6641 = vpop.f32.mrb[0].mxu0
        %v6642 = vadd.f32 %v6529, %v6641
        %v6643 = vpop.f32.mrb[0].mxu0
        %v6644 = vadd.f32 %v6531, %v6643
        %v6645 = vpop.f32.mrb[0].mxu0
        %v6646 = vadd.f32 %v6533, %v6645
        %6647 = vmatprep.mubr.bf16.mxu0 0
        %6648 = vmatmul.mubr.bf16.gmra.mrb[0].mxu0 %v1533
        %v6649 = vpop.f32.mrb[0].mxu0
        %v6650 = vadd.f32 %v6537, %v6649
        %v6651 = vpop.f32.mrb[0].mxu0
        %v6652 = vadd.f32 %v6539, %v6651
        %v6653 = vpop.f32.mrb[0].mxu0
        %v6654 = vadd.f32 %v6541, %v6653
        %v6655 = vpop.f32.mrb[0].mxu0
        %v6656 = vadd.f32 %v6543, %v6655
        %6657 = vmatprep.mubr.bf16.mxu0 0
        %6658 = vmatmul.mubr.bf16.gmra.mrb[0].mxu0 %v1534
        %v6659 = vpop.f32.mrb[0].mxu0
        %v6660 = vadd.f32 %v6547, %v6659
        %v6661 = vpop.f32.mrb[0].mxu0
        %v6662 = vadd.f32 %v6549, %v6661
        %v6663 = vpop.f32.mrb[0].mxu0
        %v6664 = vadd.f32 %v6551, %v6663
        %v6665 = vpop.f32.mrb[0].mxu0
        %v6666 = vadd.f32 %v6553, %v6665
        %6667 = vdwg.mxu0
        %6668 = vmatprep.subr.bf16.mxu0 %v4954
        %6669 = vmatpush1.bf16.msra.mxu0 %v4953
        %6670 = vmatprep.subr.bf16.mxu0 %v4962
        %6671 = vmatpush1.bf16.msra.mxu0 %v4961
        %6672 = vmatprep.subr.bf16.mxu0 %v4970
        %6673 = vmatpush1.bf16.msra.mxu0 %v4969
        %6674 = vmatprep.subr.bf16.mxu0 %v4978
        %6675 = vmatpush1.bf16.msra.mxu0 %v4977
        %6676 = vmatprep.subr.bf16.mxu0 %v4986
        %6677 = vmatpush1.bf16.msra.mxu0 %v4985
        %6678 = vmatprep.subr.bf16.mxu0 %v4994
        %6679 = vmatpush1.bf16.msra.mxu0 %v4993
        %6680 = vmatprep.subr.bf16.mxu0 %v5002
        %6681 = vmatpush1.bf16.msra.mxu0 %v5001
        %6682 = vmatprep.subr.bf16.mxu0 %v5010
        %6683 = vmatpush1.bf16.msra.mxu0 %v5009
        %6684 = vmatprep.subr.bf16.mxu0 %v5018
        %6685 = vmatpush1.bf16.msra.mxu0 %v5017
        %6686 = vmatprep.subr.bf16.mxu0 %v5026
        %6687 = vmatpush1.bf16.msra.mxu0 %v5025
        %6688 = vmatprep.subr.bf16.mxu0 %v5034
        %6689 = vmatpush1.bf16.msra.mxu0 %v5033
        %6690 = vmatprep.subr.bf16.mxu0 %v5042
        %6691 = vmatpush1.bf16.msra.mxu0 %v5041
        %6692 = vmatprep.subr.bf16.mxu0 %v5050
        %6693 = vmatpush1.bf16.msra.mxu0 %v5049
        %6694 = vmatprep.subr.bf16.mxu0 %v5058
        %6695 = vmatpush1.bf16.msra.mxu0 %v5057
        %6696 = vmatprep.subr.bf16.mxu0 %v5066
        %6697 = vmatpush1.bf16.msra.mxu0 %v5065
        %6698 = vmatprep.subr.bf16.mxu0 %v5074
        %6699 = vmatpush1.bf16.msra.mxu0 %v5073
        %6700 = vmatprep.mubr.bf16.mxu0 %v2542
        %6701 = vmatmul.mubr.bf16.gmra.mrb[0].mxu0 %v2541
        %v6702 = vpop.f32.mrb[0].mxu0
        %v6703 = vadd.f32 %v3194, %v6702
        %v6704 = vpop.f32.mrb[0].mxu0
        %v6705 = vadd.f32 %v3198, %v6704
        %v6706 = vpop.f32.mrb[0].mxu0
        %v6707 = vadd.f32 %v3194, %v6706
        %v6708 = vpop.f32.mrb[0].mxu0
        %v6709 = vadd.f32 %v3198, %v6708
        %6710 = vmatprep.mubr.bf16.mxu0 %v2550
        %6711 = vmatmul.mubr.bf16.gmra.mrb[0].mxu0 %v2549
        %v6712 = vpop.f32.mrb[0].mxu0
        %v6713 = vadd.f32 %v3194, %v6712
        %v6714 = vpop.f32.mrb[0].mxu0
        %v6715 = vadd.f32 %v3198, %v6714
        %v6716 = vpop.f32.mrb[0].mxu0
        %v6717 = vadd.f32 %v3194, %v6716
        %v6718 = vpop.f32.mrb[0].mxu0
        %v6719 = vadd.f32 %v3198, %v6718
        %6720 = vmatprep.mubr.bf16.mxu0 %v2558
        %6721 = vmatmul.mubr.bf16.gmra.mrb[0].mxu0 %v2557
        %v6722 = vpop.f32.mrb[0].mxu0
        %v6723 = vadd.f32 %v3194, %v6722
        %v6724 = vpop.f32.mrb[0].mxu0
        %v6725 = vadd.f32 %v3198, %v6724
        %v6726 = vpop.f32.mrb[0].mxu0
        %v6727 = vadd.f32 %v3194, %v6726
        %v6728 = vpop.f32.mrb[0].mxu0
        %v6729 = vadd.f32 %v3198, %v6728
        %6730 = vmatprep.mubr.bf16.mxu0 %v2566
        %6731 = vmatmul.mubr.bf16.gmra.mrb[0].mxu0 %v2565
        %v6732 = vpop.f32.mrb[0].mxu0
        %v6733 = vadd.f32 %v3194, %v6732
        %v6734 = vpop.f32.mrb[0].mxu0
        %v6735 = vadd.f32 %v3198, %v6734
        %v6736 = vpop.f32.mrb[0].mxu0
        %v6737 = vadd.f32 %v3194, %v6736
        %v6738 = vpop.f32.mrb[0].mxu0
        %v6739 = vadd.f32 %v3198, %v6738
        %6740 = vmatprep.mubr.bf16.mxu0 %v2574
        %6741 = vmatmul.mubr.bf16.gmra.mrb[0].mxu0 %v2573
        %v6742 = vpop.f32.mrb[0].mxu0
        %v6743 = vadd.f32 %v3194, %v6742
        %v6744 = vpop.f32.mrb[0].mxu0
        %v6745 = vadd.f32 %v3198, %v6744
        %v6746 = vpop.f32.mrb[0].mxu0
        %v6747 = vadd.f32 %v3194, %v6746
        %v6748 = vpop.f32.mrb[0].mxu0
        %v6749 = vadd.f32 %v3198, %v6748
        %6750 = vmatprep.mubr.bf16.mxu0 %v2582
        %6751 = vmatmul.mubr.bf16.gmra.mrb[0].mxu0 %v2581
        %v6752 = vpop.f32.mrb[0].mxu0
        %v6753 = vadd.f32 %v3194, %v6752
        %v6754 = vpop.f32.mrb[0].mxu0
        %v6755 = vadd.f32 %v3198, %v6754
        %v6756 = vpop.f32.mrb[0].mxu0
        %v6757 = vadd.f32 %v3194, %v6756
        %v6758 = vpop.f32.mrb[0].mxu0
        %v6759 = vadd.f32 %v3198, %v6758
        %6760 = vmatprep.mubr.bf16.mxu0 %v2590
        %6761 = vmatmul.mubr.bf16.gmra.mrb[0].mxu0 %v2589
        %v6762 = vpop.f32.mrb[0].mxu0
        %v6763 = vadd.f32 %v3194, %v6762
        %v6764 = vpop.f32.mrb[0].mxu0
        %v6765 = vadd.f32 %v3198, %v6764
        %v6766 = vpop.f32.mrb[0].mxu0
        %v6767 = vadd.f32 %v3194, %v6766
        %v6768 = vpop.f32.mrb[0].mxu0
        %v6769 = vadd.f32 %v3198, %v6768
        %6770 = vmatprep.mubr.bf16.mxu0 %v2598
        %6771 = vmatmul.mubr.bf16.gmra.mrb[0].mxu0 %v2597
        %v6772 = vpop.f32.mrb[0].mxu0
        %v6773 = vadd.f32 %v3194, %v6772
        %v6774 = vpop.f32.mrb[0].mxu0
        %v6775 = vadd.f32 %v3198, %v6774
        %v6776 = vpop.f32.mrb[0].mxu0
        %v6777 = vadd.f32 %v3194, %v6776
        %v6778 = vpop.f32.mrb[0].mxu0
        %v6779 = vadd.f32 %v3198, %v6778
        %6780 = vdwg.mxu0
        %6781 = vmatprep.subr.bf16.mxu0 %v5082
        %6782 = vmatpush1.bf16.msra.mxu0 %v5081
        %6783 = vmatprep.subr.bf16.mxu0 %v5090
        %6784 = vmatpush1.bf16.msra.mxu0 %v5089
        %6785 = vmatprep.subr.bf16.mxu0 %v5098
        %6786 = vmatpush1.bf16.msra.mxu0 %v5097
        %6787 = vmatprep.subr.bf16.mxu0 %v5106
        %6788 = vmatpush1.bf16.msra.mxu0 %v5105
        %6789 = vmatprep.subr.bf16.mxu0 %v5114
        %6790 = vmatpush1.bf16.msra.mxu0 %v5113
        %6791 = vmatprep.subr.bf16.mxu0 %v5122
        %6792 = vmatpush1.bf16.msra.mxu0 %v5121
        %6793 = vmatprep.subr.bf16.mxu0 %v5130
        %6794 = vmatpush1.bf16.msra.mxu0 %v5129
        %6795 = vmatprep.subr.bf16.mxu0 %v5138
        %6796 = vmatpush1.bf16.msra.mxu0 %v5137
        %6797 = vmatprep.subr.bf16.mxu0 %v5146
        %6798 = vmatpush1.bf16.msra.mxu0 %v5145
        %6799 = vmatprep.subr.bf16.mxu0 %v5154
        %6800 = vmatpush1.bf16.msra.mxu0 %v5153
        %6801 = vmatprep.subr.bf16.mxu0 %v5162
        %6802 = vmatpush1.bf16.msra.mxu0 %v5161
        %6803 = vmatprep.subr.bf16.mxu0 %v5170
        %6804 = vmatpush1.bf16.msra.mxu0 %v5169
        %6805 = vmatprep.subr.bf16.mxu0 %v5178
        %6806 = vmatpush1.bf16.msra.mxu0 %v5177
        %6807 = vmatprep.subr.bf16.mxu0 %v5186
        %6808 = vmatpush1.bf16.msra.mxu0 %v5185
        %6809 = vmatprep.subr.bf16.mxu0 %v5194
        %6810 = vmatpush1.bf16.msra.mxu0 %v5193
        %6811 = vmatprep.subr.bf16.mxu0 %v5202
        %6812 = vmatpush1.bf16.msra.mxu0 %v5201
        %6813 = vmatprep.mubr.bf16.mxu0 %v2544
        %6814 = vmatmul.mubr.bf16.gmra.mrb[0].mxu0 %v2543
        %v6815 = vpop.f32.mrb[0].mxu0
        %v6816 = vadd.f32 %v6703, %v6815
        %v6817 = vpop.f32.mrb[0].mxu0
        %v6818 = vadd.f32 %v6705, %v6817
        %v6819 = vpop.f32.mrb[0].mxu0
        %v6820 = vadd.f32 %v6707, %v6819
        %v6821 = vpop.f32.mrb[0].mxu0
        %v6822 = vadd.f32 %v6709, %v6821
        %6823 = vmatprep.mubr.bf16.mxu0 %v2552
        %6824 = vmatmul.mubr.bf16.gmra.mrb[0].mxu0 %v2551
        %v6825 = vpop.f32.mrb[0].mxu0
        %v6826 = vadd.f32 %v6713, %v6825
        %v6827 = vpop.f32.mrb[0].mxu0
        %v6828 = vadd.f32 %v6715, %v6827
        %v6829 = vpop.f32.mrb[0].mxu0
        %v6830 = vadd.f32 %v6717, %v6829
        %v6831 = vpop.f32.mrb[0].mxu0
        %v6832 = vadd.f32 %v6719, %v6831
        %6833 = vmatprep.mubr.bf16.mxu0 %v2560
        %6834 = vmatmul.mubr.bf16.gmra.mrb[0].mxu0 %v2559
        %v6835 = vpop.f32.mrb[0].mxu0
        %v6836 = vadd.f32 %v6723, %v6835
        %v6837 = vpop.f32.mrb[0].mxu0
        %v6838 = vadd.f32 %v6725, %v6837
        %v6839 = vpop.f32.mrb[0].mxu0
        %v6840 = vadd.f32 %v6727, %v6839
        %v6841 = vpop.f32.mrb[0].mxu0
        %v6842 = vadd.f32 %v6729, %v6841
        %6843 = vmatprep.mubr.bf16.mxu0 %v2568
        %6844 = vmatmul.mubr.bf16.gmra.mrb[0].mxu0 %v2567
        %v6845 = vpop.f32.mrb[0].mxu0
        %v6846 = vadd.f32 %v6733, %v6845
        %v6847 = vpop.f32.mrb[0].mxu0
        %v6848 = vadd.f32 %v6735, %v6847
        %v6849 = vpop.f32.mrb[0].mxu0
        %v6850 = vadd.f32 %v6737, %v6849
        %v6851 = vpop.f32.mrb[0].mxu0
        %v6852 = vadd.f32 %v6739, %v6851
        %6853 = vmatprep.mubr.bf16.mxu0 %v2576
        %6854 = vmatmul.mubr.bf16.gmra.mrb[0].mxu0 %v2575
        %v6855 = vpop.f32.mrb[0].mxu0
        %v6856 = vadd.f32 %v6743, %v6855
        %v6857 = vpop.f32.mrb[0].mxu0
        %v6858 = vadd.f32 %v6745, %v6857
        %v6859 = vpop.f32.mrb[0].mxu0
        %v6860 = vadd.f32 %v6747, %v6859
        %v6861 = vpop.f32.mrb[0].mxu0
        %v6862 = vadd.f32 %v6749, %v6861
        %6863 = vmatprep.mubr.bf16.mxu0 %v2584
        %6864 = vmatmul.mubr.bf16.gmra.mrb[0].mxu0 %v2583
        %v6865 = vpop.f32.mrb[0].mxu0
        %v6866 = vadd.f32 %v6753, %v6865
        %v6867 = vpop.f32.mrb[0].mxu0
        %v6868 = vadd.f32 %v6755, %v6867
        %v6869 = vpop.f32.mrb[0].mxu0
        %v6870 = vadd.f32 %v6757, %v6869
        %v6871 = vpop.f32.mrb[0].mxu0
        %v6872 = vadd.f32 %v6759, %v6871
        %6873 = vmatprep.mubr.bf16.mxu0 %v2592
        %6874 = vmatmul.mubr.bf16.gmra.mrb[0].mxu0 %v2591
        %v6875 = vpop.f32.mrb[0].mxu0
        %v6876 = vadd.f32 %v6763, %v6875
        %v6877 = vpop.f32.mrb[0].mxu0
        %v6878 = vadd.f32 %v6765, %v6877
        %v6879 = vpop.f32.mrb[0].mxu0
        %v6880 = vadd.f32 %v6767, %v6879
        %v6881 = vpop.f32.mrb[0].mxu0
        %v6882 = vadd.f32 %v6769, %v6881
        %6883 = vmatprep.mubr.bf16.mxu0 %v2600
        %6884 = vmatmul.mubr.bf16.gmra.mrb[0].mxu0 %v2599
        %v6885 = vpop.f32.mrb[0].mxu0
        %v6886 = vadd.f32 %v6773, %v6885
        %v6887 = vpop.f32.mrb[0].mxu0
        %v6888 = vadd.f32 %v6775, %v6887
        %v6889 = vpop.f32.mrb[0].mxu0
        %v6890 = vadd.f32 %v6777, %v6889
        %v6891 = vpop.f32.mrb[0].mxu0
        %v6892 = vadd.f32 %v6779, %v6891
        %6893 = vdwg.mxu0
        %6894 = vmatprep.subr.bf16.mxu0 %v5210
        %6895 = vmatpush1.bf16.msra.mxu0 %v5209
        %6896 = vmatprep.subr.bf16.mxu0 %v5218
        %6897 = vmatpush1.bf16.msra.mxu0 %v5217
        %6898 = vmatprep.subr.bf16.mxu0 %v5226
        %6899 = vmatpush1.bf16.msra.mxu0 %v5225
        %6900 = vmatprep.subr.bf16.mxu0 %v5234
        %6901 = vmatpush1.bf16.msra.mxu0 %v5233
        %6902 = vmatprep.subr.bf16.mxu0 %v5242
        %6903 = vmatpush1.bf16.msra.mxu0 %v5241
        %6904 = vmatprep.subr.bf16.mxu0 %v5250
        %6905 = vmatpush1.bf16.msra.mxu0 %v5249
        %6906 = vmatprep.subr.bf16.mxu0 %v5258
        %6907 = vmatpush1.bf16.msra.mxu0 %v5257
        %6908 = vmatprep.subr.bf16.mxu0 %v5266
        %6909 = vmatpush1.bf16.msra.mxu0 %v5265
        %6910 = vmatprep.subr.bf16.mxu0 %v5274
        %6911 = vmatpush1.bf16.msra.mxu0 %v5273
        %6912 = vmatprep.subr.bf16.mxu0 %v5282
        %6913 = vmatpush1.bf16.msra.mxu0 %v5281
        %6914 = vmatprep.subr.bf16.mxu0 %v5290
        %6915 = vmatpush1.bf16.msra.mxu0 %v5289
        %6916 = vmatprep.subr.bf16.mxu0 %v5298
        %6917 = vmatpush1.bf16.msra.mxu0 %v5297
        %6918 = vmatprep.subr.bf16.mxu0 %v5306
        %6919 = vmatpush1.bf16.msra.mxu0 %v5305
        %6920 = vmatprep.subr.bf16.mxu0 %v5314
        %6921 = vmatpush1.bf16.msra.mxu0 %v5313
        %6922 = vmatprep.subr.bf16.mxu0 %v5322
        %6923 = vmatpush1.bf16.msra.mxu0 %v5321
        %6924 = vmatprep.subr.bf16.mxu0 %v5330
        %6925 = vmatpush1.bf16.msra.mxu0 %v5329
        %6926 = vmatprep.mubr.bf16.mxu0 %v2546
        %6927 = vmatmul.mubr.bf16.gmra.mrb[0].mxu0 %v2545
        %v6928 = vpop.f32.mrb[0].mxu0
        %v6929 = vadd.f32 %v6816, %v6928
        %v6930 = vpop.f32.mrb[0].mxu0
        %v6931 = vadd.f32 %v6818, %v6930
        %v6932 = vpop.f32.mrb[0].mxu0
        %v6933 = vadd.f32 %v6820, %v6932
        %v6934 = vpop.f32.mrb[0].mxu0
        %v6935 = vadd.f32 %v6822, %v6934
        %6936 = vmatprep.mubr.bf16.mxu0 %v2554
        %6937 = vmatmul.mubr.bf16.gmra.mrb[0].mxu0 %v2553
        %v6938 = vpop.f32.mrb[0].mxu0
        %v6939 = vadd.f32 %v6826, %v6938
        %v6940 = vpop.f32.mrb[0].mxu0
        %v6941 = vadd.f32 %v6828, %v6940
        %v6942 = vpop.f32.mrb[0].mxu0
        %v6943 = vadd.f32 %v6830, %v6942
        %v6944 = vpop.f32.mrb[0].mxu0
        %v6945 = vadd.f32 %v6832, %v6944
        %6946 = vmatprep.mubr.bf16.mxu0 %v2562
        %6947 = vmatmul.mubr.bf16.gmra.mrb[0].mxu0 %v2561
        %v6948 = vpop.f32.mrb[0].mxu0
        %v6949 = vadd.f32 %v6836, %v6948
        %v6950 = vpop.f32.mrb[0].mxu0
        %v6951 = vadd.f32 %v6838, %v6950
        %v6952 = vpop.f32.mrb[0].mxu0
        %v6953 = vadd.f32 %v6840, %v6952
        %v6954 = vpop.f32.mrb[0].mxu0
        %v6955 = vadd.f32 %v6842, %v6954
        %6956 = vmatprep.mubr.bf16.mxu0 %v2570
        %6957 = vmatmul.mubr.bf16.gmra.mrb[0].mxu0 %v2569
        %v6958 = vpop.f32.mrb[0].mxu0
        %v6959 = vadd.f32 %v6846, %v6958
        %v6960 = vpop.f32.mrb[0].mxu0
        %v6961 = vadd.f32 %v6848, %v6960
        %v6962 = vpop.f32.mrb[0].mxu0
        %v6963 = vadd.f32 %v6850, %v6962
        %v6964 = vpop.f32.mrb[0].mxu0
        %v6965 = vadd.f32 %v6852, %v6964
        %6966 = vmatprep.mubr.bf16.mxu0 %v2578
        %6967 = vmatmul.mubr.bf16.gmra.mrb[0].mxu0 %v2577
        %v6968 = vpop.f32.mrb[0].mxu0
        %v6969 = vadd.f32 %v6856, %v6968
        %v6970 = vpop.f32.mrb[0].mxu0
        %v6971 = vadd.f32 %v6858, %v6970
        %v6972 = vpop.f32.mrb[0].mxu0
        %v6973 = vadd.f32 %v6860, %v6972
        %v6974 = vpop.f32.mrb[0].mxu0
        %v6975 = vadd.f32 %v6862, %v6974
        %6976 = vmatprep.mubr.bf16.mxu0 %v2586
        %6977 = vmatmul.mubr.bf16.gmra.mrb[0].mxu0 %v2585
        %v6978 = vpop.f32.mrb[0].mxu0
        %v6979 = vadd.f32 %v6866, %v6978
        %v6980 = vpop.f32.mrb[0].mxu0
        %v6981 = vadd.f32 %v6868, %v6980
        %v6982 = vpop.f32.mrb[0].mxu0
        %v6983 = vadd.f32 %v6870, %v6982
        %v6984 = vpop.f32.mrb[0].mxu0
        %v6985 = vadd.f32 %v6872, %v6984
        %6986 = vmatprep.mubr.bf16.mxu0 %v2594
        %6987 = vmatmul.mubr.bf16.gmra.mrb[0].mxu0 %v2593
        %v6988 = vpop.f32.mrb[0].mxu0
        %v6989 = vadd.f32 %v6876, %v6988
        %v6990 = vpop.f32.mrb[0].mxu0
        %v6991 = vadd.f32 %v6878, %v6990
        %v6992 = vpop.f32.mrb[0].mxu0
        %v6993 = vadd.f32 %v6880, %v6992
        %v6994 = vpop.f32.mrb[0].mxu0
        %v6995 = vadd.f32 %v6882, %v6994
        %6996 = vmatprep.mubr.bf16.mxu0 %v2602
        %6997 = vmatmul.mubr.bf16.gmra.mrb[0].mxu0 %v2601
        %v6998 = vpop.f32.mrb[0].mxu0
        %v6999 = vadd.f32 %v6886, %v6998
        %v7000 = vpop.f32.mrb[0].mxu0
        %v7001 = vadd.f32 %v6888, %v7000
        %v7002 = vpop.f32.mrb[0].mxu0
        %v7003 = vadd.f32 %v6890, %v7002
        %v7004 = vpop.f32.mrb[0].mxu0
        %v7005 = vadd.f32 %v6892, %v7004
        %7006 = vdwg.mxu0
        %7007 = vmatprep.subr.bf16.mxu0 %v5338
        %7008 = vmatpush1.bf16.msra.mxu0 %v5337
        %7009 = vmatprep.subr.bf16.mxu0 %v5346
        %7010 = vmatpush1.bf16.msra.mxu0 %v5345
        %7011 = vmatprep.subr.bf16.mxu0 %v5354
        %7012 = vmatpush1.bf16.msra.mxu0 %v5353
        %7013 = vmatprep.subr.bf16.mxu0 %v5362
        %7014 = vmatpush1.bf16.msra.mxu0 %v5361
        %7015 = vmatprep.subr.bf16.mxu0 %v5370
        %7016 = vmatpush1.bf16.msra.mxu0 %v5369
        %7017 = vmatprep.subr.bf16.mxu0 %v5378
        %7018 = vmatpush1.bf16.msra.mxu0 %v5377
        %7019 = vmatprep.subr.bf16.mxu0 %v5386
        %7020 = vmatpush1.bf16.msra.mxu0 %v5385
        %7021 = vmatprep.subr.bf16.mxu0 %v5394
        %7022 = vmatpush1.bf16.msra.mxu0 %v5393
        %7023 = vmatprep.subr.bf16.mxu0 %v5402
        %7024 = vmatpush1.bf16.msra.mxu0 %v5401
        %7025 = vmatprep.subr.bf16.mxu0 %v5410
        %7026 = vmatpush1.bf16.msra.mxu0 %v5409
        %7027 = vmatprep.subr.bf16.mxu0 %v5418
        %7028 = vmatpush1.bf16.msra.mxu0 %v5417
        %7029 = vmatprep.subr.bf16.mxu0 %v5426
        %7030 = vmatpush1.bf16.msra.mxu0 %v5425
        %7031 = vmatprep.subr.bf16.mxu0 %v5434
        %7032 = vmatpush1.bf16.msra.mxu0 %v5433
        %7033 = vmatprep.subr.bf16.mxu0 %v5442
        %7034 = vmatpush1.bf16.msra.mxu0 %v5441
        %7035 = vmatprep.subr.bf16.mxu0 %v5450
        %7036 = vmatpush1.bf16.msra.mxu0 %v5449
        %7037 = vmatprep.subr.bf16.mxu0 %v5458
        %7038 = vmatpush1.bf16.msra.mxu0 %v5457
        %7039 = vmatprep.mubr.bf16.mxu0 %v2548
        %7040 = vmatmul.mubr.bf16.gmra.mrb[0].mxu0 %v2547
        %v7041 = vpop.f32.mrb[0].mxu0
        %v7042 = vadd.f32 %v6929, %v7041
        %v7043 = vpop.f32.mrb[0].mxu0
        %v7044 = vadd.f32 %v6931, %v7043
        %v7045 = vpop.f32.mrb[0].mxu0
        %v7046 = vadd.f32 %v6933, %v7045
        %v7047 = vpop.f32.mrb[0].mxu0
        %v7048 = vadd.f32 %v6935, %v7047
        %7049 = vmatprep.mubr.bf16.mxu0 %v2556
        %7050 = vmatmul.mubr.bf16.gmra.mrb[0].mxu0 %v2555
        %v7051 = vpop.f32.mrb[0].mxu0
        %v7052 = vadd.f32 %v6939, %v7051
        %v7053 = vpop.f32.mrb[0].mxu0
        %v7054 = vadd.f32 %v6941, %v7053
        %v7055 = vpop.f32.mrb[0].mxu0
        %v7056 = vadd.f32 %v6943, %v7055
        %v7057 = vpop.f32.mrb[0].mxu0
        %v7058 = vadd.f32 %v6945, %v7057
        %7059 = vmatprep.mubr.bf16.mxu0 %v2564
        %7060 = vmatmul.mubr.bf16.gmra.mrb[0].mxu0 %v2563
        %v7061 = vpop.f32.mrb[0].mxu0
        %v7062 = vadd.f32 %v6949, %v7061
        %v7063 = vpop.f32.mrb[0].mxu0
        %v7064 = vadd.f32 %v6951, %v7063
        %v7065 = vpop.f32.mrb[0].mxu0
        %v7066 = vadd.f32 %v6953, %v7065
        %v7067 = vpop.f32.mrb[0].mxu0
        %v7068 = vadd.f32 %v6955, %v7067
        %7069 = vmatprep.mubr.bf16.mxu0 %v2572
        %7070 = vmatmul.mubr.bf16.gmra.mrb[0].mxu0 %v2571
        %v7071 = vpop.f32.mrb[0].mxu0
        %v7072 = vadd.f32 %v6959, %v7071
        %v7073 = vpop.f32.mrb[0].mxu0
        %v7074 = vadd.f32 %v6961, %v7073
        %v7075 = vpop.f32.mrb[0].mxu0
        %v7076 = vadd.f32 %v6963, %v7075
        %v7077 = vpop.f32.mrb[0].mxu0
        %v7078 = vadd.f32 %v6965, %v7077
        %7079 = vmatprep.mubr.bf16.mxu0 %v2580
        %7080 = vmatmul.mubr.bf16.gmra.mrb[0].mxu0 %v2579
        %v7081 = vpop.f32.mrb[0].mxu0
        %v7082 = vadd.f32 %v6969, %v7081
        %v7083 = vpop.f32.mrb[0].mxu0
        %v7084 = vadd.f32 %v6971, %v7083
        %v7085 = vpop.f32.mrb[0].mxu0
        %v7086 = vadd.f32 %v6973, %v7085
        %v7087 = vpop.f32.mrb[0].mxu0
        %v7088 = vadd.f32 %v6975, %v7087
        %7089 = vmatprep.mubr.bf16.mxu0 %v2588
        %7090 = vmatmul.mubr.bf16.gmra.mrb[0].mxu0 %v2587
        %v7091 = vpop.f32.mrb[0].mxu0
        %v7092 = vadd.f32 %v6979, %v7091
        %v7093 = vpop.f32.mrb[0].mxu0
        %v7094 = vadd.f32 %v6981, %v7093
        %v7095 = vpop.f32.mrb[0].mxu0
        %v7096 = vadd.f32 %v6983, %v7095
        %v7097 = vpop.f32.mrb[0].mxu0
        %v7098 = vadd.f32 %v6985, %v7097
        %7099 = vmatprep.mubr.bf16.mxu0 %v2596
        %7100 = vmatmul.mubr.bf16.gmra.mrb[0].mxu0 %v2595
        %v7101 = vpop.f32.mrb[0].mxu0
        %v7102 = vadd.f32 %v6989, %v7101
        %v7103 = vpop.f32.mrb[0].mxu0
        %v7104 = vadd.f32 %v6991, %v7103
        %v7105 = vpop.f32.mrb[0].mxu0
        %v7106 = vadd.f32 %v6993, %v7105
        %v7107 = vpop.f32.mrb[0].mxu0
        %v7108 = vadd.f32 %v6995, %v7107
        %7109 = vmatprep.mubr.bf16.mxu0 %v2604
        %7110 = vmatmul.mubr.bf16.gmra.mrb[0].mxu0 %v2603
        %v7111 = vpop.f32.mrb[0].mxu0
        %v7112 = vadd.f32 %v6999, %v7111
        %v7113 = vpop.f32.mrb[0].mxu0
        %v7114 = vadd.f32 %v7001, %v7113
        %v7115 = vpop.f32.mrb[0].mxu0
        %v7116 = vadd.f32 %v7003, %v7115
        %v7117 = vpop.f32.mrb[0].mxu0
        %v7118 = vadd.f32 %v7005, %v7117
        %7119 = vdwg.mxu0
        %7120 = vmatprep.subr.bf16.mxu0 %v5466
        %7121 = vmatpush1.bf16.msra.mxu0 %v5465
        %7122 = vmatprep.subr.bf16.mxu0 %v5474
        %7123 = vmatpush1.bf16.msra.mxu0 %v5473
        %7124 = vmatprep.subr.bf16.mxu0 %v5482
        %7125 = vmatpush1.bf16.msra.mxu0 %v5481
        %7126 = vmatprep.subr.bf16.mxu0 %v5490
        %7127 = vmatpush1.bf16.msra.mxu0 %v5489
        %7128 = vmatprep.subr.bf16.mxu0 %v5498
        %7129 = vmatpush1.bf16.msra.mxu0 %v5497
        %7130 = vmatprep.subr.bf16.mxu0 %v5506
        %7131 = vmatpush1.bf16.msra.mxu0 %v5505
        %7132 = vmatprep.subr.bf16.mxu0 %v5514
        %7133 = vmatpush1.bf16.msra.mxu0 %v5513
        %7134 = vmatprep.subr.bf16.mxu0 %v5522
        %7135 = vmatpush1.bf16.msra.mxu0 %v5521
        %7136 = vmatprep.subr.bf16.mxu0 0
        %7137 = vmatpush1.bf16.msra.mxu0 0
        %7138 = vmatprep.subr.bf16.mxu0 0
        %7139 = vmatpush1.bf16.msra.mxu0 0
        %7140 = vmatprep.subr.bf16.mxu0 0
        %7141 = vmatpush1.bf16.msra.mxu0 0
        %7142 = vmatprep.subr.bf16.mxu0 0
        %7143 = vmatpush1.bf16.msra.mxu0 0
        %7144 = vmatprep.subr.bf16.mxu0 0
        %7145 = vmatpush1.bf16.msra.mxu0 0
        %7146 = vmatprep.subr.bf16.mxu0 0
        %7147 = vmatpush1.bf16.msra.mxu0 0
        %7148 = vmatprep.subr.bf16.mxu0 0
        %7149 = vmatpush1.bf16.msra.mxu0 0
        %7150 = vmatprep.subr.bf16.mxu0 0
        %7151 = vmatpush1.bf16.msra.mxu0 0
        %7152 = vmatprep.mubr.bf16.mxu0 0
        %7153 = vmatmul.mubr.bf16.gmra.mrb[0].mxu0 %v1527
        %v7154 = vpop.f32.mrb[0].mxu0
        %v7155 = vadd.f32 %v7042, %v7154
        %v7156 = vpop.f32.mrb[0].mxu0
        %v7157 = vadd.f32 %v7044, %v7156
        %v7158 = vpop.f32.mrb[0].mxu0
        %v7159 = vadd.f32 %v7046, %v7158
        %v7160 = vpop.f32.mrb[0].mxu0
        %v7161 = vadd.f32 %v7048, %v7160
        %7162 = vmatprep.mubr.bf16.mxu0 0
        %7163 = vmatmul.mubr.bf16.gmra.mrb[0].mxu0 %v1528
        %v7164 = vpop.f32.mrb[0].mxu0
        %v7165 = vadd.f32 %v7052, %v7164
        %v7166 = vpop.f32.mrb[0].mxu0
        %v7167 = vadd.f32 %v7054, %v7166
        %v7168 = vpop.f32.mrb[0].mxu0
        %v7169 = vadd.f32 %v7056, %v7168
        %v7170 = vpop.f32.mrb[0].mxu0
        %v7171 = vadd.f32 %v7058, %v7170
        %7172 = vmatprep.mubr.bf16.mxu0 0
        %7173 = vmatmul.mubr.bf16.gmra.mrb[0].mxu0 %v1529
        %v7174 = vpop.f32.mrb[0].mxu0
        %v7175 = vadd.f32 %v7062, %v7174
        %v7176 = vpop.f32.mrb[0].mxu0
        %v7177 = vadd.f32 %v7064, %v7176
        %v7178 = vpop.f32.mrb[0].mxu0
        %v7179 = vadd.f32 %v7066, %v7178
        %v7180 = vpop.f32.mrb[0].mxu0
        %v7181 = vadd.f32 %v7068, %v7180
        %7182 = vmatprep.mubr.bf16.mxu0 0
        %7183 = vmatmul.mubr.bf16.gmra.mrb[0].mxu0 %v1530
        %v7184 = vpop.f32.mrb[0].mxu0
        %v7185 = vadd.f32 %v7072, %v7184
        %v7186 = vpop.f32.mrb[0].mxu0
        %v7187 = vadd.f32 %v7074, %v7186
        %v7188 = vpop.f32.mrb[0].mxu0
        %v7189 = vadd.f32 %v7076, %v7188
        %v7190 = vpop.f32.mrb[0].mxu0
        %v7191 = vadd.f32 %v7078, %v7190
        %7192 = vmatprep.mubr.bf16.mxu0 0
        %7193 = vmatmul.mubr.bf16.gmra.mrb[0].mxu0 %v1531
        %v7194 = vpop.f32.mrb[0].mxu0
        %v7195 = vadd.f32 %v7082, %v7194
        %v7196 = vpop.f32.mrb[0].mxu0
        %v7197 = vadd.f32 %v7084, %v7196
        %v7198 = vpop.f32.mrb[0].mxu0
        %v7199 = vadd.f32 %v7086, %v7198
        %v7200 = vpop.f32.mrb[0].mxu0
        %v7201 = vadd.f32 %v7088, %v7200
        %7202 = vmatprep.mubr.bf16.mxu0 0
        %7203 = vmatmul.mubr.bf16.gmra.mrb[0].mxu0 %v1532
        %v7204 = vpop.f32.mrb[0].mxu0
        %v7205 = vadd.f32 %v7092, %v7204
        %v7206 = vpop.f32.mrb[0].mxu0
        %v7207 = vadd.f32 %v7094, %v7206
        %v7208 = vpop.f32.mrb[0].mxu0
        %v7209 = vadd.f32 %v7096, %v7208
        %v7210 = vpop.f32.mrb[0].mxu0
        %v7211 = vadd.f32 %v7098, %v7210
        %7212 = vmatprep.mubr.bf16.mxu0 0
        %7213 = vmatmul.mubr.bf16.gmra.mrb[0].mxu0 %v1533
        %v7214 = vpop.f32.mrb[0].mxu0
        %v7215 = vadd.f32 %v7102, %v7214
        %v7216 = vpop.f32.mrb[0].mxu0
        %v7217 = vadd.f32 %v7104, %v7216
        %v7218 = vpop.f32.mrb[0].mxu0
        %v7219 = vadd.f32 %v7106, %v7218
        %v7220 = vpop.f32.mrb[0].mxu0
        %v7221 = vadd.f32 %v7108, %v7220
        %7222 = vmatprep.mubr.bf16.mxu0 0
        %7223 = vmatmul.mubr.bf16.gmra.mrb[0].mxu0 %v1534
        %v7224 = vpop.f32.mrb[0].mxu0
        %v7225 = vadd.f32 %v7112, %v7224
        %v7226 = vpop.f32.mrb[0].mxu0
        %v7227 = vadd.f32 %v7114, %v7226
        %v7228 = vpop.f32.mrb[0].mxu0
        %v7229 = vadd.f32 %v7116, %v7228
        %v7230 = vpop.f32.mrb[0].mxu0
        %v7231 = vadd.f32 %v7118, %v7230
        %7232 = vdwg.mxu0
        %7233 = vmatprep.subr.bf16.mxu0 %v4956
        %7234 = vmatpush1.bf16.msra.mxu0 %v4955
        %7235 = vmatprep.subr.bf16.mxu0 %v4964
        %7236 = vmatpush1.bf16.msra.mxu0 %v4963
        %7237 = vmatprep.subr.bf16.mxu0 %v4972
        %7238 = vmatpush1.bf16.msra.mxu0 %v4971
        %7239 = vmatprep.subr.bf16.mxu0 %v4980
        %7240 = vmatpush1.bf16.msra.mxu0 %v4979
        %7241 = vmatprep.subr.bf16.mxu0 %v4988
        %7242 = vmatpush1.bf16.msra.mxu0 %v4987
        %7243 = vmatprep.subr.bf16.mxu0 %v4996
        %7244 = vmatpush1.bf16.msra.mxu0 %v4995
        %7245 = vmatprep.subr.bf16.mxu0 %v5004
        %7246 = vmatpush1.bf16.msra.mxu0 %v5003
        %7247 = vmatprep.subr.bf16.mxu0 %v5012
        %7248 = vmatpush1.bf16.msra.mxu0 %v5011
        %7249 = vmatprep.subr.bf16.mxu0 %v5020
        %7250 = vmatpush1.bf16.msra.mxu0 %v5019
        %7251 = vmatprep.subr.bf16.mxu0 %v5028
        %7252 = vmatpush1.bf16.msra.mxu0 %v5027
        %7253 = vmatprep.subr.bf16.mxu0 %v5036
        %7254 = vmatpush1.bf16.msra.mxu0 %v5035
        %7255 = vmatprep.subr.bf16.mxu0 %v5044
        %7256 = vmatpush1.bf16.msra.mxu0 %v5043
        %7257 = vmatprep.subr.bf16.mxu0 %v5052
        %7258 = vmatpush1.bf16.msra.mxu0 %v5051
        %7259 = vmatprep.subr.bf16.mxu0 %v5060
        %7260 = vmatpush1.bf16.msra.mxu0 %v5059
        %7261 = vmatprep.subr.bf16.mxu0 %v5068
        %7262 = vmatpush1.bf16.msra.mxu0 %v5067
        %7263 = vmatprep.subr.bf16.mxu0 %v5076
        %7264 = vmatpush1.bf16.msra.mxu0 %v5075
        %7265 = vmatprep.mubr.bf16.mxu0 %v2542
        %7266 = vmatmul.mubr.bf16.gmra.mrb[0].mxu0 %v2541
        %v7267 = vpop.f32.mrb[0].mxu0
        %v7268 = vadd.f32 %v3202, %v7267
        %v7269 = vpop.f32.mrb[0].mxu0
        %v7270 = vadd.f32 %v3206, %v7269
        %v7271 = vpop.f32.mrb[0].mxu0
        %v7272 = vadd.f32 %v3202, %v7271
        %v7273 = vpop.f32.mrb[0].mxu0
        %v7274 = vadd.f32 %v3206, %v7273
        %7275 = vmatprep.mubr.bf16.mxu0 %v2550
        %7276 = vmatmul.mubr.bf16.gmra.mrb[0].mxu0 %v2549
        %v7277 = vpop.f32.mrb[0].mxu0
        %v7278 = vadd.f32 %v3202, %v7277
        %v7279 = vpop.f32.mrb[0].mxu0
        %v7280 = vadd.f32 %v3206, %v7279
        %v7281 = vpop.f32.mrb[0].mxu0
        %v7282 = vadd.f32 %v3202, %v7281
        %v7283 = vpop.f32.mrb[0].mxu0
        %v7284 = vadd.f32 %v3206, %v7283
        %7285 = vmatprep.mubr.bf16.mxu0 %v2558
        %7286 = vmatmul.mubr.bf16.gmra.mrb[0].mxu0 %v2557
        %v7287 = vpop.f32.mrb[0].mxu0
        %v7288 = vadd.f32 %v3202, %v7287
        %v7289 = vpop.f32.mrb[0].mxu0
        %v7290 = vadd.f32 %v3206, %v7289
        %v7291 = vpop.f32.mrb[0].mxu0
        %v7292 = vadd.f32 %v3202, %v7291
        %v7293 = vpop.f32.mrb[0].mxu0
        %v7294 = vadd.f32 %v3206, %v7293
        %7295 = vmatprep.mubr.bf16.mxu0 %v2566
        %7296 = vmatmul.mubr.bf16.gmra.mrb[0].mxu0 %v2565
        %v7297 = vpop.f32.mrb[0].mxu0
        %v7298 = vadd.f32 %v3202, %v7297
        %v7299 = vpop.f32.mrb[0].mxu0
        %v7300 = vadd.f32 %v3206, %v7299
        %v7301 = vpop.f32.mrb[0].mxu0
        %v7302 = vadd.f32 %v3202, %v7301
        %v7303 = vpop.f32.mrb[0].mxu0
        %v7304 = vadd.f32 %v3206, %v7303
        %7305 = vmatprep.mubr.bf16.mxu0 %v2574
        %7306 = vmatmul.mubr.bf16.gmra.mrb[0].mxu0 %v2573
        %v7307 = vpop.f32.mrb[0].mxu0
        %v7308 = vadd.f32 %v3202, %v7307
        %v7309 = vpop.f32.mrb[0].mxu0
        %v7310 = vadd.f32 %v3206, %v7309
        %v7311 = vpop.f32.mrb[0].mxu0
        %v7312 = vadd.f32 %v3202, %v7311
        %v7313 = vpop.f32.mrb[0].mxu0
        %v7314 = vadd.f32 %v3206, %v7313
        %7315 = vmatprep.mubr.bf16.mxu0 %v2582
        %7316 = vmatmul.mubr.bf16.gmra.mrb[0].mxu0 %v2581
        %v7317 = vpop.f32.mrb[0].mxu0
        %v7318 = vadd.f32 %v3202, %v7317
        %v7319 = vpop.f32.mrb[0].mxu0
        %v7320 = vadd.f32 %v3206, %v7319
        %v7321 = vpop.f32.mrb[0].mxu0
        %v7322 = vadd.f32 %v3202, %v7321
        %v7323 = vpop.f32.mrb[0].mxu0
        %v7324 = vadd.f32 %v3206, %v7323
        %7325 = vmatprep.mubr.bf16.mxu0 %v2590
        %7326 = vmatmul.mubr.bf16.gmra.mrb[0].mxu0 %v2589
        %v7327 = vpop.f32.mrb[0].mxu0
        %v7328 = vadd.f32 %v3202, %v7327
        %v7329 = vpop.f32.mrb[0].mxu0
        %v7330 = vadd.f32 %v3206, %v7329
        %v7331 = vpop.f32.mrb[0].mxu0
        %v7332 = vadd.f32 %v3202, %v7331
        %v7333 = vpop.f32.mrb[0].mxu0
        %v7334 = vadd.f32 %v3206, %v7333
        %7335 = vmatprep.mubr.bf16.mxu0 %v2598
        %7336 = vmatmul.mubr.bf16.gmra.mrb[0].mxu0 %v2597
        %v7337 = vpop.f32.mrb[0].mxu0
        %v7338 = vadd.f32 %v3202, %v7337
        %v7339 = vpop.f32.mrb[0].mxu0
        %v7340 = vadd.f32 %v3206, %v7339
        %v7341 = vpop.f32.mrb[0].mxu0
        %v7342 = vadd.f32 %v3202, %v7341
        %v7343 = vpop.f32.mrb[0].mxu0
        %v7344 = vadd.f32 %v3206, %v7343
        %7345 = vdwg.mxu0
        %7346 = vmatprep.subr.bf16.mxu0 %v5084
        %7347 = vmatpush1.bf16.msra.mxu0 %v5083
        %7348 = vmatprep.subr.bf16.mxu0 %v5092
        %7349 = vmatpush1.bf16.msra.mxu0 %v5091
        %7350 = vmatprep.subr.bf16.mxu0 %v5100
        %7351 = vmatpush1.bf16.msra.mxu0 %v5099
        %7352 = vmatprep.subr.bf16.mxu0 %v5108
        %7353 = vmatpush1.bf16.msra.mxu0 %v5107
        %7354 = vmatprep.subr.bf16.mxu0 %v5116
        %7355 = vmatpush1.bf16.msra.mxu0 %v5115
        %7356 = vmatprep.subr.bf16.mxu0 %v5124
        %7357 = vmatpush1.bf16.msra.mxu0 %v5123
        %7358 = vmatprep.subr.bf16.mxu0 %v5132
        %7359 = vmatpush1.bf16.msra.mxu0 %v5131
        %7360 = vmatprep.subr.bf16.mxu0 %v5140
        %7361 = vmatpush1.bf16.msra.mxu0 %v5139
        %7362 = vmatprep.subr.bf16.mxu0 %v5148
        %7363 = vmatpush1.bf16.msra.mxu0 %v5147
        %7364 = vmatprep.subr.bf16.mxu0 %v5156
        %7365 = vmatpush1.bf16.msra.mxu0 %v5155
        %7366 = vmatprep.subr.bf16.mxu0 %v5164
        %7367 = vmatpush1.bf16.msra.mxu0 %v5163
        %7368 = vmatprep.subr.bf16.mxu0 %v5172
        %7369 = vmatpush1.bf16.msra.mxu0 %v5171
        %7370 = vmatprep.subr.bf16.mxu0 %v5180
        %7371 = vmatpush1.bf16.msra.mxu0 %v5179
        %7372 = vmatprep.subr.bf16.mxu0 %v5188
        %7373 = vmatpush1.bf16.msra.mxu0 %v5187
        %7374 = vmatprep.subr.bf16.mxu0 %v5196
        %7375 = vmatpush1.bf16.msra.mxu0 %v5195
        %7376 = vmatprep.subr.bf16.mxu0 %v5204
        %7377 = vmatpush1.bf16.msra.mxu0 %v5203
        %7378 = vmatprep.mubr.bf16.mxu0 %v2544
        %7379 = vmatmul.mubr.bf16.gmra.mrb[0].mxu0 %v2543
        %v7380 = vpop.f32.mrb[0].mxu0
        %v7381 = vadd.f32 %v7268, %v7380
        %v7382 = vpop.f32.mrb[0].mxu0
        %v7383 = vadd.f32 %v7270, %v7382
        %v7384 = vpop.f32.mrb[0].mxu0
        %v7385 = vadd.f32 %v7272, %v7384
        %v7386 = vpop.f32.mrb[0].mxu0
        %v7387 = vadd.f32 %v7274, %v7386
        %7388 = vmatprep.mubr.bf16.mxu0 %v2552
        %7389 = vmatmul.mubr.bf16.gmra.mrb[0].mxu0 %v2551
        %v7390 = vpop.f32.mrb[0].mxu0
        %v7391 = vadd.f32 %v7278, %v7390
        %v7392 = vpop.f32.mrb[0].mxu0
        %v7393 = vadd.f32 %v7280, %v7392
        %v7394 = vpop.f32.mrb[0].mxu0
        %v7395 = vadd.f32 %v7282, %v7394
        %v7396 = vpop.f32.mrb[0].mxu0
        %v7397 = vadd.f32 %v7284, %v7396
        %7398 = vmatprep.mubr.bf16.mxu0 %v2560
        %7399 = vmatmul.mubr.bf16.gmra.mrb[0].mxu0 %v2559
        %v7400 = vpop.f32.mrb[0].mxu0
        %v7401 = vadd.f32 %v7288, %v7400
        %v7402 = vpop.f32.mrb[0].mxu0
        %v7403 = vadd.f32 %v7290, %v7402
        %v7404 = vpop.f32.mrb[0].mxu0
        %v7405 = vadd.f32 %v7292, %v7404
        %v7406 = vpop.f32.mrb[0].mxu0
        %v7407 = vadd.f32 %v7294, %v7406
        %7408 = vmatprep.mubr.bf16.mxu0 %v2568
        %7409 = vmatmul.mubr.bf16.gmra.mrb[0].mxu0 %v2567
        %v7410 = vpop.f32.mrb[0].mxu0
        %v7411 = vadd.f32 %v7298, %v7410
        %v7412 = vpop.f32.mrb[0].mxu0
        %v7413 = vadd.f32 %v7300, %v7412
        %v7414 = vpop.f32.mrb[0].mxu0
        %v7415 = vadd.f32 %v7302, %v7414
        %v7416 = vpop.f32.mrb[0].mxu0
        %v7417 = vadd.f32 %v7304, %v7416
        %7418 = vmatprep.mubr.bf16.mxu0 %v2576
        %7419 = vmatmul.mubr.bf16.gmra.mrb[0].mxu0 %v2575
        %v7420 = vpop.f32.mrb[0].mxu0
        %v7421 = vadd.f32 %v7308, %v7420
        %v7422 = vpop.f32.mrb[0].mxu0
        %v7423 = vadd.f32 %v7310, %v7422
        %v7424 = vpop.f32.mrb[0].mxu0
        %v7425 = vadd.f32 %v7312, %v7424
        %v7426 = vpop.f32.mrb[0].mxu0
        %v7427 = vadd.f32 %v7314, %v7426
        %7428 = vmatprep.mubr.bf16.mxu0 %v2584
        %7429 = vmatmul.mubr.bf16.gmra.mrb[0].mxu0 %v2583
        %v7430 = vpop.f32.mrb[0].mxu0
        %v7431 = vadd.f32 %v7318, %v7430
        %v7432 = vpop.f32.mrb[0].mxu0
        %v7433 = vadd.f32 %v7320, %v7432
        %v7434 = vpop.f32.mrb[0].mxu0
        %v7435 = vadd.f32 %v7322, %v7434
        %v7436 = vpop.f32.mrb[0].mxu0
        %v7437 = vadd.f32 %v7324, %v7436
        %7438 = vmatprep.mubr.bf16.mxu0 %v2592
        %7439 = vmatmul.mubr.bf16.gmra.mrb[0].mxu0 %v2591
        %v7440 = vpop.f32.mrb[0].mxu0
        %v7441 = vadd.f32 %v7328, %v7440
        %v7442 = vpop.f32.mrb[0].mxu0
        %v7443 = vadd.f32 %v7330, %v7442
        %v7444 = vpop.f32.mrb[0].mxu0
        %v7445 = vadd.f32 %v7332, %v7444
        %v7446 = vpop.f32.mrb[0].mxu0
        %v7447 = vadd.f32 %v7334, %v7446
        %7448 = vmatprep.mubr.bf16.mxu0 %v2600
        %7449 = vmatmul.mubr.bf16.gmra.mrb[0].mxu0 %v2599
        %v7450 = vpop.f32.mrb[0].mxu0
        %v7451 = vadd.f32 %v7338, %v7450
        %v7452 = vpop.f32.mrb[0].mxu0
        %v7453 = vadd.f32 %v7340, %v7452
        %v7454 = vpop.f32.mrb[0].mxu0
        %v7455 = vadd.f32 %v7342, %v7454
        %v7456 = vpop.f32.mrb[0].mxu0
        %v7457 = vadd.f32 %v7344, %v7456
        %7458 = vdwg.mxu0
        %7459 = vmatprep.subr.bf16.mxu0 %v5212
        %7460 = vmatpush1.bf16.msra.mxu0 %v5211
        %7461 = vmatprep.subr.bf16.mxu0 %v5220
        %7462 = vmatpush1.bf16.msra.mxu0 %v5219
        %7463 = vmatprep.subr.bf16.mxu0 %v5228
        %7464 = vmatpush1.bf16.msra.mxu0 %v5227
        %7465 = vmatprep.subr.bf16.mxu0 %v5236
        %7466 = vmatpush1.bf16.msra.mxu0 %v5235
        %7467 = vmatprep.subr.bf16.mxu0 %v5244
        %7468 = vmatpush1.bf16.msra.mxu0 %v5243
        %7469 = vmatprep.subr.bf16.mxu0 %v5252
        %7470 = vmatpush1.bf16.msra.mxu0 %v5251
        %7471 = vmatprep.subr.bf16.mxu0 %v5260
        %7472 = vmatpush1.bf16.msra.mxu0 %v5259
        %7473 = vmatprep.subr.bf16.mxu0 %v5268
        %7474 = vmatpush1.bf16.msra.mxu0 %v5267
        %7475 = vmatprep.subr.bf16.mxu0 %v5276
        %7476 = vmatpush1.bf16.msra.mxu0 %v5275
        %7477 = vmatprep.subr.bf16.mxu0 %v5284
        %7478 = vmatpush1.bf16.msra.mxu0 %v5283
        %7479 = vmatprep.subr.bf16.mxu0 %v5292
        %7480 = vmatpush1.bf16.msra.mxu0 %v5291
        %7481 = vmatprep.subr.bf16.mxu0 %v5300
        %7482 = vmatpush1.bf16.msra.mxu0 %v5299
        %7483 = vmatprep.subr.bf16.mxu0 %v5308
        %7484 = vmatpush1.bf16.msra.mxu0 %v5307
        %7485 = vmatprep.subr.bf16.mxu0 %v5316
        %7486 = vmatpush1.bf16.msra.mxu0 %v5315
        %7487 = vmatprep.subr.bf16.mxu0 %v5324
        %7488 = vmatpush1.bf16.msra.mxu0 %v5323
        %7489 = vmatprep.subr.bf16.mxu0 %v5332
        %7490 = vmatpush1.bf16.msra.mxu0 %v5331
        %7491 = vmatprep.mubr.bf16.mxu0 %v2546
        %7492 = vmatmul.mubr.bf16.gmra.mrb[0].mxu0 %v2545
        %v7493 = vpop.f32.mrb[0].mxu0
        %v7494 = vadd.f32 %v7381, %v7493
        %v7495 = vpop.f32.mrb[0].mxu0
        %v7496 = vadd.f32 %v7383, %v7495
        %v7497 = vpop.f32.mrb[0].mxu0
        %v7498 = vadd.f32 %v7385, %v7497
        %v7499 = vpop.f32.mrb[0].mxu0
        %v7500 = vadd.f32 %v7387, %v7499
        %7501 = vmatprep.mubr.bf16.mxu0 %v2554
        %7502 = vmatmul.mubr.bf16.gmra.mrb[0].mxu0 %v2553
        %v7503 = vpop.f32.mrb[0].mxu0
        %v7504 = vadd.f32 %v7391, %v7503
        %v7505 = vpop.f32.mrb[0].mxu0
        %v7506 = vadd.f32 %v7393, %v7505
        %v7507 = vpop.f32.mrb[0].mxu0
        %v7508 = vadd.f32 %v7395, %v7507
        %v7509 = vpop.f32.mrb[0].mxu0
        %v7510 = vadd.f32 %v7397, %v7509
        %7511 = vmatprep.mubr.bf16.mxu0 %v2562
        %7512 = vmatmul.mubr.bf16.gmra.mrb[0].mxu0 %v2561
        %v7513 = vpop.f32.mrb[0].mxu0
        %v7514 = vadd.f32 %v7401, %v7513
        %v7515 = vpop.f32.mrb[0].mxu0
        %v7516 = vadd.f32 %v7403, %v7515
        %v7517 = vpop.f32.mrb[0].mxu0
        %v7518 = vadd.f32 %v7405, %v7517
        %v7519 = vpop.f32.mrb[0].mxu0
        %v7520 = vadd.f32 %v7407, %v7519
        %7521 = vmatprep.mubr.bf16.mxu0 %v2570
        %7522 = vmatmul.mubr.bf16.gmra.mrb[0].mxu0 %v2569
        %v7523 = vpop.f32.mrb[0].mxu0
        %v7524 = vadd.f32 %v7411, %v7523
        %v7525 = vpop.f32.mrb[0].mxu0
        %v7526 = vadd.f32 %v7413, %v7525
        %v7527 = vpop.f32.mrb[0].mxu0
        %v7528 = vadd.f32 %v7415, %v7527
        %v7529 = vpop.f32.mrb[0].mxu0
        %v7530 = vadd.f32 %v7417, %v7529
        %7531 = vmatprep.mubr.bf16.mxu0 %v2578
        %7532 = vmatmul.mubr.bf16.gmra.mrb[0].mxu0 %v2577
        %v7533 = vpop.f32.mrb[0].mxu0
        %v7534 = vadd.f32 %v7421, %v7533
        %v7535 = vpop.f32.mrb[0].mxu0
        %v7536 = vadd.f32 %v7423, %v7535
        %v7537 = vpop.f32.mrb[0].mxu0
        %v7538 = vadd.f32 %v7425, %v7537
        %v7539 = vpop.f32.mrb[0].mxu0
        %v7540 = vadd.f32 %v7427, %v7539
        %7541 = vmatprep.mubr.bf16.mxu0 %v2586
        %7542 = vmatmul.mubr.bf16.gmra.mrb[0].mxu0 %v2585
        %v7543 = vpop.f32.mrb[0].mxu0
        %v7544 = vadd.f32 %v7431, %v7543
        %v7545 = vpop.f32.mrb[0].mxu0
        %v7546 = vadd.f32 %v7433, %v7545
        %v7547 = vpop.f32.mrb[0].mxu0
        %v7548 = vadd.f32 %v7435, %v7547
        %v7549 = vpop.f32.mrb[0].mxu0
        %v7550 = vadd.f32 %v7437, %v7549
        %7551 = vmatprep.mubr.bf16.mxu0 %v2594
        %7552 = vmatmul.mubr.bf16.gmra.mrb[0].mxu0 %v2593
        %v7553 = vpop.f32.mrb[0].mxu0
        %v7554 = vadd.f32 %v7441, %v7553
        %v7555 = vpop.f32.mrb[0].mxu0
        %v7556 = vadd.f32 %v7443, %v7555
        %v7557 = vpop.f32.mrb[0].mxu0
        %v7558 = vadd.f32 %v7445, %v7557
        %v7559 = vpop.f32.mrb[0].mxu0
        %v7560 = vadd.f32 %v7447, %v7559
        %7561 = vmatprep.mubr.bf16.mxu0 %v2602
        %7562 = vmatmul.mubr.bf16.gmra.mrb[0].mxu0 %v2601
        %v7563 = vpop.f32.mrb[0].mxu0
        %v7564 = vadd.f32 %v7451, %v7563
        %v7565 = vpop.f32.mrb[0].mxu0
        %v7566 = vadd.f32 %v7453, %v7565
        %v7567 = vpop.f32.mrb[0].mxu0
        %v7568 = vadd.f32 %v7455, %v7567
        %v7569 = vpop.f32.mrb[0].mxu0
        %v7570 = vadd.f32 %v7457, %v7569
        %7571 = vdwg.mxu0
        %7572 = vmatprep.subr.bf16.mxu0 %v5340
        %7573 = vmatpush1.bf16.msra.mxu0 %v5339
        %7574 = vmatprep.subr.bf16.mxu0 %v5348
        %7575 = vmatpush1.bf16.msra.mxu0 %v5347
        %7576 = vmatprep.subr.bf16.mxu0 %v5356
        %7577 = vmatpush1.bf16.msra.mxu0 %v5355
        %7578 = vmatprep.subr.bf16.mxu0 %v5364
        %7579 = vmatpush1.bf16.msra.mxu0 %v5363
        %7580 = vmatprep.subr.bf16.mxu0 %v5372
        %7581 = vmatpush1.bf16.msra.mxu0 %v5371
        %7582 = vmatprep.subr.bf16.mxu0 %v5380
        %7583 = vmatpush1.bf16.msra.mxu0 %v5379
        %7584 = vmatprep.subr.bf16.mxu0 %v5388
        %7585 = vmatpush1.bf16.msra.mxu0 %v5387
        %7586 = vmatprep.subr.bf16.mxu0 %v5396
        %7587 = vmatpush1.bf16.msra.mxu0 %v5395
        %7588 = vmatprep.subr.bf16.mxu0 %v5404
        %7589 = vmatpush1.bf16.msra.mxu0 %v5403
        %7590 = vmatprep.subr.bf16.mxu0 %v5412
        %7591 = vmatpush1.bf16.msra.mxu0 %v5411
        %7592 = vmatprep.subr.bf16.mxu0 %v5420
        %7593 = vmatpush1.bf16.msra.mxu0 %v5419
        %7594 = vmatprep.subr.bf16.mxu0 %v5428
        %7595 = vmatpush1.bf16.msra.mxu0 %v5427
        %7596 = vmatprep.subr.bf16.mxu0 %v5436
        %7597 = vmatpush1.bf16.msra.mxu0 %v5435
        %7598 = vmatprep.subr.bf16.mxu0 %v5444
        %7599 = vmatpush1.bf16.msra.mxu0 %v5443
        %7600 = vmatprep.subr.bf16.mxu0 %v5452
        %7601 = vmatpush1.bf16.msra.mxu0 %v5451
        %7602 = vmatprep.subr.bf16.mxu0 %v5460
        %7603 = vmatpush1.bf16.msra.mxu0 %v5459
        %7604 = vmatprep.mubr.bf16.mxu0 %v2548
        %7605 = vmatmul.mubr.bf16.gmra.mrb[0].mxu0 %v2547
        %v7606 = vpop.f32.mrb[0].mxu0
        %v7607 = vadd.f32 %v7494, %v7606
        %v7608 = vpop.f32.mrb[0].mxu0
        %v7609 = vadd.f32 %v7496, %v7608
        %v7610 = vpop.f32.mrb[0].mxu0
        %v7611 = vadd.f32 %v7498, %v7610
        %v7612 = vpop.f32.mrb[0].mxu0
        %v7613 = vadd.f32 %v7500, %v7612
        %7614 = vmatprep.mubr.bf16.mxu0 %v2556
        %7615 = vmatmul.mubr.bf16.gmra.mrb[0].mxu0 %v2555
        %v7616 = vpop.f32.mrb[0].mxu0
        %v7617 = vadd.f32 %v7504, %v7616
        %v7618 = vpop.f32.mrb[0].mxu0
        %v7619 = vadd.f32 %v7506, %v7618
        %v7620 = vpop.f32.mrb[0].mxu0
        %v7621 = vadd.f32 %v7508, %v7620
        %v7622 = vpop.f32.mrb[0].mxu0
        %v7623 = vadd.f32 %v7510, %v7622
        %7624 = vmatprep.mubr.bf16.mxu0 %v2564
        %7625 = vmatmul.mubr.bf16.gmra.mrb[0].mxu0 %v2563
        %v7626 = vpop.f32.mrb[0].mxu0
        %v7627 = vadd.f32 %v7514, %v7626
        %v7628 = vpop.f32.mrb[0].mxu0
        %v7629 = vadd.f32 %v7516, %v7628
        %v7630 = vpop.f32.mrb[0].mxu0
        %v7631 = vadd.f32 %v7518, %v7630
        %v7632 = vpop.f32.mrb[0].mxu0
        %v7633 = vadd.f32 %v7520, %v7632
        %7634 = vmatprep.mubr.bf16.mxu0 %v2572
        %7635 = vmatmul.mubr.bf16.gmra.mrb[0].mxu0 %v2571
        %v7636 = vpop.f32.mrb[0].mxu0
        %v7637 = vadd.f32 %v7524, %v7636
        %v7638 = vpop.f32.mrb[0].mxu0
        %v7639 = vadd.f32 %v7526, %v7638
        %v7640 = vpop.f32.mrb[0].mxu0
        %v7641 = vadd.f32 %v7528, %v7640
        %v7642 = vpop.f32.mrb[0].mxu0
        %v7643 = vadd.f32 %v7530, %v7642
        %7644 = vmatprep.mubr.bf16.mxu0 %v2580
        %7645 = vmatmul.mubr.bf16.gmra.mrb[0].mxu0 %v2579
        %v7646 = vpop.f32.mrb[0].mxu0
        %v7647 = vadd.f32 %v7534, %v7646
        %v7648 = vpop.f32.mrb[0].mxu0
        %v7649 = vadd.f32 %v7536, %v7648
        %v7650 = vpop.f32.mrb[0].mxu0
        %v7651 = vadd.f32 %v7538, %v7650
        %v7652 = vpop.f32.mrb[0].mxu0
        %v7653 = vadd.f32 %v7540, %v7652
        %7654 = vmatprep.mubr.bf16.mxu0 %v2588
        %7655 = vmatmul.mubr.bf16.gmra.mrb[0].mxu0 %v2587
        %v7656 = vpop.f32.mrb[0].mxu0
        %v7657 = vadd.f32 %v7544, %v7656
        %v7658 = vpop.f32.mrb[0].mxu0
        %v7659 = vadd.f32 %v7546, %v7658
        %v7660 = vpop.f32.mrb[0].mxu0
        %v7661 = vadd.f32 %v7548, %v7660
        %v7662 = vpop.f32.mrb[0].mxu0
        %v7663 = vadd.f32 %v7550, %v7662
        %7664 = vmatprep.mubr.bf16.mxu0 %v2596
        %7665 = vmatmul.mubr.bf16.gmra.mrb[0].mxu0 %v2595
        %v7666 = vpop.f32.mrb[0].mxu0
        %v7667 = vadd.f32 %v7554, %v7666
        %v7668 = vpop.f32.mrb[0].mxu0
        %v7669 = vadd.f32 %v7556, %v7668
        %v7670 = vpop.f32.mrb[0].mxu0
        %v7671 = vadd.f32 %v7558, %v7670
        %v7672 = vpop.f32.mrb[0].mxu0
        %v7673 = vadd.f32 %v7560, %v7672
        %7674 = vmatprep.mubr.bf16.mxu0 %v2604
        %7675 = vmatmul.mubr.bf16.gmra.mrb[0].mxu0 %v2603
        %v7676 = vpop.f32.mrb[0].mxu0
        %v7677 = vadd.f32 %v7564, %v7676
        %v7678 = vpop.f32.mrb[0].mxu0
        %v7679 = vadd.f32 %v7566, %v7678
        %v7680 = vpop.f32.mrb[0].mxu0
        %v7681 = vadd.f32 %v7568, %v7680
        %v7682 = vpop.f32.mrb[0].mxu0
        %v7683 = vadd.f32 %v7570, %v7682
        %7684 = vdwg.mxu0
        %7685 = vmatprep.subr.bf16.mxu0 %v5468
        %7686 = vmatpush1.bf16.msra.mxu0 %v5467
        %7687 = vmatprep.subr.bf16.mxu0 %v5476
        %7688 = vmatpush1.bf16.msra.mxu0 %v5475
        %7689 = vmatprep.subr.bf16.mxu0 %v5484
        %7690 = vmatpush1.bf16.msra.mxu0 %v5483
        %7691 = vmatprep.subr.bf16.mxu0 %v5492
        %7692 = vmatpush1.bf16.msra.mxu0 %v5491
        %7693 = vmatprep.subr.bf16.mxu0 %v5500
        %7694 = vmatpush1.bf16.msra.mxu0 %v5499
        %7695 = vmatprep.subr.bf16.mxu0 %v5508
        %7696 = vmatpush1.bf16.msra.mxu0 %v5507
        %7697 = vmatprep.subr.bf16.mxu0 %v5516
        %7698 = vmatpush1.bf16.msra.mxu0 %v5515
        %7699 = vmatprep.subr.bf16.mxu0 %v5524
        %7700 = vmatpush1.bf16.msra.mxu0 %v5523
        %7701 = vmatprep.subr.bf16.mxu0 0
        %7702 = vmatpush1.bf16.msra.mxu0 0
        %7703 = vmatprep.subr.bf16.mxu0 0
        %7704 = vmatpush1.bf16.msra.mxu0 0
        %7705 = vmatprep.subr.bf16.mxu0 0
        %7706 = vmatpush1.bf16.msra.mxu0 0
        %7707 = vmatprep.subr.bf16.mxu0 0
        %7708 = vmatpush1.bf16.msra.mxu0 0
        %7709 = vmatprep.subr.bf16.mxu0 0
        %7710 = vmatpush1.bf16.msra.mxu0 0
        %7711 = vmatprep.subr.bf16.mxu0 0
        %7712 = vmatpush1.bf16.msra.mxu0 0
        %7713 = vmatprep.subr.bf16.mxu0 0
        %7714 = vmatpush1.bf16.msra.mxu0 0
        %7715 = vmatprep.subr.bf16.mxu0 0
        %7716 = vmatpush1.bf16.msra.mxu0 0
        %7717 = vmatprep.mubr.bf16.mxu0 0
        %7718 = vmatmul.mubr.bf16.gmra.mrb[0].mxu0 %v1527
        %v7719 = vpop.f32.mrb[0].mxu0
        %v7720 = vadd.f32 %v7607, %v7719
        %v7721 = vpop.f32.mrb[0].mxu0
        %v7722 = vadd.f32 %v7609, %v7721
        %v7723 = vpop.f32.mrb[0].mxu0
        %v7724 = vadd.f32 %v7611, %v7723
        %v7725 = vpop.f32.mrb[0].mxu0
        %v7726 = vadd.f32 %v7613, %v7725
        %7727 = vmatprep.mubr.bf16.mxu0 0
        %7728 = vmatmul.mubr.bf16.gmra.mrb[0].mxu0 %v1528
        %v7729 = vpop.f32.mrb[0].mxu0
        %v7730 = vadd.f32 %v7617, %v7729
        %v7731 = vpop.f32.mrb[0].mxu0
        %v7732 = vadd.f32 %v7619, %v7731
        %v7733 = vpop.f32.mrb[0].mxu0
        %v7734 = vadd.f32 %v7621, %v7733
        %v7735 = vpop.f32.mrb[0].mxu0
        %v7736 = vadd.f32 %v7623, %v7735
        %7737 = vmatprep.mubr.bf16.mxu0 0
        %7738 = vmatmul.mubr.bf16.gmra.mrb[0].mxu0 %v1529
        %v7739 = vpop.f32.mrb[0].mxu0
        %v7740 = vadd.f32 %v7627, %v7739
        %v7741 = vpop.f32.mrb[0].mxu0
        %v7742 = vadd.f32 %v7629, %v7741
        %v7743 = vpop.f32.mrb[0].mxu0
        %v7744 = vadd.f32 %v7631, %v7743
        %v7745 = vpop.f32.mrb[0].mxu0
        %v7746 = vadd.f32 %v7633, %v7745
        %7747 = vmatprep.mubr.bf16.mxu0 0
        %7748 = vmatmul.mubr.bf16.gmra.mrb[0].mxu0 %v1530
        %v7749 = vpop.f32.mrb[0].mxu0
        %v7750 = vadd.f32 %v7637, %v7749
        %v7751 = vpop.f32.mrb[0].mxu0
        %v7752 = vadd.f32 %v7639, %v7751
        %v7753 = vpop.f32.mrb[0].mxu0
        %v7754 = vadd.f32 %v7641, %v7753
        %v7755 = vpop.f32.mrb[0].mxu0
        %v7756 = vadd.f32 %v7643, %v7755
        %7757 = vmatprep.mubr.bf16.mxu0 0
        %7758 = vmatmul.mubr.bf16.gmra.mrb[0].mxu0 %v1531
        %v7759 = vpop.f32.mrb[0].mxu0
        %v7760 = vadd.f32 %v7647, %v7759
        %v7761 = vpop.f32.mrb[0].mxu0
        %v7762 = vadd.f32 %v7649, %v7761
        %v7763 = vpop.f32.mrb[0].mxu0
        %v7764 = vadd.f32 %v7651, %v7763
        %v7765 = vpop.f32.mrb[0].mxu0
        %v7766 = vadd.f32 %v7653, %v7765
        %7767 = vmatprep.mubr.bf16.mxu0 0
        %7768 = vmatmul.mubr.bf16.gmra.mrb[0].mxu0 %v1532
        %v7769 = vpop.f32.mrb[0].mxu0
        %v7770 = vadd.f32 %v7657, %v7769
        %v7771 = vpop.f32.mrb[0].mxu0
        %v7772 = vadd.f32 %v7659, %v7771
        %v7773 = vpop.f32.mrb[0].mxu0
        %v7774 = vadd.f32 %v7661, %v7773
        %v7775 = vpop.f32.mrb[0].mxu0
        %v7776 = vadd.f32 %v7663, %v7775
        %7777 = vmatprep.mubr.bf16.mxu0 0
        %7778 = vmatmul.mubr.bf16.gmra.mrb[0].mxu0 %v1533
        %v7779 = vpop.f32.mrb[0].mxu0
        %v7780 = vadd.f32 %v7667, %v7779
        %v7781 = vpop.f32.mrb[0].mxu0
        %v7782 = vadd.f32 %v7669, %v7781
        %v7783 = vpop.f32.mrb[0].mxu0
        %v7784 = vadd.f32 %v7671, %v7783
        %v7785 = vpop.f32.mrb[0].mxu0
        %v7786 = vadd.f32 %v7673, %v7785
        %7787 = vmatprep.mubr.bf16.mxu0 0
        %7788 = vmatmul.mubr.bf16.gmra.mrb[0].mxu0 %v1534
        %v7789 = vpop.f32.mrb[0].mxu0
        %v7790 = vadd.f32 %v7677, %v7789
        %v7791 = vpop.f32.mrb[0].mxu0
        %v7792 = vadd.f32 %v7679, %v7791
        %v7793 = vpop.f32.mrb[0].mxu0
        %v7794 = vadd.f32 %v7681, %v7793
        %v7795 = vpop.f32.mrb[0].mxu0
        %v7796 = vadd.f32 %v7683, %v7795
        %7797 = vdwg.mxu0
        %7798 = vmatprep.subr.bf16.mxu0 %v4958
        %7799 = vmatpush1.bf16.msra.mxu0 %v4957
        %7800 = vmatprep.subr.bf16.mxu0 %v4966
        %7801 = vmatpush1.bf16.msra.mxu0 %v4965
        %7802 = vmatprep.subr.bf16.mxu0 %v4974
        %7803 = vmatpush1.bf16.msra.mxu0 %v4973
        %7804 = vmatprep.subr.bf16.mxu0 %v4982
        %7805 = vmatpush1.bf16.msra.mxu0 %v4981
        %7806 = vmatprep.subr.bf16.mxu0 %v4990
        %7807 = vmatpush1.bf16.msra.mxu0 %v4989
        %7808 = vmatprep.subr.bf16.mxu0 %v4998
        %7809 = vmatpush1.bf16.msra.mxu0 %v4997
        %7810 = vmatprep.subr.bf16.mxu0 %v5006
        %7811 = vmatpush1.bf16.msra.mxu0 %v5005
        %7812 = vmatprep.subr.bf16.mxu0 %v5014
        %7813 = vmatpush1.bf16.msra.mxu0 %v5013
        %7814 = vmatprep.subr.bf16.mxu0 %v5022
        %7815 = vmatpush1.bf16.msra.mxu0 %v5021
        %7816 = vmatprep.subr.bf16.mxu0 %v5030
        %7817 = vmatpush1.bf16.msra.mxu0 %v5029
        %7818 = vmatprep.subr.bf16.mxu0 %v5038
        %7819 = vmatpush1.bf16.msra.mxu0 %v5037
        %7820 = vmatprep.subr.bf16.mxu0 %v5046
        %7821 = vmatpush1.bf16.msra.mxu0 %v5045
        %7822 = vmatprep.subr.bf16.mxu0 %v5054
        %7823 = vmatpush1.bf16.msra.mxu0 %v5053
        %7824 = vmatprep.subr.bf16.mxu0 %v5062
        %7825 = vmatpush1.bf16.msra.mxu0 %v5061
        %7826 = vmatprep.subr.bf16.mxu0 %v5070
        %7827 = vmatpush1.bf16.msra.mxu0 %v5069
        %7828 = vmatprep.subr.bf16.mxu0 %v5078
        %7829 = vmatpush1.bf16.msra.mxu0 %v5077
        %7830 = vmatprep.mubr.bf16.mxu0 %v2542
        %7831 = vmatmul.mubr.bf16.gmra.mrb[0].mxu0 %v2541
        %v7832 = vpop.f32.mrb[0].mxu0
        %v7833 = vadd.f32 %v3210, %v7832
        %v7834 = vpop.f32.mrb[0].mxu0
        %v7835 = vadd.f32 %v3214, %v7834
        %v7836 = vpop.f32.mrb[0].mxu0
        %v7837 = vadd.f32 %v3210, %v7836
        %v7838 = vpop.f32.mrb[0].mxu0
        %v7839 = vadd.f32 %v3214, %v7838
        %7840 = vmatprep.mubr.bf16.mxu0 %v2550
        %7841 = vmatmul.mubr.bf16.gmra.mrb[0].mxu0 %v2549
        %v7842 = vpop.f32.mrb[0].mxu0
        %v7843 = vadd.f32 %v3210, %v7842
        %v7844 = vpop.f32.mrb[0].mxu0
        %v7845 = vadd.f32 %v3214, %v7844
        %v7846 = vpop.f32.mrb[0].mxu0
        %v7847 = vadd.f32 %v3210, %v7846
        %v7848 = vpop.f32.mrb[0].mxu0
        %v7849 = vadd.f32 %v3214, %v7848
        %7850 = vmatprep.mubr.bf16.mxu0 %v2558
        %7851 = vmatmul.mubr.bf16.gmra.mrb[0].mxu0 %v2557
        %v7852 = vpop.f32.mrb[0].mxu0
        %v7853 = vadd.f32 %v3210, %v7852
        %v7854 = vpop.f32.mrb[0].mxu0
        %v7855 = vadd.f32 %v3214, %v7854
        %v7856 = vpop.f32.mrb[0].mxu0
        %v7857 = vadd.f32 %v3210, %v7856
        %v7858 = vpop.f32.mrb[0].mxu0
        %v7859 = vadd.f32 %v3214, %v7858
        %7860 = vmatprep.mubr.bf16.mxu0 %v2566
        %7861 = vmatmul.mubr.bf16.gmra.mrb[0].mxu0 %v2565
        %v7862 = vpop.f32.mrb[0].mxu0
        %v7863 = vadd.f32 %v3210, %v7862
        %v7864 = vpop.f32.mrb[0].mxu0
        %v7865 = vadd.f32 %v3214, %v7864
        %v7866 = vpop.f32.mrb[0].mxu0
        %v7867 = vadd.f32 %v3210, %v7866
        %v7868 = vpop.f32.mrb[0].mxu0
        %v7869 = vadd.f32 %v3214, %v7868
        %7870 = vmatprep.mubr.bf16.mxu0 %v2574
        %7871 = vmatmul.mubr.bf16.gmra.mrb[0].mxu0 %v2573
        %v7872 = vpop.f32.mrb[0].mxu0
        %v7873 = vadd.f32 %v3210, %v7872
        %v7874 = vpop.f32.mrb[0].mxu0
        %v7875 = vadd.f32 %v3214, %v7874
        %v7876 = vpop.f32.mrb[0].mxu0
        %v7877 = vadd.f32 %v3210, %v7876
        %v7878 = vpop.f32.mrb[0].mxu0
        %v7879 = vadd.f32 %v3214, %v7878
        %7880 = vmatprep.mubr.bf16.mxu0 %v2582
        %7881 = vmatmul.mubr.bf16.gmra.mrb[0].mxu0 %v2581
        %v7882 = vpop.f32.mrb[0].mxu0
        %v7883 = vadd.f32 %v3210, %v7882
        %v7884 = vpop.f32.mrb[0].mxu0
        %v7885 = vadd.f32 %v3214, %v7884
        %v7886 = vpop.f32.mrb[0].mxu0
        %v7887 = vadd.f32 %v3210, %v7886
        %v7888 = vpop.f32.mrb[0].mxu0
        %v7889 = vadd.f32 %v3214, %v7888
        %7890 = vmatprep.mubr.bf16.mxu0 %v2590
        %7891 = vmatmul.mubr.bf16.gmra.mrb[0].mxu0 %v2589
        %v7892 = vpop.f32.mrb[0].mxu0
        %v7893 = vadd.f32 %v3210, %v7892
        %v7894 = vpop.f32.mrb[0].mxu0
        %v7895 = vadd.f32 %v3214, %v7894
        %v7896 = vpop.f32.mrb[0].mxu0
        %v7897 = vadd.f32 %v3210, %v7896
        %v7898 = vpop.f32.mrb[0].mxu0
        %v7899 = vadd.f32 %v3214, %v7898
        %7900 = vmatprep.mubr.bf16.mxu0 %v2598
        %7901 = vmatmul.mubr.bf16.gmra.mrb[0].mxu0 %v2597
        %v7902 = vpop.f32.mrb[0].mxu0
        %v7903 = vadd.f32 %v3210, %v7902
        %v7904 = vpop.f32.mrb[0].mxu0
        %v7905 = vadd.f32 %v3214, %v7904
        %v7906 = vpop.f32.mrb[0].mxu0
        %v7907 = vadd.f32 %v3210, %v7906
        %v7908 = vpop.f32.mrb[0].mxu0
        %v7909 = vadd.f32 %v3214, %v7908
        %7910 = vdwg.mxu0
        %7911 = vmatprep.subr.bf16.mxu0 %v5086
        %7912 = vmatpush1.bf16.msra.mxu0 %v5085
        %7913 = vmatprep.subr.bf16.mxu0 %v5094
        %7914 = vmatpush1.bf16.msra.mxu0 %v5093
        %7915 = vmatprep.subr.bf16.mxu0 %v5102
        %7916 = vmatpush1.bf16.msra.mxu0 %v5101
        %7917 = vmatprep.subr.bf16.mxu0 %v5110
        %7918 = vmatpush1.bf16.msra.mxu0 %v5109
        %7919 = vmatprep.subr.bf16.mxu0 %v5118
        %7920 = vmatpush1.bf16.msra.mxu0 %v5117
        %7921 = vmatprep.subr.bf16.mxu0 %v5126
        %7922 = vmatpush1.bf16.msra.mxu0 %v5125
        %7923 = vmatprep.subr.bf16.mxu0 %v5134
        %7924 = vmatpush1.bf16.msra.mxu0 %v5133
        %7925 = vmatprep.subr.bf16.mxu0 %v5142
        %7926 = vmatpush1.bf16.msra.mxu0 %v5141
        %7927 = vmatprep.subr.bf16.mxu0 %v5150
        %7928 = vmatpush1.bf16.msra.mxu0 %v5149
        %7929 = vmatprep.subr.bf16.mxu0 %v5158
        %7930 = vmatpush1.bf16.msra.mxu0 %v5157
        %7931 = vmatprep.subr.bf16.mxu0 %v5166
        %7932 = vmatpush1.bf16.msra.mxu0 %v5165
        %7933 = vmatprep.subr.bf16.mxu0 %v5174
        %7934 = vmatpush1.bf16.msra.mxu0 %v5173
        %7935 = vmatprep.subr.bf16.mxu0 %v5182
        %7936 = vmatpush1.bf16.msra.mxu0 %v5181
        %7937 = vmatprep.subr.bf16.mxu0 %v5190
        %7938 = vmatpush1.bf16.msra.mxu0 %v5189
        %7939 = vmatprep.subr.bf16.mxu0 %v5198
        %7940 = vmatpush1.bf16.msra.mxu0 %v5197
        %7941 = vmatprep.subr.bf16.mxu0 %v5206
        %7942 = vmatpush1.bf16.msra.mxu0 %v5205
        %7943 = vmatprep.mubr.bf16.mxu0 %v2544
        %7944 = vmatmul.mubr.bf16.gmra.mrb[0].mxu0 %v2543
        %v7945 = vpop.f32.mrb[0].mxu0
        %v7946 = vadd.f32 %v7833, %v7945
        %v7947 = vpop.f32.mrb[0].mxu0
        %v7948 = vadd.f32 %v7835, %v7947
        %v7949 = vpop.f32.mrb[0].mxu0
        %v7950 = vadd.f32 %v7837, %v7949
        %v7951 = vpop.f32.mrb[0].mxu0
        %v7952 = vadd.f32 %v7839, %v7951
        %7953 = vmatprep.mubr.bf16.mxu0 %v2552
        %7954 = vmatmul.mubr.bf16.gmra.mrb[0].mxu0 %v2551
        %v7955 = vpop.f32.mrb[0].mxu0
        %v7956 = vadd.f32 %v7843, %v7955
        %v7957 = vpop.f32.mrb[0].mxu0
        %v7958 = vadd.f32 %v7845, %v7957
        %v7959 = vpop.f32.mrb[0].mxu0
        %v7960 = vadd.f32 %v7847, %v7959
        %v7961 = vpop.f32.mrb[0].mxu0
        %v7962 = vadd.f32 %v7849, %v7961
        %7963 = vmatprep.mubr.bf16.mxu0 %v2560
        %7964 = vmatmul.mubr.bf16.gmra.mrb[0].mxu0 %v2559
        %v7965 = vpop.f32.mrb[0].mxu0
        %v7966 = vadd.f32 %v7853, %v7965
        %v7967 = vpop.f32.mrb[0].mxu0
        %v7968 = vadd.f32 %v7855, %v7967
        %v7969 = vpop.f32.mrb[0].mxu0
        %v7970 = vadd.f32 %v7857, %v7969
        %v7971 = vpop.f32.mrb[0].mxu0
        %v7972 = vadd.f32 %v7859, %v7971
        %7973 = vmatprep.mubr.bf16.mxu0 %v2568
        %7974 = vmatmul.mubr.bf16.gmra.mrb[0].mxu0 %v2567
        %v7975 = vpop.f32.mrb[0].mxu0
        %v7976 = vadd.f32 %v7863, %v7975
        %v7977 = vpop.f32.mrb[0].mxu0
        %v7978 = vadd.f32 %v7865, %v7977
        %v7979 = vpop.f32.mrb[0].mxu0
        %v7980 = vadd.f32 %v7867, %v7979
        %v7981 = vpop.f32.mrb[0].mxu0
        %v7982 = vadd.f32 %v7869, %v7981
        %7983 = vmatprep.mubr.bf16.mxu0 %v2576
        %7984 = vmatmul.mubr.bf16.gmra.mrb[0].mxu0 %v2575
        %v7985 = vpop.f32.mrb[0].mxu0
        %v7986 = vadd.f32 %v7873, %v7985
        %v7987 = vpop.f32.mrb[0].mxu0
        %v7988 = vadd.f32 %v7875, %v7987
        %v7989 = vpop.f32.mrb[0].mxu0
        %v7990 = vadd.f32 %v7877, %v7989
        %v7991 = vpop.f32.mrb[0].mxu0
        %v7992 = vadd.f32 %v7879, %v7991
        %7993 = vmatprep.mubr.bf16.mxu0 %v2584
        %7994 = vmatmul.mubr.bf16.gmra.mrb[0].mxu0 %v2583
        %v7995 = vpop.f32.mrb[0].mxu0
        %v7996 = vadd.f32 %v7883, %v7995
        %v7997 = vpop.f32.mrb[0].mxu0
        %v7998 = vadd.f32 %v7885, %v7997
        %v7999 = vpop.f32.mrb[0].mxu0
        %v8000 = vadd.f32 %v7887, %v7999
        %v8001 = vpop.f32.mrb[0].mxu0
        %v8002 = vadd.f32 %v7889, %v8001
        %8003 = vmatprep.mubr.bf16.mxu0 %v2592
        %8004 = vmatmul.mubr.bf16.gmra.mrb[0].mxu0 %v2591
        %v8005 = vpop.f32.mrb[0].mxu0
        %v8006 = vadd.f32 %v7893, %v8005
        %v8007 = vpop.f32.mrb[0].mxu0
        %v8008 = vadd.f32 %v7895, %v8007
        %v8009 = vpop.f32.mrb[0].mxu0
        %v8010 = vadd.f32 %v7897, %v8009
        %v8011 = vpop.f32.mrb[0].mxu0
        %v8012 = vadd.f32 %v7899, %v8011
        %8013 = vmatprep.mubr.bf16.mxu0 %v2600
        %8014 = vmatmul.mubr.bf16.gmra.mrb[0].mxu0 %v2599
        %v8015 = vpop.f32.mrb[0].mxu0
        %v8016 = vadd.f32 %v7903, %v8015
        %v8017 = vpop.f32.mrb[0].mxu0
        %v8018 = vadd.f32 %v7905, %v8017
        %v8019 = vpop.f32.mrb[0].mxu0
        %v8020 = vadd.f32 %v7907, %v8019
        %v8021 = vpop.f32.mrb[0].mxu0
        %v8022 = vadd.f32 %v7909, %v8021
        %8023 = vdwg.mxu0
        %8024 = vmatprep.subr.bf16.mxu0 %v5214
        %8025 = vmatpush1.bf16.msra.mxu0 %v5213
        %8026 = vmatprep.subr.bf16.mxu0 %v5222
        %8027 = vmatpush1.bf16.msra.mxu0 %v5221
        %8028 = vmatprep.subr.bf16.mxu0 %v5230
        %8029 = vmatpush1.bf16.msra.mxu0 %v5229
        %8030 = vmatprep.subr.bf16.mxu0 %v5238
        %8031 = vmatpush1.bf16.msra.mxu0 %v5237
        %8032 = vmatprep.subr.bf16.mxu0 %v5246
        %8033 = vmatpush1.bf16.msra.mxu0 %v5245
        %8034 = vmatprep.subr.bf16.mxu0 %v5254
        %8035 = vmatpush1.bf16.msra.mxu0 %v5253
        %8036 = vmatprep.subr.bf16.mxu0 %v5262
        %8037 = vmatpush1.bf16.msra.mxu0 %v5261
        %8038 = vmatprep.subr.bf16.mxu0 %v5270
        %8039 = vmatpush1.bf16.msra.mxu0 %v5269
        %8040 = vmatprep.subr.bf16.mxu0 %v5278
        %8041 = vmatpush1.bf16.msra.mxu0 %v5277
        %8042 = vmatprep.subr.bf16.mxu0 %v5286
        %8043 = vmatpush1.bf16.msra.mxu0 %v5285
        %8044 = vmatprep.subr.bf16.mxu0 %v5294
        %8045 = vmatpush1.bf16.msra.mxu0 %v5293
        %8046 = vmatprep.subr.bf16.mxu0 %v5302
        %8047 = vmatpush1.bf16.msra.mxu0 %v5301
        %8048 = vmatprep.subr.bf16.mxu0 %v5310
        %8049 = vmatpush1.bf16.msra.mxu0 %v5309
        %8050 = vmatprep.subr.bf16.mxu0 %v5318
        %8051 = vmatpush1.bf16.msra.mxu0 %v5317
        %8052 = vmatprep.subr.bf16.mxu0 %v5326
        %8053 = vmatpush1.bf16.msra.mxu0 %v5325
        %8054 = vmatprep.subr.bf16.mxu0 %v5334
        %8055 = vmatpush1.bf16.msra.mxu0 %v5333
        %8056 = vmatprep.mubr.bf16.mxu0 %v2546
        %8057 = vmatmul.mubr.bf16.gmra.mrb[0].mxu0 %v2545
        %v8058 = vpop.f32.mrb[0].mxu0
        %v8059 = vadd.f32 %v7946, %v8058
        %v8060 = vpop.f32.mrb[0].mxu0
        %v8061 = vadd.f32 %v7948, %v8060
        %v8062 = vpop.f32.mrb[0].mxu0
        %v8063 = vadd.f32 %v7950, %v8062
        %v8064 = vpop.f32.mrb[0].mxu0
        %v8065 = vadd.f32 %v7952, %v8064
        %8066 = vmatprep.mubr.bf16.mxu0 %v2554
        %8067 = vmatmul.mubr.bf16.gmra.mrb[0].mxu0 %v2553
        %v8068 = vpop.f32.mrb[0].mxu0
        %v8069 = vadd.f32 %v7956, %v8068
        %v8070 = vpop.f32.mrb[0].mxu0
        %v8071 = vadd.f32 %v7958, %v8070
        %v8072 = vpop.f32.mrb[0].mxu0
        %v8073 = vadd.f32 %v7960, %v8072
        %v8074 = vpop.f32.mrb[0].mxu0
        %v8075 = vadd.f32 %v7962, %v8074
        %8076 = vmatprep.mubr.bf16.mxu0 %v2562
        %8077 = vmatmul.mubr.bf16.gmra.mrb[0].mxu0 %v2561
        %v8078 = vpop.f32.mrb[0].mxu0
        %v8079 = vadd.f32 %v7966, %v8078
        %v8080 = vpop.f32.mrb[0].mxu0
        %v8081 = vadd.f32 %v7968, %v8080
        %v8082 = vpop.f32.mrb[0].mxu0
        %v8083 = vadd.f32 %v7970, %v8082
        %v8084 = vpop.f32.mrb[0].mxu0
        %v8085 = vadd.f32 %v7972, %v8084
        %8086 = vmatprep.mubr.bf16.mxu0 %v2570
        %8087 = vmatmul.mubr.bf16.gmra.mrb[0].mxu0 %v2569
        %v8088 = vpop.f32.mrb[0].mxu0
        %v8089 = vadd.f32 %v7976, %v8088
        %v8090 = vpop.f32.mrb[0].mxu0
        %v8091 = vadd.f32 %v7978, %v8090
        %v8092 = vpop.f32.mrb[0].mxu0
        %v8093 = vadd.f32 %v7980, %v8092
        %v8094 = vpop.f32.mrb[0].mxu0
        %v8095 = vadd.f32 %v7982, %v8094
        %8096 = vmatprep.mubr.bf16.mxu0 %v2578
        %8097 = vmatmul.mubr.bf16.gmra.mrb[0].mxu0 %v2577
        %v8098 = vpop.f32.mrb[0].mxu0
        %v8099 = vadd.f32 %v7986, %v8098
        %v8100 = vpop.f32.mrb[0].mxu0
        %v8101 = vadd.f32 %v7988, %v8100
        %v8102 = vpop.f32.mrb[0].mxu0
        %v8103 = vadd.f32 %v7990, %v8102
        %v8104 = vpop.f32.mrb[0].mxu0
        %v8105 = vadd.f32 %v7992, %v8104
        %8106 = vmatprep.mubr.bf16.mxu0 %v2586
        %8107 = vmatmul.mubr.bf16.gmra.mrb[0].mxu0 %v2585
        %v8108 = vpop.f32.mrb[0].mxu0
        %v8109 = vadd.f32 %v7996, %v8108
        %v8110 = vpop.f32.mrb[0].mxu0
        %v8111 = vadd.f32 %v7998, %v8110
        %v8112 = vpop.f32.mrb[0].mxu0
        %v8113 = vadd.f32 %v8000, %v8112
        %v8114 = vpop.f32.mrb[0].mxu0
        %v8115 = vadd.f32 %v8002, %v8114
        %8116 = vmatprep.mubr.bf16.mxu0 %v2594
        %8117 = vmatmul.mubr.bf16.gmra.mrb[0].mxu0 %v2593
        %v8118 = vpop.f32.mrb[0].mxu0
        %v8119 = vadd.f32 %v8006, %v8118
        %v8120 = vpop.f32.mrb[0].mxu0
        %v8121 = vadd.f32 %v8008, %v8120
        %v8122 = vpop.f32.mrb[0].mxu0
        %v8123 = vadd.f32 %v8010, %v8122
        %v8124 = vpop.f32.mrb[0].mxu0
        %v8125 = vadd.f32 %v8012, %v8124
        %8126 = vmatprep.mubr.bf16.mxu0 %v2602
        %8127 = vmatmul.mubr.bf16.gmra.mrb[0].mxu0 %v2601
        %v8128 = vpop.f32.mrb[0].mxu0
        %v8129 = vadd.f32 %v8016, %v8128
        %v8130 = vpop.f32.mrb[0].mxu0
        %v8131 = vadd.f32 %v8018, %v8130
        %v8132 = vpop.f32.mrb[0].mxu0
        %v8133 = vadd.f32 %v8020, %v8132
        %v8134 = vpop.f32.mrb[0].mxu0
        %v8135 = vadd.f32 %v8022, %v8134
        %8136 = vdwg.mxu0
        %8137 = vmatprep.subr.bf16.mxu0 %v5342
        %8138 = vmatpush1.bf16.msra.mxu0 %v5341
        %8139 = vmatprep.subr.bf16.mxu0 %v5350
        %8140 = vmatpush1.bf16.msra.mxu0 %v5349
        %8141 = vmatprep.subr.bf16.mxu0 %v5358
        %8142 = vmatpush1.bf16.msra.mxu0 %v5357
        %8143 = vmatprep.subr.bf16.mxu0 %v5366
        %8144 = vmatpush1.bf16.msra.mxu0 %v5365
        %8145 = vmatprep.subr.bf16.mxu0 %v5374
        %8146 = vmatpush1.bf16.msra.mxu0 %v5373
        %8147 = vmatprep.subr.bf16.mxu0 %v5382
        %8148 = vmatpush1.bf16.msra.mxu0 %v5381
        %8149 = vmatprep.subr.bf16.mxu0 %v5390
        %8150 = vmatpush1.bf16.msra.mxu0 %v5389
        %8151 = vmatprep.subr.bf16.mxu0 %v5398
        %8152 = vmatpush1.bf16.msra.mxu0 %v5397
        %8153 = vmatprep.subr.bf16.mxu0 %v5406
        %8154 = vmatpush1.bf16.msra.mxu0 %v5405
        %8155 = vmatprep.subr.bf16.mxu0 %v5414
        %8156 = vmatpush1.bf16.msra.mxu0 %v5413
        %8157 = vmatprep.subr.bf16.mxu0 %v5422
        %8158 = vmatpush1.bf16.msra.mxu0 %v5421
        %8159 = vmatprep.subr.bf16.mxu0 %v5430
        %8160 = vmatpush1.bf16.msra.mxu0 %v5429
        %8161 = vmatprep.subr.bf16.mxu0 %v5438
        %8162 = vmatpush1.bf16.msra.mxu0 %v5437
        %8163 = vmatprep.subr.bf16.mxu0 %v5446
        %8164 = vmatpush1.bf16.msra.mxu0 %v5445
        %8165 = vmatprep.subr.bf16.mxu0 %v5454
        %8166 = vmatpush1.bf16.msra.mxu0 %v5453
        %8167 = vmatprep.subr.bf16.mxu0 %v5462
        %8168 = vmatpush1.bf16.msra.mxu0 %v5461
        %8169 = vmatprep.mubr.bf16.mxu0 %v2548
        %8170 = vmatmul.mubr.bf16.gmra.mrb[0].mxu0 %v2547
        %v8171 = vpop.f32.mrb[0].mxu0
        %v8172 = vadd.f32 %v8059, %v8171
        %v8173 = vpop.f32.mrb[0].mxu0
        %v8174 = vadd.f32 %v8061, %v8173
        %v8175 = vpop.f32.mrb[0].mxu0
        %v8176 = vadd.f32 %v8063, %v8175
        %v8177 = vpop.f32.mrb[0].mxu0
        %v8178 = vadd.f32 %v8065, %v8177
        %8179 = vmatprep.mubr.bf16.mxu0 %v2556
        %8180 = vmatmul.mubr.bf16.gmra.mrb[0].mxu0 %v2555
        %v8181 = vpop.f32.mrb[0].mxu0
        %v8182 = vadd.f32 %v8069, %v8181
        %v8183 = vpop.f32.mrb[0].mxu0
        %v8184 = vadd.f32 %v8071, %v8183
        %v8185 = vpop.f32.mrb[0].mxu0
        %v8186 = vadd.f32 %v8073, %v8185
        %v8187 = vpop.f32.mrb[0].mxu0
        %v8188 = vadd.f32 %v8075, %v8187
        %8189 = vmatprep.mubr.bf16.mxu0 %v2564
        %8190 = vmatmul.mubr.bf16.gmra.mrb[0].mxu0 %v2563
        %v8191 = vpop.f32.mrb[0].mxu0
        %v8192 = vadd.f32 %v8079, %v8191
        %v8193 = vpop.f32.mrb[0].mxu0
        %v8194 = vadd.f32 %v8081, %v8193
        %v8195 = vpop.f32.mrb[0].mxu0
        %v8196 = vadd.f32 %v8083, %v8195
        %v8197 = vpop.f32.mrb[0].mxu0
        %v8198 = vadd.f32 %v8085, %v8197
        %8199 = vmatprep.mubr.bf16.mxu0 %v2572
        %8200 = vmatmul.mubr.bf16.gmra.mrb[0].mxu0 %v2571
        %v8201 = vpop.f32.mrb[0].mxu0
        %v8202 = vadd.f32 %v8089, %v8201
        %v8203 = vpop.f32.mrb[0].mxu0
        %v8204 = vadd.f32 %v8091, %v8203
        %v8205 = vpop.f32.mrb[0].mxu0
        %v8206 = vadd.f32 %v8093, %v8205
        %v8207 = vpop.f32.mrb[0].mxu0
        %v8208 = vadd.f32 %v8095, %v8207
        %8209 = vmatprep.mubr.bf16.mxu0 %v2580
        %8210 = vmatmul.mubr.bf16.gmra.mrb[0].mxu0 %v2579
        %v8211 = vpop.f32.mrb[0].mxu0
        %v8212 = vadd.f32 %v8099, %v8211
        %v8213 = vpop.f32.mrb[0].mxu0
        %v8214 = vadd.f32 %v8101, %v8213
        %v8215 = vpop.f32.mrb[0].mxu0
        %v8216 = vadd.f32 %v8103, %v8215
        %v8217 = vpop.f32.mrb[0].mxu0
        %v8218 = vadd.f32 %v8105, %v8217
        %8219 = vmatprep.mubr.bf16.mxu0 %v2588
        %8220 = vmatmul.mubr.bf16.gmra.mrb[0].mxu0 %v2587
        %v8221 = vpop.f32.mrb[0].mxu0
        %v8222 = vadd.f32 %v8109, %v8221
        %v8223 = vpop.f32.mrb[0].mxu0
        %v8224 = vadd.f32 %v8111, %v8223
        %v8225 = vpop.f32.mrb[0].mxu0
        %v8226 = vadd.f32 %v8113, %v8225
        %v8227 = vpop.f32.mrb[0].mxu0
        %v8228 = vadd.f32 %v8115, %v8227
        %8229 = vmatprep.mubr.bf16.mxu0 %v2596
        %8230 = vmatmul.mubr.bf16.gmra.mrb[0].mxu0 %v2595
        %v8231 = vpop.f32.mrb[0].mxu0
        %v8232 = vadd.f32 %v8119, %v8231
        %v8233 = vpop.f32.mrb[0].mxu0
        %v8234 = vadd.f32 %v8121, %v8233
        %v8235 = vpop.f32.mrb[0].mxu0
        %v8236 = vadd.f32 %v8123, %v8235
        %v8237 = vpop.f32.mrb[0].mxu0
        %v8238 = vadd.f32 %v8125, %v8237
        %8239 = vmatprep.mubr.bf16.mxu0 %v2604
        %8240 = vmatmul.mubr.bf16.gmra.mrb[0].mxu0 %v2603
        %v8241 = vpop.f32.mrb[0].mxu0
        %v8242 = vadd.f32 %v8129, %v8241
        %v8243 = vpop.f32.mrb[0].mxu0
        %v8244 = vadd.f32 %v8131, %v8243
        %v8245 = vpop.f32.mrb[0].mxu0
        %v8246 = vadd.f32 %v8133, %v8245
        %v8247 = vpop.f32.mrb[0].mxu0
        %v8248 = vadd.f32 %v8135, %v8247
        %8249 = vdwg.mxu0
        %8250 = vmatprep.subr.bf16.mxu0 %v5470
        %8251 = vmatpush1.bf16.msra.mxu0 %v5469
        %8252 = vmatprep.subr.bf16.mxu0 %v5478
        %8253 = vmatpush1.bf16.msra.mxu0 %v5477
        %8254 = vmatprep.subr.bf16.mxu0 %v5486
        %8255 = vmatpush1.bf16.msra.mxu0 %v5485
        %8256 = vmatprep.subr.bf16.mxu0 %v5494
        %8257 = vmatpush1.bf16.msra.mxu0 %v5493
        %8258 = vmatprep.subr.bf16.mxu0 %v5502
        %8259 = vmatpush1.bf16.msra.mxu0 %v5501
        %8260 = vmatprep.subr.bf16.mxu0 %v5510
        %8261 = vmatpush1.bf16.msra.mxu0 %v5509
        %8262 = vmatprep.subr.bf16.mxu0 %v5518
        %8263 = vmatpush1.bf16.msra.mxu0 %v5517
        %8264 = vmatprep.subr.bf16.mxu0 %v5526
        %8265 = vmatpush1.bf16.msra.mxu0 %v5525
        %8266 = vmatprep.subr.bf16.mxu0 0
        %8267 = vmatpush1.bf16.msra.mxu0 0
        %8268 = vmatprep.subr.bf16.mxu0 0
        %8269 = vmatpush1.bf16.msra.mxu0 0
        %8270 = vmatprep.subr.bf16.mxu0 0
        %8271 = vmatpush1.bf16.msra.mxu0 0
        %8272 = vmatprep.subr.bf16.mxu0 0
        %8273 = vmatpush1.bf16.msra.mxu0 0
        %8274 = vmatprep.subr.bf16.mxu0 0
        %8275 = vmatpush1.bf16.msra.mxu0 0
        %8276 = vmatprep.subr.bf16.mxu0 0
        %8277 = vmatpush1.bf16.msra.mxu0 0
        %8278 = vmatprep.subr.bf16.mxu0 0
        %8279 = vmatpush1.bf16.msra.mxu0 0
        %8280 = vmatprep.subr.bf16.mxu0 0
        %8281 = vmatpush1.bf16.msra.mxu0 0
        %8282 = vmatprep.mubr.bf16.mxu0 0
        %8283 = vmatmul.mubr.bf16.gmra.mrb[0].mxu0 %v1527
        %v8284 = vpop.f32.mrb[0].mxu0
        %v8285 = vadd.f32 %v8172, %v8284
        %v8286 = vpop.f32.mrb[0].mxu0
        %v8287 = vadd.f32 %v8174, %v8286
        %v8288 = vpop.f32.mrb[0].mxu0
        %v8289 = vadd.f32 %v8176, %v8288
        %v8290 = vpop.f32.mrb[0].mxu0
        %v8291 = vadd.f32 %v8178, %v8290
        %8292 = vmatprep.mubr.bf16.mxu0 0
        %8293 = vmatmul.mubr.bf16.gmra.mrb[0].mxu0 %v1528
        %v8294 = vpop.f32.mrb[0].mxu0
        %v8295 = vadd.f32 %v8182, %v8294
        %v8296 = vpop.f32.mrb[0].mxu0
        %v8297 = vadd.f32 %v8184, %v8296
        %v8298 = vpop.f32.mrb[0].mxu0
        %v8299 = vadd.f32 %v8186, %v8298
        %v8300 = vpop.f32.mrb[0].mxu0
        %v8301 = vadd.f32 %v8188, %v8300
        %8302 = vmatprep.mubr.bf16.mxu0 0
        %8303 = vmatmul.mubr.bf16.gmra.mrb[0].mxu0 %v1529
        %v8304 = vpop.f32.mrb[0].mxu0
        %v8305 = vadd.f32 %v8192, %v8304
        %v8306 = vpop.f32.mrb[0].mxu0
        %v8307 = vadd.f32 %v8194, %v8306
        %v8308 = vpop.f32.mrb[0].mxu0
        %v8309 = vadd.f32 %v8196, %v8308
        %v8310 = vpop.f32.mrb[0].mxu0
        %v8311 = vadd.f32 %v8198, %v8310
        %8312 = vmatprep.mubr.bf16.mxu0 0
        %8313 = vmatmul.mubr.bf16.gmra.mrb[0].mxu0 %v1530
        %v8314 = vpop.f32.mrb[0].mxu0
        %v8315 = vadd.f32 %v8202, %v8314
        %v8316 = vpop.f32.mrb[0].mxu0
        %v8317 = vadd.f32 %v8204, %v8316
        %v8318 = vpop.f32.mrb[0].mxu0
        %v8319 = vadd.f32 %v8206, %v8318
        %v8320 = vpop.f32.mrb[0].mxu0
        %v8321 = vadd.f32 %v8208, %v8320
        %8322 = vmatprep.mubr.bf16.mxu0 0
        %8323 = vmatmul.mubr.bf16.gmra.mrb[0].mxu0 %v1531
        %v8324 = vpop.f32.mrb[0].mxu0
        %v8325 = vadd.f32 %v8212, %v8324
        %v8326 = vpop.f32.mrb[0].mxu0
        %v8327 = vadd.f32 %v8214, %v8326
        %v8328 = vpop.f32.mrb[0].mxu0
        %v8329 = vadd.f32 %v8216, %v8328
        %v8330 = vpop.f32.mrb[0].mxu0
        %v8331 = vadd.f32 %v8218, %v8330
        %8332 = vmatprep.mubr.bf16.mxu0 0
        %8333 = vmatmul.mubr.bf16.gmra.mrb[0].mxu0 %v1532
        %v8334 = vpop.f32.mrb[0].mxu0
        %v8335 = vadd.f32 %v8222, %v8334
        %v8336 = vpop.f32.mrb[0].mxu0
        %v8337 = vadd.f32 %v8224, %v8336
        %v8338 = vpop.f32.mrb[0].mxu0
        %v8339 = vadd.f32 %v8226, %v8338
        %v8340 = vpop.f32.mrb[0].mxu0
        %v8341 = vadd.f32 %v8228, %v8340
        %8342 = vmatprep.mubr.bf16.mxu0 0
        %8343 = vmatmul.mubr.bf16.gmra.mrb[0].mxu0 %v1533
        %v8344 = vpop.f32.mrb[0].mxu0
        %v8345 = vadd.f32 %v8232, %v8344
        %v8346 = vpop.f32.mrb[0].mxu0
        %v8347 = vadd.f32 %v8234, %v8346
        %v8348 = vpop.f32.mrb[0].mxu0
        %v8349 = vadd.f32 %v8236, %v8348
        %v8350 = vpop.f32.mrb[0].mxu0
        %v8351 = vadd.f32 %v8238, %v8350
        %8352 = vmatprep.mubr.bf16.mxu0 0
        %8353 = vmatmul.mubr.bf16.gmra.mrb[0].mxu0 %v1534
        %v8354 = vpop.f32.mrb[0].mxu0
        %v8355 = vadd.f32 %v8242, %v8354
        %v8356 = vpop.f32.mrb[0].mxu0
        %v8357 = vadd.f32 %v8244, %v8356
        %v8358 = vpop.f32.mrb[0].mxu0
        %v8359 = vadd.f32 %v8246, %v8358
        %v8360 = vpop.f32.mrb[0].mxu0
        %v8361 = vadd.f32 %v8248, %v8360
        %8362 = vdwg.mxu0
        %v8363 = vmax.f32 %v6590, 0.0
        %v8364 = vmax.f32 %v6592, 0.0
        %v8365 = vmax.f32 %v7155, 0.0
        %v8366 = vmax.f32 %v7157, 0.0
        %v8367 = vmax.f32 %v7720, 0.0
        %v8368 = vmax.f32 %v7722, 0.0
        %v8369 = vmax.f32 %v8285, 0.0
        %v8370 = vmax.f32 %v8287, 0.0
        %v8371 = vmax.f32 %v6594, 0.0
        %v8372 = vmax.f32 %v6596, 0.0
        %v8373 = vmax.f32 %v7159, 0.0
        %v8374 = vmax.f32 %v7161, 0.0
        %v8375 = vmax.f32 %v7724, 0.0
        %v8376 = vmax.f32 %v7726, 0.0
        %v8377 = vmax.f32 %v8289, 0.0
        %v8378 = vmax.f32 %v8291, 0.0
        %v8379 = vmax.f32 %v6600, 0.0
        %v8380 = vmax.f32 %v6602, 0.0
        %v8381 = vmax.f32 %v7165, 0.0
        %v8382 = vmax.f32 %v7167, 0.0
        %v8383 = vmax.f32 %v7730, 0.0
        %v8384 = vmax.f32 %v7732, 0.0
        %v8385 = vmax.f32 %v8295, 0.0
        %v8386 = vmax.f32 %v8297, 0.0
        %v8387 = vmax.f32 %v6604, 0.0
        %v8388 = vmax.f32 %v6606, 0.0
        %v8389 = vmax.f32 %v7169, 0.0
        %v8390 = vmax.f32 %v7171, 0.0
        %v8391 = vmax.f32 %v7734, 0.0
        %v8392 = vmax.f32 %v7736, 0.0
        %v8393 = vmax.f32 %v8299, 0.0
        %v8394 = vmax.f32 %v8301, 0.0
        %v8395 = vmax.f32 %v6610, 0.0
        %v8396 = vmax.f32 %v6612, 0.0
        %v8397 = vmax.f32 %v7175, 0.0
        %v8398 = vmax.f32 %v7177, 0.0
        %v8399 = vmax.f32 %v7740, 0.0
        %v8400 = vmax.f32 %v7742, 0.0
        %v8401 = vmax.f32 %v8305, 0.0
        %v8402 = vmax.f32 %v8307, 0.0
        %v8403 = vmax.f32 %v6614, 0.0
        %v8404 = vmax.f32 %v6616, 0.0
        %v8405 = vmax.f32 %v7179, 0.0
        %v8406 = vmax.f32 %v7181, 0.0
        %v8407 = vmax.f32 %v7744, 0.0
        %v8408 = vmax.f32 %v7746, 0.0
        %v8409 = vmax.f32 %v8309, 0.0
        %v8410 = vmax.f32 %v8311, 0.0
        %v8411 = vmax.f32 %v6620, 0.0
        %v8412 = vmax.f32 %v6622, 0.0
        %v8413 = vmax.f32 %v7185, 0.0
        %v8414 = vmax.f32 %v7187, 0.0
        %v8415 = vmax.f32 %v7750, 0.0
        %v8416 = vmax.f32 %v7752, 0.0
        %v8417 = vmax.f32 %v8315, 0.0
        %v8418 = vmax.f32 %v8317, 0.0
        %v8419 = vmax.f32 %v6624, 0.0
        %v8420 = vmax.f32 %v6626, 0.0
        %v8421 = vmax.f32 %v7189, 0.0
        %v8422 = vmax.f32 %v7191, 0.0
        %v8423 = vmax.f32 %v7754, 0.0
        %v8424 = vmax.f32 %v7756, 0.0
        %v8425 = vmax.f32 %v8319, 0.0
        %v8426 = vmax.f32 %v8321, 0.0
        %v8427 = vmax.f32 %v6630, 0.0
        %v8428 = vmax.f32 %v6632, 0.0
        %v8429 = vmax.f32 %v7195, 0.0
        %v8430 = vmax.f32 %v7197, 0.0
        %v8431 = vmax.f32 %v7760, 0.0
        %v8432 = vmax.f32 %v7762, 0.0
        %v8433 = vmax.f32 %v8325, 0.0
        %v8434 = vmax.f32 %v8327, 0.0
        %v8435 = vmax.f32 %v6634, 0.0
        %v8436 = vmax.f32 %v6636, 0.0
        %v8437 = vmax.f32 %v7199, 0.0
        %v8438 = vmax.f32 %v7201, 0.0
        %v8439 = vmax.f32 %v7764, 0.0
        %v8440 = vmax.f32 %v7766, 0.0
        %v8441 = vmax.f32 %v8329, 0.0
        %v8442 = vmax.f32 %v8331, 0.0
        %v8443 = vmax.f32 %v6640, 0.0
        %v8444 = vmax.f32 %v6642, 0.0
        %v8445 = vmax.f32 %v7205, 0.0
        %v8446 = vmax.f32 %v7207, 0.0
        %v8447 = vmax.f32 %v7770, 0.0
        %v8448 = vmax.f32 %v7772, 0.0
        %v8449 = vmax.f32 %v8335, 0.0
        %v8450 = vmax.f32 %v8337, 0.0
        %v8451 = vmax.f32 %v6644, 0.0
        %v8452 = vmax.f32 %v6646, 0.0
        %v8453 = vmax.f32 %v7209, 0.0
        %v8454 = vmax.f32 %v7211, 0.0
        %v8455 = vmax.f32 %v7774, 0.0
        %v8456 = vmax.f32 %v7776, 0.0
        %v8457 = vmax.f32 %v8339, 0.0
        %v8458 = vmax.f32 %v8341, 0.0
        %v8459 = vmax.f32 %v6650, 0.0
        %v8460 = vmax.f32 %v6652, 0.0
        %v8461 = vmax.f32 %v7215, 0.0
        %v8462 = vmax.f32 %v7217, 0.0
        %v8463 = vmax.f32 %v7780, 0.0
        %v8464 = vmax.f32 %v7782, 0.0
        %v8465 = vmax.f32 %v8345, 0.0
        %v8466 = vmax.f32 %v8347, 0.0
        %v8467 = vmax.f32 %v6654, 0.0
        %v8468 = vmax.f32 %v6656, 0.0
        %v8469 = vmax.f32 %v7219, 0.0
        %v8470 = vmax.f32 %v7221, 0.0
        %v8471 = vmax.f32 %v7784, 0.0
        %v8472 = vmax.f32 %v7786, 0.0
        %v8473 = vmax.f32 %v8349, 0.0
        %v8474 = vmax.f32 %v8351, 0.0
        %v8475 = vmax.f32 %v6660, 0.0
        %v8476 = vmax.f32 %v6662, 0.0
        %v8477 = vmax.f32 %v7225, 0.0
        %v8478 = vmax.f32 %v7227, 0.0
        %v8479 = vmax.f32 %v7790, 0.0
        %v8480 = vmax.f32 %v7792, 0.0
        %v8481 = vmax.f32 %v8355, 0.0
        %v8482 = vmax.f32 %v8357, 0.0
        %v8483 = vmax.f32 %v6664, 0.0
        %v8484 = vmax.f32 %v6666, 0.0
        %v8485 = vmax.f32 %v7229, 0.0
        %v8486 = vmax.f32 %v7231, 0.0
        %v8487 = vmax.f32 %v7794, 0.0
        %v8488 = vmax.f32 %v7796, 0.0
        %v8489 = vmax.f32 %v8359, 0.0
        %v8490 = vmax.f32 %v8361, 0.0
        %v8491 = vpack.c.bf16 %v8371, %v8363
        %v8492 = vpack.c.bf16 %v8372, %v8364
        %v8493 = vpack.c.bf16 %v8373, %v8365
        %v8494 = vpack.c.bf16 %v8374, %v8366
        %v8495 = vpack.c.bf16 %v8375, %v8367
        %v8496 = vpack.c.bf16 %v8376, %v8368
        %v8497 = vpack.c.bf16 %v8377, %v8369
        %v8498 = vpack.c.bf16 %v8378, %v8370
        %v8499 = vpack.c.bf16 %v8387, %v8379
        %v8500 = vpack.c.bf16 %v8388, %v8380
        %v8501 = vpack.c.bf16 %v8389, %v8381
        %v8502 = vpack.c.bf16 %v8390, %v8382
        %v8503 = vpack.c.bf16 %v8391, %v8383
        %v8504 = vpack.c.bf16 %v8392, %v8384
        %v8505 = vpack.c.bf16 %v8393, %v8385
        %v8506 = vpack.c.bf16 %v8394, %v8386
        %v8507 = vpack.c.bf16 %v8403, %v8395
        %v8508 = vpack.c.bf16 %v8404, %v8396
        %v8509 = vpack.c.bf16 %v8405, %v8397
        %v8510 = vpack.c.bf16 %v8406, %v8398
        %v8511 = vpack.c.bf16 %v8407, %v8399
        %v8512 = vpack.c.bf16 %v8408, %v8400
        %v8513 = vpack.c.bf16 %v8409, %v8401
        %v8514 = vpack.c.bf16 %v8410, %v8402
        %v8515 = vpack.c.bf16 %v8419, %v8411
        %v8516 = vpack.c.bf16 %v8420, %v8412
        %v8517 = vpack.c.bf16 %v8421, %v8413
        %v8518 = vpack.c.bf16 %v8422, %v8414
        %v8519 = vpack.c.bf16 %v8423, %v8415
        %v8520 = vpack.c.bf16 %v8424, %v8416
        %v8521 = vpack.c.bf16 %v8425, %v8417
        %v8522 = vpack.c.bf16 %v8426, %v8418
        %v8523 = vpack.c.bf16 %v8435, %v8427
        %v8524 = vpack.c.bf16 %v8436, %v8428
        %v8525 = vpack.c.bf16 %v8437, %v8429
        %v8526 = vpack.c.bf16 %v8438, %v8430
        %v8527 = vpack.c.bf16 %v8439, %v8431
        %v8528 = vpack.c.bf16 %v8440, %v8432
        %v8529 = vpack.c.bf16 %v8441, %v8433
        %v8530 = vpack.c.bf16 %v8442, %v8434
        %v8531 = vpack.c.bf16 %v8451, %v8443
        %v8532 = vpack.c.bf16 %v8452, %v8444
        %v8533 = vpack.c.bf16 %v8453, %v8445
        %v8534 = vpack.c.bf16 %v8454, %v8446
        %v8535 = vpack.c.bf16 %v8455, %v8447
        %v8536 = vpack.c.bf16 %v8456, %v8448
        %v8537 = vpack.c.bf16 %v8457, %v8449
        %v8538 = vpack.c.bf16 %v8458, %v8450
        %v8539 = vpack.c.bf16 %v8467, %v8459
        %v8540 = vpack.c.bf16 %v8468, %v8460
        %v8541 = vpack.c.bf16 %v8469, %v8461
        %v8542 = vpack.c.bf16 %v8470, %v8462
        %v8543 = vpack.c.bf16 %v8471, %v8463
        %v8544 = vpack.c.bf16 %v8472, %v8464
        %v8545 = vpack.c.bf16 %v8473, %v8465
        %v8546 = vpack.c.bf16 %v8474, %v8466
        %v8547 = vpack.c.bf16 %v8483, %v8475
        %v8548 = vpack.c.bf16 %v8484, %v8476
        %v8549 = vpack.c.bf16 %v8485, %v8477
        %v8550 = vpack.c.bf16 %v8486, %v8478
        %v8551 = vpack.c.bf16 %v8487, %v8479
        %v8552 = vpack.c.bf16 %v8488, %v8480
        %v8553 = vpack.c.bf16 %v8489, %v8481
        %v8554 = vpack.c.bf16 %v8490, %v8482
        %v8555 = vmax.bf16 %v8491, %v8499
        %v8556 = vmax.bf16 %v8555, %v8507
        %v8557 = vmax.bf16 %v8556, %v8515
        %v8558 = vmax.bf16 %v8557, %v8523
        %v8559 = vmax.bf16 %v8558, %v8531
        %v8560 = vmax.bf16 %v8559, %v8539
        %v8561 = vmax.bf16 %v8560, %v8547
        %v8562 = vunpack.i.l.bf16 %v8561
        %v8563 = vunpack.i.h.bf16 %v8561
        %v8564 = vmax.f32 %v8562, %v8563
        %v8565 = vrot.slane %v8564, 4
        %v8566 = vmax.f32 %v8564, %v8565
        %v8567 = vrot.slane %v8566, 2
        %v8568 = vmax.f32 %v8566, %v8567
        %v8569 = vrot.slane %v8568, 1
        %v8570 = vmax.f32 %v8568, %v8569
        %v8571 = vpack.i.bf16 %v8570, %v8570
        %v8572 = vmax.bf16 %v8492, %v8500
        %v8573 = vmax.bf16 %v8572, %v8508
        %v8574 = vmax.bf16 %v8573, %v8516
        %v8575 = vmax.bf16 %v8574, %v8524
        %v8576 = vmax.bf16 %v8575, %v8532
        %v8577 = vmax.bf16 %v8576, %v8540
        %v8578 = vmax.bf16 %v8577, %v8548
        %v8579 = vunpack.i.l.bf16 %v8578
        %v8580 = vunpack.i.h.bf16 %v8578
        %v8581 = vmax.f32 %v8579, %v8580
        %v8582 = vrot.slane %v8581, 4
        %v8583 = vmax.f32 %v8581, %v8582
        %v8584 = vrot.slane %v8583, 2
        %v8585 = vmax.f32 %v8583, %v8584
        %v8586 = vrot.slane %v8585, 1
        %v8587 = vmax.f32 %v8585, %v8586
        %v8588 = vpack.i.bf16 %v8587, %v8587
        %v8589 = vmax.bf16 %v8493, %v8501
        %v8590 = vmax.bf16 %v8589, %v8509
        %v8591 = vmax.bf16 %v8590, %v8517
        %v8592 = vmax.bf16 %v8591, %v8525
        %v8593 = vmax.bf16 %v8592, %v8533
        %v8594 = vmax.bf16 %v8593, %v8541
        %v8595 = vmax.bf16 %v8594, %v8549
        %v8596 = vunpack.i.l.bf16 %v8595
        %v8597 = vunpack.i.h.bf16 %v8595
        %v8598 = vmax.f32 %v8596, %v8597
        %v8599 = vrot.slane %v8598, 4
        %v8600 = vmax.f32 %v8598, %v8599
        %v8601 = vrot.slane %v8600, 2
        %v8602 = vmax.f32 %v8600, %v8601
        %v8603 = vrot.slane %v8602, 1
        %v8604 = vmax.f32 %v8602, %v8603
        %v8605 = vpack.i.bf16 %v8604, %v8604
        %v8606 = vmax.bf16 %v8494, %v8502
        %v8607 = vmax.bf16 %v8606, %v8510
        %v8608 = vmax.bf16 %v8607, %v8518
        %v8609 = vmax.bf16 %v8608, %v8526
        %v8610 = vmax.bf16 %v8609, %v8534
        %v8611 = vmax.bf16 %v8610, %v8542
        %v8612 = vmax.bf16 %v8611, %v8550
        %v8613 = vunpack.i.l.bf16 %v8612
        %v8614 = vunpack.i.h.bf16 %v8612
        %v8615 = vmax.f32 %v8613, %v8614
        %v8616 = vrot.slane %v8615, 4
        %v8617 = vmax.f32 %v8615, %v8616
        %v8618 = vrot.slane %v8617, 2
        %v8619 = vmax.f32 %v8617, %v8618
        %v8620 = vrot.slane %v8619, 1
        %v8621 = vmax.f32 %v8619, %v8620
        %v8622 = vpack.i.bf16 %v8621, %v8621
        %v8623 = vmax.bf16 %v8495, %v8503
        %v8624 = vmax.bf16 %v8623, %v8511
        %v8625 = vmax.bf16 %v8624, %v8519
        %v8626 = vmax.bf16 %v8625, %v8527
        %v8627 = vmax.bf16 %v8626, %v8535
        %v8628 = vmax.bf16 %v8627, %v8543
        %v8629 = vmax.bf16 %v8628, %v8551
        %v8630 = vunpack.i.l.bf16 %v8629
        %v8631 = vunpack.i.h.bf16 %v8629
        %v8632 = vmax.f32 %v8630, %v8631
        %v8633 = vrot.slane %v8632, 4
        %v8634 = vmax.f32 %v8632, %v8633
        %v8635 = vrot.slane %v8634, 2
        %v8636 = vmax.f32 %v8634, %v8635
        %v8637 = vrot.slane %v8636, 1
        %v8638 = vmax.f32 %v8636, %v8637
        %v8639 = vpack.i.bf16 %v8638, %v8638
        %v8640 = vmax.bf16 %v8496, %v8504
        %v8641 = vmax.bf16 %v8640, %v8512
        %v8642 = vmax.bf16 %v8641, %v8520
        %v8643 = vmax.bf16 %v8642, %v8528
        %v8644 = vmax.bf16 %v8643, %v8536
        %v8645 = vmax.bf16 %v8644, %v8544
        %v8646 = vmax.bf16 %v8645, %v8552
        %v8647 = vunpack.i.l.bf16 %v8646
        %v8648 = vunpack.i.h.bf16 %v8646
        %v8649 = vmax.f32 %v8647, %v8648
        %v8650 = vrot.slane %v8649, 4
        %v8651 = vmax.f32 %v8649, %v8650
        %v8652 = vrot.slane %v8651, 2
        %v8653 = vmax.f32 %v8651, %v8652
        %v8654 = vrot.slane %v8653, 1
        %v8655 = vmax.f32 %v8653, %v8654
        %v8656 = vpack.i.bf16 %v8655, %v8655
        %v8657 = vmax.bf16 %v8497, %v8505
        %v8658 = vmax.bf16 %v8657, %v8513
        %v8659 = vmax.bf16 %v8658, %v8521
        %v8660 = vmax.bf16 %v8659, %v8529
        %v8661 = vmax.bf16 %v8660, %v8537
        %v8662 = vmax.bf16 %v8661, %v8545
        %v8663 = vmax.bf16 %v8662, %v8553
        %v8664 = vunpack.i.l.bf16 %v8663
        %v8665 = vunpack.i.h.bf16 %v8663
        %v8666 = vmax.f32 %v8664, %v8665
        %v8667 = vrot.slane %v8666, 4
        %v8668 = vmax.f32 %v8666, %v8667
        %v8669 = vrot.slane %v8668, 2
        %v8670 = vmax.f32 %v8668, %v8669
        %v8671 = vrot.slane %v8670, 1
        %v8672 = vmax.f32 %v8670, %v8671
        %v8673 = vpack.i.bf16 %v8672, %v8672
        %v8674 = vmax.bf16 %v8498, %v8506
        %v8675 = vmax.bf16 %v8674, %v8514
        %v8676 = vmax.bf16 %v8675, %v8522
        %v8677 = vmax.bf16 %v8676, %v8530
        %v8678 = vmax.bf16 %v8677, %v8538
        %v8679 = vmax.bf16 %v8678, %v8546
        %v8680 = vmax.bf16 %v8679, %v8554
        %v8681 = vunpack.i.l.bf16 %v8680
        %v8682 = vunpack.i.h.bf16 %v8680
        %v8683 = vmax.f32 %v8681, %v8682
        %v8684 = vrot.slane %v8683, 4
        %v8685 = vmax.f32 %v8683, %v8684
        %v8686 = vrot.slane %v8685, 2
        %v8687 = vmax.f32 %v8685, %v8686
        %v8688 = vrot.slane %v8687, 1
        %v8689 = vmax.f32 %v8687, %v8688
        %v8690 = vpack.i.bf16 %v8689, %v8689
        %v8699 = vcombine.low %v8571, %v8588
        %v8700 = vcombine.low %v8605, %v8622
        %v8701 = vcombine.low %v8639, %v8656
        %v8702 = vcombine.low %v8673, %v8690
        %v8704 = vunpack.c.l.s4 1966171168
        %v8705 = vunpack.c.0.s8 %v8704
        %v8706 = vlaneseq
        %v8707 = vshrl.u32 %v8706, 7
        %v8708 = vsub.s32 %v8705, %v8707
        %v8709 = vrot.slane %v8699, %v8708
        %v8711 = vunpack.c.l.s4 1966171168
        %v8712 = vunpack.c.0.s8 %v8711
        %v8713 = vlaneseq
        %v8714 = vshrl.u32 %v8713, 7
        %v8715 = vsub.s32 %v8712, %v8714
        %v8716 = vrot.slane %v8700, %v8715
        %v8718 = vunpack.c.l.s4 1966171168
        %v8719 = vunpack.c.0.s8 %v8718
        %v8720 = vlaneseq
        %v8721 = vshrl.u32 %v8720, 7
        %v8722 = vsub.s32 %v8719, %v8721
        %v8723 = vrot.slane %v8701, %v8722
        %v8725 = vunpack.c.l.s4 1966171168
        %v8726 = vunpack.c.0.s8 %v8725
        %v8727 = vlaneseq
        %v8728 = vshrl.u32 %v8727, 7
        %v8729 = vsub.s32 %v8726, %v8728
        %v8730 = vrot.slane %v8702, %v8729
        %v8731 = vcombine.low %v8709, %v8716
        %v8732 = vcombine.low %v8723, %v8730
        %v8734 = vunpack.c.l.s4 1966171168
        %v8735 = vunpack.c.0.s8 %v8734
        %v8736 = vlaneseq
        %v8737 = vshrl.u32 %v8736, 7
        %v8738 = vsub.s32 %v8735, %v8737
        %v8739 = vrot.slane %v8731, %v8738
        %v8741 = vunpack.c.l.s4 1966171168
        %v8742 = vunpack.c.0.s8 %v8741
        %v8743 = vlaneseq
        %v8744 = vshrl.u32 %v8743, 7
        %v8745 = vsub.s32 %v8742, %v8744
        %v8746 = vrot.slane %v8732, %v8745
        %v8747 = vcombine.low %v8739, %v8746
        %vm8749 = vcmask 1040384
        %vm8750 = vsmask.f32 256
        %vm8751 = vmand %vm8749, %vm8750
        %vm8752 = vcmask 1041409
        %vm8753 = vsmask.f32 1280
        %vm8754 = vmand %vm8752, %vm8753
        %vm8755 = vmor %vm8754, %vm8751
        %vm8756 = vcmask 1042434
        %vm8757 = vsmask.f32 2304
        %vm8758 = vmand %vm8756, %vm8757
        %vm8759 = vmor %vm8758, %vm8755
        %vm8760 = vcmask 1043459
        %vm8761 = vsmask.f32 3328
        %vm8762 = vmand %vm8760, %vm8761
        %vm8763 = vmor %vm8762, %vm8759
        %vm8764 = vcmask 1044484
        %vm8765 = vsmask.f32 4352
        %vm8766 = vmand %vm8764, %vm8765
        %vm8767 = vmor %vm8766, %vm8763
        %vm8768 = vcmask 1045509
        %vm8769 = vsmask.f32 5376
        %vm8770 = vmand %vm8768, %vm8769
        %vm8771 = vmor %vm8770, %vm8767
        %vm8772 = vcmask 1046534
        %vm8773 = vsmask.f32 6400
        %vm8774 = vmand %vm8772, %vm8773
        %vm8775 = vmor %vm8774, %vm8771
        %vm8776 = vcmask 1047559
        %vm8777 = vsmask.f32 7424
        %vm8778 = vmand %vm8776, %vm8777
        %vm8779 = vmor %vm8778, %vm8775
        %v8780 = vld [vmem:[%s638] sm:$0xff]
        %v8781 = vsel %vm8779, %v8747, %v8780
        %8782 = vst [vmem:[%s638] sm:$0xff] %v8781
        %p8783 = scmp.lt.s32.totalorder %s32, 1
        %s8784 = scalar_select %p8783, %s32, 1
        %s8785 = smul.addr %s8784, 8
        %s8786 = scalar_lea.vmem %s14, %s8785
        // Predicated region
        $region129: #{tpu_custom_call.1} parent=75 // pred_check
          %p8787 = pneg %p349
        $region130: #{tpu_custom_call.1} parent=75 // pred_check_branch
          %8789 = sbr.rel (%p8787) target = $region132
        $region131: #{tpu_custom_call.1} parent=75 // pred_region
          _
        $region132: #{tpu_custom_call.1} parent=75 // pred_fallthru
          _
      $region76: #{tpu_custom_call.1} parent=5 // pred_fallthru
        _
      %p8790 = scmp.le.s32.totalorder 2, %s27
      // Predicated region
      $region133: #{tpu_custom_call.1} parent=5 // pred_check
        %p8791 = pneg %p8790
      $region134: #{tpu_custom_call.1} parent=5 // pred_check_branch
        %8793 = sbr.rel (%p8791) target = $region136
      $region135: #{tpu_custom_call.1} parent=5 // pred_region
        %s8794 = ssub.s32 %s27, 2
        // Predicated region
        $region137: #{tpu_custom_call.1} parent=135 // pred_check
          %p8795 = pneg %p355
        $region138: #{tpu_custom_call.1} parent=135 // pred_check_branch
          %8797 = sbr.rel (%p8795) target = $region140
        $region139: #{tpu_custom_call.1} parent=135 // pred_region
          %p8798 = scmp.lt.s32.totalorder %s33, 1
          %s8799 = scalar_select %p8798, %s33, 1
          %s8800 = smul.addr %s8799, 8
          %s8801 = scalar_lea.vmem %s14, %s8800
        $region140: #{tpu_custom_call.1} parent=135 // pred_fallthru
          _
      $region136: #{tpu_custom_call.1} parent=5 // pred_fallthru
        _
    $region6: #{tpu_custom_call.1} parent=1 // loop_footer
      %s31 = sadd.s32 1, %s27
    $region7: #{tpu_custom_call.1} parent=1 // loop_footer_branch
      %26 = sbr.rel target = $region3
    $region8: #{tpu_custom_call.1} parent=1 // loop_exit
      _
    %8802 = vsyncpa [#allocation3], 1
    %s8803 = scalar_lea.sflag [#allocation3], 1
    %8804 = vsyncpa %s8803, 1
    %8805 = vsyncpa [#allocation5], 1
    %8806 = vsyncpa [#allocation8], 1
    %8807 = vsyncpa [#allocation11], 1
    %8808 = vsyncpa [#allocation14], 1
    %8809 = vsyncpa [#allocation17], 1
    %8810 = vsyncpa [#allocation20], 1

</llo_original>
